<compile_context>
chip_gen: v7x
topology: tpu7x:2x2x1
jax: 0.10.0
libtpu: 0.0.40
codegen_flags: <defaults>
</compile_context>

<pallas_src>
import math
from functools import partial

import jax
import jax.numpy as jnp
from jax.experimental import pallas as pl
from jax.experimental.pallas import tpu as pltpu


# Use XLU rolls for the +-1 shifted taps only when the spatial dims are
# tile-aligned (lane dim multiple of 128, sublane dim multiple of 8); otherwise
# fall back to static slice + concat, which always lowers.
_ROLL_ALIGNED_TAPS = True


def _reflect_taps_pm1(v, axis, use_roll):
    """(tap at offset -1, tap at offset +1) along `axis` of a (Ct, H, W) slab,
    with 1-pixel reflection padding (PyTorch ReflectionPad2d semantics)."""
    L = v.shape[axis]
    if use_roll:
        # Wrap-around rotation on the XLU (slot is otherwise idle here); the
        # single wrapped row/col is then overwritten with the reflected value.
        r_m = pltpu.roll(v, shift=1, axis=axis)        # v[i-1] (wrapped at i=0)
        r_p = pltpu.roll(v, shift=L - 1, axis=axis)    # v[i+1] (wrapped at i=L-1)
        idx = jax.lax.broadcasted_iota(jnp.int32, v.shape, axis)
        tap_m = jnp.where(idx == 0, r_p, r_m)          # reflect: i=0   -> v[1]
        tap_p = jnp.where(idx == L - 1, r_m, r_p)      # reflect: i=L-1 -> v[L-2]
        return tap_m, tap_p
    # Fallback: static slice + concat (boundary element is the reflection).
    if axis == 1:
        tap_m = jnp.concatenate([v[:, 1:2, :], v[:, :L - 1, :]], axis=1)
        tap_p = jnp.concatenate([v[:, 1:, :], v[:, L - 2:L - 1, :]], axis=1)
    else:
        tap_m = jnp.concatenate([v[:, :, 1:2], v[:, :, :L - 1]], axis=2)
        tap_p = jnp.concatenate([v[:, :, 1:], v[:, :, L - 2:L - 1]], axis=2)
    return tap_m, tap_p


# ---------------------------------------------------------------------------
# Kernel A: fused square attention (DynamicFilter) + H-strip attention.
#   inputs : x (1,Ct,H,W), wsq_g (1,Ct,1,10) [9 taps + global pool of x],
#            w_h (1,Ct,1,3), prm_sq (Ct,1,3), prm_h (Ct,1,3)
#            [prm = inside, lamb_l, lamb_h]
#   outputs: x2 (1,Ct,H,W), xh (1,Ct,H,W), xh_pool (1,Ct,1,1)
# ---------------------------------------------------------------------------
def _square_hstrip_kernel(x_ref, wsqg_ref, wh_ref, psq_ref, ph_ref,
                          x2_ref, xh_ref, xhpool_ref, *, use_roll):
    x = x_ref[0].astype(jnp.float32)                    # (Ct, H, W)

    # per-channel scalars as (Ct,1,1) broadcasts (hoisted out of the tap math)
    psq3 = psq_ref[...]                                 # (Ct, 1, 3)
    ph3 = ph_ref[...]                                   # (Ct, 1, 3)
    in_sq = psq3[:, :, 0:1]
    in1_sq = in_sq + 1.0
    ll_sq = psq3[:, :, 1:2]
    lh1_sq = psq3[:, :, 2:3] + 1.0
    in_h = ph3[:, :, 0:1]
    in1_h = in_h + 1.0
    ll_h = ph3[:, :, 1:2]
    lh1_h = ph3[:, :, 2:3] + 1.0

    wsqg = wsqg_ref[0].astype(jnp.float32)              # (Ct, 1, 10)
    wh = wh_ref[0].astype(jnp.float32)                  # (Ct, 1, 3)
    gap_sq = wsqg[:, :, 9:10]                           # precomputed global mean of x

    # +-1 reflected taps along W (lane axis)
    xw_m, xw_p = _reflect_taps_pm1(x, axis=2, use_roll=use_roll)

    # ---------------- H strip (1x3 taps along W) -- retired first ----------
    acc_h = (xw_m * wh[:, :, 0:1]
             + x * wh[:, :, 1:2]
             + xw_p * wh[:, :, 2:3])
    gap_h = jnp.mean(x, axis=2, keepdims=True)          # (Ct, H, 1) row means
    xh = (acc_h * in1_h - in_h * gap_h) * ll_h + x * lh1_h
    xh_ref[0] = xh.astype(xh_ref.dtype)
    # Global mean of xh feeds the W-strip filter generation (avoids re-reading
    # xh from HBM in the glue).
    xhpool_ref[0] = jnp.mean(jnp.mean(xh, axis=2, keepdims=True),
                             axis=1, keepdims=True)

    # ---------------- square DSA (3x3 taps) ---------------------------------
    acc = None
    for dx, v in ((0, xw_m), (1, x), (2, xw_p)):
        t_up, t_dn = _reflect_taps_pm1(v, axis=1, use_roll=use_roll)
        term = (t_up * wsqg[:, :, dx:dx + 1]            # dy = -1 row of taps
                + v * wsqg[:, :, 3 + dx:4 + dx]         # dy =  0
                + t_dn * wsqg[:, :, 6 + dx:7 + dx])     # dy = +1
        acc = term if acc is None else acc + term
    x2 = (acc * in1_sq - in_sq * gap_sq) * ll_sq + x * lh1_sq
    x2_ref[0] = x2.astype(x2_ref.dtype)


# ---------------------------------------------------------------------------
# Kernel B: fused W-strip attention + cubic gamma/beta combine + x1 + x2.
#   inputs : xh (1,Ct,H,W), x (1,Ct,H,W), x2 (1,Ct,H,W),
#            w_w (1,Ct,1,3), pwgb (Ct,1,5) [inside, lamb_l, lamb_h, gamma, beta]
#   output : out (1,Ct,H,W) = gamma*out_W + beta*x + x2
# ---------------------------------------------------------------------------
def _wstrip_combine_kernel(xh_ref, x_ref, x2_ref, ww_ref, pwgb_ref, out_ref,
                           *, use_roll):
    xh = xh_ref[0].astype(jnp.float32)                  # (Ct, H, W)

    p3 = pwgb_ref[...]                                  # (Ct, 1, 5)
    in_w = p3[:, :, 0:1]
    in1_w = in_w + 1.0
    ll_w = p3[:, :, 1:2]
    lh1_w = p3[:, :, 2:3] + 1.0
    gamma = p3[:, :, 3:4]
    beta = p3[:, :, 4:5]
    ww = ww_ref[0].astype(jnp.float32)                  # (Ct, 1, 3)

    # +-1 reflected taps along H (sublane axis)
    t_up, t_dn = _reflect_taps_pm1(xh, axis=1, use_roll=use_roll)
    acc = (t_up * ww[:, :, 0:1]
           + xh * ww[:, :, 1:2]
           + t_dn * ww[:, :, 2:3])
    gap = jnp.mean(xh, axis=1, keepdims=True)           # (Ct, 1, W) column means
    out_w = (acc * in1_w - in_w * gap) * ll_w + xh * lh1_w

    out_ref[0] = (gamma * out_w
                  + beta * x_ref[0].astype(jnp.float32)
                  + x2_ref[0].astype(jnp.float32)).astype(out_ref.dtype)


# ---------------------------------------------------------------------------
# pallas_call wrappers
# ---------------------------------------------------------------------------
def _vmem_capacity_bytes():
    try:
        cap = getattr(pltpu.get_tpu_info(), "vmem_capacity_bytes", None)
        if cap:
            return int(cap)
    except Exception:
        pass
    return 64 * 1024 * 1024          # conservative default (v7x per-TC VMEM)


def _pick_channel_tile(C, H, W, vmem_budget, slabs=18):
    """Largest divisor of C whose working set (~`slabs` f32 HxW slabs per
    channel: double-buffered pipeline blocks + in-kernel temporaries) fits."""
    slab = H * W * 4
    best = 1
    for d in range(1, C + 1):
        if C % d == 0 and slabs * d * slab <= vmem_budget:
            best = d
    return best


def _call_square_hstrip(x, wsq_g, w_h, prm_sq, prm_h, *, C_t, vmem_limit,
                        use_roll):
    N, C, H, W = x.shape
    T1 = wsq_g.shape[-1]
    grid = (N, C // C_t)
    kern = partial(_square_hstrip_kernel, use_roll=use_roll)
    flops = int(N * C * H * W * 48)
    bytes_accessed = int(4 * N * C * (3 * H * W + T1 + 4) + 4 * C * 6)
    return pl.pallas_call(
        kern,
        out_shape=(
            jax.ShapeDtypeStruct((N, C, H, W), x.dtype),      # x2 (square DSA)
            jax.ShapeDtypeStruct((N, C, H, W), x.dtype),      # xh (H strip)
            jax.ShapeDtypeStruct((N, C, 1, 1), jnp.float32),  # mean(xh)
        ),
        grid_spec=pl.GridSpec(
            grid=grid,
            in_specs=[
                pl.BlockSpec((1, C_t, H, W), lambda n, c: (n, c, 0, 0)),
                pl.BlockSpec((1, C_t, 1, T1), lambda n, c: (n, c, 0, 0)),
                pl.BlockSpec((1, C_t, 1, 3), lambda n, c: (n, c, 0, 0)),
                pl.BlockSpec((C_t, 1, 3), lambda n, c: (c, 0, 0)),
                pl.BlockSpec((C_t, 1, 3), lambda n, c: (c, 0, 0)),
            ],
            out_specs=(
                pl.BlockSpec((1, C_t, H, W), lambda n, c: (n, c, 0, 0)),
                pl.BlockSpec((1, C_t, H, W), lambda n, c: (n, c, 0, 0)),
                pl.BlockSpec((1, C_t, 1, 1), lambda n, c: (n, c, 0, 0)),
            ),
        ),
        compiler_params=pltpu.CompilerParams(
            dimension_semantics=("parallel", "parallel"),
            vmem_limit_bytes=vmem_limit),
        cost_estimate=pl.CostEstimate(flops=flops, transcendentals=0,
                                      bytes_accessed=bytes_accessed),
    )(x, wsq_g, w_h, prm_sq, prm_h)


def _call_wstrip_combine(xh, x, x2, w_w, pwgb, *, C_t, vmem_limit, use_roll):
    N, C, H, W = x.shape
    grid = (N, C // C_t)
    kern = partial(_wstrip_combine_kernel, use_roll=use_roll)
    flops = int(N * C * H * W * 24)
    bytes_accessed = int(4 * N * C * (4 * H * W + 3) + 4 * C * 5)
    return pl.pallas_call(
        kern,
        out_shape=jax.ShapeDtypeStruct((N, C, H, W), x.dtype),
        grid_spec=pl.GridSpec(
            grid=grid,
            in_specs=[
                pl.BlockSpec((1, C_t, H, W), lambda n, c: (n, c, 0, 0)),
                pl.BlockSpec((1, C_t, H, W), lambda n, c: (n, c, 0, 0)),
                pl.BlockSpec((1, C_t, H, W), lambda n, c: (n, c, 0, 0)),
                pl.BlockSpec((1, C_t, 1, 3), lambda n, c: (n, c, 0, 0)),
                pl.BlockSpec((C_t, 1, 5), lambda n, c: (c, 0, 0)),
            ],
            out_specs=pl.BlockSpec((1, C_t, H, W), lambda n, c: (n, c, 0, 0)),
        ),
        compiler_params=pltpu.CompilerParams(
            dimension_semantics=("parallel", "parallel"),
            vmem_limit_bytes=vmem_limit),
        cost_estimate=pl.CostEstimate(flops=flops, transcendentals=0,
                                      bytes_accessed=bytes_accessed),
    )(xh, x, x2, w_w, pwgb)


# ---------------------------------------------------------------------------
# Glue: dynamic-filter weight generation (tiny: operates on pooled 1x1 values)
# ---------------------------------------------------------------------------
def _filter_weights(pooled, conv_w, group, taps, channels, bn=None):
    # pooled: (N, C) -> per-channel tap weights (N, C, taps)
    f = pooled @ conv_w.T                              # 1x1 conv, no bias
    if bn is not None:
        w, b, rm, rv = bn                              # eval-mode BatchNorm
        f = (f - rm) * jax.lax.rsqrt(rv + 1e-5) * w + b
    f = jnp.tanh(f)
    f = f.reshape(-1, group, taps)
    f = jnp.repeat(f, channels // group, axis=1)       # group -> channels
    return f


# ---------------------------------------------------------------------------
# MultiShapeKernel forward (Pallas path)
# ---------------------------------------------------------------------------
def multishape_forward(params, x, *, k=3, dil=1, group=8):
    if k != 3 or dil != 1:
        # TODO(synk): in-kernel reflection taps are specialised to the module
        # defaults (kernel_size=3, dilation=1).
        raise NotImplementedError("Pallas path supports kernel_size=3, dilation=1")
    N, C, H, W = x.shape

    vmem_cap = _vmem_capacity_bytes()
    C_t = _pick_channel_tile(C, H, W, int(vmem_cap * 0.6))
    vmem_limit = max(32 * 1024 * 1024, int(vmem_cap * 0.75))
    use_roll = _ROLL_ALIGNED_TAPS and (W % 128 == 0) and (H % 8 == 0)

    # ----- filter generation (tiny, on pooled 1x1 values; stays in XLA) -----
    pooled_x = jnp.mean(x, axis=(2, 3))                # (N, C) global avg pool
    w_sq = _filter_weights(pooled_x, params["sq_conv_w"], group, k * k, C,
                           bn=(params["sq_bn_w"], params["sq_bn_b"],
                               params["sq_bn_rm"], params["sq_bn_rv"]))
    w_h = _filter_weights(pooled_x, params["h_conv_w"], group, k, C)

    # Pack the (already computed) global pool of x as a 10th column of the
    # square tap weights so kernel A needs no in-kernel global reduction.
    wsq_g = jnp.concatenate(
        [w_sq, pooled_x.astype(w_sq.dtype)[:, :, None]], axis=2)[:, :, None, :]
    w_h4 = w_h[:, :, None, :]                          # (N, C, 1, 3)

    prm_sq = jnp.stack([params["sq_inside"], params["sq_lamb_l"],
                        params["sq_lamb_h"]], axis=1)[:, None, :]   # (C, 1, 3)
    prm_h = jnp.stack([params["h_inside"], params["h_lamb_l"],
                       params["h_lamb_h"]], axis=1)[:, None, :]

    x2, xh, xh_pool = _call_square_hstrip(
        x, wsq_g, w_h4, prm_sq, prm_h,
        C_t=C_t, vmem_limit=vmem_limit, use_roll=use_roll)

    # ----- W-strip filter generation from the fused pooled output -----
    w_w = _filter_weights(xh_pool[:, :, 0, 0], params["w_conv_w"], group, k, C)
    w_w4 = w_w[:, :, None, :]
    pwgb = jnp.stack([params["w_inside"], params["w_lamb_l"],
                      params["w_lamb_h"], params["gamma"],
                      params["beta"]], axis=1)[:, None, :]           # (C, 1, 5)

    out = _call_wstrip_combine(
        xh, x, x2, w_w4, pwgb,
        C_t=C_t, vmem_limit=vmem_limit, use_roll=use_roll)
    return out


# ---------------------------------------------------------------------------
# Pure-JAX reference (same math, no Pallas) for correctness verification.
# ---------------------------------------------------------------------------
def _ref_filter_apply(xpad, w_ch, prm, *, H, W, offsets, center, gap_mode):
    py, px = center
    xid = xpad[:, :, py:py + H, px:px + W].astype(jnp.float32)
    acc = jnp.zeros_like(xid)
    for t, (oy, ox) in enumerate(offsets):
        acc = acc + xpad[:, :, oy:oy + H, ox:ox + W].astype(jnp.float32) \
              * w_ch[:, :, t][:, :, None, None]
    inside = prm[:, 0][None, :, None, None]
    lamb_l = prm[:, 1][None, :, None, None]
    lamb_h = prm[:, 2][None, :, None, None]
    if gap_mode == "global":
        gap = jnp.mean(xid, axis=(2, 3), keepdims=True)
    elif gap_mode == "row":
        gap = jnp.mean(xid, axis=3, keepdims=True)
    else:
        gap = jnp.mean(xid, axis=2, keepdims=True)
    out_low = (acc * (inside + 1.0) - inside * gap) * lamb_l
    out_high = xid * (lamb_h + 1.0)
    return (out_low + out_high).astype(xpad.dtype)


def multishape_forward_ref(params, x, *, k=3, dil=1, group=8):
    N, C, H, W = x.shape
    pad = dil * (k - 1) // 2
    pooled_x = jnp.mean(x, axis=(2, 3))

    prm_sq = jnp.stack([params["sq_inside"], params["sq_lamb_l"],
                        params["sq_lamb_h"]], axis=1)
    prm_h = jnp.stack([params["h_inside"], params["h_lamb_l"],
                       params["h_lamb_h"]], axis=1)
    prm_w = jnp.stack([params["w_inside"], params["w_lamb_l"],
                       params["w_lamb_h"]], axis=1)

    # square attention
    w_sq = _filter_weights(pooled_x, params["sq_conv_w"], group, k * k, C,
                           bn=(params["sq_bn_w"], params["sq_bn_b"],
                               params["sq_bn_rm"], params["sq_bn_rv"]))
    xpad_sq = jnp.pad(x, ((0, 0), (0, 0), (pad, pad), (pad, pad)), mode="reflect")
    offs_sq = [(dy * dil, dx * dil) for dy in range(k) for dx in range(k)]
    x2 = _ref_filter_apply(xpad_sq, w_sq, prm_sq, H=H, W=W, offsets=offs_sq,
                           center=(pad, pad), gap_mode="global")

    # H strip
    w_h = _filter_weights(pooled_x, params["h_conv_w"], group, k, C)
    xpad_h = jnp.pad(x, ((0, 0), (0, 0), (0, 0), (pad, pad)), mode="reflect")
    offs_h = [(0, t * dil) for t in range(k)]
    xh = _ref_filter_apply(xpad_h, w_h, prm_h, H=H, W=W, offsets=offs_h,
                           center=(0, pad), gap_mode="row")

    # W strip
    w_w = _filter_weights(jnp.mean(xh, axis=(2, 3)), params["w_conv_w"], group, k, C)
    xpad_w = jnp.pad(xh, ((0, 0), (0, 0), (pad, pad), (0, 0)), mode="reflect")
    offs_w = [(t * dil, 0) for t in range(k)]
    xw = _ref_filter_apply(xpad_w, w_w, prm_w, H=H, W=W, offsets=offs_w,
                           center=(pad, 0), gap_mode="col")

    x1 = (params["gamma"][None, :, None, None] * xw
          + x * params["beta"][None, :, None, None])
    return x1 + x2


# ---------------------------------------------------------------------------
# Deterministic parameter init (shapes from the PyTorch __init__; values are
# small non-zero randoms so the compute path is non-degenerate — the original
# zero-init of lamb/inside/gamma would make the whole module collapse to 2*x).
# ---------------------------------------------------------------------------
def init_params(key, dim, k, group):
    k2 = k * k
    ks = jax.random.split(key, 16)

    def kaiming(key, out_ch, in_ch):
        # kaiming_normal_(fan_out, relu): std = sqrt(2 / fan_out)
        return jax.random.normal(key, (out_ch, in_ch), jnp.float32) * math.sqrt(2.0 / out_ch)

    return {
        # DynamicFilter (square attention)
        "sq_conv_w": kaiming(ks[0], group * k2, dim),
        "sq_bn_w": 1.0 + 0.1 * jax.random.normal(ks[1], (group * k2,), jnp.float32),
        "sq_bn_b": 0.1 * jax.random.normal(ks[2], (group * k2,), jnp.float32),
        "sq_bn_rm": jnp.zeros((group * k2,), jnp.float32),
        "sq_bn_rv": jnp.ones((group * k2,), jnp.float32),
        "sq_lamb_l": 0.1 * jax.random.normal(ks[3], (dim,), jnp.float32),
        "sq_lamb_h": 0.1 * jax.random.normal(ks[4], (dim,), jnp.float32),
        "sq_inside": 0.1 * jax.random.normal(ks[5], (dim,), jnp.float32),
        # cubic_attention -> H strip
        "h_conv_w": kaiming(ks[6], group * k, dim),
        "h_lamb_l": 0.1 * jax.random.normal(ks[7], (dim,), jnp.float32),
        "h_lamb_h": 0.1 * jax.random.normal(ks[8], (dim,), jnp.float32),
        "h_inside": 0.1 * jax.random.normal(ks[9], (dim,), jnp.float32),
        # cubic_attention -> W strip
        "w_conv_w": kaiming(ks[10], group * k, dim),
        "w_lamb_l": 0.1 * jax.random.normal(ks[11], (dim,), jnp.float32),
        "w_lamb_h": 0.1 * jax.random.normal(ks[12], (dim,), jnp.float32),
        "w_inside": 0.1 * jax.random.normal(ks[13], (dim,), jnp.float32),
        # cubic_attention gamma/beta
        "gamma": 0.1 * jax.random.normal(ks[14], (dim,), jnp.float32),
        "beta": 1.0 + 0.1 * jax.random.normal(ks[15], (dim,), jnp.float32),
    }


if __name__ == "__main__":
    DIM, K, DIL, GROUP = 16, 3, 1, 8
    N, H, W = 2, 16, 16

    key = jax.random.PRNGKey(0)
    k_x, k_p = jax.random.split(key)
    x = jax.random.normal(k_x, (N, DIM, H, W), jnp.float32)
    params = init_params(k_p, DIM, K, GROUP)

    fwd = jax.jit(partial(multishape_forward, k=K, dil=DIL, group=GROUP))
    out = jax.block_until_ready(fwd(params, x))

    ref = jax.block_until_ready(
        multishape_forward_ref(params, x, k=K, dil=DIL, group=GROUP))

    assert out.shape == (N, DIM, H, W)
    assert jnp.allclose(out, ref, rtol=2e-5, atol=2e-5), "Pallas vs JAX ref mismatch"
    print("KERNEL_OK")
</pallas_src>

<mosaic_0001>
module attributes {stable_mosaic.version = 11 : i64} {
  func.func @_square_hstrip_kernel(%arg0: i32, %arg1: i32, %arg2: memref<1x16x16x16xf32, #tpu.memory_space<vmem>>, %arg3: memref<1x16x1x10xf32, #tpu.memory_space<vmem>>, %arg4: memref<1x16x1x3xf32, #tpu.memory_space<vmem>>, %arg5: memref<16x1x3xf32, #tpu.memory_space<vmem>>, %arg6: memref<16x1x3xf32, #tpu.memory_space<vmem>>, %arg7: memref<1x16x16x16xf32, #tpu.memory_space<vmem>>, %arg8: memref<1x16x16x16xf32, #tpu.memory_space<vmem>>, %arg9: memref<1x16x1x1xf32, #tpu.memory_space<vmem>>) attributes {dimension_semantics = [#tpu.dimension_semantics<parallel>, #tpu.dimension_semantics<parallel>], iteration_bounds = array<i64: 2, 1>, scalar_prefetch = 0 : i64, scratch_operands = 0 : i64, tpu.core_type = #tpu.core_type<tc>, window_params = [{transform_indices = @transform_0, window_bounds = array<i64: 1, 16, 16, 16>}, {transform_indices = @transform_1, window_bounds = array<i64: 1, 16, 1, 10>}, {transform_indices = @transform_2, window_bounds = array<i64: 1, 16, 1, 3>}, {transform_indices = @transform_3, window_bounds = array<i64: 16, 1, 3>}, {transform_indices = @transform_4, window_bounds = array<i64: 16, 1, 3>}, {transform_indices = @transform_5, window_bounds = array<i64: 1, 16, 16, 16>}, {transform_indices = @transform_6, window_bounds = array<i64: 1, 16, 16, 16>}, {transform_indices = @transform_7, window_bounds = array<i64: 1, 16, 1, 1>}]} {
    %c0 = arith.constant 0 : index
    %c0_0 = arith.constant 0 : index
    %c0_1 = arith.constant 0 : index
    %c0_2 = arith.constant 0 : index
    %0 = vector.load %arg2[%c0, %c0_0, %c0_1, %c0_2] : memref<1x16x16x16xf32, #tpu.memory_space<vmem>>, vector<1x16x16x16xf32>
    %1 = vector.shape_cast %0 : vector<1x16x16x16xf32> to vector<16x16x16xf32>
    %c0_3 = arith.constant 0 : index
    %c0_4 = arith.constant 0 : index
    %c0_5 = arith.constant 0 : index
    %2 = vector.load %arg5[%c0_3, %c0_4, %c0_5] : memref<16x1x3xf32, #tpu.memory_space<vmem>>, vector<16x1x3xf32>
    %c0_6 = arith.constant 0 : index
    %c0_7 = arith.constant 0 : index
    %c0_8 = arith.constant 0 : index
    %3 = vector.load %arg6[%c0_6, %c0_7, %c0_8] : memref<16x1x3xf32, #tpu.memory_space<vmem>>, vector<16x1x3xf32>
    %4 = vector.extract_strided_slice %2 {offsets = [0, 0, 0], sizes = [16, 1, 1], strides = [1, 1, 1]} : vector<16x1x3xf32> to vector<16x1x1xf32>
    %cst = arith.constant 1.000000e+00 : f32
    %5 = vector.broadcast %cst : f32 to vector<16x1x1xf32>
    %6 = arith.addf %4, %5 : vector<16x1x1xf32>
    %7 = vector.extract_strided_slice %2 {offsets = [0, 0, 1], sizes = [16, 1, 1], strides = [1, 1, 1]} : vector<16x1x3xf32> to vector<16x1x1xf32>
    %8 = vector.extract_strided_slice %2 {offsets = [0, 0, 2], sizes = [16, 1, 1], strides = [1, 1, 1]} : vector<16x1x3xf32> to vector<16x1x1xf32>
    %cst_9 = arith.constant 1.000000e+00 : f32
    %9 = vector.broadcast %cst_9 : f32 to vector<16x1x1xf32>
    %10 = arith.addf %8, %9 : vector<16x1x1xf32>
    %11 = vector.extract_strided_slice %3 {offsets = [0, 0, 0], sizes = [16, 1, 1], strides = [1, 1, 1]} : vector<16x1x3xf32> to vector<16x1x1xf32>
    %cst_10 = arith.constant 1.000000e+00 : f32
    %12 = vector.broadcast %cst_10 : f32 to vector<16x1x1xf32>
    %13 = arith.addf %11, %12 : vector<16x1x1xf32>
    %14 = vector.extract_strided_slice %3 {offsets = [0, 0, 1], sizes = [16, 1, 1], strides = [1, 1, 1]} : vector<16x1x3xf32> to vector<16x1x1xf32>
    %15 = vector.extract_strided_slice %3 {offsets = [0, 0, 2], sizes = [16, 1, 1], strides = [1, 1, 1]} : vector<16x1x3xf32> to vector<16x1x1xf32>
    %cst_11 = arith.constant 1.000000e+00 : f32
    %16 = vector.broadcast %cst_11 : f32 to vector<16x1x1xf32>
    %17 = arith.addf %15, %16 : vector<16x1x1xf32>
    %c0_12 = arith.constant 0 : index
    %c0_13 = arith.constant 0 : index
    %c0_14 = arith.constant 0 : index
    %c0_15 = arith.constant 0 : index
    %18 = vector.load %arg3[%c0_12, %c0_13, %c0_14, %c0_15] : memref<1x16x1x10xf32, #tpu.memory_space<vmem>>, vector<1x16x1x10xf32>
    %19 = vector.shape_cast %18 : vector<1x16x1x10xf32> to vector<16x1x10xf32>
    %c0_16 = arith.constant 0 : index
    %c0_17 = arith.constant 0 : index
    %c0_18 = arith.constant 0 : index
    %c0_19 = arith.constant 0 : index
    %20 = vector.load %arg4[%c0_16, %c0_17, %c0_18, %c0_19] : memref<1x16x1x3xf32, #tpu.memory_space<vmem>>, vector<1x16x1x3xf32>
    %21 = vector.shape_cast %20 : vector<1x16x1x3xf32> to vector<16x1x3xf32>
    %22 = vector.extract_strided_slice %19 {offsets = [0, 0, 9], sizes = [16, 1, 1], strides = [1, 1, 1]} : vector<16x1x10xf32> to vector<16x1x1xf32>
    %23 = vector.extract_strided_slice %1 {offsets = [0, 0, 1], sizes = [16, 16, 1], strides = [1, 1, 1]} : vector<16x16x16xf32> to vector<16x16x1xf32>
    %24 = vector.extract_strided_slice %1 {offsets = [0, 0, 0], sizes = [16, 16, 15], strides = [1, 1, 1]} : vector<16x16x16xf32> to vector<16x16x15xf32>
    %25 = tpu.concatenate %23, %24 in 2 : vector<16x16x1xf32>, vector<16x16x15xf32> -> vector<16x16x16xf32>
    %26 = vector.extract_strided_slice %1 {offsets = [0, 0, 1], sizes = [16, 16, 15], strides = [1, 1, 1]} : vector<16x16x16xf32> to vector<16x16x15xf32>
    %27 = vector.extract_strided_slice %1 {offsets = [0, 0, 14], sizes = [16, 16, 1], strides = [1, 1, 1]} : vector<16x16x16xf32> to vector<16x16x1xf32>
    %28 = tpu.concatenate %26, %27 in 2 : vector<16x16x15xf32>, vector<16x16x1xf32> -> vector<16x16x16xf32>
    %29 = vector.extract_strided_slice %21 {offsets = [0, 0, 0], sizes = [16, 1, 1], strides = [1, 1, 1]} : vector<16x1x3xf32> to vector<16x1x1xf32>
    %30 = vector.broadcast %29 : vector<16x1x1xf32> to vector<16x16x16xf32>
    %31 = arith.mulf %25, %30 : vector<16x16x16xf32>
    %32 = vector.extract_strided_slice %21 {offsets = [0, 0, 1], sizes = [16, 1, 1], strides = [1, 1, 1]} : vector<16x1x3xf32> to vector<16x1x1xf32>
    %33 = vector.broadcast %32 : vector<16x1x1xf32> to vector<16x16x16xf32>
    %34 = arith.mulf %1, %33 : vector<16x16x16xf32>
    %35 = arith.addf %31, %34 : vector<16x16x16xf32>
    %36 = vector.extract_strided_slice %21 {offsets = [0, 0, 2], sizes = [16, 1, 1], strides = [1, 1, 1]} : vector<16x1x3xf32> to vector<16x1x1xf32>
    %37 = vector.broadcast %36 : vector<16x1x1xf32> to vector<16x16x16xf32>
    %38 = arith.mulf %28, %37 : vector<16x16x16xf32>
    %39 = arith.addf %35, %38 : vector<16x16x16xf32>
    %cst_20 = arith.constant dense<0.000000e+00> : vector<16x16xf32>
    %40 = vector.multi_reduction <add>, %1, %cst_20 [2] : vector<16x16x16xf32> to vector<16x16xf32>
    %41 = vector.shape_cast %40 : vector<16x16xf32> to vector<16x16x1xf32>
    %cst_21 = arith.constant 1.600000e+01 : f32
    %42 = vector.broadcast %cst_21 : f32 to vector<16x16x1xf32>
    %43 = arith.divf %41, %42 : vector<16x16x1xf32>
    %44 = vector.broadcast %13 : vector<16x1x1xf32> to vector<16x16x16xf32>
    %45 = arith.mulf %39, %44 : vector<16x16x16xf32>
    %46 = vector.broadcast %11 : vector<16x1x1xf32> to vector<16x16x1xf32>
    %47 = arith.mulf %46, %43 : vector<16x16x1xf32>
    %48 = vector.broadcast %47 : vector<16x16x1xf32> to vector<16x16x16xf32>
    %49 = arith.subf %45, %48 : vector<16x16x16xf32>
    %50 = vector.broadcast %14 : vector<16x1x1xf32> to vector<16x16x16xf32>
    %51 = arith.mulf %49, %50 : vector<16x16x16xf32>
    %52 = vector.broadcast %17 : vector<16x1x1xf32> to vector<16x16x16xf32>
    %53 = arith.mulf %1, %52 : vector<16x16x16xf32>
    %54 = arith.addf %51, %53 : vector<16x16x16xf32>
    %c0_22 = arith.constant 0 : index
    %c0_23 = arith.constant 0 : index
    %c0_24 = arith.constant 0 : index
    %c0_25 = arith.constant 0 : index
    %55 = vector.load %arg8[%c0_22, %c0_23, %c0_24, %c0_25] : memref<1x16x16x16xf32, #tpu.memory_space<vmem>>, vector<1x16x16x16xf32>
    %56 = vector.shape_cast %55 : vector<1x16x16x16xf32> to vector<16x16x16xf32>
    %57 = vector.shape_cast %54 : vector<16x16x16xf32> to vector<1x16x16x16xf32>
    tpu.vector_store %arg8[%c0_22, %c0_23, %c0_24, %c0_25], %57 {strides = array<i32>} : memref<1x16x16x16xf32, #tpu.memory_space<vmem>>, vector<1x16x16x16xf32>,
    %cst_26 = arith.constant dense<0.000000e+00> : vector<16x16xf32>
    %58 = vector.multi_reduction <add>, %54, %cst_26 [2] : vector<16x16x16xf32> to vector<16x16xf32>
    %59 = vector.shape_cast %58 : vector<16x16xf32> to vector<16x16x1xf32>
    %cst_27 = arith.constant 1.600000e+01 : f32
    %60 = vector.broadcast %cst_27 : f32 to vector<16x16x1xf32>
    %61 = arith.divf %59, %60 : vector<16x16x1xf32>
    %cst_28 = arith.constant dense<0.000000e+00> : vector<16x1xf32>
    %62 = vector.multi_reduction <add>, %61, %cst_28 [1] : vector<16x16x1xf32> to vector<16x1xf32>
    %63 = vector.shape_cast %62 : vector<16x1xf32> to vector<16x1x1xf32>
    %cst_29 = arith.constant 1.600000e+01 : f32
    %64 = vector.broadcast %cst_29 : f32 to vector<16x1x1xf32>
    %65 = arith.divf %63, %64 : vector<16x1x1xf32>
    %c0_30 = arith.constant 0 : index
    %c0_31 = arith.constant 0 : index
    %c0_32 = arith.constant 0 : index
    %c0_33 = arith.constant 0 : index
    %66 = vector.load %arg9[%c0_30, %c0_31, %c0_32, %c0_33] : memref<1x16x1x1xf32, #tpu.memory_space<vmem>>, vector<1x16x1x1xf32>
    %67 = vector.shape_cast %66 : vector<1x16x1x1xf32> to vector<16x1x1xf32>
    %68 = vector.shape_cast %65 : vector<16x1x1xf32> to vector<1x16x1x1xf32>
    tpu.vector_store %arg9[%c0_30, %c0_31, %c0_32, %c0_33], %68 {strides = array<i32>} : memref<1x16x1x1xf32, #tpu.memory_space<vmem>>, vector<1x16x1x1xf32>,
    %69 = vector.extract_strided_slice %25 {offsets = [0, 1, 0], sizes = [16, 1, 16], strides = [1, 1, 1]} : vector<16x16x16xf32> to vector<16x1x16xf32>
    %70 = vector.extract_strided_slice %25 {offsets = [0, 0, 0], sizes = [16, 15, 16], strides = [1, 1, 1]} : vector<16x16x16xf32> to vector<16x15x16xf32>
    %71 = tpu.concatenate %69, %70 in 1 : vector<16x1x16xf32>, vector<16x15x16xf32> -> vector<16x16x16xf32>
    %72 = vector.extract_strided_slice %25 {offsets = [0, 1, 0], sizes = [16, 15, 16], strides = [1, 1, 1]} : vector<16x16x16xf32> to vector<16x15x16xf32>
    %73 = vector.extract_strided_slice %25 {offsets = [0, 14, 0], sizes = [16, 1, 16], strides = [1, 1, 1]} : vector<16x16x16xf32> to vector<16x1x16xf32>
    %74 = tpu.concatenate %72, %73 in 1 : vector<16x15x16xf32>, vector<16x1x16xf32> -> vector<16x16x16xf32>
    %75 = vector.extract_strided_slice %19 {offsets = [0, 0, 0], sizes = [16, 1, 1], strides = [1, 1, 1]} : vector<16x1x10xf32> to vector<16x1x1xf32>
    %76 = vector.broadcast %75 : vector<16x1x1xf32> to vector<16x16x16xf32>
    %77 = arith.mulf %71, %76 : vector<16x16x16xf32>
    %78 = vector.extract_strided_slice %19 {offsets = [0, 0, 3], sizes = [16, 1, 1], strides = [1, 1, 1]} : vector<16x1x10xf32> to vector<16x1x1xf32>
    %79 = vector.broadcast %78 : vector<16x1x1xf32> to vector<16x16x16xf32>
    %80 = arith.mulf %25, %79 : vector<16x16x16xf32>
    %81 = arith.addf %77, %80 : vector<16x16x16xf32>
    %82 = vector.extract_strided_slice %19 {offsets = [0, 0, 6], sizes = [16, 1, 1], strides = [1, 1, 1]} : vector<16x1x10xf32> to vector<16x1x1xf32>
    %83 = vector.broadcast %82 : vector<16x1x1xf32> to vector<16x16x16xf32>
    %84 = arith.mulf %74, %83 : vector<16x16x16xf32>
    %85 = arith.addf %81, %84 : vector<16x16x16xf32>
    %86 = vector.extract_strided_slice %1 {offsets = [0, 1, 0], sizes = [16, 1, 16], strides = [1, 1, 1]} : vector<16x16x16xf32> to vector<16x1x16xf32>
    %87 = vector.extract_strided_slice %1 {offsets = [0, 0, 0], sizes = [16, 15, 16], strides = [1, 1, 1]} : vector<16x16x16xf32> to vector<16x15x16xf32>
    %88 = tpu.concatenate %86, %87 in 1 : vector<16x1x16xf32>, vector<16x15x16xf32> -> vector<16x16x16xf32>
    %89 = vector.extract_strided_slice %1 {offsets = [0, 1, 0], sizes = [16, 15, 16], strides = [1, 1, 1]} : vector<16x16x16xf32> to vector<16x15x16xf32>
    %90 = vector.extract_strided_slice %1 {offsets = [0, 14, 0], sizes = [16, 1, 16], strides = [1, 1, 1]} : vector<16x16x16xf32> to vector<16x1x16xf32>
    %91 = tpu.concatenate %89, %90 in 1 : vector<16x15x16xf32>, vector<16x1x16xf32> -> vector<16x16x16xf32>
    %92 = vector.extract_strided_slice %19 {offsets = [0, 0, 1], sizes = [16, 1, 1], strides = [1, 1, 1]} : vector<16x1x10xf32> to vector<16x1x1xf32>
    %93 = vector.broadcast %92 : vector<16x1x1xf32> to vector<16x16x16xf32>
    %94 = arith.mulf %88, %93 : vector<16x16x16xf32>
    %95 = vector.extract_strided_slice %19 {offsets = [0, 0, 4], sizes = [16, 1, 1], strides = [1, 1, 1]} : vector<16x1x10xf32> to vector<16x1x1xf32>
    %96 = vector.broadcast %95 : vector<16x1x1xf32> to vector<16x16x16xf32>
    %97 = arith.mulf %1, %96 : vector<16x16x16xf32>
    %98 = arith.addf %94, %97 : vector<16x16x16xf32>
    %99 = vector.extract_strided_slice %19 {offsets = [0, 0, 7], sizes = [16, 1, 1], strides = [1, 1, 1]} : vector<16x1x10xf32> to vector<16x1x1xf32>
    %100 = vector.broadcast %99 : vector<16x1x1xf32> to vector<16x16x16xf32>
    %101 = arith.mulf %91, %100 : vector<16x16x16xf32>
    %102 = arith.addf %98, %101 : vector<16x16x16xf32>
    %103 = arith.addf %85, %102 : vector<16x16x16xf32>
    %104 = vector.extract_strided_slice %28 {offsets = [0, 1, 0], sizes = [16, 1, 16], strides = [1, 1, 1]} : vector<16x16x16xf32> to vector<16x1x16xf32>
    %105 = vector.extract_strided_slice %28 {offsets = [0, 0, 0], sizes = [16, 15, 16], strides = [1, 1, 1]} : vector<16x16x16xf32> to vector<16x15x16xf32>
    %106 = tpu.concatenate %104, %105 in 1 : vector<16x1x16xf32>, vector<16x15x16xf32> -> vector<16x16x16xf32>
    %107 = vector.extract_strided_slice %28 {offsets = [0, 1, 0], sizes = [16, 15, 16], strides = [1, 1, 1]} : vector<16x16x16xf32> to vector<16x15x16xf32>
    %108 = vector.extract_strided_slice %28 {offsets = [0, 14, 0], sizes = [16, 1, 16], strides = [1, 1, 1]} : vector<16x16x16xf32> to vector<16x1x16xf32>
    %109 = tpu.concatenate %107, %108 in 1 : vector<16x15x16xf32>, vector<16x1x16xf32> -> vector<16x16x16xf32>
    %110 = vector.extract_strided_slice %19 {offsets = [0, 0, 2], sizes = [16, 1, 1], strides = [1, 1, 1]} : vector<16x1x10xf32> to vector<16x1x1xf32>
    %111 = vector.broadcast %110 : vector<16x1x1xf32> to vector<16x16x16xf32>
    %112 = arith.mulf %106, %111 : vector<16x16x16xf32>
    %113 = vector.extract_strided_slice %19 {offsets = [0, 0, 5], sizes = [16, 1, 1], strides = [1, 1, 1]} : vector<16x1x10xf32> to vector<16x1x1xf32>
    %114 = vector.broadcast %113 : vector<16x1x1xf32> to vector<16x16x16xf32>
    %115 = arith.mulf %28, %114 : vector<16x16x16xf32>
    %116 = arith.addf %112, %115 : vector<16x16x16xf32>
    %117 = vector.extract_strided_slice %19 {offsets = [0, 0, 8], sizes = [16, 1, 1], strides = [1, 1, 1]} : vector<16x1x10xf32> to vector<16x1x1xf32>
    %118 = vector.broadcast %117 : vector<16x1x1xf32> to vector<16x16x16xf32>
    %119 = arith.mulf %109, %118 : vector<16x16x16xf32>
    %120 = arith.addf %116, %119 : vector<16x16x16xf32>
    %121 = arith.addf %103, %120 : vector<16x16x16xf32>
    %122 = vector.broadcast %6 : vector<16x1x1xf32> to vector<16x16x16xf32>
    %123 = arith.mulf %121, %122 : vector<16x16x16xf32>
    %124 = arith.mulf %4, %22 : vector<16x1x1xf32>
    %125 = vector.broadcast %124 : vector<16x1x1xf32> to vector<16x16x16xf32>
    %126 = arith.subf %123, %125 : vector<16x16x16xf32>
    %127 = vector.broadcast %7 : vector<16x1x1xf32> to vector<16x16x16xf32>
    %128 = arith.mulf %126, %127 : vector<16x16x16xf32>
    %129 = vector.broadcast %10 : vector<16x1x1xf32> to vector<16x16x16xf32>
    %130 = arith.mulf %1, %129 : vector<16x16x16xf32>
    %131 = arith.addf %128, %130 : vector<16x16x16xf32>
    %c0_34 = arith.constant 0 : index
    %c0_35 = arith.constant 0 : index
    %c0_36 = arith.constant 0 : index
    %c0_37 = arith.constant 0 : index
    %132 = vector.load %arg7[%c0_34, %c0_35, %c0_36, %c0_37] : memref<1x16x16x16xf32, #tpu.memory_space<vmem>>, vector<1x16x16x16xf32>
    %133 = vector.shape_cast %132 : vector<1x16x16x16xf32> to vector<16x16x16xf32>
    %134 = vector.shape_cast %131 : vector<16x16x16xf32> to vector<1x16x16x16xf32>
    tpu.vector_store %arg7[%c0_34, %c0_35, %c0_36, %c0_37], %134 {strides = array<i32>} : memref<1x16x16x16xf32, #tpu.memory_space<vmem>>, vector<1x16x16x16xf32>,
    return
  }
  func.func @transform_0(%arg0: i32, %arg1: i32) -> (i32, i32, i32, i32) {
    %c0_i32 = arith.constant 0 : i32
    %c0_i32_0 = arith.constant 0 : i32
    %c0_i32_1 = arith.constant 0 : i32
    return %arg0, %arg1, %c0_i32, %c0_i32_0 : i32, i32, i32, i32
  }
  func.func @transform_1(%arg0: i32, %arg1: i32) -> (i32, i32, i32, i32) {
    %c0_i32 = arith.constant 0 : i32
    %c0_i32_0 = arith.constant 0 : i32
    %c0_i32_1 = arith.constant 0 : i32
    return %arg0, %arg1, %c0_i32, %c0_i32_0 : i32, i32, i32, i32
  }
  func.func @transform_2(%arg0: i32, %arg1: i32) -> (i32, i32, i32, i32) {
    %c0_i32 = arith.constant 0 : i32
    %c0_i32_0 = arith.constant 0 : i32
    %c0_i32_1 = arith.constant 0 : i32
    return %arg0, %arg1, %c0_i32, %c0_i32_0 : i32, i32, i32, i32
  }
  func.func @transform_3(%arg0: i32, %arg1: i32) -> (i32, i32, i32) {
    %c0_i32 = arith.constant 0 : i32
    %c0_i32_0 = arith.constant 0 : i32
    %c0_i32_1 = arith.constant 0 : i32
    return %arg1, %c0_i32, %c0_i32_0 : i32, i32, i32
  }
  func.func @transform_4(%arg0: i32, %arg1: i32) -> (i32, i32, i32) {
    %c0_i32 = arith.constant 0 : i32
    %c0_i32_0 = arith.constant 0 : i32
    %c0_i32_1 = arith.constant 0 : i32
    return %arg1, %c0_i32, %c0_i32_0 : i32, i32, i32
  }
  func.func @transform_5(%arg0: i32, %arg1: i32) -> (i32, i32, i32, i32) {
    %c0_i32 = arith.constant 0 : i32
    %c0_i32_0 = arith.constant 0 : i32
    %c0_i32_1 = arith.constant 0 : i32
    return %arg0, %arg1, %c0_i32, %c0_i32_0 : i32, i32, i32, i32
  }
  func.func @transform_6(%arg0: i32, %arg1: i32) -> (i32, i32, i32, i32) {
    %c0_i32 = arith.constant 0 : i32
    %c0_i32_0 = arith.constant 0 : i32
    %c0_i32_1 = arith.constant 0 : i32
    return %arg0, %arg1, %c0_i32, %c0_i32_0 : i32, i32, i32, i32
  }
  func.func @transform_7(%arg0: i32, %arg1: i32) -> (i32, i32, i32, i32) {
    %c0_i32 = arith.constant 0 : i32
    %c0_i32_0 = arith.constant 0 : i32
    %c0_i32_1 = arith.constant 0 : i32
    return %arg0, %arg1, %c0_i32, %c0_i32_0 : i32, i32, i32, i32
  }
}

module attributes {stable_mosaic.version = 11 : i64} {
  func.func @_wstrip_combine_kernel(%arg0: i32, %arg1: i32, %arg2: memref<1x16x16x16xf32, #tpu.memory_space<vmem>>, %arg3: memref<1x16x16x16xf32, #tpu.memory_space<vmem>>, %arg4: memref<1x16x16x16xf32, #tpu.memory_space<vmem>>, %arg5: memref<1x16x1x3xf32, #tpu.memory_space<vmem>>, %arg6: memref<16x1x5xf32, #tpu.memory_space<vmem>>, %arg7: memref<1x16x16x16xf32, #tpu.memory_space<vmem>>) attributes {dimension_semantics = [#tpu.dimension_semantics<parallel>, #tpu.dimension_semantics<parallel>], iteration_bounds = array<i64: 2, 1>, scalar_prefetch = 0 : i64, scratch_operands = 0 : i64, tpu.core_type = #tpu.core_type<tc>, window_params = [{transform_indices = @transform_0, window_bounds = array<i64: 1, 16, 16, 16>}, {transform_indices = @transform_1, window_bounds = array<i64: 1, 16, 16, 16>}, {transform_indices = @transform_2, window_bounds = array<i64: 1, 16, 16, 16>}, {transform_indices = @transform_3, window_bounds = array<i64: 1, 16, 1, 3>}, {transform_indices = @transform_4, window_bounds = array<i64: 16, 1, 5>}, {transform_indices = @transform_5, window_bounds = array<i64: 1, 16, 16, 16>}]} {
    %c0 = arith.constant 0 : index
    %c0_0 = arith.constant 0 : index
    %c0_1 = arith.constant 0 : index
    %c0_2 = arith.constant 0 : index
    %0 = vector.load %arg2[%c0, %c0_0, %c0_1, %c0_2] : memref<1x16x16x16xf32, #tpu.memory_space<vmem>>, vector<1x16x16x16xf32>
    %1 = vector.shape_cast %0 : vector<1x16x16x16xf32> to vector<16x16x16xf32>
    %c0_3 = arith.constant 0 : index
    %c0_4 = arith.constant 0 : index
    %c0_5 = arith.constant 0 : index
    %2 = vector.load %arg6[%c0_3, %c0_4, %c0_5] : memref<16x1x5xf32, #tpu.memory_space<vmem>>, vector<16x1x5xf32>
    %3 = vector.extract_strided_slice %2 {offsets = [0, 0, 0], sizes = [16, 1, 1], strides = [1, 1, 1]} : vector<16x1x5xf32> to vector<16x1x1xf32>
    %cst = arith.constant 1.000000e+00 : f32
    %4 = vector.broadcast %cst : f32 to vector<16x1x1xf32>
    %5 = arith.addf %3, %4 : vector<16x1x1xf32>
    %6 = vector.extract_strided_slice %2 {offsets = [0, 0, 1], sizes = [16, 1, 1], strides = [1, 1, 1]} : vector<16x1x5xf32> to vector<16x1x1xf32>
    %7 = vector.extract_strided_slice %2 {offsets = [0, 0, 2], sizes = [16, 1, 1], strides = [1, 1, 1]} : vector<16x1x5xf32> to vector<16x1x1xf32>
    %cst_6 = arith.constant 1.000000e+00 : f32
    %8 = vector.broadcast %cst_6 : f32 to vector<16x1x1xf32>
    %9 = arith.addf %7, %8 : vector<16x1x1xf32>
    %10 = vector.extract_strided_slice %2 {offsets = [0, 0, 3], sizes = [16, 1, 1], strides = [1, 1, 1]} : vector<16x1x5xf32> to vector<16x1x1xf32>
    %11 = vector.extract_strided_slice %2 {offsets = [0, 0, 4], sizes = [16, 1, 1], strides = [1, 1, 1]} : vector<16x1x5xf32> to vector<16x1x1xf32>
    %c0_7 = arith.constant 0 : index
    %c0_8 = arith.constant 0 : index
    %c0_9 = arith.constant 0 : index
    %c0_10 = arith.constant 0 : index
    %12 = vector.load %arg5[%c0_7, %c0_8, %c0_9, %c0_10] : memref<1x16x1x3xf32, #tpu.memory_space<vmem>>, vector<1x16x1x3xf32>
    %13 = vector.shape_cast %12 : vector<1x16x1x3xf32> to vector<16x1x3xf32>
    %14 = vector.extract_strided_slice %1 {offsets = [0, 1, 0], sizes = [16, 1, 16], strides = [1, 1, 1]} : vector<16x16x16xf32> to vector<16x1x16xf32>
    %15 = vector.extract_strided_slice %1 {offsets = [0, 0, 0], sizes = [16, 15, 16], strides = [1, 1, 1]} : vector<16x16x16xf32> to vector<16x15x16xf32>
    %16 = tpu.concatenate %14, %15 in 1 : vector<16x1x16xf32>, vector<16x15x16xf32> -> vector<16x16x16xf32>
    %17 = vector.extract_strided_slice %1 {offsets = [0, 1, 0], sizes = [16, 15, 16], strides = [1, 1, 1]} : vector<16x16x16xf32> to vector<16x15x16xf32>
    %18 = vector.extract_strided_slice %1 {offsets = [0, 14, 0], sizes = [16, 1, 16], strides = [1, 1, 1]} : vector<16x16x16xf32> to vector<16x1x16xf32>
    %19 = tpu.concatenate %17, %18 in 1 : vector<16x15x16xf32>, vector<16x1x16xf32> -> vector<16x16x16xf32>
    %20 = vector.extract_strided_slice %13 {offsets = [0, 0, 0], sizes = [16, 1, 1], strides = [1, 1, 1]} : vector<16x1x3xf32> to vector<16x1x1xf32>
    %21 = vector.broadcast %20 : vector<16x1x1xf32> to vector<16x16x16xf32>
    %22 = arith.mulf %16, %21 : vector<16x16x16xf32>
    %23 = vector.extract_strided_slice %13 {offsets = [0, 0, 1], sizes = [16, 1, 1], strides = [1, 1, 1]} : vector<16x1x3xf32> to vector<16x1x1xf32>
    %24 = vector.broadcast %23 : vector<16x1x1xf32> to vector<16x16x16xf32>
    %25 = arith.mulf %1, %24 : vector<16x16x16xf32>
    %26 = arith.addf %22, %25 : vector<16x16x16xf32>
    %27 = vector.extract_strided_slice %13 {offsets = [0, 0, 2], sizes = [16, 1, 1], strides = [1, 1, 1]} : vector<16x1x3xf32> to vector<16x1x1xf32>
    %28 = vector.broadcast %27 : vector<16x1x1xf32> to vector<16x16x16xf32>
    %29 = arith.mulf %19, %28 : vector<16x16x16xf32>
    %30 = arith.addf %26, %29 : vector<16x16x16xf32>
    %cst_11 = arith.constant dense<0.000000e+00> : vector<16x16xf32>
    %31 = vector.multi_reduction <add>, %1, %cst_11 [1] : vector<16x16x16xf32> to vector<16x16xf32>
    %32 = vector.shape_cast %31 : vector<16x16xf32> to vector<16x1x16xf32>
    %cst_12 = arith.constant 1.600000e+01 : f32
    %33 = vector.broadcast %cst_12 : f32 to vector<16x1x16xf32>
    %34 = arith.divf %32, %33 : vector<16x1x16xf32>
    %35 = vector.broadcast %5 : vector<16x1x1xf32> to vector<16x16x16xf32>
    %36 = arith.mulf %30, %35 : vector<16x16x16xf32>
    %37 = vector.broadcast %3 : vector<16x1x1xf32> to vector<16x1x16xf32>
    %38 = arith.mulf %37, %34 : vector<16x1x16xf32>
    %39 = vector.broadcast %38 : vector<16x1x16xf32> to vector<16x16x16xf32>
    %40 = arith.subf %36, %39 : vector<16x16x16xf32>
    %41 = vector.broadcast %6 : vector<16x1x1xf32> to vector<16x16x16xf32>
    %42 = arith.mulf %40, %41 : vector<16x16x16xf32>
    %43 = vector.broadcast %9 : vector<16x1x1xf32> to vector<16x16x16xf32>
    %44 = arith.mulf %1, %43 : vector<16x16x16xf32>
    %45 = arith.addf %42, %44 : vector<16x16x16xf32>
    %46 = vector.broadcast %10 : vector<16x1x1xf32> to vector<16x16x16xf32>
    %47 = arith.mulf %46, %45 : vector<16x16x16xf32>
    %c0_13 = arith.constant 0 : index
    %c0_14 = arith.constant 0 : index
    %c0_15 = arith.constant 0 : index
    %c0_16 = arith.constant 0 : index
    %48 = vector.load %arg3[%c0_13, %c0_14, %c0_15, %c0_16] : memref<1x16x16x16xf32, #tpu.memory_space<vmem>>, vector<1x16x16x16xf32>
    %49 = vector.shape_cast %48 : vector<1x16x16x16xf32> to vector<16x16x16xf32>
    %50 = vector.broadcast %11 : vector<16x1x1xf32> to vector<16x16x16xf32>
    %51 = arith.mulf %50, %49 : vector<16x16x16xf32>
    %52 = arith.addf %47, %51 : vector<16x16x16xf32>
    %c0_17 = arith.constant 0 : index
    %c0_18 = arith.constant 0 : index
    %c0_19 = arith.constant 0 : index
    %c0_20 = arith.constant 0 : index
    %53 = vector.load %arg4[%c0_17, %c0_18, %c0_19, %c0_20] : memref<1x16x16x16xf32, #tpu.memory_space<vmem>>, vector<1x16x16x16xf32>
    %54 = vector.shape_cast %53 : vector<1x16x16x16xf32> to vector<16x16x16xf32>
    %55 = arith.addf %52, %54 : vector<16x16x16xf32>
    %c0_21 = arith.constant 0 : index
    %c0_22 = arith.constant 0 : index
    %c0_23 = arith.constant 0 : index
    %c0_24 = arith.constant 0 : index
    %56 = vector.load %arg7[%c0_21, %c0_22, %c0_23, %c0_24] : memref<1x16x16x16xf32, #tpu.memory_space<vmem>>, vector<1x16x16x16xf32>
    %57 = vector.shape_cast %56 : vector<1x16x16x16xf32> to vector<16x16x16xf32>
    %58 = vector.shape_cast %55 : vector<16x16x16xf32> to vector<1x16x16x16xf32>
    tpu.vector_store %arg7[%c0_21, %c0_22, %c0_23, %c0_24], %58 {strides = array<i32>} : memref<1x16x16x16xf32, #tpu.memory_space<vmem>>, vector<1x16x16x16xf32>,
    return
  }
  func.func @transform_0(%arg0: i32, %arg1: i32) -> (i32, i32, i32, i32) {
    %c0_i32 = arith.constant 0 : i32
    %c0_i32_0 = arith.constant 0 : i32
    %c0_i32_1 = arith.constant 0 : i32
    return %arg0, %arg1, %c0_i32, %c0_i32_0 : i32, i32, i32, i32
  }
  func.func @transform_1(%arg0: i32, %arg1: i32) -> (i32, i32, i32, i32) {
    %c0_i32 = arith.constant 0 : i32
    %c0_i32_0 = arith.constant 0 : i32
    %c0_i32_1 = arith.constant 0 : i32
    return %arg0, %arg1, %c0_i32, %c0_i32_0 : i32, i32, i32, i32
  }
  func.func @transform_2(%arg0: i32, %arg1: i32) -> (i32, i32, i32, i32) {
    %c0_i32 = arith.constant 0 : i32
    %c0_i32_0 = arith.constant 0 : i32
    %c0_i32_1 = arith.constant 0 : i32
    return %arg0, %arg1, %c0_i32, %c0_i32_0 : i32, i32, i32, i32
  }
  func.func @transform_3(%arg0: i32, %arg1: i32) -> (i32, i32, i32, i32) {
    %c0_i32 = arith.constant 0 : i32
    %c0_i32_0 = arith.constant 0 : i32
    %c0_i32_1 = arith.constant 0 : i32
    return %arg0, %arg1, %c0_i32, %c0_i32_0 : i32, i32, i32, i32
  }
  func.func @transform_4(%arg0: i32, %arg1: i32) -> (i32, i32, i32) {
    %c0_i32 = arith.constant 0 : i32
    %c0_i32_0 = arith.constant 0 : i32
    %c0_i32_1 = arith.constant 0 : i32
    return %arg1, %c0_i32, %c0_i32_0 : i32, i32, i32
  }
  func.func @transform_5(%arg0: i32, %arg1: i32) -> (i32, i32, i32, i32) {
    %c0_i32 = arith.constant 0 : i32
    %c0_i32_0 = arith.constant 0 : i32
    %c0_i32_1 = arith.constant 0 : i32
    return %arg0, %arg1, %c0_i32, %c0_i32_0 : i32, i32, i32, i32
  }
}

</mosaic_0001>

<llo_original>
// kernel: multishape_forward.3
$region0: #{multishape_forward.3}
  #allocation0 [shape = 'u32[]', space=smem, size = 0x4, offset = 0x4, fixed_abs, tag = 'smem constant byte address 0x4 - core index']
  #allocation1 [shape = 'u32[144,128]{1,0:T(1,128)}', space=vmem, size = 0x12000, scoped, tag = 'internal scratch']
  %s0 = inlined_call_operand.vmem [shape: f32[2,16,16,16], index: 0, kind: input, shape index: {}]
  %s1 = inlined_call_operand.vmem [shape: f32[2,16,16,16], index: 1, kind: input, shape index: {}]
  %s2 = inlined_call_operand.vmem [shape: f32[2,16,16,16], index: 2, kind: input, shape index: {}]
  %s3 = inlined_call_operand.vmem [shape: f32[2,16,1,3], index: 3, kind: input, shape index: {}]
  %s4 = inlined_call_operand.vmem [shape: f32[16,1,5], index: 4, kind: input, shape index: {}]
  %s5 = inlined_call_operand.hbm [shape: f32[2,16,16,16], index: 5, kind: output, shape index: {}]
  %s6 = sld [smem:[#allocation0]]
  $region53: #{multishape_forward.3} parent=0
    _
  %s8 = ssub.s32 1, %s6
  %s9 = scalar_select 0, %s8, %s6
  $region1: #{multishape_forward.3} parent=0
    #allocation2 [shape = 'u8[262144]{0}', space=vmem, size = 0x40000, scoped, tag = 'output window, operand 0']
    #allocation3 [shape = 's32[2]{0}', space=sflag, size = 0x8, scoped, tag = 'scoped memory for multishape_forward.3']
    %10 = vsyncpa [#allocation3], 0
    %s11 = scalar_lea.sflag [#allocation3], 1
    %12 = vsyncpa %s11, 0
    loop: start=0, step=1, limit=4
    $region2: #{multishape_forward.3} parent=1 // loop_pre_header
      _
    $region3: #{multishape_forward.3} parent=1 // loop_header
      %s14 = sphi 0, %s18
      %p15 = scmp.ge.s32.totalorder %s14, 4
      %s21 = sphi 0, %s33
      %s22 = sphi 0, %s29
      %s23 = sphi 0, %s21
      %s24 = sphi 0, %s22
      %s25 = sphi 0, %s23
      %s26 = sphi 0, %s24
      %s38 = sphi 0, %s40
      %s41 = sphi 0, %s38
      %s42 = sphi 0, %s41
      %s58 = sphi 0, %s42
      %s66 = sphi 0, %s68
      %s69 = sphi 0, %s66
      %s70 = sphi 0, %s69
      %s86 = sphi 0, %s70
      %s94 = sphi 0, %s96
      %s97 = sphi 0, %s94
      %s98 = sphi 0, %s97
      %s114 = sphi 0, %s98
      %s122 = sphi 0, %s124
      %s125 = sphi 0, %s122
      %s126 = sphi 0, %s125
      %s142 = sphi 0, %s126
      %s148 = sphi 0, %s150
      %s151 = sphi 0, %s148
      %s152 = sphi 0, %s151
      %s168 = sphi 0, %s152
      %s176 = sphi 0, %s178
      %s179 = sphi 0, %s176
      %s180 = sphi 0, %s179
      %s196 = sphi 0, %s180
    $region4: #{multishape_forward.3} parent=1 // loop_header_branch
      %17 = sbr.rel (%p15) target = $region8
    $region5: #{multishape_forward.3} parent=1 // loop_body
      %s19 = ssub.s32 %s14, 1
      %s20 = ssub.s32 %s14, 2
      %s27 = sadd.s32 1, %s22
      %p28 = scmp.ge.s32.totalorder %s27, 1
      %s29 = scalar_select %p28, 0, %s27
      %s30 = sadd.s32 1, %s21
      %s31 = scalar_select %p28, %s30, %s21
      %p32 = scmp.ge.s32.totalorder %s31, 2
      %s33 = scalar_select %p32, 0, %s31
      %s34 = ssub.s32 %s21, %s33
      %s35 = ssub.s32 %s22, %s29
      %s36 = sor.u32 %s34, %s35
      %p37 = scmp.eq.s32.totalorder %s36, 0
      %s39 = sadd.s32 %s38, 1
      %s40 = scalar_select %p37, %s38, %s39
      %p43 = pneg %p37
      %p44 = scmp.eq.s32.totalorder %s14, 1
      %p45 = por %p43, %p44
      %p46 = scmp.ne.s32.totalorder %s38, %s41
      %p47 = scmp.eq.s32.totalorder %s14, 0
      %p48 = por %p46, %p47
      %p49 = scmp.ne.s32.totalorder %s38, %s41
      %p50 = scmp.eq.s32.totalorder %s19, 1
      %p51 = por %p49, %p50
      %p52 = scmp.ne.s32.totalorder %s41, %s42
      %p53 = scmp.eq.s32.totalorder %s19, 0
      %p54 = por %p52, %p53
      %p55 = scmp.ne.s32.totalorder %s41, %s42
      %p56 = scmp.eq.s32.totalorder %s20, 1
      %p57 = por %p55, %p56
      %p59 = scmp.ne.s32.totalorder %s42, %s58
      %p60 = scmp.eq.s32.totalorder %s20, 0
      %p61 = por %p59, %p60
      %s62 = ssub.s32 %s21, %s33
      %s63 = ssub.s32 %s22, %s29
      %s64 = sor.u32 %s62, %s63
      %p65 = scmp.eq.s32.totalorder %s64, 0
      %s67 = sadd.s32 %s66, 1
      %s68 = scalar_select %p65, %s66, %s67
      %p71 = pneg %p65
      %p72 = scmp.eq.s32.totalorder %s14, 1
      %p73 = por %p71, %p72
      %p74 = scmp.ne.s32.totalorder %s66, %s69
      %p75 = scmp.eq.s32.totalorder %s14, 0
      %p76 = por %p74, %p75
      %p77 = scmp.ne.s32.totalorder %s66, %s69
      %p78 = scmp.eq.s32.totalorder %s19, 1
      %p79 = por %p77, %p78
      %p80 = scmp.ne.s32.totalorder %s69, %s70
      %p81 = scmp.eq.s32.totalorder %s19, 0
      %p82 = por %p80, %p81
      %p83 = scmp.ne.s32.totalorder %s69, %s70
      %p84 = scmp.eq.s32.totalorder %s20, 1
      %p85 = por %p83, %p84
      %p87 = scmp.ne.s32.totalorder %s70, %s86
      %p88 = scmp.eq.s32.totalorder %s20, 0
      %p89 = por %p87, %p88
      %s90 = ssub.s32 %s21, %s33
      %s91 = ssub.s32 %s22, %s29
      %s92 = sor.u32 %s90, %s91
      %p93 = scmp.eq.s32.totalorder %s92, 0
      %s95 = sadd.s32 %s94, 1
      %s96 = scalar_select %p93, %s94, %s95
      %p99 = pneg %p93
      %p100 = scmp.eq.s32.totalorder %s14, 1
      %p101 = por %p99, %p100
      %p102 = scmp.ne.s32.totalorder %s94, %s97
      %p103 = scmp.eq.s32.totalorder %s14, 0
      %p104 = por %p102, %p103
      %p105 = scmp.ne.s32.totalorder %s94, %s97
      %p106 = scmp.eq.s32.totalorder %s19, 1
      %p107 = por %p105, %p106
      %p108 = scmp.ne.s32.totalorder %s97, %s98
      %p109 = scmp.eq.s32.totalorder %s19, 0
      %p110 = por %p108, %p109
      %p111 = scmp.ne.s32.totalorder %s97, %s98
      %p112 = scmp.eq.s32.totalorder %s20, 1
      %p113 = por %p111, %p112
      %p115 = scmp.ne.s32.totalorder %s98, %s114
      %p116 = scmp.eq.s32.totalorder %s20, 0
      %p117 = por %p115, %p116
      %s118 = ssub.s32 %s21, %s33
      %s119 = ssub.s32 %s22, %s29
      %s120 = sor.u32 %s118, %s119
      %p121 = scmp.eq.s32.totalorder %s120, 0
      %s123 = sadd.s32 %s122, 1
      %s124 = scalar_select %p121, %s122, %s123
      %p127 = pneg %p121
      %p128 = scmp.eq.s32.totalorder %s14, 1
      %p129 = por %p127, %p128
      %p130 = scmp.ne.s32.totalorder %s122, %s125
      %p131 = scmp.eq.s32.totalorder %s14, 0
      %p132 = por %p130, %p131
      %p133 = scmp.ne.s32.totalorder %s122, %s125
      %p134 = scmp.eq.s32.totalorder %s19, 1
      %p135 = por %p133, %p134
      %p136 = scmp.ne.s32.totalorder %s125, %s126
      %p137 = scmp.eq.s32.totalorder %s19, 0
      %p138 = por %p136, %p137
      %p139 = scmp.ne.s32.totalorder %s125, %s126
      %p140 = scmp.eq.s32.totalorder %s20, 1
      %p141 = por %p139, %p140
      %p143 = scmp.ne.s32.totalorder %s126, %s142
      %p144 = scmp.eq.s32.totalorder %s20, 0
      %p145 = por %p143, %p144
      %s146 = ssub.s32 %s22, %s29
      %p147 = scmp.eq.s32.totalorder %s146, 0
      %s149 = sadd.s32 %s148, 1
      %s150 = scalar_select %p147, %s148, %s149
      %p153 = pneg %p147
      %p154 = scmp.eq.s32.totalorder %s14, 1
      %p155 = por %p153, %p154
      %p156 = scmp.ne.s32.totalorder %s148, %s151
      %p157 = scmp.eq.s32.totalorder %s14, 0
      %p158 = por %p156, %p157
      %p159 = scmp.ne.s32.totalorder %s148, %s151
      %p160 = scmp.eq.s32.totalorder %s19, 1
      %p161 = por %p159, %p160
      %p162 = scmp.ne.s32.totalorder %s151, %s152
      %p163 = scmp.eq.s32.totalorder %s19, 0
      %p164 = por %p162, %p163
      %p165 = scmp.ne.s32.totalorder %s151, %s152
      %p166 = scmp.eq.s32.totalorder %s20, 1
      %p167 = por %p165, %p166
      %p169 = scmp.ne.s32.totalorder %s152, %s168
      %p170 = scmp.eq.s32.totalorder %s20, 0
      %p171 = por %p169, %p170
      %s172 = ssub.s32 %s21, %s33
      %s173 = ssub.s32 %s22, %s29
      %s174 = sor.u32 %s172, %s173
      %p175 = scmp.eq.s32.totalorder %s174, 0
      %s177 = sadd.s32 %s176, 1
      %s178 = scalar_select %p175, %s176, %s177
      %p181 = pneg %p175
      %p182 = scmp.eq.s32.totalorder %s14, 1
      %p183 = por %p181, %p182
      %p184 = scmp.ne.s32.totalorder %s176, %s179
      %p185 = scmp.eq.s32.totalorder %s14, 0
      %p186 = por %p184, %p185
      %p187 = scmp.ne.s32.totalorder %s176, %s179
      %p188 = scmp.eq.s32.totalorder %s19, 1
      %p189 = por %p187, %p188
      %p190 = scmp.ne.s32.totalorder %s179, %s180
      %p191 = scmp.eq.s32.totalorder %s19, 0
      %p192 = por %p190, %p191
      %p193 = scmp.ne.s32.totalorder %s179, %s180
      %p194 = scmp.eq.s32.totalorder %s20, 1
      %p195 = por %p193, %p194
      %p197 = scmp.ne.s32.totalorder %s180, %s196
      %p198 = scmp.eq.s32.totalorder %s20, 0
      %p199 = por %p197, %p198
      %p200 = scmp.le.s32.totalorder 1, %s14
      %p201 = scmp.lt.s32.totalorder %s14, 3
      %p202 = pnand %p200, %p201
      %p203 = pneg %p202
      // Predicated region
      $region9: #{multishape_forward.3} parent=5 // pred_check
        _
      $region10: #{multishape_forward.3} parent=5 // pred_check_branch
        %205 = sbr.rel (%p202) target = $region12
      $region11: #{multishape_forward.3} parent=5 // pred_region
        %s206 = ssub.s32 %s14, 1
        // Predicated region
        $region13: #{multishape_forward.3} parent=11 // pred_check
          %p207 = pneg %p164
        $region14: #{multishape_forward.3} parent=11 // pred_check_branch
          %209 = sbr.rel (%p207) target = $region16
        $region15: #{multishape_forward.3} parent=11 // pred_region
          %s210 = smul.u32 16, %s24
          %p211 = scmp.lt.s32.totalorder %s210, 15
          %s212 = scalar_select %p211, %s210, 15
          %s213 = scalar_lea.vmem %s4, %s212
          %s214 = smul.u32 16, %s24
        $region16: #{multishape_forward.3} parent=11 // pred_fallthru
          _
      $region12: #{multishape_forward.3} parent=5 // pred_fallthru
        _
      %p215 = scmp.lt.s32.totalorder %s14, 2
      // Predicated region
      $region17: #{multishape_forward.3} parent=5 // pred_check
        %p216 = pneg %p215
      $region18: #{multishape_forward.3} parent=5 // pred_check_branch
        %218 = sbr.rel (%p216) target = $region20
      $region19: #{multishape_forward.3} parent=5 // pred_region
        // Predicated region
        $region21: #{multishape_forward.3} parent=19 // pred_check
          %p219 = pneg %p48
        $region22: #{multishape_forward.3} parent=19 // pred_check_branch
          %221 = sbr.rel (%p219) target = $region24
        $region23: #{multishape_forward.3} parent=19 // pred_region
          %s222 = smul.u32 16, %s22
          %p223 = scmp.lt.s32.totalorder %s21, 1
          %s224 = scalar_select %p223, %s21, 1
          %p225 = scmp.lt.s32.totalorder %s222, 15
          %s226 = scalar_select %p225, %s222, 15
          %s227 = smul.addr %s226, 2
          %s228 = smul.addr %s224, 32
          %s229 = sadd.s32 %s227, %s228
          %s230 = smul.addr %s229, 8
          %s231 = scalar_lea.vmem %s0, %s230
          %s232 = smul.u32 16, %s22
        $region24: #{multishape_forward.3} parent=19 // pred_fallthru
          _
        // Predicated region
        $region25: #{multishape_forward.3} parent=19 // pred_check
          %p233 = pneg %p76
        $region26: #{multishape_forward.3} parent=19 // pred_check_branch
          %235 = sbr.rel (%p233) target = $region28
        $region27: #{multishape_forward.3} parent=19 // pred_region
          %s236 = smul.u32 16, %s22
          %p237 = scmp.lt.s32.totalorder %s21, 1
          %s238 = scalar_select %p237, %s21, 1
          %p239 = scmp.lt.s32.totalorder %s236, 15
          %s240 = scalar_select %p239, %s236, 15
          %s241 = smul.addr %s240, 2
          %s242 = smul.addr %s238, 32
          %s243 = sadd.s32 %s241, %s242
          %s244 = smul.addr %s243, 8
          %s245 = scalar_lea.vmem %s1, %s244
          %s246 = smul.u32 16, %s22
        $region28: #{multishape_forward.3} parent=19 // pred_fallthru
          _
        // Predicated region
        $region29: #{multishape_forward.3} parent=19 // pred_check
          %p247 = pneg %p104
        $region30: #{multishape_forward.3} parent=19 // pred_check_branch
          %249 = sbr.rel (%p247) target = $region32
        $region31: #{multishape_forward.3} parent=19 // pred_region
          %s250 = smul.u32 16, %s22
          %p251 = scmp.lt.s32.totalorder %s21, 1
          %s252 = scalar_select %p251, %s21, 1
          %p253 = scmp.lt.s32.totalorder %s250, 15
          %s254 = scalar_select %p253, %s250, 15
          %s255 = smul.addr %s254, 2
          %s256 = smul.addr %s252, 32
          %s257 = sadd.s32 %s255, %s256
          %s258 = smul.addr %s257, 8
          %s259 = scalar_lea.vmem %s2, %s258
          %s260 = smul.u32 16, %s22
        $region32: #{multishape_forward.3} parent=19 // pred_fallthru
          _
        // Predicated region
        $region33: #{multishape_forward.3} parent=19 // pred_check
          %p261 = pneg %p132
        $region34: #{multishape_forward.3} parent=19 // pred_check_branch
          %263 = sbr.rel (%p261) target = $region36
        $region35: #{multishape_forward.3} parent=19 // pred_region
          %s264 = smul.u32 16, %s22
          %p265 = scmp.lt.s32.totalorder %s21, 1
          %s266 = scalar_select %p265, %s21, 1
          %p267 = scmp.lt.s32.totalorder %s264, 15
          %s268 = scalar_select %p267, %s264, 15
          %s269 = smul.addr %s266, 16
          %s270 = sadd.s32 %s268, %s269
          %s271 = scalar_lea.vmem %s3, %s270
          %s272 = smul.u32 16, %s22
        $region36: #{multishape_forward.3} parent=19 // pred_fallthru
          _
      $region20: #{multishape_forward.3} parent=5 // pred_fallthru
        _
      %p273 = scmp.le.s32.totalorder 1, %s14
      %p274 = scmp.lt.s32.totalorder %s14, 3
      %p275 = pnand %p273, %p274
      %p276 = pneg %p275
      // Predicated region
      $region37: #{multishape_forward.3} parent=5 // pred_check
        _
      $region38: #{multishape_forward.3} parent=5 // pred_check_branch
        %278 = sbr.rel (%p275) target = $region40
      $region39: #{multishape_forward.3} parent=5 // pred_region
        %s279 = ssub.s32 %s14, 1
        %s280 = smul.u32 16, %s24
        %p281 = scmp.lt.s32.totalorder %s23, 1
        %s282 = scalar_select %p281, %s23, 1
        %p283 = scmp.lt.s32.totalorder %s280, 15
        %s284 = scalar_select %p283, %s280, 15
        %s285 = smul.addr %s284, 2
        %s286 = smul.addr %s282, 32
        %s287 = sadd.s32 %s285, %s286
        %s288 = smul.addr %s287, 8
        %s289 = scalar_lea.vmem %s0, %s288
        %p290 = pneg %p54
        %p291 = pneg %p51
        %s292 = smul.u32 16, %s24
        %p293 = scmp.lt.s32.totalorder %s23, 1
        %s294 = scalar_select %p293, %s23, 1
        %p295 = scmp.lt.s32.totalorder %s292, 15
        %s296 = scalar_select %p295, %s292, 15
        %s297 = smul.addr %s296, 2
        %s298 = smul.addr %s294, 32
        %s299 = sadd.s32 %s297, %s298
        %s300 = smul.addr %s299, 8
        %s301 = scalar_lea.vmem %s1, %s300
        %p302 = pneg %p82
        %p303 = pneg %p79
        %s304 = smul.u32 16, %s24
        %p305 = scmp.lt.s32.totalorder %s23, 1
        %s306 = scalar_select %p305, %s23, 1
        %p307 = scmp.lt.s32.totalorder %s304, 15
        %s308 = scalar_select %p307, %s304, 15
        %s309 = smul.addr %s308, 2
        %s310 = smul.addr %s306, 32
        %s311 = sadd.s32 %s309, %s310
        %s312 = smul.addr %s311, 8
        %s313 = scalar_lea.vmem %s2, %s312
        %p314 = pneg %p110
        %p315 = pneg %p107
        %s316 = smul.u32 16, %s24
        %p317 = scmp.lt.s32.totalorder %s23, 1
        %s318 = scalar_select %p317, %s23, 1
        %p319 = scmp.lt.s32.totalorder %s316, 15
        %s320 = scalar_select %p319, %s316, 15
        %s321 = smul.addr %s318, 16
        %s322 = sadd.s32 %s320, %s321
        %s323 = scalar_lea.vmem %s3, %s322
        %p324 = pneg %p138
        %p325 = pneg %p135
        %s326 = smul.u32 16, %s24
        %p327 = scmp.lt.s32.totalorder %s326, 15
        %s328 = scalar_select %p327, %s326, 15
        %s329 = scalar_lea.vmem %s4, %s328
        %p330 = pneg %p164
        %p331 = pneg %p161
        %p332 = pneg %p192
        %p333 = pneg %p189
        %s334 = sand.u32 %s179, 1
        %s335 = scalar_lea.sflag [#allocation3], %s334
        %s336 = sand.u32 %s179, 1
        %s337 = smul.addr %s336, 256
        %s338 = scalar_lea.vmem [#allocation2], %s337
        %s339 = smul.u32 16, %s24
        %p340 = scmp.lt.s32.totalorder %s23, 1
        %s341 = scalar_select %p340, %s23, 1
        %p342 = scmp.lt.s32.totalorder %s339, 15
        %s343 = scalar_select %p342, %s339, 15
        %s344 = smul.addr %s343, 2
        %s345 = smul.addr %s341, 32
        %s346 = sadd.s32 %s344, %s345
        %s347 = smul.addr %s346, 8
        %s348 = scalar_lea.vmem %s0, %s347
        %s349 = smul.u32 16, %s24
        %s350 = smul.u32 16, %s24
        %p351 = scmp.lt.s32.totalorder %s23, 1
        %s352 = scalar_select %p351, %s23, 1
        %p353 = scmp.lt.s32.totalorder %s350, 15
        %s354 = scalar_select %p353, %s350, 15
        %s355 = smul.addr %s354, 2
        %s356 = smul.addr %s352, 32
        %s357 = sadd.s32 %s355, %s356
        %s358 = smul.addr %s357, 8
        %s359 = scalar_lea.vmem %s1, %s358
        %s360 = smul.u32 16, %s24
        %s361 = smul.u32 16, %s24
        %p362 = scmp.lt.s32.totalorder %s23, 1
        %s363 = scalar_select %p362, %s23, 1
        %p364 = scmp.lt.s32.totalorder %s361, 15
        %s365 = scalar_select %p364, %s361, 15
        %s366 = smul.addr %s365, 2
        %s367 = smul.addr %s363, 32
        %s368 = sadd.s32 %s366, %s367
        %s369 = smul.addr %s368, 8
        %s370 = scalar_lea.vmem %s2, %s369
        %s371 = smul.u32 16, %s24
        %s372 = smul.u32 16, %s24
        %p373 = scmp.lt.s32.totalorder %s23, 1
        %s374 = scalar_select %p373, %s23, 1
        %p375 = scmp.lt.s32.totalorder %s372, 15
        %s376 = scalar_select %p375, %s372, 15
        %s377 = smul.addr %s374, 16
        %s378 = sadd.s32 %s376, %s377
        %s379 = scalar_lea.vmem %s3, %s378
        %s380 = smul.u32 16, %s24
        %s381 = smul.u32 16, %s24
        %p382 = scmp.lt.s32.totalorder %s381, 15
        %s383 = scalar_select %p382, %s381, 15
        %s384 = scalar_lea.vmem %s4, %s383
        %s385 = smul.u32 16, %s24
        %s386 = smul.u32 16, %s24
        %v387 = vld [vmem:[%s348] sm:$0xff]
        %v388 = vld [vmem:[%s348 + $0x8] sm:$0xff]
        %v389 = vld [vmem:[%s348 + $0x10] sm:$0xff]
        %v390 = vld [vmem:[%s348 + $0x18] sm:$0xff]
        %v391 = vld [vmem:[%s348 + $0x20] sm:$0xff]
        %v392 = vld [vmem:[%s348 + $0x28] sm:$0xff]
        %v393 = vld [vmem:[%s348 + $0x30] sm:$0xff]
        %v394 = vld [vmem:[%s348 + $0x38] sm:$0xff]
        %v395 = vld [vmem:[%s348 + $0x40] sm:$0xff]
        %v396 = vld [vmem:[%s348 + $0x48] sm:$0xff]
        %v397 = vld [vmem:[%s348 + $0x50] sm:$0xff]
        %v398 = vld [vmem:[%s348 + $0x58] sm:$0xff]
        %v399 = vld [vmem:[%s348 + $0x60] sm:$0xff]
        %v400 = vld [vmem:[%s348 + $0x68] sm:$0xff]
        %v401 = vld [vmem:[%s348 + $0x70] sm:$0xff]
        %v402 = vld [vmem:[%s348 + $0x78] sm:$0xff]
        %v403 = vld [vmem:[%s348 + $0x80] sm:$0xff]
        %v404 = vld [vmem:[%s348 + $0x88] sm:$0xff]
        %v405 = vld [vmem:[%s348 + $0x90] sm:$0xff]
        %v406 = vld [vmem:[%s348 + $0x98] sm:$0xff]
        %v407 = vld [vmem:[%s348 + $0xa0] sm:$0xff]
        %v408 = vld [vmem:[%s348 + $0xa8] sm:$0xff]
        %v409 = vld [vmem:[%s348 + $0xb0] sm:$0xff]
        %v410 = vld [vmem:[%s348 + $0xb8] sm:$0xff]
        %v411 = vld [vmem:[%s348 + $0xc0] sm:$0xff]
        %v412 = vld [vmem:[%s348 + $0xc8] sm:$0xff]
        %v413 = vld [vmem:[%s348 + $0xd0] sm:$0xff]
        %v414 = vld [vmem:[%s348 + $0xd8] sm:$0xff]
        %v415 = vld [vmem:[%s348 + $0xe0] sm:$0xff]
        %v416 = vld [vmem:[%s348 + $0xe8] sm:$0xff]
        %v417 = vld [vmem:[%s348 + $0xf0] sm:$0xff]
        %v418 = vld [vmem:[%s348 + $0xf8] sm:$0xff]
        %v419 = vld [vmem:[%s384] sm:$0x1]
        %v420 = vld [vmem:[%s384 + $0x1] sm:$0x1]
        %v421 = vld [vmem:[%s384 + $0x2] sm:$0x1]
        %v422 = vld [vmem:[%s384 + $0x3] sm:$0x1]
        %v423 = vld [vmem:[%s384 + $0x4] sm:$0x1]
        %v424 = vld [vmem:[%s384 + $0x5] sm:$0x1]
        %v425 = vld [vmem:[%s384 + $0x6] sm:$0x1]
        %v426 = vld [vmem:[%s384 + $0x7] sm:$0x1]
        %v427 = vld [vmem:[%s384 + $0x8] sm:$0x1]
        %v428 = vld [vmem:[%s384 + $0x9] sm:$0x1]
        %v429 = vld [vmem:[%s384 + $0xa] sm:$0x1]
        %v430 = vld [vmem:[%s384 + $0xb] sm:$0x1]
        %v431 = vld [vmem:[%s384 + $0xc] sm:$0x1]
        %v432 = vld [vmem:[%s384 + $0xd] sm:$0x1]
        %v433 = vld [vmem:[%s384 + $0xe] sm:$0x1]
        %v434 = vld [vmem:[%s384 + $0xf] sm:$0x1]
        %v435 = vadd.f32 %v419, 1.0
        %v436 = vadd.f32 %v420, 1.0
        %v437 = vadd.f32 %v421, 1.0
        %v438 = vadd.f32 %v422, 1.0
        %v439 = vadd.f32 %v423, 1.0
        %v440 = vadd.f32 %v424, 1.0
        %v441 = vadd.f32 %v425, 1.0
        %v442 = vadd.f32 %v426, 1.0
        %v443 = vadd.f32 %v427, 1.0
        %v444 = vadd.f32 %v428, 1.0
        %v445 = vadd.f32 %v429, 1.0
        %v446 = vadd.f32 %v430, 1.0
        %v447 = vadd.f32 %v431, 1.0
        %v448 = vadd.f32 %v432, 1.0
        %v449 = vadd.f32 %v433, 1.0
        %v450 = vadd.f32 %v434, 1.0
        %v451 = vld [vmem:[%s379] sm:$0x1]
        %v452 = vld [vmem:[%s379 + $0x1] sm:$0x1]
        %v453 = vld [vmem:[%s379 + $0x2] sm:$0x1]
        %v454 = vld [vmem:[%s379 + $0x3] sm:$0x1]
        %v455 = vld [vmem:[%s379 + $0x4] sm:$0x1]
        %v456 = vld [vmem:[%s379 + $0x5] sm:$0x1]
        %v457 = vld [vmem:[%s379 + $0x6] sm:$0x1]
        %v458 = vld [vmem:[%s379 + $0x7] sm:$0x1]
        %v459 = vld [vmem:[%s379 + $0x8] sm:$0x1]
        %v460 = vld [vmem:[%s379 + $0x9] sm:$0x1]
        %v461 = vld [vmem:[%s379 + $0xa] sm:$0x1]
        %v462 = vld [vmem:[%s379 + $0xb] sm:$0x1]
        %v463 = vld [vmem:[%s379 + $0xc] sm:$0x1]
        %v464 = vld [vmem:[%s379 + $0xd] sm:$0x1]
        %v465 = vld [vmem:[%s379 + $0xe] sm:$0x1]
        %v466 = vld [vmem:[%s379 + $0xf] sm:$0x1]
        %v483 = vrot.slane %v387, 1
        %v484 = vrot.slane %v389, 1
        %v485 = vrot.slane %v391, 1
        %v486 = vrot.slane %v393, 1
        %v487 = vrot.slane %v395, 1
        %v488 = vrot.slane %v397, 1
        %v489 = vrot.slane %v399, 1
        %v490 = vrot.slane %v401, 1
        %v491 = vrot.slane %v403, 1
        %v492 = vrot.slane %v405, 1
        %v493 = vrot.slane %v407, 1
        %v494 = vrot.slane %v409, 1
        %v495 = vrot.slane %v411, 1
        %v496 = vrot.slane %v413, 1
        %v497 = vrot.slane %v415, 1
        %v498 = vrot.slane %v417, 1
        %vm531 = vcmask 1040384
        %v532 = vrot.slane %v387, 7
        %v533 = vrot.slane %v388, 7
        %v534 = vsel %vm531, %v532, %v533
        %v535 = vrot.slane %v389, 7
        %v536 = vrot.slane %v390, 7
        %v537 = vsel %vm531, %v535, %v536
        %v538 = vrot.slane %v391, 7
        %v539 = vrot.slane %v392, 7
        %v540 = vsel %vm531, %v538, %v539
        %v541 = vrot.slane %v393, 7
        %v542 = vrot.slane %v394, 7
        %v543 = vsel %vm531, %v541, %v542
        %v544 = vrot.slane %v395, 7
        %v545 = vrot.slane %v396, 7
        %v546 = vsel %vm531, %v544, %v545
        %v547 = vrot.slane %v397, 7
        %v548 = vrot.slane %v398, 7
        %v549 = vsel %vm531, %v547, %v548
        %v550 = vrot.slane %v399, 7
        %v551 = vrot.slane %v400, 7
        %v552 = vsel %vm531, %v550, %v551
        %v553 = vrot.slane %v401, 7
        %v554 = vrot.slane %v402, 7
        %v555 = vsel %vm531, %v553, %v554
        %v556 = vrot.slane %v403, 7
        %v557 = vrot.slane %v404, 7
        %v558 = vsel %vm531, %v556, %v557
        %v559 = vrot.slane %v405, 7
        %v560 = vrot.slane %v406, 7
        %v561 = vsel %vm531, %v559, %v560
        %v562 = vrot.slane %v407, 7
        %v563 = vrot.slane %v408, 7
        %v564 = vsel %vm531, %v562, %v563
        %v565 = vrot.slane %v409, 7
        %v566 = vrot.slane %v410, 7
        %v567 = vsel %vm531, %v565, %v566
        %v568 = vrot.slane %v411, 7
        %v569 = vrot.slane %v412, 7
        %v570 = vsel %vm531, %v568, %v569
        %v571 = vrot.slane %v413, 7
        %v572 = vrot.slane %v414, 7
        %v573 = vsel %vm531, %v571, %v572
        %v574 = vrot.slane %v415, 7
        %v575 = vrot.slane %v416, 7
        %v576 = vsel %vm531, %v574, %v575
        %v577 = vrot.slane %v417, 7
        %v578 = vrot.slane %v418, 7
        %v579 = vsel %vm531, %v577, %v578
        %v612 = vsel %vm531, %v483, %v532
        %v613 = vsel %vm531, %v484, %v535
        %v614 = vsel %vm531, %v485, %v538
        %v615 = vsel %vm531, %v486, %v541
        %v616 = vsel %vm531, %v487, %v544
        %v617 = vsel %vm531, %v488, %v547
        %v618 = vsel %vm531, %v489, %v550
        %v619 = vsel %vm531, %v490, %v553
        %v620 = vsel %vm531, %v491, %v556
        %v621 = vsel %vm531, %v492, %v559
        %v622 = vsel %vm531, %v493, %v562
        %v623 = vsel %vm531, %v494, %v565
        %v624 = vsel %vm531, %v495, %v568
        %v625 = vsel %vm531, %v496, %v571
        %v626 = vsel %vm531, %v497, %v574
        %v627 = vsel %vm531, %v498, %v577
        %vm628 = vcmask 1046528
        %v629 = vrot.slane %v388, 1
        %v630 = vsel %vm628, %v483, %v629
        %v631 = vrot.slane %v390, 1
        %v632 = vsel %vm628, %v484, %v631
        %v633 = vrot.slane %v392, 1
        %v634 = vsel %vm628, %v485, %v633
        %v635 = vrot.slane %v394, 1
        %v636 = vsel %vm628, %v486, %v635
        %v637 = vrot.slane %v396, 1
        %v638 = vsel %vm628, %v487, %v637
        %v639 = vrot.slane %v398, 1
        %v640 = vsel %vm628, %v488, %v639
        %v641 = vrot.slane %v400, 1
        %v642 = vsel %vm628, %v489, %v641
        %v643 = vrot.slane %v402, 1
        %v644 = vsel %vm628, %v490, %v643
        %v645 = vrot.slane %v404, 1
        %v646 = vsel %vm628, %v491, %v645
        %v647 = vrot.slane %v406, 1
        %v648 = vsel %vm628, %v492, %v647
        %v649 = vrot.slane %v408, 1
        %v650 = vsel %vm628, %v493, %v649
        %v651 = vrot.slane %v410, 1
        %v652 = vsel %vm628, %v494, %v651
        %v653 = vrot.slane %v412, 1
        %v654 = vsel %vm628, %v495, %v653
        %v655 = vrot.slane %v414, 1
        %v656 = vsel %vm628, %v496, %v655
        %v657 = vrot.slane %v416, 1
        %v658 = vsel %vm628, %v497, %v657
        %v659 = vrot.slane %v418, 1
        %v660 = vsel %vm628, %v498, %v659
        %v709 = vsel %vm628, %v629, %v533
        %v710 = vsel %vm628, %v631, %v536
        %v711 = vsel %vm628, %v633, %v539
        %v712 = vsel %vm628, %v635, %v542
        %v713 = vsel %vm628, %v637, %v545
        %v714 = vsel %vm628, %v639, %v548
        %v715 = vsel %vm628, %v641, %v551
        %v716 = vsel %vm628, %v643, %v554
        %v717 = vsel %vm628, %v645, %v557
        %v718 = vsel %vm628, %v647, %v560
        %v719 = vsel %vm628, %v649, %v563
        %v720 = vsel %vm628, %v651, %v566
        %v721 = vsel %vm628, %v653, %v569
        %v722 = vsel %vm628, %v655, %v572
        %v723 = vsel %vm628, %v657, %v575
        %v724 = vsel %vm628, %v659, %v578
        %v741 = vlaneseq
        %v742 = vshrl.u32 %v741, 7
        %v743 = vsub.s32 0, %v742
        %v744 = vrot.slane %v451, %v743
        %v745 = vlaneseq
        %v746 = vshrl.u32 %v745, 7
        %v747 = vsub.s32 0, %v746
        %v748 = vrot.slane %v452, %v747
        %v749 = vlaneseq
        %v750 = vshrl.u32 %v749, 7
        %v751 = vsub.s32 0, %v750
        %v752 = vrot.slane %v453, %v751
        %v753 = vlaneseq
        %v754 = vshrl.u32 %v753, 7
        %v755 = vsub.s32 0, %v754
        %v756 = vrot.slane %v454, %v755
        %v757 = vlaneseq
        %v758 = vshrl.u32 %v757, 7
        %v759 = vsub.s32 0, %v758
        %v760 = vrot.slane %v455, %v759
        %v761 = vlaneseq
        %v762 = vshrl.u32 %v761, 7
        %v763 = vsub.s32 0, %v762
        %v764 = vrot.slane %v456, %v763
        %v765 = vlaneseq
        %v766 = vshrl.u32 %v765, 7
        %v767 = vsub.s32 0, %v766
        %v768 = vrot.slane %v457, %v767
        %v769 = vlaneseq
        %v770 = vshrl.u32 %v769, 7
        %v771 = vsub.s32 0, %v770
        %v772 = vrot.slane %v458, %v771
        %v773 = vlaneseq
        %v774 = vshrl.u32 %v773, 7
        %v775 = vsub.s32 0, %v774
        %v776 = vrot.slane %v459, %v775
        %v777 = vlaneseq
        %v778 = vshrl.u32 %v777, 7
        %v779 = vsub.s32 0, %v778
        %v780 = vrot.slane %v460, %v779
        %v781 = vlaneseq
        %v782 = vshrl.u32 %v781, 7
        %v783 = vsub.s32 0, %v782
        %v784 = vrot.slane %v461, %v783
        %v785 = vlaneseq
        %v786 = vshrl.u32 %v785, 7
        %v787 = vsub.s32 0, %v786
        %v788 = vrot.slane %v462, %v787
        %v789 = vlaneseq
        %v790 = vshrl.u32 %v789, 7
        %v791 = vsub.s32 0, %v790
        %v792 = vrot.slane %v463, %v791
        %v793 = vlaneseq
        %v794 = vshrl.u32 %v793, 7
        %v795 = vsub.s32 0, %v794
        %v796 = vrot.slane %v464, %v795
        %v797 = vlaneseq
        %v798 = vshrl.u32 %v797, 7
        %v799 = vsub.s32 0, %v798
        %v800 = vrot.slane %v465, %v799
        %v801 = vlaneseq
        %v802 = vshrl.u32 %v801, 7
        %v803 = vsub.s32 0, %v802
        %v804 = vrot.slane %v466, %v803
        %805 = vset.pattern.permute.xlu0 0
        %806 = vperm.xlu0 %805, %v744
        %v807 = vpop.permute.xlu0 %806
        %809 = vset.pattern.permute.xlu0 0
        %810 = vperm.xlu0 %809, %v748
        %v811 = vpop.permute.xlu0 %810
        %813 = vset.pattern.permute.xlu0 0
        %814 = vperm.xlu0 %813, %v752
        %v815 = vpop.permute.xlu0 %814
        %817 = vset.pattern.permute.xlu0 0
        %818 = vperm.xlu0 %817, %v756
        %v819 = vpop.permute.xlu0 %818
        %821 = vset.pattern.permute.xlu0 0
        %822 = vperm.xlu0 %821, %v760
        %v823 = vpop.permute.xlu0 %822
        %825 = vset.pattern.permute.xlu0 0
        %826 = vperm.xlu0 %825, %v764
        %v827 = vpop.permute.xlu0 %826
        %829 = vset.pattern.permute.xlu0 0
        %830 = vperm.xlu0 %829, %v768
        %v831 = vpop.permute.xlu0 %830
        %833 = vset.pattern.permute.xlu0 0
        %834 = vperm.xlu0 %833, %v772
        %v835 = vpop.permute.xlu0 %834
        %837 = vset.pattern.permute.xlu0 0
        %838 = vperm.xlu0 %837, %v776
        %v839 = vpop.permute.xlu0 %838
        %841 = vset.pattern.permute.xlu0 0
        %842 = vperm.xlu0 %841, %v780
        %v843 = vpop.permute.xlu0 %842
        %845 = vset.pattern.permute.xlu0 0
        %846 = vperm.xlu0 %845, %v784
        %v847 = vpop.permute.xlu0 %846
        %849 = vset.pattern.permute.xlu0 0
        %850 = vperm.xlu0 %849, %v788
        %v851 = vpop.permute.xlu0 %850
        %853 = vset.pattern.permute.xlu0 0
        %854 = vperm.xlu0 %853, %v792
        %v855 = vpop.permute.xlu0 %854
        %857 = vset.pattern.permute.xlu0 0
        %858 = vperm.xlu0 %857, %v796
        %v859 = vpop.permute.xlu0 %858
        %861 = vset.pattern.permute.xlu0 0
        %862 = vperm.xlu0 %861, %v800
        %v863 = vpop.permute.xlu0 %862
        %865 = vset.pattern.permute.xlu0 0
        %866 = vperm.xlu0 %865, %v804
        %v867 = vpop.permute.xlu0 %866
        %v869 = vmul.f32 %v612, %v807
        %v870 = vmul.f32 %v534, %v807
        %v871 = vmul.f32 %v613, %v811
        %v872 = vmul.f32 %v537, %v811
        %v873 = vmul.f32 %v614, %v815
        %v874 = vmul.f32 %v540, %v815
        %v875 = vmul.f32 %v615, %v819
        %v876 = vmul.f32 %v543, %v819
        %v877 = vmul.f32 %v616, %v823
        %v878 = vmul.f32 %v546, %v823
        %v879 = vmul.f32 %v617, %v827
        %v880 = vmul.f32 %v549, %v827
        %v881 = vmul.f32 %v618, %v831
        %v882 = vmul.f32 %v552, %v831
        %v883 = vmul.f32 %v619, %v835
        %v884 = vmul.f32 %v555, %v835
        %v885 = vmul.f32 %v620, %v839
        %v886 = vmul.f32 %v558, %v839
        %v887 = vmul.f32 %v621, %v843
        %v888 = vmul.f32 %v561, %v843
        %v889 = vmul.f32 %v622, %v847
        %v890 = vmul.f32 %v564, %v847
        %v891 = vmul.f32 %v623, %v851
        %v892 = vmul.f32 %v567, %v851
        %v893 = vmul.f32 %v624, %v855
        %v894 = vmul.f32 %v570, %v855
        %v895 = vmul.f32 %v625, %v859
        %v896 = vmul.f32 %v573, %v859
        %v897 = vmul.f32 %v626, %v863
        %v898 = vmul.f32 %v576, %v863
        %v899 = vmul.f32 %v627, %v867
        %v900 = vmul.f32 %v579, %v867
        %901 = vset.pattern.permute.xlu0 1
        %902 = vperm.xlu0 %901, %v744
        %v903 = vpop.permute.xlu0 %902
        %905 = vset.pattern.permute.xlu0 1
        %906 = vperm.xlu0 %905, %v748
        %v907 = vpop.permute.xlu0 %906
        %909 = vset.pattern.permute.xlu0 1
        %910 = vperm.xlu0 %909, %v752
        %v911 = vpop.permute.xlu0 %910
        %913 = vset.pattern.permute.xlu0 1
        %914 = vperm.xlu0 %913, %v756
        %v915 = vpop.permute.xlu0 %914
        %917 = vset.pattern.permute.xlu0 1
        %918 = vperm.xlu0 %917, %v760
        %v919 = vpop.permute.xlu0 %918
        %921 = vset.pattern.permute.xlu0 1
        %922 = vperm.xlu0 %921, %v764
        %v923 = vpop.permute.xlu0 %922
        %925 = vset.pattern.permute.xlu0 1
        %926 = vperm.xlu0 %925, %v768
        %v927 = vpop.permute.xlu0 %926
        %929 = vset.pattern.permute.xlu0 1
        %930 = vperm.xlu0 %929, %v772
        %v931 = vpop.permute.xlu0 %930
        %933 = vset.pattern.permute.xlu0 1
        %934 = vperm.xlu0 %933, %v776
        %v935 = vpop.permute.xlu0 %934
        %937 = vset.pattern.permute.xlu0 1
        %938 = vperm.xlu0 %937, %v780
        %v939 = vpop.permute.xlu0 %938
        %941 = vset.pattern.permute.xlu0 1
        %942 = vperm.xlu0 %941, %v784
        %v943 = vpop.permute.xlu0 %942
        %945 = vset.pattern.permute.xlu0 1
        %946 = vperm.xlu0 %945, %v788
        %v947 = vpop.permute.xlu0 %946
        %949 = vset.pattern.permute.xlu0 1
        %950 = vperm.xlu0 %949, %v792
        %v951 = vpop.permute.xlu0 %950
        %953 = vset.pattern.permute.xlu0 1
        %954 = vperm.xlu0 %953, %v796
        %v955 = vpop.permute.xlu0 %954
        %957 = vset.pattern.permute.xlu0 1
        %958 = vperm.xlu0 %957, %v800
        %v959 = vpop.permute.xlu0 %958
        %961 = vset.pattern.permute.xlu0 1
        %962 = vperm.xlu0 %961, %v804
        %v963 = vpop.permute.xlu0 %962
        %v965 = vmul.f32 %v387, %v903
        %v966 = vmul.f32 %v388, %v903
        %v967 = vmul.f32 %v389, %v907
        %v968 = vmul.f32 %v390, %v907
        %v969 = vmul.f32 %v391, %v911
        %v970 = vmul.f32 %v392, %v911
        %v971 = vmul.f32 %v393, %v915
        %v972 = vmul.f32 %v394, %v915
        %v973 = vmul.f32 %v395, %v919
        %v974 = vmul.f32 %v396, %v919
        %v975 = vmul.f32 %v397, %v923
        %v976 = vmul.f32 %v398, %v923
        %v977 = vmul.f32 %v399, %v927
        %v978 = vmul.f32 %v400, %v927
        %v979 = vmul.f32 %v401, %v931
        %v980 = vmul.f32 %v402, %v931
        %v981 = vmul.f32 %v403, %v935
        %v982 = vmul.f32 %v404, %v935
        %v983 = vmul.f32 %v405, %v939
        %v984 = vmul.f32 %v406, %v939
        %v985 = vmul.f32 %v407, %v943
        %v986 = vmul.f32 %v408, %v943
        %v987 = vmul.f32 %v409, %v947
        %v988 = vmul.f32 %v410, %v947
        %v989 = vmul.f32 %v411, %v951
        %v990 = vmul.f32 %v412, %v951
        %v991 = vmul.f32 %v413, %v955
        %v992 = vmul.f32 %v414, %v955
        %v993 = vmul.f32 %v415, %v959
        %v994 = vmul.f32 %v416, %v959
        %v995 = vmul.f32 %v417, %v963
        %v996 = vmul.f32 %v418, %v963
        %v997 = vadd.f32 %v869, %v965
        %v998 = vadd.f32 %v870, %v966
        %v999 = vadd.f32 %v871, %v967
        %v1000 = vadd.f32 %v872, %v968
        %v1001 = vadd.f32 %v873, %v969
        %v1002 = vadd.f32 %v874, %v970
        %v1003 = vadd.f32 %v875, %v971
        %v1004 = vadd.f32 %v876, %v972
        %v1005 = vadd.f32 %v877, %v973
        %v1006 = vadd.f32 %v878, %v974
        %v1007 = vadd.f32 %v879, %v975
        %v1008 = vadd.f32 %v880, %v976
        %v1009 = vadd.f32 %v881, %v977
        %v1010 = vadd.f32 %v882, %v978
        %v1011 = vadd.f32 %v883, %v979
        %v1012 = vadd.f32 %v884, %v980
        %v1013 = vadd.f32 %v885, %v981
        %v1014 = vadd.f32 %v886, %v982
        %v1015 = vadd.f32 %v887, %v983
        %v1016 = vadd.f32 %v888, %v984
        %v1017 = vadd.f32 %v889, %v985
        %v1018 = vadd.f32 %v890, %v986
        %v1019 = vadd.f32 %v891, %v987
        %v1020 = vadd.f32 %v892, %v988
        %v1021 = vadd.f32 %v893, %v989
        %v1022 = vadd.f32 %v894, %v990
        %v1023 = vadd.f32 %v895, %v991
        %v1024 = vadd.f32 %v896, %v992
        %v1025 = vadd.f32 %v897, %v993
        %v1026 = vadd.f32 %v898, %v994
        %v1027 = vadd.f32 %v899, %v995
        %v1028 = vadd.f32 %v900, %v996
        %1029 = vset.pattern.permute.xlu0 2
        %1030 = vperm.xlu0 %1029, %v744
        %v1031 = vpop.permute.xlu0 %1030
        %1033 = vset.pattern.permute.xlu0 2
        %1034 = vperm.xlu0 %1033, %v748
        %v1035 = vpop.permute.xlu0 %1034
        %1037 = vset.pattern.permute.xlu0 2
        %1038 = vperm.xlu0 %1037, %v752
        %v1039 = vpop.permute.xlu0 %1038
        %1041 = vset.pattern.permute.xlu0 2
        %1042 = vperm.xlu0 %1041, %v756
        %v1043 = vpop.permute.xlu0 %1042
        %1045 = vset.pattern.permute.xlu0 2
        %1046 = vperm.xlu0 %1045, %v760
        %v1047 = vpop.permute.xlu0 %1046
        %1049 = vset.pattern.permute.xlu0 2
        %1050 = vperm.xlu0 %1049, %v764
        %v1051 = vpop.permute.xlu0 %1050
        %1053 = vset.pattern.permute.xlu0 2
        %1054 = vperm.xlu0 %1053, %v768
        %v1055 = vpop.permute.xlu0 %1054
        %1057 = vset.pattern.permute.xlu0 2
        %1058 = vperm.xlu0 %1057, %v772
        %v1059 = vpop.permute.xlu0 %1058
        %1061 = vset.pattern.permute.xlu0 2
        %1062 = vperm.xlu0 %1061, %v776
        %v1063 = vpop.permute.xlu0 %1062
        %1065 = vset.pattern.permute.xlu0 2
        %1066 = vperm.xlu0 %1065, %v780
        %v1067 = vpop.permute.xlu0 %1066
        %1069 = vset.pattern.permute.xlu0 2
        %1070 = vperm.xlu0 %1069, %v784
        %v1071 = vpop.permute.xlu0 %1070
        %1073 = vset.pattern.permute.xlu0 2
        %1074 = vperm.xlu0 %1073, %v788
        %v1075 = vpop.permute.xlu0 %1074
        %1077 = vset.pattern.permute.xlu0 2
        %1078 = vperm.xlu0 %1077, %v792
        %v1079 = vpop.permute.xlu0 %1078
        %1081 = vset.pattern.permute.xlu0 2
        %1082 = vperm.xlu0 %1081, %v796
        %v1083 = vpop.permute.xlu0 %1082
        %1085 = vset.pattern.permute.xlu0 2
        %1086 = vperm.xlu0 %1085, %v800
        %v1087 = vpop.permute.xlu0 %1086
        %1089 = vset.pattern.permute.xlu0 2
        %1090 = vperm.xlu0 %1089, %v804
        %v1091 = vpop.permute.xlu0 %1090
        %v1093 = vmul.f32 %v630, %v1031
        %v1094 = vmul.f32 %v709, %v1031
        %v1095 = vmul.f32 %v632, %v1035
        %v1096 = vmul.f32 %v710, %v1035
        %v1097 = vmul.f32 %v634, %v1039
        %v1098 = vmul.f32 %v711, %v1039
        %v1099 = vmul.f32 %v636, %v1043
        %v1100 = vmul.f32 %v712, %v1043
        %v1101 = vmul.f32 %v638, %v1047
        %v1102 = vmul.f32 %v713, %v1047
        %v1103 = vmul.f32 %v640, %v1051
        %v1104 = vmul.f32 %v714, %v1051
        %v1105 = vmul.f32 %v642, %v1055
        %v1106 = vmul.f32 %v715, %v1055
        %v1107 = vmul.f32 %v644, %v1059
        %v1108 = vmul.f32 %v716, %v1059
        %v1109 = vmul.f32 %v646, %v1063
        %v1110 = vmul.f32 %v717, %v1063
        %v1111 = vmul.f32 %v648, %v1067
        %v1112 = vmul.f32 %v718, %v1067
        %v1113 = vmul.f32 %v650, %v1071
        %v1114 = vmul.f32 %v719, %v1071
        %v1115 = vmul.f32 %v652, %v1075
        %v1116 = vmul.f32 %v720, %v1075
        %v1117 = vmul.f32 %v654, %v1079
        %v1118 = vmul.f32 %v721, %v1079
        %v1119 = vmul.f32 %v656, %v1083
        %v1120 = vmul.f32 %v722, %v1083
        %v1121 = vmul.f32 %v658, %v1087
        %v1122 = vmul.f32 %v723, %v1087
        %v1123 = vmul.f32 %v660, %v1091
        %v1124 = vmul.f32 %v724, %v1091
        %v1125 = vadd.f32 %v997, %v1093
        %v1126 = vadd.f32 %v998, %v1094
        %v1127 = vadd.f32 %v999, %v1095
        %v1128 = vadd.f32 %v1000, %v1096
        %v1129 = vadd.f32 %v1001, %v1097
        %v1130 = vadd.f32 %v1002, %v1098
        %v1131 = vadd.f32 %v1003, %v1099
        %v1132 = vadd.f32 %v1004, %v1100
        %v1133 = vadd.f32 %v1005, %v1101
        %v1134 = vadd.f32 %v1006, %v1102
        %v1135 = vadd.f32 %v1007, %v1103
        %v1136 = vadd.f32 %v1008, %v1104
        %v1137 = vadd.f32 %v1009, %v1105
        %v1138 = vadd.f32 %v1010, %v1106
        %v1139 = vadd.f32 %v1011, %v1107
        %v1140 = vadd.f32 %v1012, %v1108
        %v1141 = vadd.f32 %v1013, %v1109
        %v1142 = vadd.f32 %v1014, %v1110
        %v1143 = vadd.f32 %v1015, %v1111
        %v1144 = vadd.f32 %v1016, %v1112
        %v1145 = vadd.f32 %v1017, %v1113
        %v1146 = vadd.f32 %v1018, %v1114
        %v1147 = vadd.f32 %v1019, %v1115
        %v1148 = vadd.f32 %v1020, %v1116
        %v1149 = vadd.f32 %v1021, %v1117
        %v1150 = vadd.f32 %v1022, %v1118
        %v1151 = vadd.f32 %v1023, %v1119
        %v1152 = vadd.f32 %v1024, %v1120
        %v1153 = vadd.f32 %v1025, %v1121
        %v1154 = vadd.f32 %v1026, %v1122
        %v1155 = vadd.f32 %v1027, %v1123
        %v1156 = vadd.f32 %v1028, %v1124
        %vm1157 = vcmask 130048
        %v1158 = vsel %vm1157, %v387, 0.0
        %v1159 = vsel %vm1157, %v388, 0.0
        %v1160 = vadd.f32 %v1158, %v1159
        %v1161 = vrot.slane %v1160, 4
        %v1162 = vadd.f32 %v1160, %v1161
        %v1163 = vrot.slane %v1162, 2
        %v1164 = vadd.f32 %v1162, %v1163
        %v1165 = vrot.slane %v1164, 1
        %v1166 = vadd.f32 %v1164, %v1165
        %v1167 = vsel %vm1157, %v389, 0.0
        %v1168 = vsel %vm1157, %v390, 0.0
        %v1169 = vadd.f32 %v1167, %v1168
        %v1170 = vrot.slane %v1169, 4
        %v1171 = vadd.f32 %v1169, %v1170
        %v1172 = vrot.slane %v1171, 2
        %v1173 = vadd.f32 %v1171, %v1172
        %v1174 = vrot.slane %v1173, 1
        %v1175 = vadd.f32 %v1173, %v1174
        %v1176 = vsel %vm1157, %v391, 0.0
        %v1177 = vsel %vm1157, %v392, 0.0
        %v1178 = vadd.f32 %v1176, %v1177
        %v1179 = vrot.slane %v1178, 4
        %v1180 = vadd.f32 %v1178, %v1179
        %v1181 = vrot.slane %v1180, 2
        %v1182 = vadd.f32 %v1180, %v1181
        %v1183 = vrot.slane %v1182, 1
        %v1184 = vadd.f32 %v1182, %v1183
        %v1185 = vsel %vm1157, %v393, 0.0
        %v1186 = vsel %vm1157, %v394, 0.0
        %v1187 = vadd.f32 %v1185, %v1186
        %v1188 = vrot.slane %v1187, 4
        %v1189 = vadd.f32 %v1187, %v1188
        %v1190 = vrot.slane %v1189, 2
        %v1191 = vadd.f32 %v1189, %v1190
        %v1192 = vrot.slane %v1191, 1
        %v1193 = vadd.f32 %v1191, %v1192
        %v1194 = vsel %vm1157, %v395, 0.0
        %v1195 = vsel %vm1157, %v396, 0.0
        %v1196 = vadd.f32 %v1194, %v1195
        %v1197 = vrot.slane %v1196, 4
        %v1198 = vadd.f32 %v1196, %v1197
        %v1199 = vrot.slane %v1198, 2
        %v1200 = vadd.f32 %v1198, %v1199
        %v1201 = vrot.slane %v1200, 1
        %v1202 = vadd.f32 %v1200, %v1201
        %v1203 = vsel %vm1157, %v397, 0.0
        %v1204 = vsel %vm1157, %v398, 0.0
        %v1205 = vadd.f32 %v1203, %v1204
        %v1206 = vrot.slane %v1205, 4
        %v1207 = vadd.f32 %v1205, %v1206
        %v1208 = vrot.slane %v1207, 2
        %v1209 = vadd.f32 %v1207, %v1208
        %v1210 = vrot.slane %v1209, 1
        %v1211 = vadd.f32 %v1209, %v1210
        %v1212 = vsel %vm1157, %v399, 0.0
        %v1213 = vsel %vm1157, %v400, 0.0
        %v1214 = vadd.f32 %v1212, %v1213
        %v1215 = vrot.slane %v1214, 4
        %v1216 = vadd.f32 %v1214, %v1215
        %v1217 = vrot.slane %v1216, 2
        %v1218 = vadd.f32 %v1216, %v1217
        %v1219 = vrot.slane %v1218, 1
        %v1220 = vadd.f32 %v1218, %v1219
        %v1221 = vsel %vm1157, %v401, 0.0
        %v1222 = vsel %vm1157, %v402, 0.0
        %v1223 = vadd.f32 %v1221, %v1222
        %v1224 = vrot.slane %v1223, 4
        %v1225 = vadd.f32 %v1223, %v1224
        %v1226 = vrot.slane %v1225, 2
        %v1227 = vadd.f32 %v1225, %v1226
        %v1228 = vrot.slane %v1227, 1
        %v1229 = vadd.f32 %v1227, %v1228
        %v1230 = vsel %vm1157, %v403, 0.0
        %v1231 = vsel %vm1157, %v404, 0.0
        %v1232 = vadd.f32 %v1230, %v1231
        %v1233 = vrot.slane %v1232, 4
        %v1234 = vadd.f32 %v1232, %v1233
        %v1235 = vrot.slane %v1234, 2
        %v1236 = vadd.f32 %v1234, %v1235
        %v1237 = vrot.slane %v1236, 1
        %v1238 = vadd.f32 %v1236, %v1237
        %v1239 = vsel %vm1157, %v405, 0.0
        %v1240 = vsel %vm1157, %v406, 0.0
        %v1241 = vadd.f32 %v1239, %v1240
        %v1242 = vrot.slane %v1241, 4
        %v1243 = vadd.f32 %v1241, %v1242
        %v1244 = vrot.slane %v1243, 2
        %v1245 = vadd.f32 %v1243, %v1244
        %v1246 = vrot.slane %v1245, 1
        %v1247 = vadd.f32 %v1245, %v1246
        %v1248 = vsel %vm1157, %v407, 0.0
        %v1249 = vsel %vm1157, %v408, 0.0
        %v1250 = vadd.f32 %v1248, %v1249
        %v1251 = vrot.slane %v1250, 4
        %v1252 = vadd.f32 %v1250, %v1251
        %v1253 = vrot.slane %v1252, 2
        %v1254 = vadd.f32 %v1252, %v1253
        %v1255 = vrot.slane %v1254, 1
        %v1256 = vadd.f32 %v1254, %v1255
        %v1257 = vsel %vm1157, %v409, 0.0
        %v1258 = vsel %vm1157, %v410, 0.0
        %v1259 = vadd.f32 %v1257, %v1258
        %v1260 = vrot.slane %v1259, 4
        %v1261 = vadd.f32 %v1259, %v1260
        %v1262 = vrot.slane %v1261, 2
        %v1263 = vadd.f32 %v1261, %v1262
        %v1264 = vrot.slane %v1263, 1
        %v1265 = vadd.f32 %v1263, %v1264
        %v1266 = vsel %vm1157, %v411, 0.0
        %v1267 = vsel %vm1157, %v412, 0.0
        %v1268 = vadd.f32 %v1266, %v1267
        %v1269 = vrot.slane %v1268, 4
        %v1270 = vadd.f32 %v1268, %v1269
        %v1271 = vrot.slane %v1270, 2
        %v1272 = vadd.f32 %v1270, %v1271
        %v1273 = vrot.slane %v1272, 1
        %v1274 = vadd.f32 %v1272, %v1273
        %v1275 = vsel %vm1157, %v413, 0.0
        %v1276 = vsel %vm1157, %v414, 0.0
        %v1277 = vadd.f32 %v1275, %v1276
        %v1278 = vrot.slane %v1277, 4
        %v1279 = vadd.f32 %v1277, %v1278
        %v1280 = vrot.slane %v1279, 2
        %v1281 = vadd.f32 %v1279, %v1280
        %v1282 = vrot.slane %v1281, 1
        %v1283 = vadd.f32 %v1281, %v1282
        %v1284 = vsel %vm1157, %v415, 0.0
        %v1285 = vsel %vm1157, %v416, 0.0
        %v1286 = vadd.f32 %v1284, %v1285
        %v1287 = vrot.slane %v1286, 4
        %v1288 = vadd.f32 %v1286, %v1287
        %v1289 = vrot.slane %v1288, 2
        %v1290 = vadd.f32 %v1288, %v1289
        %v1291 = vrot.slane %v1290, 1
        %v1292 = vadd.f32 %v1290, %v1291
        %v1293 = vsel %vm1157, %v417, 0.0
        %v1294 = vsel %vm1157, %v418, 0.0
        %v1295 = vadd.f32 %v1293, %v1294
        %v1296 = vrot.slane %v1295, 4
        %v1297 = vadd.f32 %v1295, %v1296
        %v1298 = vrot.slane %v1297, 2
        %v1299 = vadd.f32 %v1297, %v1298
        %v1300 = vrot.slane %v1299, 1
        %v1301 = vadd.f32 %v1299, %v1300
        %v1302 = vrcp.pop 16.0
        %v1303 = vmul.f32 %v1166, %v1302
        %v1304 = vmul.f32 %v1175, %v1302
        %v1305 = vmul.f32 %v1184, %v1302
        %v1306 = vmul.f32 %v1193, %v1302
        %v1307 = vmul.f32 %v1202, %v1302
        %v1308 = vmul.f32 %v1211, %v1302
        %v1309 = vmul.f32 %v1220, %v1302
        %v1310 = vmul.f32 %v1229, %v1302
        %v1311 = vmul.f32 %v1238, %v1302
        %v1312 = vmul.f32 %v1247, %v1302
        %v1313 = vmul.f32 %v1256, %v1302
        %v1314 = vmul.f32 %v1265, %v1302
        %v1315 = vmul.f32 %v1274, %v1302
        %v1316 = vmul.f32 %v1283, %v1302
        %v1317 = vmul.f32 %v1292, %v1302
        %v1318 = vmul.f32 %v1301, %v1302
        %v1335 = vlaneseq
        %v1336 = vshrl.u32 %v1335, 7
        %v1337 = vsub.s32 0, %v1336
        %v1338 = vrot.slane %v435, %v1337
        %v1339 = vlaneseq
        %v1340 = vshrl.u32 %v1339, 7
        %v1341 = vsub.s32 0, %v1340
        %v1342 = vrot.slane %v436, %v1341
        %v1343 = vlaneseq
        %v1344 = vshrl.u32 %v1343, 7
        %v1345 = vsub.s32 0, %v1344
        %v1346 = vrot.slane %v437, %v1345
        %v1347 = vlaneseq
        %v1348 = vshrl.u32 %v1347, 7
        %v1349 = vsub.s32 0, %v1348
        %v1350 = vrot.slane %v438, %v1349
        %v1351 = vlaneseq
        %v1352 = vshrl.u32 %v1351, 7
        %v1353 = vsub.s32 0, %v1352
        %v1354 = vrot.slane %v439, %v1353
        %v1355 = vlaneseq
        %v1356 = vshrl.u32 %v1355, 7
        %v1357 = vsub.s32 0, %v1356
        %v1358 = vrot.slane %v440, %v1357
        %v1359 = vlaneseq
        %v1360 = vshrl.u32 %v1359, 7
        %v1361 = vsub.s32 0, %v1360
        %v1362 = vrot.slane %v441, %v1361
        %v1363 = vlaneseq
        %v1364 = vshrl.u32 %v1363, 7
        %v1365 = vsub.s32 0, %v1364
        %v1366 = vrot.slane %v442, %v1365
        %v1367 = vlaneseq
        %v1368 = vshrl.u32 %v1367, 7
        %v1369 = vsub.s32 0, %v1368
        %v1370 = vrot.slane %v443, %v1369
        %v1371 = vlaneseq
        %v1372 = vshrl.u32 %v1371, 7
        %v1373 = vsub.s32 0, %v1372
        %v1374 = vrot.slane %v444, %v1373
        %v1375 = vlaneseq
        %v1376 = vshrl.u32 %v1375, 7
        %v1377 = vsub.s32 0, %v1376
        %v1378 = vrot.slane %v445, %v1377
        %v1379 = vlaneseq
        %v1380 = vshrl.u32 %v1379, 7
        %v1381 = vsub.s32 0, %v1380
        %v1382 = vrot.slane %v446, %v1381
        %v1383 = vlaneseq
        %v1384 = vshrl.u32 %v1383, 7
        %v1385 = vsub.s32 0, %v1384
        %v1386 = vrot.slane %v447, %v1385
        %v1387 = vlaneseq
        %v1388 = vshrl.u32 %v1387, 7
        %v1389 = vsub.s32 0, %v1388
        %v1390 = vrot.slane %v448, %v1389
        %v1391 = vlaneseq
        %v1392 = vshrl.u32 %v1391, 7
        %v1393 = vsub.s32 0, %v1392
        %v1394 = vrot.slane %v449, %v1393
        %v1395 = vlaneseq
        %v1396 = vshrl.u32 %v1395, 7
        %v1397 = vsub.s32 0, %v1396
        %v1398 = vrot.slane %v450, %v1397
        %1399 = vset.pattern.permute.xlu0 0
        %1400 = vperm.xlu0 %1399, %v1338
        %v1401 = vpop.permute.xlu0 %1400
        %1403 = vset.pattern.permute.xlu0 0
        %1404 = vperm.xlu0 %1403, %v1342
        %v1405 = vpop.permute.xlu0 %1404
        %1407 = vset.pattern.permute.xlu0 0
        %1408 = vperm.xlu0 %1407, %v1346
        %v1409 = vpop.permute.xlu0 %1408
        %1411 = vset.pattern.permute.xlu0 0
        %1412 = vperm.xlu0 %1411, %v1350
        %v1413 = vpop.permute.xlu0 %1412
        %1415 = vset.pattern.permute.xlu0 0
        %1416 = vperm.xlu0 %1415, %v1354
        %v1417 = vpop.permute.xlu0 %1416
        %1419 = vset.pattern.permute.xlu0 0
        %1420 = vperm.xlu0 %1419, %v1358
        %v1421 = vpop.permute.xlu0 %1420
        %1423 = vset.pattern.permute.xlu0 0
        %1424 = vperm.xlu0 %1423, %v1362
        %v1425 = vpop.permute.xlu0 %1424
        %1427 = vset.pattern.permute.xlu0 0
        %1428 = vperm.xlu0 %1427, %v1366
        %v1429 = vpop.permute.xlu0 %1428
        %1431 = vset.pattern.permute.xlu0 0
        %1432 = vperm.xlu0 %1431, %v1370
        %v1433 = vpop.permute.xlu0 %1432
        %1435 = vset.pattern.permute.xlu0 0
        %1436 = vperm.xlu0 %1435, %v1374
        %v1437 = vpop.permute.xlu0 %1436
        %1439 = vset.pattern.permute.xlu0 0
        %1440 = vperm.xlu0 %1439, %v1378
        %v1441 = vpop.permute.xlu0 %1440
        %1443 = vset.pattern.permute.xlu0 0
        %1444 = vperm.xlu0 %1443, %v1382
        %v1445 = vpop.permute.xlu0 %1444
        %1447 = vset.pattern.permute.xlu0 0
        %1448 = vperm.xlu0 %1447, %v1386
        %v1449 = vpop.permute.xlu0 %1448
        %1451 = vset.pattern.permute.xlu0 0
        %1452 = vperm.xlu0 %1451, %v1390
        %v1453 = vpop.permute.xlu0 %1452
        %1455 = vset.pattern.permute.xlu0 0
        %1456 = vperm.xlu0 %1455, %v1394
        %v1457 = vpop.permute.xlu0 %1456
        %1459 = vset.pattern.permute.xlu0 0
        %1460 = vperm.xlu0 %1459, %v1398
        %v1461 = vpop.permute.xlu0 %1460
        %v1463 = vmul.f32 %v1125, %v1401
        %v1464 = vmul.f32 %v1126, %v1401
        %v1465 = vmul.f32 %v1127, %v1405
        %v1466 = vmul.f32 %v1128, %v1405
        %v1467 = vmul.f32 %v1129, %v1409
        %v1468 = vmul.f32 %v1130, %v1409
        %v1469 = vmul.f32 %v1131, %v1413
        %v1470 = vmul.f32 %v1132, %v1413
        %v1471 = vmul.f32 %v1133, %v1417
        %v1472 = vmul.f32 %v1134, %v1417
        %v1473 = vmul.f32 %v1135, %v1421
        %v1474 = vmul.f32 %v1136, %v1421
        %v1475 = vmul.f32 %v1137, %v1425
        %v1476 = vmul.f32 %v1138, %v1425
        %v1477 = vmul.f32 %v1139, %v1429
        %v1478 = vmul.f32 %v1140, %v1429
        %v1479 = vmul.f32 %v1141, %v1433
        %v1480 = vmul.f32 %v1142, %v1433
        %v1481 = vmul.f32 %v1143, %v1437
        %v1482 = vmul.f32 %v1144, %v1437
        %v1483 = vmul.f32 %v1145, %v1441
        %v1484 = vmul.f32 %v1146, %v1441
        %v1485 = vmul.f32 %v1147, %v1445
        %v1486 = vmul.f32 %v1148, %v1445
        %v1487 = vmul.f32 %v1149, %v1449
        %v1488 = vmul.f32 %v1150, %v1449
        %v1489 = vmul.f32 %v1151, %v1453
        %v1490 = vmul.f32 %v1152, %v1453
        %v1491 = vmul.f32 %v1153, %v1457
        %v1492 = vmul.f32 %v1154, %v1457
        %v1493 = vmul.f32 %v1155, %v1461
        %v1494 = vmul.f32 %v1156, %v1461
        %1496 = vset.pattern.permute.xlu0 0
        %1497 = vperm.xlu0 %1496, %v419
        %v1498 = vpop.permute.xlu0 %1497
        %v1500 = vlaneseq
        %v1501 = vshrl.u32 %v1500, 7
        %v1502 = vsub.s32 0, %v1501
        %v1503 = vrot.slane %v1498, %v1502
        %1505 = vset.pattern.permute.xlu0 0
        %1506 = vperm.xlu0 %1505, %v420
        %v1507 = vpop.permute.xlu0 %1506
        %v1509 = vlaneseq
        %v1510 = vshrl.u32 %v1509, 7
        %v1511 = vsub.s32 0, %v1510
        %v1512 = vrot.slane %v1507, %v1511
        %1514 = vset.pattern.permute.xlu0 0
        %1515 = vperm.xlu0 %1514, %v421
        %v1516 = vpop.permute.xlu0 %1515
        %v1518 = vlaneseq
        %v1519 = vshrl.u32 %v1518, 7
        %v1520 = vsub.s32 0, %v1519
        %v1521 = vrot.slane %v1516, %v1520
        %1523 = vset.pattern.permute.xlu0 0
        %1524 = vperm.xlu0 %1523, %v422
        %v1525 = vpop.permute.xlu0 %1524
        %v1527 = vlaneseq
        %v1528 = vshrl.u32 %v1527, 7
        %v1529 = vsub.s32 0, %v1528
        %v1530 = vrot.slane %v1525, %v1529
        %1532 = vset.pattern.permute.xlu0 0
        %1533 = vperm.xlu0 %1532, %v423
        %v1534 = vpop.permute.xlu0 %1533
        %v1536 = vlaneseq
        %v1537 = vshrl.u32 %v1536, 7
        %v1538 = vsub.s32 0, %v1537
        %v1539 = vrot.slane %v1534, %v1538
        %1541 = vset.pattern.permute.xlu0 0
        %1542 = vperm.xlu0 %1541, %v424
        %v1543 = vpop.permute.xlu0 %1542
        %v1545 = vlaneseq
        %v1546 = vshrl.u32 %v1545, 7
        %v1547 = vsub.s32 0, %v1546
        %v1548 = vrot.slane %v1543, %v1547
        %1550 = vset.pattern.permute.xlu0 0
        %1551 = vperm.xlu0 %1550, %v425
        %v1552 = vpop.permute.xlu0 %1551
        %v1554 = vlaneseq
        %v1555 = vshrl.u32 %v1554, 7
        %v1556 = vsub.s32 0, %v1555
        %v1557 = vrot.slane %v1552, %v1556
        %1559 = vset.pattern.permute.xlu0 0
        %1560 = vperm.xlu0 %1559, %v426
        %v1561 = vpop.permute.xlu0 %1560
        %v1563 = vlaneseq
        %v1564 = vshrl.u32 %v1563, 7
        %v1565 = vsub.s32 0, %v1564
        %v1566 = vrot.slane %v1561, %v1565
        %1568 = vset.pattern.permute.xlu0 0
        %1569 = vperm.xlu0 %1568, %v427
        %v1570 = vpop.permute.xlu0 %1569
        %v1572 = vlaneseq
        %v1573 = vshrl.u32 %v1572, 7
        %v1574 = vsub.s32 0, %v1573
        %v1575 = vrot.slane %v1570, %v1574
        %1577 = vset.pattern.permute.xlu0 0
        %1578 = vperm.xlu0 %1577, %v428
        %v1579 = vpop.permute.xlu0 %1578
        %v1581 = vlaneseq
        %v1582 = vshrl.u32 %v1581, 7
        %v1583 = vsub.s32 0, %v1582
        %v1584 = vrot.slane %v1579, %v1583
        %1586 = vset.pattern.permute.xlu0 0
        %1587 = vperm.xlu0 %1586, %v429
        %v1588 = vpop.permute.xlu0 %1587
        %v1590 = vlaneseq
        %v1591 = vshrl.u32 %v1590, 7
        %v1592 = vsub.s32 0, %v1591
        %v1593 = vrot.slane %v1588, %v1592
        %1595 = vset.pattern.permute.xlu0 0
        %1596 = vperm.xlu0 %1595, %v430
        %v1597 = vpop.permute.xlu0 %1596
        %v1599 = vlaneseq
        %v1600 = vshrl.u32 %v1599, 7
        %v1601 = vsub.s32 0, %v1600
        %v1602 = vrot.slane %v1597, %v1601
        %1604 = vset.pattern.permute.xlu0 0
        %1605 = vperm.xlu0 %1604, %v431
        %v1606 = vpop.permute.xlu0 %1605
        %v1608 = vlaneseq
        %v1609 = vshrl.u32 %v1608, 7
        %v1610 = vsub.s32 0, %v1609
        %v1611 = vrot.slane %v1606, %v1610
        %1613 = vset.pattern.permute.xlu0 0
        %1614 = vperm.xlu0 %1613, %v432
        %v1615 = vpop.permute.xlu0 %1614
        %v1617 = vlaneseq
        %v1618 = vshrl.u32 %v1617, 7
        %v1619 = vsub.s32 0, %v1618
        %v1620 = vrot.slane %v1615, %v1619
        %1622 = vset.pattern.permute.xlu0 0
        %1623 = vperm.xlu0 %1622, %v433
        %v1624 = vpop.permute.xlu0 %1623
        %v1626 = vlaneseq
        %v1627 = vshrl.u32 %v1626, 7
        %v1628 = vsub.s32 0, %v1627
        %v1629 = vrot.slane %v1624, %v1628
        %1631 = vset.pattern.permute.xlu0 0
        %1632 = vperm.xlu0 %1631, %v434
        %v1633 = vpop.permute.xlu0 %1632
        %v1635 = vlaneseq
        %v1636 = vshrl.u32 %v1635, 7
        %v1637 = vsub.s32 0, %v1636
        %v1638 = vrot.slane %v1633, %v1637
        %v1639 = vmul.f32 %v1503, %v1303
        %v1640 = vmul.f32 %v1512, %v1304
        %v1641 = vmul.f32 %v1521, %v1305
        %v1642 = vmul.f32 %v1530, %v1306
        %v1643 = vmul.f32 %v1539, %v1307
        %v1644 = vmul.f32 %v1548, %v1308
        %v1645 = vmul.f32 %v1557, %v1309
        %v1646 = vmul.f32 %v1566, %v1310
        %v1647 = vmul.f32 %v1575, %v1311
        %v1648 = vmul.f32 %v1584, %v1312
        %v1649 = vmul.f32 %v1593, %v1313
        %v1650 = vmul.f32 %v1602, %v1314
        %v1651 = vmul.f32 %v1611, %v1315
        %v1652 = vmul.f32 %v1620, %v1316
        %v1653 = vmul.f32 %v1629, %v1317
        %v1654 = vmul.f32 %v1638, %v1318
        %v1655 = vsub.f32 %v1463, %v1639
        %v1656 = vsub.f32 %v1464, %v1639
        %v1657 = vsub.f32 %v1465, %v1640
        %v1658 = vsub.f32 %v1466, %v1640
        %v1659 = vsub.f32 %v1467, %v1641
        %v1660 = vsub.f32 %v1468, %v1641
        %v1661 = vsub.f32 %v1469, %v1642
        %v1662 = vsub.f32 %v1470, %v1642
        %v1663 = vsub.f32 %v1471, %v1643
        %v1664 = vsub.f32 %v1472, %v1643
        %v1665 = vsub.f32 %v1473, %v1644
        %v1666 = vsub.f32 %v1474, %v1644
        %v1667 = vsub.f32 %v1475, %v1645
        %v1668 = vsub.f32 %v1476, %v1645
        %v1669 = vsub.f32 %v1477, %v1646
        %v1670 = vsub.f32 %v1478, %v1646
        %v1671 = vsub.f32 %v1479, %v1647
        %v1672 = vsub.f32 %v1480, %v1647
        %v1673 = vsub.f32 %v1481, %v1648
        %v1674 = vsub.f32 %v1482, %v1648
        %v1675 = vsub.f32 %v1483, %v1649
        %v1676 = vsub.f32 %v1484, %v1649
        %v1677 = vsub.f32 %v1485, %v1650
        %v1678 = vsub.f32 %v1486, %v1650
        %v1679 = vsub.f32 %v1487, %v1651
        %v1680 = vsub.f32 %v1488, %v1651
        %v1681 = vsub.f32 %v1489, %v1652
        %v1682 = vsub.f32 %v1490, %v1652
        %v1683 = vsub.f32 %v1491, %v1653
        %v1684 = vsub.f32 %v1492, %v1653
        %v1685 = vsub.f32 %v1493, %v1654
        %v1686 = vsub.f32 %v1494, %v1654
        %v1687 = vlaneseq
        %v1688 = vshrl.u32 %v1687, 7
        %v1689 = vsub.s32 0, %v1688
        %v1690 = vrot.slane %v419, %v1689
        %v1691 = vlaneseq
        %v1692 = vshrl.u32 %v1691, 7
        %v1693 = vsub.s32 0, %v1692
        %v1694 = vrot.slane %v420, %v1693
        %v1695 = vlaneseq
        %v1696 = vshrl.u32 %v1695, 7
        %v1697 = vsub.s32 0, %v1696
        %v1698 = vrot.slane %v421, %v1697
        %v1699 = vlaneseq
        %v1700 = vshrl.u32 %v1699, 7
        %v1701 = vsub.s32 0, %v1700
        %v1702 = vrot.slane %v422, %v1701
        %v1703 = vlaneseq
        %v1704 = vshrl.u32 %v1703, 7
        %v1705 = vsub.s32 0, %v1704
        %v1706 = vrot.slane %v423, %v1705
        %v1707 = vlaneseq
        %v1708 = vshrl.u32 %v1707, 7
        %v1709 = vsub.s32 0, %v1708
        %v1710 = vrot.slane %v424, %v1709
        %v1711 = vlaneseq
        %v1712 = vshrl.u32 %v1711, 7
        %v1713 = vsub.s32 0, %v1712
        %v1714 = vrot.slane %v425, %v1713
        %v1715 = vlaneseq
        %v1716 = vshrl.u32 %v1715, 7
        %v1717 = vsub.s32 0, %v1716
        %v1718 = vrot.slane %v426, %v1717
        %v1719 = vlaneseq
        %v1720 = vshrl.u32 %v1719, 7
        %v1721 = vsub.s32 0, %v1720
        %v1722 = vrot.slane %v427, %v1721
        %v1723 = vlaneseq
        %v1724 = vshrl.u32 %v1723, 7
        %v1725 = vsub.s32 0, %v1724
        %v1726 = vrot.slane %v428, %v1725
        %v1727 = vlaneseq
        %v1728 = vshrl.u32 %v1727, 7
        %v1729 = vsub.s32 0, %v1728
        %v1730 = vrot.slane %v429, %v1729
        %v1731 = vlaneseq
        %v1732 = vshrl.u32 %v1731, 7
        %v1733 = vsub.s32 0, %v1732
        %v1734 = vrot.slane %v430, %v1733
        %v1735 = vlaneseq
        %v1736 = vshrl.u32 %v1735, 7
        %v1737 = vsub.s32 0, %v1736
        %v1738 = vrot.slane %v431, %v1737
        %v1739 = vlaneseq
        %v1740 = vshrl.u32 %v1739, 7
        %v1741 = vsub.s32 0, %v1740
        %v1742 = vrot.slane %v432, %v1741
        %v1743 = vlaneseq
        %v1744 = vshrl.u32 %v1743, 7
        %v1745 = vsub.s32 0, %v1744
        %v1746 = vrot.slane %v433, %v1745
        %v1747 = vlaneseq
        %v1748 = vshrl.u32 %v1747, 7
        %v1749 = vsub.s32 0, %v1748
        %v1750 = vrot.slane %v434, %v1749
        %1751 = vset.pattern.permute.xlu0 1
        %1752 = vperm.xlu0 %1751, %v1690
        %v1753 = vpop.permute.xlu0 %1752
        %1755 = vset.pattern.permute.xlu0 1
        %1756 = vperm.xlu0 %1755, %v1694
        %v1757 = vpop.permute.xlu0 %1756
        %1759 = vset.pattern.permute.xlu0 1
        %1760 = vperm.xlu0 %1759, %v1698
        %v1761 = vpop.permute.xlu0 %1760
        %1763 = vset.pattern.permute.xlu0 1
        %1764 = vperm.xlu0 %1763, %v1702
        %v1765 = vpop.permute.xlu0 %1764
        %1767 = vset.pattern.permute.xlu0 1
        %1768 = vperm.xlu0 %1767, %v1706
        %v1769 = vpop.permute.xlu0 %1768
        %1771 = vset.pattern.permute.xlu0 1
        %1772 = vperm.xlu0 %1771, %v1710
        %v1773 = vpop.permute.xlu0 %1772
        %1775 = vset.pattern.permute.xlu0 1
        %1776 = vperm.xlu0 %1775, %v1714
        %v1777 = vpop.permute.xlu0 %1776
        %1779 = vset.pattern.permute.xlu0 1
        %1780 = vperm.xlu0 %1779, %v1718
        %v1781 = vpop.permute.xlu0 %1780
        %1783 = vset.pattern.permute.xlu0 1
        %1784 = vperm.xlu0 %1783, %v1722
        %v1785 = vpop.permute.xlu0 %1784
        %1787 = vset.pattern.permute.xlu0 1
        %1788 = vperm.xlu0 %1787, %v1726
        %v1789 = vpop.permute.xlu0 %1788
        %1791 = vset.pattern.permute.xlu0 1
        %1792 = vperm.xlu0 %1791, %v1730
        %v1793 = vpop.permute.xlu0 %1792
        %1795 = vset.pattern.permute.xlu0 1
        %1796 = vperm.xlu0 %1795, %v1734
        %v1797 = vpop.permute.xlu0 %1796
        %1799 = vset.pattern.permute.xlu0 1
        %1800 = vperm.xlu0 %1799, %v1738
        %v1801 = vpop.permute.xlu0 %1800
        %1803 = vset.pattern.permute.xlu0 1
        %1804 = vperm.xlu0 %1803, %v1742
        %v1805 = vpop.permute.xlu0 %1804
        %1807 = vset.pattern.permute.xlu0 1
        %1808 = vperm.xlu0 %1807, %v1746
        %v1809 = vpop.permute.xlu0 %1808
        %1811 = vset.pattern.permute.xlu0 1
        %1812 = vperm.xlu0 %1811, %v1750
        %v1813 = vpop.permute.xlu0 %1812
        %v1815 = vmul.f32 %v1655, %v1753
        %v1816 = vmul.f32 %v1656, %v1753
        %v1817 = vmul.f32 %v1657, %v1757
        %v1818 = vmul.f32 %v1658, %v1757
        %v1819 = vmul.f32 %v1659, %v1761
        %v1820 = vmul.f32 %v1660, %v1761
        %v1821 = vmul.f32 %v1661, %v1765
        %v1822 = vmul.f32 %v1662, %v1765
        %v1823 = vmul.f32 %v1663, %v1769
        %v1824 = vmul.f32 %v1664, %v1769
        %v1825 = vmul.f32 %v1665, %v1773
        %v1826 = vmul.f32 %v1666, %v1773
        %v1827 = vmul.f32 %v1667, %v1777
        %v1828 = vmul.f32 %v1668, %v1777
        %v1829 = vmul.f32 %v1669, %v1781
        %v1830 = vmul.f32 %v1670, %v1781
        %v1831 = vmul.f32 %v1671, %v1785
        %v1832 = vmul.f32 %v1672, %v1785
        %v1833 = vmul.f32 %v1673, %v1789
        %v1834 = vmul.f32 %v1674, %v1789
        %v1835 = vmul.f32 %v1675, %v1793
        %v1836 = vmul.f32 %v1676, %v1793
        %v1837 = vmul.f32 %v1677, %v1797
        %v1838 = vmul.f32 %v1678, %v1797
        %v1839 = vmul.f32 %v1679, %v1801
        %v1840 = vmul.f32 %v1680, %v1801
        %v1841 = vmul.f32 %v1681, %v1805
        %v1842 = vmul.f32 %v1682, %v1805
        %v1843 = vmul.f32 %v1683, %v1809
        %v1844 = vmul.f32 %v1684, %v1809
        %v1845 = vmul.f32 %v1685, %v1813
        %v1846 = vmul.f32 %v1686, %v1813
        %1847 = vset.pattern.permute.xlu0 2
        %1848 = vperm.xlu0 %1847, %v1338
        %v1849 = vpop.permute.xlu0 %1848
        %1851 = vset.pattern.permute.xlu0 2
        %1852 = vperm.xlu0 %1851, %v1342
        %v1853 = vpop.permute.xlu0 %1852
        %1855 = vset.pattern.permute.xlu0 2
        %1856 = vperm.xlu0 %1855, %v1346
        %v1857 = vpop.permute.xlu0 %1856
        %1859 = vset.pattern.permute.xlu0 2
        %1860 = vperm.xlu0 %1859, %v1350
        %v1861 = vpop.permute.xlu0 %1860
        %1863 = vset.pattern.permute.xlu0 2
        %1864 = vperm.xlu0 %1863, %v1354
        %v1865 = vpop.permute.xlu0 %1864
        %1867 = vset.pattern.permute.xlu0 2
        %1868 = vperm.xlu0 %1867, %v1358
        %v1869 = vpop.permute.xlu0 %1868
        %1871 = vset.pattern.permute.xlu0 2
        %1872 = vperm.xlu0 %1871, %v1362
        %v1873 = vpop.permute.xlu0 %1872
        %1875 = vset.pattern.permute.xlu0 2
        %1876 = vperm.xlu0 %1875, %v1366
        %v1877 = vpop.permute.xlu0 %1876
        %1879 = vset.pattern.permute.xlu0 2
        %1880 = vperm.xlu0 %1879, %v1370
        %v1881 = vpop.permute.xlu0 %1880
        %1883 = vset.pattern.permute.xlu0 2
        %1884 = vperm.xlu0 %1883, %v1374
        %v1885 = vpop.permute.xlu0 %1884
        %1887 = vset.pattern.permute.xlu0 2
        %1888 = vperm.xlu0 %1887, %v1378
        %v1889 = vpop.permute.xlu0 %1888
        %1891 = vset.pattern.permute.xlu0 2
        %1892 = vperm.xlu0 %1891, %v1382
        %v1893 = vpop.permute.xlu0 %1892
        %1895 = vset.pattern.permute.xlu0 2
        %1896 = vperm.xlu0 %1895, %v1386
        %v1897 = vpop.permute.xlu0 %1896
        %1899 = vset.pattern.permute.xlu0 2
        %1900 = vperm.xlu0 %1899, %v1390
        %v1901 = vpop.permute.xlu0 %1900
        %1903 = vset.pattern.permute.xlu0 2
        %1904 = vperm.xlu0 %1903, %v1394
        %v1905 = vpop.permute.xlu0 %1904
        %1907 = vset.pattern.permute.xlu0 2
        %1908 = vperm.xlu0 %1907, %v1398
        %v1909 = vpop.permute.xlu0 %1908
        %v1911 = vmul.f32 %v387, %v1849
        %v1912 = vmul.f32 %v388, %v1849
        %v1913 = vmul.f32 %v389, %v1853
        %v1914 = vmul.f32 %v390, %v1853
        %v1915 = vmul.f32 %v391, %v1857
        %v1916 = vmul.f32 %v392, %v1857
        %v1917 = vmul.f32 %v393, %v1861
        %v1918 = vmul.f32 %v394, %v1861
        %v1919 = vmul.f32 %v395, %v1865
        %v1920 = vmul.f32 %v396, %v1865
        %v1921 = vmul.f32 %v397, %v1869
        %v1922 = vmul.f32 %v398, %v1869
        %v1923 = vmul.f32 %v399, %v1873
        %v1924 = vmul.f32 %v400, %v1873
        %v1925 = vmul.f32 %v401, %v1877
        %v1926 = vmul.f32 %v402, %v1877
        %v1927 = vmul.f32 %v403, %v1881
        %v1928 = vmul.f32 %v404, %v1881
        %v1929 = vmul.f32 %v405, %v1885
        %v1930 = vmul.f32 %v406, %v1885
        %v1931 = vmul.f32 %v407, %v1889
        %v1932 = vmul.f32 %v408, %v1889
        %v1933 = vmul.f32 %v409, %v1893
        %v1934 = vmul.f32 %v410, %v1893
        %v1935 = vmul.f32 %v411, %v1897
        %v1936 = vmul.f32 %v412, %v1897
        %v1937 = vmul.f32 %v413, %v1901
        %v1938 = vmul.f32 %v414, %v1901
        %v1939 = vmul.f32 %v415, %v1905
        %v1940 = vmul.f32 %v416, %v1905
        %v1941 = vmul.f32 %v417, %v1909
        %v1942 = vmul.f32 %v418, %v1909
        %v1943 = vadd.f32 %v1815, %v1911
        %v1944 = vadd.f32 %v1816, %v1912
        %v1945 = vadd.f32 %v1817, %v1913
        %v1946 = vadd.f32 %v1818, %v1914
        %v1947 = vadd.f32 %v1819, %v1915
        %v1948 = vadd.f32 %v1820, %v1916
        %v1949 = vadd.f32 %v1821, %v1917
        %v1950 = vadd.f32 %v1822, %v1918
        %v1951 = vadd.f32 %v1823, %v1919
        %v1952 = vadd.f32 %v1824, %v1920
        %v1953 = vadd.f32 %v1825, %v1921
        %v1954 = vadd.f32 %v1826, %v1922
        %v1955 = vadd.f32 %v1827, %v1923
        %v1956 = vadd.f32 %v1828, %v1924
        %v1957 = vadd.f32 %v1829, %v1925
        %v1958 = vadd.f32 %v1830, %v1926
        %v1959 = vadd.f32 %v1831, %v1927
        %v1960 = vadd.f32 %v1832, %v1928
        %v1961 = vadd.f32 %v1833, %v1929
        %v1962 = vadd.f32 %v1834, %v1930
        %v1963 = vadd.f32 %v1835, %v1931
        %v1964 = vadd.f32 %v1836, %v1932
        %v1965 = vadd.f32 %v1837, %v1933
        %v1966 = vadd.f32 %v1838, %v1934
        %v1967 = vadd.f32 %v1839, %v1935
        %v1968 = vadd.f32 %v1840, %v1936
        %v1969 = vadd.f32 %v1841, %v1937
        %v1970 = vadd.f32 %v1842, %v1938
        %v1971 = vadd.f32 %v1843, %v1939
        %v1972 = vadd.f32 %v1844, %v1940
        %v1973 = vadd.f32 %v1845, %v1941
        %v1974 = vadd.f32 %v1846, %v1942
        %1975 = vset.pattern.permute.xlu0 3
        %1976 = vperm.xlu0 %1975, %v1690
        %v1977 = vpop.permute.xlu0 %1976
        %1979 = vset.pattern.permute.xlu0 3
        %1980 = vperm.xlu0 %1979, %v1694
        %v1981 = vpop.permute.xlu0 %1980
        %1983 = vset.pattern.permute.xlu0 3
        %1984 = vperm.xlu0 %1983, %v1698
        %v1985 = vpop.permute.xlu0 %1984
        %1987 = vset.pattern.permute.xlu0 3
        %1988 = vperm.xlu0 %1987, %v1702
        %v1989 = vpop.permute.xlu0 %1988
        %1991 = vset.pattern.permute.xlu0 3
        %1992 = vperm.xlu0 %1991, %v1706
        %v1993 = vpop.permute.xlu0 %1992
        %1995 = vset.pattern.permute.xlu0 3
        %1996 = vperm.xlu0 %1995, %v1710
        %v1997 = vpop.permute.xlu0 %1996
        %1999 = vset.pattern.permute.xlu0 3
        %2000 = vperm.xlu0 %1999, %v1714
        %v2001 = vpop.permute.xlu0 %2000
        %2003 = vset.pattern.permute.xlu0 3
        %2004 = vperm.xlu0 %2003, %v1718
        %v2005 = vpop.permute.xlu0 %2004
        %2007 = vset.pattern.permute.xlu0 3
        %2008 = vperm.xlu0 %2007, %v1722
        %v2009 = vpop.permute.xlu0 %2008
        %2011 = vset.pattern.permute.xlu0 3
        %2012 = vperm.xlu0 %2011, %v1726
        %v2013 = vpop.permute.xlu0 %2012
        %2015 = vset.pattern.permute.xlu0 3
        %2016 = vperm.xlu0 %2015, %v1730
        %v2017 = vpop.permute.xlu0 %2016
        %2019 = vset.pattern.permute.xlu0 3
        %2020 = vperm.xlu0 %2019, %v1734
        %v2021 = vpop.permute.xlu0 %2020
        %2023 = vset.pattern.permute.xlu0 3
        %2024 = vperm.xlu0 %2023, %v1738
        %v2025 = vpop.permute.xlu0 %2024
        %2027 = vset.pattern.permute.xlu0 3
        %2028 = vperm.xlu0 %2027, %v1742
        %v2029 = vpop.permute.xlu0 %2028
        %2031 = vset.pattern.permute.xlu0 3
        %2032 = vperm.xlu0 %2031, %v1746
        %v2033 = vpop.permute.xlu0 %2032
        %2035 = vset.pattern.permute.xlu0 3
        %2036 = vperm.xlu0 %2035, %v1750
        %v2037 = vpop.permute.xlu0 %2036
        %v2039 = vmul.f32 %v1977, %v1943
        %v2040 = vmul.f32 %v1977, %v1944
        %v2041 = vmul.f32 %v1981, %v1945
        %v2042 = vmul.f32 %v1981, %v1946
        %v2043 = vmul.f32 %v1985, %v1947
        %v2044 = vmul.f32 %v1985, %v1948
        %v2045 = vmul.f32 %v1989, %v1949
        %v2046 = vmul.f32 %v1989, %v1950
        %v2047 = vmul.f32 %v1993, %v1951
        %v2048 = vmul.f32 %v1993, %v1952
        %v2049 = vmul.f32 %v1997, %v1953
        %v2050 = vmul.f32 %v1997, %v1954
        %v2051 = vmul.f32 %v2001, %v1955
        %v2052 = vmul.f32 %v2001, %v1956
        %v2053 = vmul.f32 %v2005, %v1957
        %v2054 = vmul.f32 %v2005, %v1958
        %v2055 = vmul.f32 %v2009, %v1959
        %v2056 = vmul.f32 %v2009, %v1960
        %v2057 = vmul.f32 %v2013, %v1961
        %v2058 = vmul.f32 %v2013, %v1962
        %v2059 = vmul.f32 %v2017, %v1963
        %v2060 = vmul.f32 %v2017, %v1964
        %v2061 = vmul.f32 %v2021, %v1965
        %v2062 = vmul.f32 %v2021, %v1966
        %v2063 = vmul.f32 %v2025, %v1967
        %v2064 = vmul.f32 %v2025, %v1968
        %v2065 = vmul.f32 %v2029, %v1969
        %v2066 = vmul.f32 %v2029, %v1970
        %v2067 = vmul.f32 %v2033, %v1971
        %v2068 = vmul.f32 %v2033, %v1972
        %v2069 = vmul.f32 %v2037, %v1973
        %v2070 = vmul.f32 %v2037, %v1974
        %v2071 = vld [vmem:[%s359] sm:$0xff]
        %v2072 = vld [vmem:[%s359 + $0x8] sm:$0xff]
        %v2073 = vld [vmem:[%s359 + $0x10] sm:$0xff]
        %v2074 = vld [vmem:[%s359 + $0x18] sm:$0xff]
        %v2075 = vld [vmem:[%s359 + $0x20] sm:$0xff]
        %v2076 = vld [vmem:[%s359 + $0x28] sm:$0xff]
        %v2077 = vld [vmem:[%s359 + $0x30] sm:$0xff]
        %v2078 = vld [vmem:[%s359 + $0x38] sm:$0xff]
        %v2079 = vld [vmem:[%s359 + $0x40] sm:$0xff]
        %v2080 = vld [vmem:[%s359 + $0x48] sm:$0xff]
        %v2081 = vld [vmem:[%s359 + $0x50] sm:$0xff]
        %v2082 = vld [vmem:[%s359 + $0x58] sm:$0xff]
        %v2083 = vld [vmem:[%s359 + $0x60] sm:$0xff]
        %v2084 = vld [vmem:[%s359 + $0x68] sm:$0xff]
        %v2085 = vld [vmem:[%s359 + $0x70] sm:$0xff]
        %v2086 = vld [vmem:[%s359 + $0x78] sm:$0xff]
        %v2087 = vld [vmem:[%s359 + $0x80] sm:$0xff]
        %v2088 = vld [vmem:[%s359 + $0x88] sm:$0xff]
        %v2089 = vld [vmem:[%s359 + $0x90] sm:$0xff]
        %v2090 = vld [vmem:[%s359 + $0x98] sm:$0xff]
        %v2091 = vld [vmem:[%s359 + $0xa0] sm:$0xff]
        %v2092 = vld [vmem:[%s359 + $0xa8] sm:$0xff]
        %v2093 = vld [vmem:[%s359 + $0xb0] sm:$0xff]
        %v2094 = vld [vmem:[%s359 + $0xb8] sm:$0xff]
        %v2095 = vld [vmem:[%s359 + $0xc0] sm:$0xff]
        %v2096 = vld [vmem:[%s359 + $0xc8] sm:$0xff]
        %v2097 = vld [vmem:[%s359 + $0xd0] sm:$0xff]
        %v2098 = vld [vmem:[%s359 + $0xd8] sm:$0xff]
        %v2099 = vld [vmem:[%s359 + $0xe0] sm:$0xff]
        %v2100 = vld [vmem:[%s359 + $0xe8] sm:$0xff]
        %v2101 = vld [vmem:[%s359 + $0xf0] sm:$0xff]
        %v2102 = vld [vmem:[%s359 + $0xf8] sm:$0xff]
        %2103 = vset.pattern.permute.xlu0 4
        %2104 = vperm.xlu0 %2103, %v1690
        %v2105 = vpop.permute.xlu0 %2104
        %2107 = vset.pattern.permute.xlu0 4
        %2108 = vperm.xlu0 %2107, %v1694
        %v2109 = vpop.permute.xlu0 %2108
        %2111 = vset.pattern.permute.xlu0 4
        %2112 = vperm.xlu0 %2111, %v1698
        %v2113 = vpop.permute.xlu0 %2112
        %2115 = vset.pattern.permute.xlu0 4
        %2116 = vperm.xlu0 %2115, %v1702
        %v2117 = vpop.permute.xlu0 %2116
        %2119 = vset.pattern.permute.xlu0 4
        %2120 = vperm.xlu0 %2119, %v1706
        %v2121 = vpop.permute.xlu0 %2120
        %2123 = vset.pattern.permute.xlu0 4
        %2124 = vperm.xlu0 %2123, %v1710
        %v2125 = vpop.permute.xlu0 %2124
        %2127 = vset.pattern.permute.xlu0 4
        %2128 = vperm.xlu0 %2127, %v1714
        %v2129 = vpop.permute.xlu0 %2128
        %2131 = vset.pattern.permute.xlu0 4
        %2132 = vperm.xlu0 %2131, %v1718
        %v2133 = vpop.permute.xlu0 %2132
        %2135 = vset.pattern.permute.xlu0 4
        %2136 = vperm.xlu0 %2135, %v1722
        %v2137 = vpop.permute.xlu0 %2136
        %2139 = vset.pattern.permute.xlu0 4
        %2140 = vperm.xlu0 %2139, %v1726
        %v2141 = vpop.permute.xlu0 %2140
        %2143 = vset.pattern.permute.xlu0 4
        %2144 = vperm.xlu0 %2143, %v1730
        %v2145 = vpop.permute.xlu0 %2144
        %2147 = vset.pattern.permute.xlu0 4
        %2148 = vperm.xlu0 %2147, %v1734
        %v2149 = vpop.permute.xlu0 %2148
        %2151 = vset.pattern.permute.xlu0 4
        %2152 = vperm.xlu0 %2151, %v1738
        %v2153 = vpop.permute.xlu0 %2152
        %2155 = vset.pattern.permute.xlu0 4
        %2156 = vperm.xlu0 %2155, %v1742
        %v2157 = vpop.permute.xlu0 %2156
        %2159 = vset.pattern.permute.xlu0 4
        %2160 = vperm.xlu0 %2159, %v1746
        %v2161 = vpop.permute.xlu0 %2160
        %2163 = vset.pattern.permute.xlu0 4
        %2164 = vperm.xlu0 %2163, %v1750
        %v2165 = vpop.permute.xlu0 %2164
        %v2167 = vmul.f32 %v2105, %v2071
        %v2168 = vmul.f32 %v2105, %v2072
        %v2169 = vmul.f32 %v2109, %v2073
        %v2170 = vmul.f32 %v2109, %v2074
        %v2171 = vmul.f32 %v2113, %v2075
        %v2172 = vmul.f32 %v2113, %v2076
        %v2173 = vmul.f32 %v2117, %v2077
        %v2174 = vmul.f32 %v2117, %v2078
        %v2175 = vmul.f32 %v2121, %v2079
        %v2176 = vmul.f32 %v2121, %v2080
        %v2177 = vmul.f32 %v2125, %v2081
        %v2178 = vmul.f32 %v2125, %v2082
        %v2179 = vmul.f32 %v2129, %v2083
        %v2180 = vmul.f32 %v2129, %v2084
        %v2181 = vmul.f32 %v2133, %v2085
        %v2182 = vmul.f32 %v2133, %v2086
        %v2183 = vmul.f32 %v2137, %v2087
        %v2184 = vmul.f32 %v2137, %v2088
        %v2185 = vmul.f32 %v2141, %v2089
        %v2186 = vmul.f32 %v2141, %v2090
        %v2187 = vmul.f32 %v2145, %v2091
        %v2188 = vmul.f32 %v2145, %v2092
        %v2189 = vmul.f32 %v2149, %v2093
        %v2190 = vmul.f32 %v2149, %v2094
        %v2191 = vmul.f32 %v2153, %v2095
        %v2192 = vmul.f32 %v2153, %v2096
        %v2193 = vmul.f32 %v2157, %v2097
        %v2194 = vmul.f32 %v2157, %v2098
        %v2195 = vmul.f32 %v2161, %v2099
        %v2196 = vmul.f32 %v2161, %v2100
        %v2197 = vmul.f32 %v2165, %v2101
        %v2198 = vmul.f32 %v2165, %v2102
        %v2199 = vadd.f32 %v2039, %v2167
        %v2200 = vadd.f32 %v2040, %v2168
        %v2201 = vadd.f32 %v2041, %v2169
        %v2202 = vadd.f32 %v2042, %v2170
        %v2203 = vadd.f32 %v2043, %v2171
        %v2204 = vadd.f32 %v2044, %v2172
        %v2205 = vadd.f32 %v2045, %v2173
        %v2206 = vadd.f32 %v2046, %v2174
        %v2207 = vadd.f32 %v2047, %v2175
        %v2208 = vadd.f32 %v2048, %v2176
        %v2209 = vadd.f32 %v2049, %v2177
        %v2210 = vadd.f32 %v2050, %v2178
        %v2211 = vadd.f32 %v2051, %v2179
        %v2212 = vadd.f32 %v2052, %v2180
        %v2213 = vadd.f32 %v2053, %v2181
        %v2214 = vadd.f32 %v2054, %v2182
        %v2215 = vadd.f32 %v2055, %v2183
        %v2216 = vadd.f32 %v2056, %v2184
        %v2217 = vadd.f32 %v2057, %v2185
        %v2218 = vadd.f32 %v2058, %v2186
        %v2219 = vadd.f32 %v2059, %v2187
        %v2220 = vadd.f32 %v2060, %v2188
        %v2221 = vadd.f32 %v2061, %v2189
        %v2222 = vadd.f32 %v2062, %v2190
        %v2223 = vadd.f32 %v2063, %v2191
        %v2224 = vadd.f32 %v2064, %v2192
        %v2225 = vadd.f32 %v2065, %v2193
        %v2226 = vadd.f32 %v2066, %v2194
        %v2227 = vadd.f32 %v2067, %v2195
        %v2228 = vadd.f32 %v2068, %v2196
        %v2229 = vadd.f32 %v2069, %v2197
        %v2230 = vadd.f32 %v2070, %v2198
        %v2231 = vld [vmem:[%s370] sm:$0xff]
        %v2232 = vld [vmem:[%s370 + $0x8] sm:$0xff]
        %v2233 = vld [vmem:[%s370 + $0x10] sm:$0xff]
        %v2234 = vld [vmem:[%s370 + $0x18] sm:$0xff]
        %v2235 = vld [vmem:[%s370 + $0x20] sm:$0xff]
        %v2236 = vld [vmem:[%s370 + $0x28] sm:$0xff]
        %v2237 = vld [vmem:[%s370 + $0x30] sm:$0xff]
        %v2238 = vld [vmem:[%s370 + $0x38] sm:$0xff]
        %v2239 = vld [vmem:[%s370 + $0x40] sm:$0xff]
        %v2240 = vld [vmem:[%s370 + $0x48] sm:$0xff]
        %v2241 = vld [vmem:[%s370 + $0x50] sm:$0xff]
        %v2242 = vld [vmem:[%s370 + $0x58] sm:$0xff]
        %v2243 = vld [vmem:[%s370 + $0x60] sm:$0xff]
        %v2244 = vld [vmem:[%s370 + $0x68] sm:$0xff]
        %v2245 = vld [vmem:[%s370 + $0x70] sm:$0xff]
        %v2246 = vld [vmem:[%s370 + $0x78] sm:$0xff]
        %v2247 = vld [vmem:[%s370 + $0x80] sm:$0xff]
        %v2248 = vld [vmem:[%s370 + $0x88] sm:$0xff]
        %v2249 = vld [vmem:[%s370 + $0x90] sm:$0xff]
        %v2250 = vld [vmem:[%s370 + $0x98] sm:$0xff]
        %v2251 = vld [vmem:[%s370 + $0xa0] sm:$0xff]
        %v2252 = vld [vmem:[%s370 + $0xa8] sm:$0xff]
        %v2253 = vld [vmem:[%s370 + $0xb0] sm:$0xff]
        %v2254 = vld [vmem:[%s370 + $0xb8] sm:$0xff]
        %v2255 = vld [vmem:[%s370 + $0xc0] sm:$0xff]
        %v2256 = vld [vmem:[%s370 + $0xc8] sm:$0xff]
        %v2257 = vld [vmem:[%s370 + $0xd0] sm:$0xff]
        %v2258 = vld [vmem:[%s370 + $0xd8] sm:$0xff]
        %v2259 = vld [vmem:[%s370 + $0xe0] sm:$0xff]
        %v2260 = vld [vmem:[%s370 + $0xe8] sm:$0xff]
        %v2261 = vld [vmem:[%s370 + $0xf0] sm:$0xff]
        %v2262 = vld [vmem:[%s370 + $0xf8] sm:$0xff]
        %v2263 = vadd.f32 %v2199, %v2231
        %v2264 = vadd.f32 %v2200, %v2232
        %v2265 = vadd.f32 %v2201, %v2233
        %v2266 = vadd.f32 %v2202, %v2234
        %v2267 = vadd.f32 %v2203, %v2235
        %v2268 = vadd.f32 %v2204, %v2236
        %v2269 = vadd.f32 %v2205, %v2237
        %v2270 = vadd.f32 %v2206, %v2238
        %v2271 = vadd.f32 %v2207, %v2239
        %v2272 = vadd.f32 %v2208, %v2240
        %v2273 = vadd.f32 %v2209, %v2241
        %v2274 = vadd.f32 %v2210, %v2242
        %v2275 = vadd.f32 %v2211, %v2243
        %v2276 = vadd.f32 %v2212, %v2244
        %v2277 = vadd.f32 %v2213, %v2245
        %v2278 = vadd.f32 %v2214, %v2246
        %v2279 = vadd.f32 %v2215, %v2247
        %v2280 = vadd.f32 %v2216, %v2248
        %v2281 = vadd.f32 %v2217, %v2249
        %v2282 = vadd.f32 %v2218, %v2250
        %v2283 = vadd.f32 %v2219, %v2251
        %v2284 = vadd.f32 %v2220, %v2252
        %v2285 = vadd.f32 %v2221, %v2253
        %v2286 = vadd.f32 %v2222, %v2254
        %v2287 = vadd.f32 %v2223, %v2255
        %v2288 = vadd.f32 %v2224, %v2256
        %v2289 = vadd.f32 %v2225, %v2257
        %v2290 = vadd.f32 %v2226, %v2258
        %v2291 = vadd.f32 %v2227, %v2259
        %v2292 = vadd.f32 %v2228, %v2260
        %v2293 = vadd.f32 %v2229, %v2261
        %v2294 = vadd.f32 %v2230, %v2262
        %2295 = vst.msk [vmem:[%s338] sm:$0xff] %vm1157, %v2263
        %2296 = vst.msk [vmem:[%s338 + $0x8] sm:$0xff] %vm1157, %v2264
        %2297 = vst.msk [vmem:[%s338 + $0x10] sm:$0xff] %vm1157, %v2265
        %2298 = vst.msk [vmem:[%s338 + $0x18] sm:$0xff] %vm1157, %v2266
        %2299 = vst.msk [vmem:[%s338 + $0x20] sm:$0xff] %vm1157, %v2267
        %2300 = vst.msk [vmem:[%s338 + $0x28] sm:$0xff] %vm1157, %v2268
        %2301 = vst.msk [vmem:[%s338 + $0x30] sm:$0xff] %vm1157, %v2269
        %2302 = vst.msk [vmem:[%s338 + $0x38] sm:$0xff] %vm1157, %v2270
        %2303 = vst.msk [vmem:[%s338 + $0x40] sm:$0xff] %vm1157, %v2271
        %2304 = vst.msk [vmem:[%s338 + $0x48] sm:$0xff] %vm1157, %v2272
        %2305 = vst.msk [vmem:[%s338 + $0x50] sm:$0xff] %vm1157, %v2273
        %2306 = vst.msk [vmem:[%s338 + $0x58] sm:$0xff] %vm1157, %v2274
        %2307 = vst.msk [vmem:[%s338 + $0x60] sm:$0xff] %vm1157, %v2275
        %2308 = vst.msk [vmem:[%s338 + $0x68] sm:$0xff] %vm1157, %v2276
        %2309 = vst.msk [vmem:[%s338 + $0x70] sm:$0xff] %vm1157, %v2277
        %2310 = vst.msk [vmem:[%s338 + $0x78] sm:$0xff] %vm1157, %v2278
        %2311 = vst.msk [vmem:[%s338 + $0x80] sm:$0xff] %vm1157, %v2279
        %2312 = vst.msk [vmem:[%s338 + $0x88] sm:$0xff] %vm1157, %v2280
        %2313 = vst.msk [vmem:[%s338 + $0x90] sm:$0xff] %vm1157, %v2281
        %2314 = vst.msk [vmem:[%s338 + $0x98] sm:$0xff] %vm1157, %v2282
        %2315 = vst.msk [vmem:[%s338 + $0xa0] sm:$0xff] %vm1157, %v2283
        %2316 = vst.msk [vmem:[%s338 + $0xa8] sm:$0xff] %vm1157, %v2284
        %2317 = vst.msk [vmem:[%s338 + $0xb0] sm:$0xff] %vm1157, %v2285
        %2318 = vst.msk [vmem:[%s338 + $0xb8] sm:$0xff] %vm1157, %v2286
        %2319 = vst.msk [vmem:[%s338 + $0xc0] sm:$0xff] %vm1157, %v2287
        %2320 = vst.msk [vmem:[%s338 + $0xc8] sm:$0xff] %vm1157, %v2288
        %2321 = vst.msk [vmem:[%s338 + $0xd0] sm:$0xff] %vm1157, %v2289
        %2322 = vst.msk [vmem:[%s338 + $0xd8] sm:$0xff] %vm1157, %v2290
        %2323 = vst.msk [vmem:[%s338 + $0xe0] sm:$0xff] %vm1157, %v2291
        %2324 = vst.msk [vmem:[%s338 + $0xe8] sm:$0xff] %vm1157, %v2292
        %2325 = vst.msk [vmem:[%s338 + $0xf0] sm:$0xff] %vm1157, %v2293
        %2326 = vst.msk [vmem:[%s338 + $0xf8] sm:$0xff] %vm1157, %v2294
        %s2327 = sand.u32 %s179, 1
        %s2328 = scalar_lea.sflag [#allocation3], %s2327
        %s2329 = sand.u32 %s179, 1
        %s2330 = smul.addr %s2329, 256
        %s2331 = scalar_lea.vmem [#allocation2], %s2330
        // Predicated region
        $region41: #{multishape_forward.3} parent=39 // pred_check
          %p2332 = pneg %p189
        $region42: #{multishape_forward.3} parent=39 // pred_check_branch
          %2334 = sbr.rel (%p2332) target = $region44
        $region43: #{multishape_forward.3} parent=39 // pred_region
          %s2335 = smul.u32 16, %s24
          %s2337 = ssub.s32 4096, 4096
          %2338 = vsyncadd %s2328, %s2337
          %s2339 = smul.addr %s2335, 2
          %s2340 = smul.addr %s23, 32
          %s2341 = sadd.s32 %s2339, %s2340
          %s2342 = smul.addr %s2341, 128
          %s2343 = scalar_lea.hbm %s5, %s2342
          %s2344 = sshll.u32 %s2331, 4
          %s2345 = int_to_ptr.vmem [resolvable:$true] %s2344
          %2350 = dma.vmem_to_hbm [thread:$0]  %s2345, 4096, %s2343, %s2328, 128, 128, 8
        $region44: #{multishape_forward.3} parent=39 // pred_fallthru
          _
      $region40: #{multishape_forward.3} parent=5 // pred_fallthru
        _
      %p2351 = scmp.le.s32.totalorder 2, %s14
      // Predicated region
      $region45: #{multishape_forward.3} parent=5 // pred_check
        %p2352 = pneg %p2351
      $region46: #{multishape_forward.3} parent=5 // pred_check_branch
        %2354 = sbr.rel (%p2352) target = $region48
      $region47: #{multishape_forward.3} parent=5 // pred_region
        %s2355 = ssub.s32 %s14, 2
        // Predicated region
        $region49: #{multishape_forward.3} parent=47 // pred_check
          %p2356 = pneg %p195
        $region50: #{multishape_forward.3} parent=47 // pred_check_branch
          %2358 = sbr.rel (%p2356) target = $region52
        $region51: #{multishape_forward.3} parent=47 // pred_region
          %s2359 = sand.u32 %s180, 1
          %s2360 = scalar_lea.sflag [#allocation3], %s2359
          %s2361 = sand.u32 %s180, 1
          %s2362 = smul.addr %s2361, 256
          %s2363 = scalar_lea.vmem [#allocation2], %s2362
          %2364 = dma.done %s2360, 4096
        $region52: #{multishape_forward.3} parent=47 // pred_fallthru
          _
      $region48: #{multishape_forward.3} parent=5 // pred_fallthru
        _
    $region6: #{multishape_forward.3} parent=1 // loop_footer
      %s18 = sadd.s32 1, %s14
    $region7: #{multishape_forward.3} parent=1 // loop_footer_branch
      %13 = sbr.rel target = $region3
    $region8: #{multishape_forward.3} parent=1 // loop_exit
      _
    %2365 = vsyncpa [#allocation3], 1
    %s2366 = scalar_lea.sflag [#allocation3], 1
    %2367 = vsyncpa %s2366, 1

// kernel: multishape_forward.2
$region0: #{multishape_forward.2}
  #allocation0 [shape = 'u32[]', space=smem, size = 0x4, offset = 0x4, fixed_abs, tag = 'smem constant byte address 0x4 - core index']
  #allocation1 [shape = 'u32[144,128]{1,0:T(1,128)}', space=vmem, size = 0x12000, scoped, tag = 'internal scratch']
  %s0 = inlined_call_operand.vmem [shape: f32[2,16,16,16], index: 0, kind: input, shape index: {}]
  %s1 = inlined_call_operand.vmem [shape: f32[2,16,1,10], index: 1, kind: input, shape index: {}]
  %s2 = inlined_call_operand.vmem [shape: f32[2,16,1,3], index: 2, kind: input, shape index: {}]
  %s3 = inlined_call_operand.vmem [shape: f32[16,1,3], index: 3, kind: input, shape index: {}]
  %s4 = inlined_call_operand.vmem [shape: f32[16,1,3], index: 4, kind: input, shape index: {}]
  %s5 = inlined_call_operand.vmem [shape: f32[2,16,16,16], index: 5, kind: output, shape index: {0}]
  %s6 = inlined_call_operand.vmem [shape: f32[2,16,16,16], index: 6, kind: output, shape index: {1}]
  %s7 = inlined_call_operand.vmem [shape: f32[2,16,1,1], index: 7, kind: output, shape index: {2}]
  %8 = xla_tuple %s5, %s6, %s7
  %s9 = sld [smem:[#allocation0]]
  $region69: #{multishape_forward.2} parent=0
    _
  %s11 = ssub.s32 1, %s9
  %s12 = scalar_select 0, %s11, %s9
  loop: start=0, step=1, limit=4
  $region2: #{multishape_forward.2} parent=0 // loop_pre_header
    _
  $region3: #{multishape_forward.2} parent=0 // loop_header
    %s14 = sphi 0, %s18
    %p15 = scmp.ge.s32.totalorder %s14, 4
    %s21 = sphi 0, %s33
    %s22 = sphi 0, %s29
    %s23 = sphi 0, %s21
    %s24 = sphi 0, %s22
    %s25 = sphi 0, %s23
    %s26 = sphi 0, %s24
    %s38 = sphi 0, %s40
    %s41 = sphi 0, %s38
    %s42 = sphi 0, %s41
    %s58 = sphi 0, %s42
    %s66 = sphi 0, %s68
    %s69 = sphi 0, %s66
    %s70 = sphi 0, %s69
    %s86 = sphi 0, %s70
    %s94 = sphi 0, %s96
    %s97 = sphi 0, %s94
    %s98 = sphi 0, %s97
    %s114 = sphi 0, %s98
    %s120 = sphi 0, %s122
    %s123 = sphi 0, %s120
    %s124 = sphi 0, %s123
    %s140 = sphi 0, %s124
    %s146 = sphi 0, %s148
    %s149 = sphi 0, %s146
    %s150 = sphi 0, %s149
    %s166 = sphi 0, %s150
    %s174 = sphi 0, %s176
    %s177 = sphi 0, %s174
    %s178 = sphi 0, %s177
    %s194 = sphi 0, %s178
    %s202 = sphi 0, %s204
    %s205 = sphi 0, %s202
    %s206 = sphi 0, %s205
    %s222 = sphi 0, %s206
    %s230 = sphi 0, %s232
    %s233 = sphi 0, %s230
    %s234 = sphi 0, %s233
    %s250 = sphi 0, %s234
  $region4: #{multishape_forward.2} parent=0 // loop_header_branch
    %17 = sbr.rel (%p15) target = $region8
  $region5: #{multishape_forward.2} parent=0 // loop_body
    %s19 = ssub.s32 %s14, 1
    %s20 = ssub.s32 %s14, 2
    %s27 = sadd.s32 1, %s22
    %p28 = scmp.ge.s32.totalorder %s27, 1
    %s29 = scalar_select %p28, 0, %s27
    %s30 = sadd.s32 1, %s21
    %s31 = scalar_select %p28, %s30, %s21
    %p32 = scmp.ge.s32.totalorder %s31, 2
    %s33 = scalar_select %p32, 0, %s31
    %s34 = ssub.s32 %s21, %s33
    %s35 = ssub.s32 %s22, %s29
    %s36 = sor.u32 %s34, %s35
    %p37 = scmp.eq.s32.totalorder %s36, 0
    %s39 = sadd.s32 %s38, 1
    %s40 = scalar_select %p37, %s38, %s39
    %p43 = pneg %p37
    %p44 = scmp.eq.s32.totalorder %s14, 1
    %p45 = por %p43, %p44
    %p46 = scmp.ne.s32.totalorder %s38, %s41
    %p47 = scmp.eq.s32.totalorder %s14, 0
    %p48 = por %p46, %p47
    %p49 = scmp.ne.s32.totalorder %s38, %s41
    %p50 = scmp.eq.s32.totalorder %s19, 1
    %p51 = por %p49, %p50
    %p52 = scmp.ne.s32.totalorder %s41, %s42
    %p53 = scmp.eq.s32.totalorder %s19, 0
    %p54 = por %p52, %p53
    %p55 = scmp.ne.s32.totalorder %s41, %s42
    %p56 = scmp.eq.s32.totalorder %s20, 1
    %p57 = por %p55, %p56
    %p59 = scmp.ne.s32.totalorder %s42, %s58
    %p60 = scmp.eq.s32.totalorder %s20, 0
    %p61 = por %p59, %p60
    %s62 = ssub.s32 %s21, %s33
    %s63 = ssub.s32 %s22, %s29
    %s64 = sor.u32 %s62, %s63
    %p65 = scmp.eq.s32.totalorder %s64, 0
    %s67 = sadd.s32 %s66, 1
    %s68 = scalar_select %p65, %s66, %s67
    %p71 = pneg %p65
    %p72 = scmp.eq.s32.totalorder %s14, 1
    %p73 = por %p71, %p72
    %p74 = scmp.ne.s32.totalorder %s66, %s69
    %p75 = scmp.eq.s32.totalorder %s14, 0
    %p76 = por %p74, %p75
    %p77 = scmp.ne.s32.totalorder %s66, %s69
    %p78 = scmp.eq.s32.totalorder %s19, 1
    %p79 = por %p77, %p78
    %p80 = scmp.ne.s32.totalorder %s69, %s70
    %p81 = scmp.eq.s32.totalorder %s19, 0
    %p82 = por %p80, %p81
    %p83 = scmp.ne.s32.totalorder %s69, %s70
    %p84 = scmp.eq.s32.totalorder %s20, 1
    %p85 = por %p83, %p84
    %p87 = scmp.ne.s32.totalorder %s70, %s86
    %p88 = scmp.eq.s32.totalorder %s20, 0
    %p89 = por %p87, %p88
    %s90 = ssub.s32 %s21, %s33
    %s91 = ssub.s32 %s22, %s29
    %s92 = sor.u32 %s90, %s91
    %p93 = scmp.eq.s32.totalorder %s92, 0
    %s95 = sadd.s32 %s94, 1
    %s96 = scalar_select %p93, %s94, %s95
    %p99 = pneg %p93
    %p100 = scmp.eq.s32.totalorder %s14, 1
    %p101 = por %p99, %p100
    %p102 = scmp.ne.s32.totalorder %s94, %s97
    %p103 = scmp.eq.s32.totalorder %s14, 0
    %p104 = por %p102, %p103
    %p105 = scmp.ne.s32.totalorder %s94, %s97
    %p106 = scmp.eq.s32.totalorder %s19, 1
    %p107 = por %p105, %p106
    %p108 = scmp.ne.s32.totalorder %s97, %s98
    %p109 = scmp.eq.s32.totalorder %s19, 0
    %p110 = por %p108, %p109
    %p111 = scmp.ne.s32.totalorder %s97, %s98
    %p112 = scmp.eq.s32.totalorder %s20, 1
    %p113 = por %p111, %p112
    %p115 = scmp.ne.s32.totalorder %s98, %s114
    %p116 = scmp.eq.s32.totalorder %s20, 0
    %p117 = por %p115, %p116
    %s118 = ssub.s32 %s22, %s29
    %p119 = scmp.eq.s32.totalorder %s118, 0
    %s121 = sadd.s32 %s120, 1
    %s122 = scalar_select %p119, %s120, %s121
    %p125 = pneg %p119
    %p126 = scmp.eq.s32.totalorder %s14, 1
    %p127 = por %p125, %p126
    %p128 = scmp.ne.s32.totalorder %s120, %s123
    %p129 = scmp.eq.s32.totalorder %s14, 0
    %p130 = por %p128, %p129
    %p131 = scmp.ne.s32.totalorder %s120, %s123
    %p132 = scmp.eq.s32.totalorder %s19, 1
    %p133 = por %p131, %p132
    %p134 = scmp.ne.s32.totalorder %s123, %s124
    %p135 = scmp.eq.s32.totalorder %s19, 0
    %p136 = por %p134, %p135
    %p137 = scmp.ne.s32.totalorder %s123, %s124
    %p138 = scmp.eq.s32.totalorder %s20, 1
    %p139 = por %p137, %p138
    %p141 = scmp.ne.s32.totalorder %s124, %s140
    %p142 = scmp.eq.s32.totalorder %s20, 0
    %p143 = por %p141, %p142
    %s144 = ssub.s32 %s22, %s29
    %p145 = scmp.eq.s32.totalorder %s144, 0
    %s147 = sadd.s32 %s146, 1
    %s148 = scalar_select %p145, %s146, %s147
    %p151 = pneg %p145
    %p152 = scmp.eq.s32.totalorder %s14, 1
    %p153 = por %p151, %p152
    %p154 = scmp.ne.s32.totalorder %s146, %s149
    %p155 = scmp.eq.s32.totalorder %s14, 0
    %p156 = por %p154, %p155
    %p157 = scmp.ne.s32.totalorder %s146, %s149
    %p158 = scmp.eq.s32.totalorder %s19, 1
    %p159 = por %p157, %p158
    %p160 = scmp.ne.s32.totalorder %s149, %s150
    %p161 = scmp.eq.s32.totalorder %s19, 0
    %p162 = por %p160, %p161
    %p163 = scmp.ne.s32.totalorder %s149, %s150
    %p164 = scmp.eq.s32.totalorder %s20, 1
    %p165 = por %p163, %p164
    %p167 = scmp.ne.s32.totalorder %s150, %s166
    %p168 = scmp.eq.s32.totalorder %s20, 0
    %p169 = por %p167, %p168
    %s170 = ssub.s32 %s21, %s33
    %s171 = ssub.s32 %s22, %s29
    %s172 = sor.u32 %s170, %s171
    %p173 = scmp.eq.s32.totalorder %s172, 0
    %s175 = sadd.s32 %s174, 1
    %s176 = scalar_select %p173, %s174, %s175
    %p179 = pneg %p173
    %p180 = scmp.eq.s32.totalorder %s14, 1
    %p181 = por %p179, %p180
    %p182 = scmp.ne.s32.totalorder %s174, %s177
    %p183 = scmp.eq.s32.totalorder %s14, 0
    %p184 = por %p182, %p183
    %p185 = scmp.ne.s32.totalorder %s174, %s177
    %p186 = scmp.eq.s32.totalorder %s19, 1
    %p187 = por %p185, %p186
    %p188 = scmp.ne.s32.totalorder %s177, %s178
    %p189 = scmp.eq.s32.totalorder %s19, 0
    %p190 = por %p188, %p189
    %p191 = scmp.ne.s32.totalorder %s177, %s178
    %p192 = scmp.eq.s32.totalorder %s20, 1
    %p193 = por %p191, %p192
    %p195 = scmp.ne.s32.totalorder %s178, %s194
    %p196 = scmp.eq.s32.totalorder %s20, 0
    %p197 = por %p195, %p196
    %s198 = ssub.s32 %s21, %s33
    %s199 = ssub.s32 %s22, %s29
    %s200 = sor.u32 %s198, %s199
    %p201 = scmp.eq.s32.totalorder %s200, 0
    %s203 = sadd.s32 %s202, 1
    %s204 = scalar_select %p201, %s202, %s203
    %p207 = pneg %p201
    %p208 = scmp.eq.s32.totalorder %s14, 1
    %p209 = por %p207, %p208
    %p210 = scmp.ne.s32.totalorder %s202, %s205
    %p211 = scmp.eq.s32.totalorder %s14, 0
    %p212 = por %p210, %p211
    %p213 = scmp.ne.s32.totalorder %s202, %s205
    %p214 = scmp.eq.s32.totalorder %s19, 1
    %p215 = por %p213, %p214
    %p216 = scmp.ne.s32.totalorder %s205, %s206
    %p217 = scmp.eq.s32.totalorder %s19, 0
    %p218 = por %p216, %p217
    %p219 = scmp.ne.s32.totalorder %s205, %s206
    %p220 = scmp.eq.s32.totalorder %s20, 1
    %p221 = por %p219, %p220
    %p223 = scmp.ne.s32.totalorder %s206, %s222
    %p224 = scmp.eq.s32.totalorder %s20, 0
    %p225 = por %p223, %p224
    %s226 = ssub.s32 %s21, %s33
    %s227 = ssub.s32 %s22, %s29
    %s228 = sor.u32 %s226, %s227
    %p229 = scmp.eq.s32.totalorder %s228, 0
    %s231 = sadd.s32 %s230, 1
    %s232 = scalar_select %p229, %s230, %s231
    %p235 = pneg %p229
    %p236 = scmp.eq.s32.totalorder %s14, 1
    %p237 = por %p235, %p236
    %p238 = scmp.ne.s32.totalorder %s230, %s233
    %p239 = scmp.eq.s32.totalorder %s14, 0
    %p240 = por %p238, %p239
    %p241 = scmp.ne.s32.totalorder %s230, %s233
    %p242 = scmp.eq.s32.totalorder %s19, 1
    %p243 = por %p241, %p242
    %p244 = scmp.ne.s32.totalorder %s233, %s234
    %p245 = scmp.eq.s32.totalorder %s19, 0
    %p246 = por %p244, %p245
    %p247 = scmp.ne.s32.totalorder %s233, %s234
    %p248 = scmp.eq.s32.totalorder %s20, 1
    %p249 = por %p247, %p248
    %p251 = scmp.ne.s32.totalorder %s234, %s250
    %p252 = scmp.eq.s32.totalorder %s20, 0
    %p253 = por %p251, %p252
    %p254 = scmp.le.s32.totalorder 1, %s14
    %p255 = scmp.lt.s32.totalorder %s14, 3
    %p256 = pnand %p254, %p255
    %p257 = pneg %p256
    // Predicated region
    $region9: #{multishape_forward.2} parent=5 // pred_check
      _
    $region10: #{multishape_forward.2} parent=5 // pred_check_branch
      %259 = sbr.rel (%p256) target = $region12
    $region11: #{multishape_forward.2} parent=5 // pred_region
      %s260 = ssub.s32 %s14, 1
      // Predicated region
      $region13: #{multishape_forward.2} parent=11 // pred_check
        %p261 = pneg %p136
      $region14: #{multishape_forward.2} parent=11 // pred_check_branch
        %263 = sbr.rel (%p261) target = $region16
      $region15: #{multishape_forward.2} parent=11 // pred_region
        %s264 = smul.u32 16, %s24
        %p265 = scmp.lt.s32.totalorder %s264, 15
        %s266 = scalar_select %p265, %s264, 15
        %s267 = scalar_lea.vmem %s3, %s266
        %s268 = smul.u32 16, %s24
      $region16: #{multishape_forward.2} parent=11 // pred_fallthru
        _
      // Predicated region
      $region17: #{multishape_forward.2} parent=11 // pred_check
        %p269 = pneg %p162
      $region18: #{multishape_forward.2} parent=11 // pred_check_branch
        %271 = sbr.rel (%p269) target = $region20
      $region19: #{multishape_forward.2} parent=11 // pred_region
        %s272 = smul.u32 16, %s24
        %p273 = scmp.lt.s32.totalorder %s272, 15
        %s274 = scalar_select %p273, %s272, 15
        %s275 = scalar_lea.vmem %s4, %s274
        %s276 = smul.u32 16, %s24
      $region20: #{multishape_forward.2} parent=11 // pred_fallthru
        _
    $region12: #{multishape_forward.2} parent=5 // pred_fallthru
      _
    %p277 = scmp.lt.s32.totalorder %s14, 2
    // Predicated region
    $region21: #{multishape_forward.2} parent=5 // pred_check
      %p278 = pneg %p277
    $region22: #{multishape_forward.2} parent=5 // pred_check_branch
      %280 = sbr.rel (%p278) target = $region24
    $region23: #{multishape_forward.2} parent=5 // pred_region
      // Predicated region
      $region25: #{multishape_forward.2} parent=23 // pred_check
        %p281 = pneg %p48
      $region26: #{multishape_forward.2} parent=23 // pred_check_branch
        %283 = sbr.rel (%p281) target = $region28
      $region27: #{multishape_forward.2} parent=23 // pred_region
        %s284 = smul.u32 16, %s22
        %p285 = scmp.lt.s32.totalorder %s21, 1
        %s286 = scalar_select %p285, %s21, 1
        %p287 = scmp.lt.s32.totalorder %s284, 15
        %s288 = scalar_select %p287, %s284, 15
        %s289 = smul.addr %s288, 2
        %s290 = smul.addr %s286, 32
        %s291 = sadd.s32 %s289, %s290
        %s292 = smul.addr %s291, 8
        %s293 = scalar_lea.vmem %s0, %s292
        %s294 = smul.u32 16, %s22
      $region28: #{multishape_forward.2} parent=23 // pred_fallthru
        _
      // Predicated region
      $region29: #{multishape_forward.2} parent=23 // pred_check
        %p295 = pneg %p76
      $region30: #{multishape_forward.2} parent=23 // pred_check_branch
        %297 = sbr.rel (%p295) target = $region32
      $region31: #{multishape_forward.2} parent=23 // pred_region
        %s298 = smul.u32 16, %s22
        %p299 = scmp.lt.s32.totalorder %s21, 1
        %s300 = scalar_select %p299, %s21, 1
        %p301 = scmp.lt.s32.totalorder %s298, 15
        %s302 = scalar_select %p301, %s298, 15
        %s303 = smul.addr %s300, 16
        %s304 = sadd.s32 %s302, %s303
        %s305 = scalar_lea.vmem %s1, %s304
        %s306 = smul.u32 16, %s22
      $region32: #{multishape_forward.2} parent=23 // pred_fallthru
        _
      // Predicated region
      $region33: #{multishape_forward.2} parent=23 // pred_check
        %p307 = pneg %p104
      $region34: #{multishape_forward.2} parent=23 // pred_check_branch
        %309 = sbr.rel (%p307) target = $region36
      $region35: #{multishape_forward.2} parent=23 // pred_region
        %s310 = smul.u32 16, %s22
        %p311 = scmp.lt.s32.totalorder %s21, 1
        %s312 = scalar_select %p311, %s21, 1
        %p313 = scmp.lt.s32.totalorder %s310, 15
        %s314 = scalar_select %p313, %s310, 15
        %s315 = smul.addr %s312, 16
        %s316 = sadd.s32 %s314, %s315
        %s317 = scalar_lea.vmem %s2, %s316
        %s318 = smul.u32 16, %s22
      $region36: #{multishape_forward.2} parent=23 // pred_fallthru
        _
    $region24: #{multishape_forward.2} parent=5 // pred_fallthru
      _
    %p319 = scmp.le.s32.totalorder 1, %s14
    %p320 = scmp.lt.s32.totalorder %s14, 3
    %p321 = pnand %p319, %p320
    %p322 = pneg %p321
    // Predicated region
    $region37: #{multishape_forward.2} parent=5 // pred_check
      _
    $region38: #{multishape_forward.2} parent=5 // pred_check_branch
      %324 = sbr.rel (%p321) target = $region40
    $region39: #{multishape_forward.2} parent=5 // pred_region
      %s325 = ssub.s32 %s14, 1
      %s326 = smul.u32 16, %s24
      %p327 = scmp.lt.s32.totalorder %s23, 1
      %s328 = scalar_select %p327, %s23, 1
      %p329 = scmp.lt.s32.totalorder %s326, 15
      %s330 = scalar_select %p329, %s326, 15
      %s331 = smul.addr %s330, 2
      %s332 = smul.addr %s328, 32
      %s333 = sadd.s32 %s331, %s332
      %s334 = smul.addr %s333, 8
      %s335 = scalar_lea.vmem %s0, %s334
      %p336 = pneg %p54
      %p337 = pneg %p51
      %s338 = smul.u32 16, %s24
      %p339 = scmp.lt.s32.totalorder %s23, 1
      %s340 = scalar_select %p339, %s23, 1
      %p341 = scmp.lt.s32.totalorder %s338, 15
      %s342 = scalar_select %p341, %s338, 15
      %s343 = smul.addr %s340, 16
      %s344 = sadd.s32 %s342, %s343
      %s345 = scalar_lea.vmem %s1, %s344
      %p346 = pneg %p82
      %p347 = pneg %p79
      %s348 = smul.u32 16, %s24
      %p349 = scmp.lt.s32.totalorder %s23, 1
      %s350 = scalar_select %p349, %s23, 1
      %p351 = scmp.lt.s32.totalorder %s348, 15
      %s352 = scalar_select %p351, %s348, 15
      %s353 = smul.addr %s350, 16
      %s354 = sadd.s32 %s352, %s353
      %s355 = scalar_lea.vmem %s2, %s354
      %p356 = pneg %p110
      %p357 = pneg %p107
      %s358 = smul.u32 16, %s24
      %p359 = scmp.lt.s32.totalorder %s358, 15
      %s360 = scalar_select %p359, %s358, 15
      %s361 = scalar_lea.vmem %s3, %s360
      %p362 = pneg %p136
      %p363 = pneg %p133
      %s364 = smul.u32 16, %s24
      %p365 = scmp.lt.s32.totalorder %s364, 15
      %s366 = scalar_select %p365, %s364, 15
      %s367 = scalar_lea.vmem %s4, %s366
      %p368 = pneg %p162
      %p369 = pneg %p159
      %p370 = pneg %p190
      %p371 = pneg %p187
      %s372 = smul.u32 16, %s24
      %p373 = scmp.lt.s32.totalorder %s23, 1
      %s374 = scalar_select %p373, %s23, 1
      %p375 = scmp.lt.s32.totalorder %s372, 15
      %s376 = scalar_select %p375, %s372, 15
      %s377 = smul.addr %s376, 2
      %s378 = smul.addr %s374, 32
      %s379 = sadd.s32 %s377, %s378
      %s380 = smul.addr %s379, 8
      %s381 = scalar_lea.vmem %s5, %s380
      %p382 = pneg %p218
      %p383 = pneg %p215
      %s384 = smul.u32 16, %s24
      %p385 = scmp.lt.s32.totalorder %s23, 1
      %s386 = scalar_select %p385, %s23, 1
      %p387 = scmp.lt.s32.totalorder %s384, 15
      %s388 = scalar_select %p387, %s384, 15
      %s389 = smul.addr %s388, 2
      %s390 = smul.addr %s386, 32
      %s391 = sadd.s32 %s389, %s390
      %s392 = smul.addr %s391, 8
      %s393 = scalar_lea.vmem %s6, %s392
      %p394 = pneg %p246
      %p395 = pneg %p243
      %s396 = smul.u32 16, %s24
      %p397 = scmp.lt.s32.totalorder %s23, 1
      %s398 = scalar_select %p397, %s23, 1
      %p399 = scmp.lt.s32.totalorder %s396, 15
      %s400 = scalar_select %p399, %s396, 15
      %s401 = smul.addr %s398, 16
      %s402 = sadd.s32 %s400, %s401
      %s403 = scalar_lea.vmem %s7, %s402
      %s404 = smul.u32 16, %s24
      %p405 = scmp.lt.s32.totalorder %s23, 1
      %s406 = scalar_select %p405, %s23, 1
      %p407 = scmp.lt.s32.totalorder %s404, 15
      %s408 = scalar_select %p407, %s404, 15
      %s409 = smul.addr %s408, 2
      %s410 = smul.addr %s406, 32
      %s411 = sadd.s32 %s409, %s410
      %s412 = smul.addr %s411, 8
      %s413 = scalar_lea.vmem %s0, %s412
      %s414 = smul.u32 16, %s24
      %s415 = smul.u32 16, %s24
      %p416 = scmp.lt.s32.totalorder %s23, 1
      %s417 = scalar_select %p416, %s23, 1
      %p418 = scmp.lt.s32.totalorder %s415, 15
      %s419 = scalar_select %p418, %s415, 15
      %s420 = smul.addr %s417, 16
      %s421 = sadd.s32 %s419, %s420
      %s422 = scalar_lea.vmem %s1, %s421
      %s423 = smul.u32 16, %s24
      %s424 = smul.u32 16, %s24
      %p425 = scmp.lt.s32.totalorder %s23, 1
      %s426 = scalar_select %p425, %s23, 1
      %p427 = scmp.lt.s32.totalorder %s424, 15
      %s428 = scalar_select %p427, %s424, 15
      %s429 = smul.addr %s426, 16
      %s430 = sadd.s32 %s428, %s429
      %s431 = scalar_lea.vmem %s2, %s430
      %s432 = smul.u32 16, %s24
      %s433 = smul.u32 16, %s24
      %p434 = scmp.lt.s32.totalorder %s433, 15
      %s435 = scalar_select %p434, %s433, 15
      %s436 = scalar_lea.vmem %s3, %s435
      %s437 = smul.u32 16, %s24
      %s438 = smul.u32 16, %s24
      %p439 = scmp.lt.s32.totalorder %s438, 15
      %s440 = scalar_select %p439, %s438, 15
      %s441 = scalar_lea.vmem %s4, %s440
      %s442 = smul.u32 16, %s24
      %s443 = smul.u32 16, %s24
      %p444 = scmp.lt.s32.totalorder %s23, 1
      %s445 = scalar_select %p444, %s23, 1
      %p446 = scmp.lt.s32.totalorder %s443, 15
      %s447 = scalar_select %p446, %s443, 15
      %s448 = smul.addr %s447, 2
      %s449 = smul.addr %s445, 32
      %s450 = sadd.s32 %s448, %s449
      %s451 = smul.addr %s450, 8
      %s452 = scalar_lea.vmem %s5, %s451
      %s453 = smul.u32 16, %s24
      %s454 = smul.u32 16, %s24
      %p455 = scmp.lt.s32.totalorder %s23, 1
      %s456 = scalar_select %p455, %s23, 1
      %p457 = scmp.lt.s32.totalorder %s454, 15
      %s458 = scalar_select %p457, %s454, 15
      %s459 = smul.addr %s458, 2
      %s460 = smul.addr %s456, 32
      %s461 = sadd.s32 %s459, %s460
      %s462 = smul.addr %s461, 8
      %s463 = scalar_lea.vmem %s6, %s462
      %s464 = smul.u32 16, %s24
      %s465 = smul.u32 16, %s24
      %p466 = scmp.lt.s32.totalorder %s23, 1
      %s467 = scalar_select %p466, %s23, 1
      %p468 = scmp.lt.s32.totalorder %s465, 15
      %s469 = scalar_select %p468, %s465, 15
      %s470 = smul.addr %s467, 16
      %s471 = sadd.s32 %s469, %s470
      %s472 = scalar_lea.vmem %s7, %s471
      %s473 = smul.u32 16, %s24
      %v474 = vld [vmem:[%s413] sm:$0xff]
      %v475 = vld [vmem:[%s413 + $0x8] sm:$0xff]
      %v476 = vld [vmem:[%s413 + $0x10] sm:$0xff]
      %v477 = vld [vmem:[%s413 + $0x18] sm:$0xff]
      %v478 = vld [vmem:[%s413 + $0x20] sm:$0xff]
      %v479 = vld [vmem:[%s413 + $0x28] sm:$0xff]
      %v480 = vld [vmem:[%s413 + $0x30] sm:$0xff]
      %v481 = vld [vmem:[%s413 + $0x38] sm:$0xff]
      %v482 = vld [vmem:[%s413 + $0x40] sm:$0xff]
      %v483 = vld [vmem:[%s413 + $0x48] sm:$0xff]
      %v484 = vld [vmem:[%s413 + $0x50] sm:$0xff]
      %v485 = vld [vmem:[%s413 + $0x58] sm:$0xff]
      %v486 = vld [vmem:[%s413 + $0x60] sm:$0xff]
      %v487 = vld [vmem:[%s413 + $0x68] sm:$0xff]
      %v488 = vld [vmem:[%s413 + $0x70] sm:$0xff]
      %v489 = vld [vmem:[%s413 + $0x78] sm:$0xff]
      %v490 = vld [vmem:[%s413 + $0x80] sm:$0xff]
      %v491 = vld [vmem:[%s413 + $0x88] sm:$0xff]
      %v492 = vld [vmem:[%s413 + $0x90] sm:$0xff]
      %v493 = vld [vmem:[%s413 + $0x98] sm:$0xff]
      %v494 = vld [vmem:[%s413 + $0xa0] sm:$0xff]
      %v495 = vld [vmem:[%s413 + $0xa8] sm:$0xff]
      %v496 = vld [vmem:[%s413 + $0xb0] sm:$0xff]
      %v497 = vld [vmem:[%s413 + $0xb8] sm:$0xff]
      %v498 = vld [vmem:[%s413 + $0xc0] sm:$0xff]
      %v499 = vld [vmem:[%s413 + $0xc8] sm:$0xff]
      %v500 = vld [vmem:[%s413 + $0xd0] sm:$0xff]
      %v501 = vld [vmem:[%s413 + $0xd8] sm:$0xff]
      %v502 = vld [vmem:[%s413 + $0xe0] sm:$0xff]
      %v503 = vld [vmem:[%s413 + $0xe8] sm:$0xff]
      %v504 = vld [vmem:[%s413 + $0xf0] sm:$0xff]
      %v505 = vld [vmem:[%s413 + $0xf8] sm:$0xff]
      %v506 = vld [vmem:[%s436] sm:$0x1]
      %v507 = vld [vmem:[%s436 + $0x1] sm:$0x1]
      %v508 = vld [vmem:[%s436 + $0x2] sm:$0x1]
      %v509 = vld [vmem:[%s436 + $0x3] sm:$0x1]
      %v510 = vld [vmem:[%s436 + $0x4] sm:$0x1]
      %v511 = vld [vmem:[%s436 + $0x5] sm:$0x1]
      %v512 = vld [vmem:[%s436 + $0x6] sm:$0x1]
      %v513 = vld [vmem:[%s436 + $0x7] sm:$0x1]
      %v514 = vld [vmem:[%s436 + $0x8] sm:$0x1]
      %v515 = vld [vmem:[%s436 + $0x9] sm:$0x1]
      %v516 = vld [vmem:[%s436 + $0xa] sm:$0x1]
      %v517 = vld [vmem:[%s436 + $0xb] sm:$0x1]
      %v518 = vld [vmem:[%s436 + $0xc] sm:$0x1]
      %v519 = vld [vmem:[%s436 + $0xd] sm:$0x1]
      %v520 = vld [vmem:[%s436 + $0xe] sm:$0x1]
      %v521 = vld [vmem:[%s436 + $0xf] sm:$0x1]
      %v522 = vld [vmem:[%s441] sm:$0x1]
      %v523 = vld [vmem:[%s441 + $0x1] sm:$0x1]
      %v524 = vld [vmem:[%s441 + $0x2] sm:$0x1]
      %v525 = vld [vmem:[%s441 + $0x3] sm:$0x1]
      %v526 = vld [vmem:[%s441 + $0x4] sm:$0x1]
      %v527 = vld [vmem:[%s441 + $0x5] sm:$0x1]
      %v528 = vld [vmem:[%s441 + $0x6] sm:$0x1]
      %v529 = vld [vmem:[%s441 + $0x7] sm:$0x1]
      %v530 = vld [vmem:[%s441 + $0x8] sm:$0x1]
      %v531 = vld [vmem:[%s441 + $0x9] sm:$0x1]
      %v532 = vld [vmem:[%s441 + $0xa] sm:$0x1]
      %v533 = vld [vmem:[%s441 + $0xb] sm:$0x1]
      %v534 = vld [vmem:[%s441 + $0xc] sm:$0x1]
      %v535 = vld [vmem:[%s441 + $0xd] sm:$0x1]
      %v536 = vld [vmem:[%s441 + $0xe] sm:$0x1]
      %v537 = vld [vmem:[%s441 + $0xf] sm:$0x1]
      %v538 = vadd.f32 %v506, 1.0
      %v539 = vadd.f32 %v507, 1.0
      %v540 = vadd.f32 %v508, 1.0
      %v541 = vadd.f32 %v509, 1.0
      %v542 = vadd.f32 %v510, 1.0
      %v543 = vadd.f32 %v511, 1.0
      %v544 = vadd.f32 %v512, 1.0
      %v545 = vadd.f32 %v513, 1.0
      %v546 = vadd.f32 %v514, 1.0
      %v547 = vadd.f32 %v515, 1.0
      %v548 = vadd.f32 %v516, 1.0
      %v549 = vadd.f32 %v517, 1.0
      %v550 = vadd.f32 %v518, 1.0
      %v551 = vadd.f32 %v519, 1.0
      %v552 = vadd.f32 %v520, 1.0
      %v553 = vadd.f32 %v521, 1.0
      %v554 = vadd.f32 %v522, 1.0
      %v555 = vadd.f32 %v523, 1.0
      %v556 = vadd.f32 %v524, 1.0
      %v557 = vadd.f32 %v525, 1.0
      %v558 = vadd.f32 %v526, 1.0
      %v559 = vadd.f32 %v527, 1.0
      %v560 = vadd.f32 %v528, 1.0
      %v561 = vadd.f32 %v529, 1.0
      %v562 = vadd.f32 %v530, 1.0
      %v563 = vadd.f32 %v531, 1.0
      %v564 = vadd.f32 %v532, 1.0
      %v565 = vadd.f32 %v533, 1.0
      %v566 = vadd.f32 %v534, 1.0
      %v567 = vadd.f32 %v535, 1.0
      %v568 = vadd.f32 %v536, 1.0
      %v569 = vadd.f32 %v537, 1.0
      %v570 = vld [vmem:[%s422] sm:$0x1]
      %v571 = vld [vmem:[%s422 + $0x1] sm:$0x1]
      %v572 = vld [vmem:[%s422 + $0x2] sm:$0x1]
      %v573 = vld [vmem:[%s422 + $0x3] sm:$0x1]
      %v574 = vld [vmem:[%s422 + $0x4] sm:$0x1]
      %v575 = vld [vmem:[%s422 + $0x5] sm:$0x1]
      %v576 = vld [vmem:[%s422 + $0x6] sm:$0x1]
      %v577 = vld [vmem:[%s422 + $0x7] sm:$0x1]
      %v578 = vld [vmem:[%s422 + $0x8] sm:$0x1]
      %v579 = vld [vmem:[%s422 + $0x9] sm:$0x1]
      %v580 = vld [vmem:[%s422 + $0xa] sm:$0x1]
      %v581 = vld [vmem:[%s422 + $0xb] sm:$0x1]
      %v582 = vld [vmem:[%s422 + $0xc] sm:$0x1]
      %v583 = vld [vmem:[%s422 + $0xd] sm:$0x1]
      %v584 = vld [vmem:[%s422 + $0xe] sm:$0x1]
      %v585 = vld [vmem:[%s422 + $0xf] sm:$0x1]
      %v586 = vld [vmem:[%s431] sm:$0x1]
      %v587 = vld [vmem:[%s431 + $0x1] sm:$0x1]
      %v588 = vld [vmem:[%s431 + $0x2] sm:$0x1]
      %v589 = vld [vmem:[%s431 + $0x3] sm:$0x1]
      %v590 = vld [vmem:[%s431 + $0x4] sm:$0x1]
      %v591 = vld [vmem:[%s431 + $0x5] sm:$0x1]
      %v592 = vld [vmem:[%s431 + $0x6] sm:$0x1]
      %v593 = vld [vmem:[%s431 + $0x7] sm:$0x1]
      %v594 = vld [vmem:[%s431 + $0x8] sm:$0x1]
      %v595 = vld [vmem:[%s431 + $0x9] sm:$0x1]
      %v596 = vld [vmem:[%s431 + $0xa] sm:$0x1]
      %v597 = vld [vmem:[%s431 + $0xb] sm:$0x1]
      %v598 = vld [vmem:[%s431 + $0xc] sm:$0x1]
      %v599 = vld [vmem:[%s431 + $0xd] sm:$0x1]
      %v600 = vld [vmem:[%s431 + $0xe] sm:$0x1]
      %v601 = vld [vmem:[%s431 + $0xf] sm:$0x1]
      %634 = vrot.lane.b32.xlu0 %v474, 127
      %v635 = vpop.permute.xlu0 %634
      %636 = vrot.lane.b32.xlu0 %v475, 127
      %v637 = vpop.permute.xlu0 %636
      %638 = vrot.lane.b32.xlu0 %v476, 127
      %v639 = vpop.permute.xlu0 %638
      %640 = vrot.lane.b32.xlu0 %v477, 127
      %v641 = vpop.permute.xlu0 %640
      %642 = vrot.lane.b32.xlu0 %v478, 127
      %v643 = vpop.permute.xlu0 %642
      %644 = vrot.lane.b32.xlu0 %v479, 127
      %v645 = vpop.permute.xlu0 %644
      %646 = vrot.lane.b32.xlu0 %v480, 127
      %v647 = vpop.permute.xlu0 %646
      %648 = vrot.lane.b32.xlu0 %v481, 127
      %v649 = vpop.permute.xlu0 %648
      %650 = vrot.lane.b32.xlu0 %v482, 127
      %v651 = vpop.permute.xlu0 %650
      %652 = vrot.lane.b32.xlu0 %v483, 127
      %v653 = vpop.permute.xlu0 %652
      %654 = vrot.lane.b32.xlu0 %v484, 127
      %v655 = vpop.permute.xlu0 %654
      %656 = vrot.lane.b32.xlu0 %v485, 127
      %v657 = vpop.permute.xlu0 %656
      %658 = vrot.lane.b32.xlu0 %v486, 127
      %v659 = vpop.permute.xlu0 %658
      %660 = vrot.lane.b32.xlu0 %v487, 127
      %v661 = vpop.permute.xlu0 %660
      %662 = vrot.lane.b32.xlu0 %v488, 127
      %v663 = vpop.permute.xlu0 %662
      %664 = vrot.lane.b32.xlu0 %v489, 127
      %v665 = vpop.permute.xlu0 %664
      %666 = vrot.lane.b32.xlu0 %v490, 127
      %v667 = vpop.permute.xlu0 %666
      %668 = vrot.lane.b32.xlu0 %v491, 127
      %v669 = vpop.permute.xlu0 %668
      %670 = vrot.lane.b32.xlu0 %v492, 127
      %v671 = vpop.permute.xlu0 %670
      %672 = vrot.lane.b32.xlu0 %v493, 127
      %v673 = vpop.permute.xlu0 %672
      %674 = vrot.lane.b32.xlu0 %v494, 127
      %v675 = vpop.permute.xlu0 %674
      %676 = vrot.lane.b32.xlu0 %v495, 127
      %v677 = vpop.permute.xlu0 %676
      %678 = vrot.lane.b32.xlu0 %v496, 127
      %v679 = vpop.permute.xlu0 %678
      %680 = vrot.lane.b32.xlu0 %v497, 127
      %v681 = vpop.permute.xlu0 %680
      %682 = vrot.lane.b32.xlu0 %v498, 127
      %v683 = vpop.permute.xlu0 %682
      %684 = vrot.lane.b32.xlu0 %v499, 127
      %v685 = vpop.permute.xlu0 %684
      %686 = vrot.lane.b32.xlu0 %v500, 127
      %v687 = vpop.permute.xlu0 %686
      %688 = vrot.lane.b32.xlu0 %v501, 127
      %v689 = vpop.permute.xlu0 %688
      %690 = vrot.lane.b32.xlu0 %v502, 127
      %v691 = vpop.permute.xlu0 %690
      %692 = vrot.lane.b32.xlu0 %v503, 127
      %v693 = vpop.permute.xlu0 %692
      %694 = vrot.lane.b32.xlu0 %v504, 127
      %v695 = vpop.permute.xlu0 %694
      %696 = vrot.lane.b32.xlu0 %v505, 127
      %v697 = vpop.permute.xlu0 %696
      %730 = vrot.lane.b32.xlu0 %v474, 1
      %v731 = vpop.permute.xlu0 %730
      %732 = vrot.lane.b32.xlu0 %v475, 1
      %v733 = vpop.permute.xlu0 %732
      %734 = vrot.lane.b32.xlu0 %v476, 1
      %v735 = vpop.permute.xlu0 %734
      %736 = vrot.lane.b32.xlu0 %v477, 1
      %v737 = vpop.permute.xlu0 %736
      %738 = vrot.lane.b32.xlu0 %v478, 1
      %v739 = vpop.permute.xlu0 %738
      %740 = vrot.lane.b32.xlu0 %v479, 1
      %v741 = vpop.permute.xlu0 %740
      %742 = vrot.lane.b32.xlu0 %v480, 1
      %v743 = vpop.permute.xlu0 %742
      %744 = vrot.lane.b32.xlu0 %v481, 1
      %v745 = vpop.permute.xlu0 %744
      %746 = vrot.lane.b32.xlu0 %v482, 1
      %v747 = vpop.permute.xlu0 %746
      %748 = vrot.lane.b32.xlu0 %v483, 1
      %v749 = vpop.permute.xlu0 %748
      %750 = vrot.lane.b32.xlu0 %v484, 1
      %v751 = vpop.permute.xlu0 %750
      %752 = vrot.lane.b32.xlu0 %v485, 1
      %v753 = vpop.permute.xlu0 %752
      %754 = vrot.lane.b32.xlu0 %v486, 1
      %v755 = vpop.permute.xlu0 %754
      %756 = vrot.lane.b32.xlu0 %v487, 1
      %v757 = vpop.permute.xlu0 %756
      %758 = vrot.lane.b32.xlu0 %v488, 1
      %v759 = vpop.permute.xlu0 %758
      %760 = vrot.lane.b32.xlu0 %v489, 1
      %v761 = vpop.permute.xlu0 %760
      %762 = vrot.lane.b32.xlu0 %v490, 1
      %v763 = vpop.permute.xlu0 %762
      %764 = vrot.lane.b32.xlu0 %v491, 1
      %v765 = vpop.permute.xlu0 %764
      %766 = vrot.lane.b32.xlu0 %v492, 1
      %v767 = vpop.permute.xlu0 %766
      %768 = vrot.lane.b32.xlu0 %v493, 1
      %v769 = vpop.permute.xlu0 %768
      %770 = vrot.lane.b32.xlu0 %v494, 1
      %v771 = vpop.permute.xlu0 %770
      %772 = vrot.lane.b32.xlu0 %v495, 1
      %v773 = vpop.permute.xlu0 %772
      %774 = vrot.lane.b32.xlu0 %v496, 1
      %v775 = vpop.permute.xlu0 %774
      %776 = vrot.lane.b32.xlu0 %v497, 1
      %v777 = vpop.permute.xlu0 %776
      %778 = vrot.lane.b32.xlu0 %v498, 1
      %v779 = vpop.permute.xlu0 %778
      %780 = vrot.lane.b32.xlu0 %v499, 1
      %v781 = vpop.permute.xlu0 %780
      %782 = vrot.lane.b32.xlu0 %v500, 1
      %v783 = vpop.permute.xlu0 %782
      %784 = vrot.lane.b32.xlu0 %v501, 1
      %v785 = vpop.permute.xlu0 %784
      %786 = vrot.lane.b32.xlu0 %v502, 1
      %v787 = vpop.permute.xlu0 %786
      %788 = vrot.lane.b32.xlu0 %v503, 1
      %v789 = vpop.permute.xlu0 %788
      %790 = vrot.lane.b32.xlu0 %v504, 1
      %v791 = vpop.permute.xlu0 %790
      %792 = vrot.lane.b32.xlu0 %v505, 1
      %v793 = vpop.permute.xlu0 %792
      %vm826 = vcmask 7168
      %v827 = vsel %vm826, %v635, %v731
      %v828 = vsel %vm826, %v637, %v733
      %v829 = vsel %vm826, %v639, %v735
      %v830 = vsel %vm826, %v641, %v737
      %v831 = vsel %vm826, %v643, %v739
      %v832 = vsel %vm826, %v645, %v741
      %v833 = vsel %vm826, %v647, %v743
      %v834 = vsel %vm826, %v649, %v745
      %v835 = vsel %vm826, %v651, %v747
      %v836 = vsel %vm826, %v653, %v749
      %v837 = vsel %vm826, %v655, %v751
      %v838 = vsel %vm826, %v657, %v753
      %v839 = vsel %vm826, %v659, %v755
      %v840 = vsel %vm826, %v661, %v757
      %v841 = vsel %vm826, %v663, %v759
      %v842 = vsel %vm826, %v665, %v761
      %v843 = vsel %vm826, %v667, %v763
      %v844 = vsel %vm826, %v669, %v765
      %v845 = vsel %vm826, %v671, %v767
      %v846 = vsel %vm826, %v673, %v769
      %v847 = vsel %vm826, %v675, %v771
      %v848 = vsel %vm826, %v677, %v773
      %v849 = vsel %vm826, %v679, %v775
      %v850 = vsel %vm826, %v681, %v777
      %v851 = vsel %vm826, %v683, %v779
      %v852 = vsel %vm826, %v685, %v781
      %v853 = vsel %vm826, %v687, %v783
      %v854 = vsel %vm826, %v689, %v785
      %v855 = vsel %vm826, %v691, %v787
      %v856 = vsel %vm826, %v693, %v789
      %v857 = vsel %vm826, %v695, %v791
      %v858 = vsel %vm826, %v697, %v793
      %vm859 = vcmask 121856
      %v860 = vsel %vm859, %v635, %v731
      %v861 = vsel %vm859, %v637, %v733
      %v862 = vsel %vm859, %v639, %v735
      %v863 = vsel %vm859, %v641, %v737
      %v864 = vsel %vm859, %v643, %v739
      %v865 = vsel %vm859, %v645, %v741
      %v866 = vsel %vm859, %v647, %v743
      %v867 = vsel %vm859, %v649, %v745
      %v868 = vsel %vm859, %v651, %v747
      %v869 = vsel %vm859, %v653, %v749
      %v870 = vsel %vm859, %v655, %v751
      %v871 = vsel %vm859, %v657, %v753
      %v872 = vsel %vm859, %v659, %v755
      %v873 = vsel %vm859, %v661, %v757
      %v874 = vsel %vm859, %v663, %v759
      %v875 = vsel %vm859, %v665, %v761
      %v876 = vsel %vm859, %v667, %v763
      %v877 = vsel %vm859, %v669, %v765
      %v878 = vsel %vm859, %v671, %v767
      %v879 = vsel %vm859, %v673, %v769
      %v880 = vsel %vm859, %v675, %v771
      %v881 = vsel %vm859, %v677, %v773
      %v882 = vsel %vm859, %v679, %v775
      %v883 = vsel %vm859, %v681, %v777
      %v884 = vsel %vm859, %v683, %v779
      %v885 = vsel %vm859, %v685, %v781
      %v886 = vsel %vm859, %v687, %v783
      %v887 = vsel %vm859, %v689, %v785
      %v888 = vsel %vm859, %v691, %v787
      %v889 = vsel %vm859, %v693, %v789
      %v890 = vsel %vm859, %v695, %v791
      %v891 = vsel %vm859, %v697, %v793
      %v908 = vlaneseq
      %v909 = vshrl.u32 %v908, 7
      %v910 = vsub.s32 0, %v909
      %v911 = vrot.slane %v586, %v910
      %v912 = vlaneseq
      %v913 = vshrl.u32 %v912, 7
      %v914 = vsub.s32 0, %v913
      %v915 = vrot.slane %v587, %v914
      %v916 = vlaneseq
      %v917 = vshrl.u32 %v916, 7
      %v918 = vsub.s32 0, %v917
      %v919 = vrot.slane %v588, %v918
      %v920 = vlaneseq
      %v921 = vshrl.u32 %v920, 7
      %v922 = vsub.s32 0, %v921
      %v923 = vrot.slane %v589, %v922
      %v924 = vlaneseq
      %v925 = vshrl.u32 %v924, 7
      %v926 = vsub.s32 0, %v925
      %v927 = vrot.slane %v590, %v926
      %v928 = vlaneseq
      %v929 = vshrl.u32 %v928, 7
      %v930 = vsub.s32 0, %v929
      %v931 = vrot.slane %v591, %v930
      %v932 = vlaneseq
      %v933 = vshrl.u32 %v932, 7
      %v934 = vsub.s32 0, %v933
      %v935 = vrot.slane %v592, %v934
      %v936 = vlaneseq
      %v937 = vshrl.u32 %v936, 7
      %v938 = vsub.s32 0, %v937
      %v939 = vrot.slane %v593, %v938
      %v940 = vlaneseq
      %v941 = vshrl.u32 %v940, 7
      %v942 = vsub.s32 0, %v941
      %v943 = vrot.slane %v594, %v942
      %v944 = vlaneseq
      %v945 = vshrl.u32 %v944, 7
      %v946 = vsub.s32 0, %v945
      %v947 = vrot.slane %v595, %v946
      %v948 = vlaneseq
      %v949 = vshrl.u32 %v948, 7
      %v950 = vsub.s32 0, %v949
      %v951 = vrot.slane %v596, %v950
      %v952 = vlaneseq
      %v953 = vshrl.u32 %v952, 7
      %v954 = vsub.s32 0, %v953
      %v955 = vrot.slane %v597, %v954
      %v956 = vlaneseq
      %v957 = vshrl.u32 %v956, 7
      %v958 = vsub.s32 0, %v957
      %v959 = vrot.slane %v598, %v958
      %v960 = vlaneseq
      %v961 = vshrl.u32 %v960, 7
      %v962 = vsub.s32 0, %v961
      %v963 = vrot.slane %v599, %v962
      %v964 = vlaneseq
      %v965 = vshrl.u32 %v964, 7
      %v966 = vsub.s32 0, %v965
      %v967 = vrot.slane %v600, %v966
      %v968 = vlaneseq
      %v969 = vshrl.u32 %v968, 7
      %v970 = vsub.s32 0, %v969
      %v971 = vrot.slane %v601, %v970
      %972 = vset.pattern.permute.xlu0 0
      %973 = vperm.xlu0 %972, %v911
      %v974 = vpop.permute.xlu0 %973
      %976 = vset.pattern.permute.xlu0 0
      %977 = vperm.xlu0 %976, %v915
      %v978 = vpop.permute.xlu0 %977
      %980 = vset.pattern.permute.xlu0 0
      %981 = vperm.xlu0 %980, %v919
      %v982 = vpop.permute.xlu0 %981
      %984 = vset.pattern.permute.xlu0 0
      %985 = vperm.xlu0 %984, %v923
      %v986 = vpop.permute.xlu0 %985
      %988 = vset.pattern.permute.xlu0 0
      %989 = vperm.xlu0 %988, %v927
      %v990 = vpop.permute.xlu0 %989
      %992 = vset.pattern.permute.xlu0 0
      %993 = vperm.xlu0 %992, %v931
      %v994 = vpop.permute.xlu0 %993
      %996 = vset.pattern.permute.xlu0 0
      %997 = vperm.xlu0 %996, %v935
      %v998 = vpop.permute.xlu0 %997
      %1000 = vset.pattern.permute.xlu0 0
      %1001 = vperm.xlu0 %1000, %v939
      %v1002 = vpop.permute.xlu0 %1001
      %1004 = vset.pattern.permute.xlu0 0
      %1005 = vperm.xlu0 %1004, %v943
      %v1006 = vpop.permute.xlu0 %1005
      %1008 = vset.pattern.permute.xlu0 0
      %1009 = vperm.xlu0 %1008, %v947
      %v1010 = vpop.permute.xlu0 %1009
      %1012 = vset.pattern.permute.xlu0 0
      %1013 = vperm.xlu0 %1012, %v951
      %v1014 = vpop.permute.xlu0 %1013
      %1016 = vset.pattern.permute.xlu0 0
      %1017 = vperm.xlu0 %1016, %v955
      %v1018 = vpop.permute.xlu0 %1017
      %1020 = vset.pattern.permute.xlu0 0
      %1021 = vperm.xlu0 %1020, %v959
      %v1022 = vpop.permute.xlu0 %1021
      %1024 = vset.pattern.permute.xlu0 0
      %1025 = vperm.xlu0 %1024, %v963
      %v1026 = vpop.permute.xlu0 %1025
      %1028 = vset.pattern.permute.xlu0 0
      %1029 = vperm.xlu0 %1028, %v967
      %v1030 = vpop.permute.xlu0 %1029
      %1032 = vset.pattern.permute.xlu0 0
      %1033 = vperm.xlu0 %1032, %v971
      %v1034 = vpop.permute.xlu0 %1033
      %v1036 = vmul.f32 %v827, %v974
      %v1037 = vmul.f32 %v828, %v974
      %v1038 = vmul.f32 %v829, %v978
      %v1039 = vmul.f32 %v830, %v978
      %v1040 = vmul.f32 %v831, %v982
      %v1041 = vmul.f32 %v832, %v982
      %v1042 = vmul.f32 %v833, %v986
      %v1043 = vmul.f32 %v834, %v986
      %v1044 = vmul.f32 %v835, %v990
      %v1045 = vmul.f32 %v836, %v990
      %v1046 = vmul.f32 %v837, %v994
      %v1047 = vmul.f32 %v838, %v994
      %v1048 = vmul.f32 %v839, %v998
      %v1049 = vmul.f32 %v840, %v998
      %v1050 = vmul.f32 %v841, %v1002
      %v1051 = vmul.f32 %v842, %v1002
      %v1052 = vmul.f32 %v843, %v1006
      %v1053 = vmul.f32 %v844, %v1006
      %v1054 = vmul.f32 %v845, %v1010
      %v1055 = vmul.f32 %v846, %v1010
      %v1056 = vmul.f32 %v847, %v1014
      %v1057 = vmul.f32 %v848, %v1014
      %v1058 = vmul.f32 %v849, %v1018
      %v1059 = vmul.f32 %v850, %v1018
      %v1060 = vmul.f32 %v851, %v1022
      %v1061 = vmul.f32 %v852, %v1022
      %v1062 = vmul.f32 %v853, %v1026
      %v1063 = vmul.f32 %v854, %v1026
      %v1064 = vmul.f32 %v855, %v1030
      %v1065 = vmul.f32 %v856, %v1030
      %v1066 = vmul.f32 %v857, %v1034
      %v1067 = vmul.f32 %v858, %v1034
      %1068 = vset.pattern.permute.xlu0 1
      %1069 = vperm.xlu0 %1068, %v911
      %v1070 = vpop.permute.xlu0 %1069
      %1072 = vset.pattern.permute.xlu0 1
      %1073 = vperm.xlu0 %1072, %v915
      %v1074 = vpop.permute.xlu0 %1073
      %1076 = vset.pattern.permute.xlu0 1
      %1077 = vperm.xlu0 %1076, %v919
      %v1078 = vpop.permute.xlu0 %1077
      %1080 = vset.pattern.permute.xlu0 1
      %1081 = vperm.xlu0 %1080, %v923
      %v1082 = vpop.permute.xlu0 %1081
      %1084 = vset.pattern.permute.xlu0 1
      %1085 = vperm.xlu0 %1084, %v927
      %v1086 = vpop.permute.xlu0 %1085
      %1088 = vset.pattern.permute.xlu0 1
      %1089 = vperm.xlu0 %1088, %v931
      %v1090 = vpop.permute.xlu0 %1089
      %1092 = vset.pattern.permute.xlu0 1
      %1093 = vperm.xlu0 %1092, %v935
      %v1094 = vpop.permute.xlu0 %1093
      %1096 = vset.pattern.permute.xlu0 1
      %1097 = vperm.xlu0 %1096, %v939
      %v1098 = vpop.permute.xlu0 %1097
      %1100 = vset.pattern.permute.xlu0 1
      %1101 = vperm.xlu0 %1100, %v943
      %v1102 = vpop.permute.xlu0 %1101
      %1104 = vset.pattern.permute.xlu0 1
      %1105 = vperm.xlu0 %1104, %v947
      %v1106 = vpop.permute.xlu0 %1105
      %1108 = vset.pattern.permute.xlu0 1
      %1109 = vperm.xlu0 %1108, %v951
      %v1110 = vpop.permute.xlu0 %1109
      %1112 = vset.pattern.permute.xlu0 1
      %1113 = vperm.xlu0 %1112, %v955
      %v1114 = vpop.permute.xlu0 %1113
      %1116 = vset.pattern.permute.xlu0 1
      %1117 = vperm.xlu0 %1116, %v959
      %v1118 = vpop.permute.xlu0 %1117
      %1120 = vset.pattern.permute.xlu0 1
      %1121 = vperm.xlu0 %1120, %v963
      %v1122 = vpop.permute.xlu0 %1121
      %1124 = vset.pattern.permute.xlu0 1
      %1125 = vperm.xlu0 %1124, %v967
      %v1126 = vpop.permute.xlu0 %1125
      %1128 = vset.pattern.permute.xlu0 1
      %1129 = vperm.xlu0 %1128, %v971
      %v1130 = vpop.permute.xlu0 %1129
      %v1132 = vmul.f32 %v474, %v1070
      %v1133 = vmul.f32 %v475, %v1070
      %v1134 = vmul.f32 %v476, %v1074
      %v1135 = vmul.f32 %v477, %v1074
      %v1136 = vmul.f32 %v478, %v1078
      %v1137 = vmul.f32 %v479, %v1078
      %v1138 = vmul.f32 %v480, %v1082
      %v1139 = vmul.f32 %v481, %v1082
      %v1140 = vmul.f32 %v482, %v1086
      %v1141 = vmul.f32 %v483, %v1086
      %v1142 = vmul.f32 %v484, %v1090
      %v1143 = vmul.f32 %v485, %v1090
      %v1144 = vmul.f32 %v486, %v1094
      %v1145 = vmul.f32 %v487, %v1094
      %v1146 = vmul.f32 %v488, %v1098
      %v1147 = vmul.f32 %v489, %v1098
      %v1148 = vmul.f32 %v490, %v1102
      %v1149 = vmul.f32 %v491, %v1102
      %v1150 = vmul.f32 %v492, %v1106
      %v1151 = vmul.f32 %v493, %v1106
      %v1152 = vmul.f32 %v494, %v1110
      %v1153 = vmul.f32 %v495, %v1110
      %v1154 = vmul.f32 %v496, %v1114
      %v1155 = vmul.f32 %v497, %v1114
      %v1156 = vmul.f32 %v498, %v1118
      %v1157 = vmul.f32 %v499, %v1118
      %v1158 = vmul.f32 %v500, %v1122
      %v1159 = vmul.f32 %v501, %v1122
      %v1160 = vmul.f32 %v502, %v1126
      %v1161 = vmul.f32 %v503, %v1126
      %v1162 = vmul.f32 %v504, %v1130
      %v1163 = vmul.f32 %v505, %v1130
      %v1164 = vadd.f32 %v1036, %v1132
      %v1165 = vadd.f32 %v1037, %v1133
      %v1166 = vadd.f32 %v1038, %v1134
      %v1167 = vadd.f32 %v1039, %v1135
      %v1168 = vadd.f32 %v1040, %v1136
      %v1169 = vadd.f32 %v1041, %v1137
      %v1170 = vadd.f32 %v1042, %v1138
      %v1171 = vadd.f32 %v1043, %v1139
      %v1172 = vadd.f32 %v1044, %v1140
      %v1173 = vadd.f32 %v1045, %v1141
      %v1174 = vadd.f32 %v1046, %v1142
      %v1175 = vadd.f32 %v1047, %v1143
      %v1176 = vadd.f32 %v1048, %v1144
      %v1177 = vadd.f32 %v1049, %v1145
      %v1178 = vadd.f32 %v1050, %v1146
      %v1179 = vadd.f32 %v1051, %v1147
      %v1180 = vadd.f32 %v1052, %v1148
      %v1181 = vadd.f32 %v1053, %v1149
      %v1182 = vadd.f32 %v1054, %v1150
      %v1183 = vadd.f32 %v1055, %v1151
      %v1184 = vadd.f32 %v1056, %v1152
      %v1185 = vadd.f32 %v1057, %v1153
      %v1186 = vadd.f32 %v1058, %v1154
      %v1187 = vadd.f32 %v1059, %v1155
      %v1188 = vadd.f32 %v1060, %v1156
      %v1189 = vadd.f32 %v1061, %v1157
      %v1190 = vadd.f32 %v1062, %v1158
      %v1191 = vadd.f32 %v1063, %v1159
      %v1192 = vadd.f32 %v1064, %v1160
      %v1193 = vadd.f32 %v1065, %v1161
      %v1194 = vadd.f32 %v1066, %v1162
      %v1195 = vadd.f32 %v1067, %v1163
      %1196 = vset.pattern.permute.xlu0 2
      %1197 = vperm.xlu0 %1196, %v911
      %v1198 = vpop.permute.xlu0 %1197
      %1200 = vset.pattern.permute.xlu0 2
      %1201 = vperm.xlu0 %1200, %v915
      %v1202 = vpop.permute.xlu0 %1201
      %1204 = vset.pattern.permute.xlu0 2
      %1205 = vperm.xlu0 %1204, %v919
      %v1206 = vpop.permute.xlu0 %1205
      %1208 = vset.pattern.permute.xlu0 2
      %1209 = vperm.xlu0 %1208, %v923
      %v1210 = vpop.permute.xlu0 %1209
      %1212 = vset.pattern.permute.xlu0 2
      %1213 = vperm.xlu0 %1212, %v927
      %v1214 = vpop.permute.xlu0 %1213
      %1216 = vset.pattern.permute.xlu0 2
      %1217 = vperm.xlu0 %1216, %v931
      %v1218 = vpop.permute.xlu0 %1217
      %1220 = vset.pattern.permute.xlu0 2
      %1221 = vperm.xlu0 %1220, %v935
      %v1222 = vpop.permute.xlu0 %1221
      %1224 = vset.pattern.permute.xlu0 2
      %1225 = vperm.xlu0 %1224, %v939
      %v1226 = vpop.permute.xlu0 %1225
      %1228 = vset.pattern.permute.xlu0 2
      %1229 = vperm.xlu0 %1228, %v943
      %v1230 = vpop.permute.xlu0 %1229
      %1232 = vset.pattern.permute.xlu0 2
      %1233 = vperm.xlu0 %1232, %v947
      %v1234 = vpop.permute.xlu0 %1233
      %1236 = vset.pattern.permute.xlu0 2
      %1237 = vperm.xlu0 %1236, %v951
      %v1238 = vpop.permute.xlu0 %1237
      %1240 = vset.pattern.permute.xlu0 2
      %1241 = vperm.xlu0 %1240, %v955
      %v1242 = vpop.permute.xlu0 %1241
      %1244 = vset.pattern.permute.xlu0 2
      %1245 = vperm.xlu0 %1244, %v959
      %v1246 = vpop.permute.xlu0 %1245
      %1248 = vset.pattern.permute.xlu0 2
      %1249 = vperm.xlu0 %1248, %v963
      %v1250 = vpop.permute.xlu0 %1249
      %1252 = vset.pattern.permute.xlu0 2
      %1253 = vperm.xlu0 %1252, %v967
      %v1254 = vpop.permute.xlu0 %1253
      %1256 = vset.pattern.permute.xlu0 2
      %1257 = vperm.xlu0 %1256, %v971
      %v1258 = vpop.permute.xlu0 %1257
      %v1260 = vmul.f32 %v860, %v1198
      %v1261 = vmul.f32 %v861, %v1198
      %v1262 = vmul.f32 %v862, %v1202
      %v1263 = vmul.f32 %v863, %v1202
      %v1264 = vmul.f32 %v864, %v1206
      %v1265 = vmul.f32 %v865, %v1206
      %v1266 = vmul.f32 %v866, %v1210
      %v1267 = vmul.f32 %v867, %v1210
      %v1268 = vmul.f32 %v868, %v1214
      %v1269 = vmul.f32 %v869, %v1214
      %v1270 = vmul.f32 %v870, %v1218
      %v1271 = vmul.f32 %v871, %v1218
      %v1272 = vmul.f32 %v872, %v1222
      %v1273 = vmul.f32 %v873, %v1222
      %v1274 = vmul.f32 %v874, %v1226
      %v1275 = vmul.f32 %v875, %v1226
      %v1276 = vmul.f32 %v876, %v1230
      %v1277 = vmul.f32 %v877, %v1230
      %v1278 = vmul.f32 %v878, %v1234
      %v1279 = vmul.f32 %v879, %v1234
      %v1280 = vmul.f32 %v880, %v1238
      %v1281 = vmul.f32 %v881, %v1238
      %v1282 = vmul.f32 %v882, %v1242
      %v1283 = vmul.f32 %v883, %v1242
      %v1284 = vmul.f32 %v884, %v1246
      %v1285 = vmul.f32 %v885, %v1246
      %v1286 = vmul.f32 %v886, %v1250
      %v1287 = vmul.f32 %v887, %v1250
      %v1288 = vmul.f32 %v888, %v1254
      %v1289 = vmul.f32 %v889, %v1254
      %v1290 = vmul.f32 %v890, %v1258
      %v1291 = vmul.f32 %v891, %v1258
      %v1292 = vadd.f32 %v1164, %v1260
      %v1293 = vadd.f32 %v1165, %v1261
      %v1294 = vadd.f32 %v1166, %v1262
      %v1295 = vadd.f32 %v1167, %v1263
      %v1296 = vadd.f32 %v1168, %v1264
      %v1297 = vadd.f32 %v1169, %v1265
      %v1298 = vadd.f32 %v1170, %v1266
      %v1299 = vadd.f32 %v1171, %v1267
      %v1300 = vadd.f32 %v1172, %v1268
      %v1301 = vadd.f32 %v1173, %v1269
      %v1302 = vadd.f32 %v1174, %v1270
      %v1303 = vadd.f32 %v1175, %v1271
      %v1304 = vadd.f32 %v1176, %v1272
      %v1305 = vadd.f32 %v1177, %v1273
      %v1306 = vadd.f32 %v1178, %v1274
      %v1307 = vadd.f32 %v1179, %v1275
      %v1308 = vadd.f32 %v1180, %v1276
      %v1309 = vadd.f32 %v1181, %v1277
      %v1310 = vadd.f32 %v1182, %v1278
      %v1311 = vadd.f32 %v1183, %v1279
      %v1312 = vadd.f32 %v1184, %v1280
      %v1313 = vadd.f32 %v1185, %v1281
      %v1314 = vadd.f32 %v1186, %v1282
      %v1315 = vadd.f32 %v1187, %v1283
      %v1316 = vadd.f32 %v1188, %v1284
      %v1317 = vadd.f32 %v1189, %v1285
      %v1318 = vadd.f32 %v1190, %v1286
      %v1319 = vadd.f32 %v1191, %v1287
      %v1320 = vadd.f32 %v1192, %v1288
      %v1321 = vadd.f32 %v1193, %v1289
      %v1322 = vadd.f32 %v1194, %v1290
      %v1323 = vadd.f32 %v1195, %v1291
      %vm1324 = vcmask 130048
      %v1325 = vsel %vm1324, %v474, 0.0
      %1326 = vadd.xlane.f32.xlu0 %v1325
      %v1327 = vpop.xlane.xlu0 %1326
      %v1328 = vsel %vm1324, %v475, 0.0
      %1329 = vadd.xlane.f32.xlu0 %v1328
      %v1330 = vpop.xlane.xlu0 %1329
      %v1331 = vsel %vm1324, %v476, 0.0
      %1332 = vadd.xlane.f32.xlu0 %v1331
      %v1333 = vpop.xlane.xlu0 %1332
      %v1334 = vsel %vm1324, %v477, 0.0
      %1335 = vadd.xlane.f32.xlu0 %v1334
      %v1336 = vpop.xlane.xlu0 %1335
      %v1337 = vsel %vm1324, %v478, 0.0
      %1338 = vadd.xlane.f32.xlu0 %v1337
      %v1339 = vpop.xlane.xlu0 %1338
      %v1340 = vsel %vm1324, %v479, 0.0
      %1341 = vadd.xlane.f32.xlu0 %v1340
      %v1342 = vpop.xlane.xlu0 %1341
      %v1343 = vsel %vm1324, %v480, 0.0
      %1344 = vadd.xlane.f32.xlu0 %v1343
      %v1345 = vpop.xlane.xlu0 %1344
      %v1346 = vsel %vm1324, %v481, 0.0
      %1347 = vadd.xlane.f32.xlu0 %v1346
      %v1348 = vpop.xlane.xlu0 %1347
      %v1349 = vsel %vm1324, %v482, 0.0
      %1350 = vadd.xlane.f32.xlu0 %v1349
      %v1351 = vpop.xlane.xlu0 %1350
      %v1352 = vsel %vm1324, %v483, 0.0
      %1353 = vadd.xlane.f32.xlu0 %v1352
      %v1354 = vpop.xlane.xlu0 %1353
      %v1355 = vsel %vm1324, %v484, 0.0
      %1356 = vadd.xlane.f32.xlu0 %v1355
      %v1357 = vpop.xlane.xlu0 %1356
      %v1358 = vsel %vm1324, %v485, 0.0
      %1359 = vadd.xlane.f32.xlu0 %v1358
      %v1360 = vpop.xlane.xlu0 %1359
      %v1361 = vsel %vm1324, %v486, 0.0
      %1362 = vadd.xlane.f32.xlu0 %v1361
      %v1363 = vpop.xlane.xlu0 %1362
      %v1364 = vsel %vm1324, %v487, 0.0
      %1365 = vadd.xlane.f32.xlu0 %v1364
      %v1366 = vpop.xlane.xlu0 %1365
      %v1367 = vsel %vm1324, %v488, 0.0
      %1368 = vadd.xlane.f32.xlu0 %v1367
      %v1369 = vpop.xlane.xlu0 %1368
      %v1370 = vsel %vm1324, %v489, 0.0
      %1371 = vadd.xlane.f32.xlu0 %v1370
      %v1372 = vpop.xlane.xlu0 %1371
      %v1373 = vsel %vm1324, %v490, 0.0
      %1374 = vadd.xlane.f32.xlu0 %v1373
      %v1375 = vpop.xlane.xlu0 %1374
      %v1376 = vsel %vm1324, %v491, 0.0
      %1377 = vadd.xlane.f32.xlu0 %v1376
      %v1378 = vpop.xlane.xlu0 %1377
      %v1379 = vsel %vm1324, %v492, 0.0
      %1380 = vadd.xlane.f32.xlu0 %v1379
      %v1381 = vpop.xlane.xlu0 %1380
      %v1382 = vsel %vm1324, %v493, 0.0
      %1383 = vadd.xlane.f32.xlu0 %v1382
      %v1384 = vpop.xlane.xlu0 %1383
      %v1385 = vsel %vm1324, %v494, 0.0
      %1386 = vadd.xlane.f32.xlu0 %v1385
      %v1387 = vpop.xlane.xlu0 %1386
      %v1388 = vsel %vm1324, %v495, 0.0
      %1389 = vadd.xlane.f32.xlu0 %v1388
      %v1390 = vpop.xlane.xlu0 %1389
      %v1391 = vsel %vm1324, %v496, 0.0
      %1392 = vadd.xlane.f32.xlu0 %v1391
      %v1393 = vpop.xlane.xlu0 %1392
      %v1394 = vsel %vm1324, %v497, 0.0
      %1395 = vadd.xlane.f32.xlu0 %v1394
      %v1396 = vpop.xlane.xlu0 %1395
      %v1397 = vsel %vm1324, %v498, 0.0
      %1398 = vadd.xlane.f32.xlu0 %v1397
      %v1399 = vpop.xlane.xlu0 %1398
      %v1400 = vsel %vm1324, %v499, 0.0
      %1401 = vadd.xlane.f32.xlu0 %v1400
      %v1402 = vpop.xlane.xlu0 %1401
      %v1403 = vsel %vm1324, %v500, 0.0
      %1404 = vadd.xlane.f32.xlu0 %v1403
      %v1405 = vpop.xlane.xlu0 %1404
      %v1406 = vsel %vm1324, %v501, 0.0
      %1407 = vadd.xlane.f32.xlu0 %v1406
      %v1408 = vpop.xlane.xlu0 %1407
      %v1409 = vsel %vm1324, %v502, 0.0
      %1410 = vadd.xlane.f32.xlu0 %v1409
      %v1411 = vpop.xlane.xlu0 %1410
      %v1412 = vsel %vm1324, %v503, 0.0
      %1413 = vadd.xlane.f32.xlu0 %v1412
      %v1414 = vpop.xlane.xlu0 %1413
      %v1415 = vsel %vm1324, %v504, 0.0
      %1416 = vadd.xlane.f32.xlu0 %v1415
      %v1417 = vpop.xlane.xlu0 %1416
      %v1418 = vsel %vm1324, %v505, 0.0
      %1419 = vadd.xlane.f32.xlu0 %v1418
      %v1420 = vpop.xlane.xlu0 %1419
      %v1421 = vrcp.pop 16.0
      %v1422 = vmul.f32 %v1327, %v1421
      %v1423 = vmul.f32 %v1330, %v1421
      %v1424 = vmul.f32 %v1333, %v1421
      %v1425 = vmul.f32 %v1336, %v1421
      %v1426 = vmul.f32 %v1339, %v1421
      %v1427 = vmul.f32 %v1342, %v1421
      %v1428 = vmul.f32 %v1345, %v1421
      %v1429 = vmul.f32 %v1348, %v1421
      %v1430 = vmul.f32 %v1351, %v1421
      %v1431 = vmul.f32 %v1354, %v1421
      %v1432 = vmul.f32 %v1357, %v1421
      %v1433 = vmul.f32 %v1360, %v1421
      %v1434 = vmul.f32 %v1363, %v1421
      %v1435 = vmul.f32 %v1366, %v1421
      %v1436 = vmul.f32 %v1369, %v1421
      %v1437 = vmul.f32 %v1372, %v1421
      %v1438 = vmul.f32 %v1375, %v1421
      %v1439 = vmul.f32 %v1378, %v1421
      %v1440 = vmul.f32 %v1381, %v1421
      %v1441 = vmul.f32 %v1384, %v1421
      %v1442 = vmul.f32 %v1387, %v1421
      %v1443 = vmul.f32 %v1390, %v1421
      %v1444 = vmul.f32 %v1393, %v1421
      %v1445 = vmul.f32 %v1396, %v1421
      %v1446 = vmul.f32 %v1399, %v1421
      %v1447 = vmul.f32 %v1402, %v1421
      %v1448 = vmul.f32 %v1405, %v1421
      %v1449 = vmul.f32 %v1408, %v1421
      %v1450 = vmul.f32 %v1411, %v1421
      %v1451 = vmul.f32 %v1414, %v1421
      %v1452 = vmul.f32 %v1417, %v1421
      %v1453 = vmul.f32 %v1420, %v1421
      %v1470 = vlaneseq
      %v1471 = vshrl.u32 %v1470, 7
      %v1472 = vsub.s32 0, %v1471
      %v1473 = vrot.slane %v554, %v1472
      %v1474 = vlaneseq
      %v1475 = vshrl.u32 %v1474, 7
      %v1476 = vsub.s32 0, %v1475
      %v1477 = vrot.slane %v555, %v1476
      %v1478 = vlaneseq
      %v1479 = vshrl.u32 %v1478, 7
      %v1480 = vsub.s32 0, %v1479
      %v1481 = vrot.slane %v556, %v1480
      %v1482 = vlaneseq
      %v1483 = vshrl.u32 %v1482, 7
      %v1484 = vsub.s32 0, %v1483
      %v1485 = vrot.slane %v557, %v1484
      %v1486 = vlaneseq
      %v1487 = vshrl.u32 %v1486, 7
      %v1488 = vsub.s32 0, %v1487
      %v1489 = vrot.slane %v558, %v1488
      %v1490 = vlaneseq
      %v1491 = vshrl.u32 %v1490, 7
      %v1492 = vsub.s32 0, %v1491
      %v1493 = vrot.slane %v559, %v1492
      %v1494 = vlaneseq
      %v1495 = vshrl.u32 %v1494, 7
      %v1496 = vsub.s32 0, %v1495
      %v1497 = vrot.slane %v560, %v1496
      %v1498 = vlaneseq
      %v1499 = vshrl.u32 %v1498, 7
      %v1500 = vsub.s32 0, %v1499
      %v1501 = vrot.slane %v561, %v1500
      %v1502 = vlaneseq
      %v1503 = vshrl.u32 %v1502, 7
      %v1504 = vsub.s32 0, %v1503
      %v1505 = vrot.slane %v562, %v1504
      %v1506 = vlaneseq
      %v1507 = vshrl.u32 %v1506, 7
      %v1508 = vsub.s32 0, %v1507
      %v1509 = vrot.slane %v563, %v1508
      %v1510 = vlaneseq
      %v1511 = vshrl.u32 %v1510, 7
      %v1512 = vsub.s32 0, %v1511
      %v1513 = vrot.slane %v564, %v1512
      %v1514 = vlaneseq
      %v1515 = vshrl.u32 %v1514, 7
      %v1516 = vsub.s32 0, %v1515
      %v1517 = vrot.slane %v565, %v1516
      %v1518 = vlaneseq
      %v1519 = vshrl.u32 %v1518, 7
      %v1520 = vsub.s32 0, %v1519
      %v1521 = vrot.slane %v566, %v1520
      %v1522 = vlaneseq
      %v1523 = vshrl.u32 %v1522, 7
      %v1524 = vsub.s32 0, %v1523
      %v1525 = vrot.slane %v567, %v1524
      %v1526 = vlaneseq
      %v1527 = vshrl.u32 %v1526, 7
      %v1528 = vsub.s32 0, %v1527
      %v1529 = vrot.slane %v568, %v1528
      %v1530 = vlaneseq
      %v1531 = vshrl.u32 %v1530, 7
      %v1532 = vsub.s32 0, %v1531
      %v1533 = vrot.slane %v569, %v1532
      %1534 = vset.pattern.permute.xlu0 0
      %1535 = vperm.xlu0 %1534, %v1473
      %v1536 = vpop.permute.xlu0 %1535
      %1538 = vset.pattern.permute.xlu0 0
      %1539 = vperm.xlu0 %1538, %v1477
      %v1540 = vpop.permute.xlu0 %1539
      %1542 = vset.pattern.permute.xlu0 0
      %1543 = vperm.xlu0 %1542, %v1481
      %v1544 = vpop.permute.xlu0 %1543
      %1546 = vset.pattern.permute.xlu0 0
      %1547 = vperm.xlu0 %1546, %v1485
      %v1548 = vpop.permute.xlu0 %1547
      %1550 = vset.pattern.permute.xlu0 0
      %1551 = vperm.xlu0 %1550, %v1489
      %v1552 = vpop.permute.xlu0 %1551
      %1554 = vset.pattern.permute.xlu0 0
      %1555 = vperm.xlu0 %1554, %v1493
      %v1556 = vpop.permute.xlu0 %1555
      %1558 = vset.pattern.permute.xlu0 0
      %1559 = vperm.xlu0 %1558, %v1497
      %v1560 = vpop.permute.xlu0 %1559
      %1562 = vset.pattern.permute.xlu0 0
      %1563 = vperm.xlu0 %1562, %v1501
      %v1564 = vpop.permute.xlu0 %1563
      %1566 = vset.pattern.permute.xlu0 0
      %1567 = vperm.xlu0 %1566, %v1505
      %v1568 = vpop.permute.xlu0 %1567
      %1570 = vset.pattern.permute.xlu0 0
      %1571 = vperm.xlu0 %1570, %v1509
      %v1572 = vpop.permute.xlu0 %1571
      %1574 = vset.pattern.permute.xlu0 0
      %1575 = vperm.xlu0 %1574, %v1513
      %v1576 = vpop.permute.xlu0 %1575
      %1578 = vset.pattern.permute.xlu0 0
      %1579 = vperm.xlu0 %1578, %v1517
      %v1580 = vpop.permute.xlu0 %1579
      %1582 = vset.pattern.permute.xlu0 0
      %1583 = vperm.xlu0 %1582, %v1521
      %v1584 = vpop.permute.xlu0 %1583
      %1586 = vset.pattern.permute.xlu0 0
      %1587 = vperm.xlu0 %1586, %v1525
      %v1588 = vpop.permute.xlu0 %1587
      %1590 = vset.pattern.permute.xlu0 0
      %1591 = vperm.xlu0 %1590, %v1529
      %v1592 = vpop.permute.xlu0 %1591
      %1594 = vset.pattern.permute.xlu0 0
      %1595 = vperm.xlu0 %1594, %v1533
      %v1596 = vpop.permute.xlu0 %1595
      %v1598 = vmul.f32 %v1292, %v1536
      %v1599 = vmul.f32 %v1293, %v1536
      %v1600 = vmul.f32 %v1294, %v1540
      %v1601 = vmul.f32 %v1295, %v1540
      %v1602 = vmul.f32 %v1296, %v1544
      %v1603 = vmul.f32 %v1297, %v1544
      %v1604 = vmul.f32 %v1298, %v1548
      %v1605 = vmul.f32 %v1299, %v1548
      %v1606 = vmul.f32 %v1300, %v1552
      %v1607 = vmul.f32 %v1301, %v1552
      %v1608 = vmul.f32 %v1302, %v1556
      %v1609 = vmul.f32 %v1303, %v1556
      %v1610 = vmul.f32 %v1304, %v1560
      %v1611 = vmul.f32 %v1305, %v1560
      %v1612 = vmul.f32 %v1306, %v1564
      %v1613 = vmul.f32 %v1307, %v1564
      %v1614 = vmul.f32 %v1308, %v1568
      %v1615 = vmul.f32 %v1309, %v1568
      %v1616 = vmul.f32 %v1310, %v1572
      %v1617 = vmul.f32 %v1311, %v1572
      %v1618 = vmul.f32 %v1312, %v1576
      %v1619 = vmul.f32 %v1313, %v1576
      %v1620 = vmul.f32 %v1314, %v1580
      %v1621 = vmul.f32 %v1315, %v1580
      %v1622 = vmul.f32 %v1316, %v1584
      %v1623 = vmul.f32 %v1317, %v1584
      %v1624 = vmul.f32 %v1318, %v1588
      %v1625 = vmul.f32 %v1319, %v1588
      %v1626 = vmul.f32 %v1320, %v1592
      %v1627 = vmul.f32 %v1321, %v1592
      %v1628 = vmul.f32 %v1322, %v1596
      %v1629 = vmul.f32 %v1323, %v1596
      %v1646 = vlaneseq
      %v1647 = vshrl.u32 %v1646, 7
      %v1648 = vsub.s32 0, %v1647
      %v1649 = vrot.slane %v522, %v1648
      %v1650 = vlaneseq
      %v1651 = vshrl.u32 %v1650, 7
      %v1652 = vsub.s32 0, %v1651
      %v1653 = vrot.slane %v523, %v1652
      %v1654 = vlaneseq
      %v1655 = vshrl.u32 %v1654, 7
      %v1656 = vsub.s32 0, %v1655
      %v1657 = vrot.slane %v524, %v1656
      %v1658 = vlaneseq
      %v1659 = vshrl.u32 %v1658, 7
      %v1660 = vsub.s32 0, %v1659
      %v1661 = vrot.slane %v525, %v1660
      %v1662 = vlaneseq
      %v1663 = vshrl.u32 %v1662, 7
      %v1664 = vsub.s32 0, %v1663
      %v1665 = vrot.slane %v526, %v1664
      %v1666 = vlaneseq
      %v1667 = vshrl.u32 %v1666, 7
      %v1668 = vsub.s32 0, %v1667
      %v1669 = vrot.slane %v527, %v1668
      %v1670 = vlaneseq
      %v1671 = vshrl.u32 %v1670, 7
      %v1672 = vsub.s32 0, %v1671
      %v1673 = vrot.slane %v528, %v1672
      %v1674 = vlaneseq
      %v1675 = vshrl.u32 %v1674, 7
      %v1676 = vsub.s32 0, %v1675
      %v1677 = vrot.slane %v529, %v1676
      %v1678 = vlaneseq
      %v1679 = vshrl.u32 %v1678, 7
      %v1680 = vsub.s32 0, %v1679
      %v1681 = vrot.slane %v530, %v1680
      %v1682 = vlaneseq
      %v1683 = vshrl.u32 %v1682, 7
      %v1684 = vsub.s32 0, %v1683
      %v1685 = vrot.slane %v531, %v1684
      %v1686 = vlaneseq
      %v1687 = vshrl.u32 %v1686, 7
      %v1688 = vsub.s32 0, %v1687
      %v1689 = vrot.slane %v532, %v1688
      %v1690 = vlaneseq
      %v1691 = vshrl.u32 %v1690, 7
      %v1692 = vsub.s32 0, %v1691
      %v1693 = vrot.slane %v533, %v1692
      %v1694 = vlaneseq
      %v1695 = vshrl.u32 %v1694, 7
      %v1696 = vsub.s32 0, %v1695
      %v1697 = vrot.slane %v534, %v1696
      %v1698 = vlaneseq
      %v1699 = vshrl.u32 %v1698, 7
      %v1700 = vsub.s32 0, %v1699
      %v1701 = vrot.slane %v535, %v1700
      %v1702 = vlaneseq
      %v1703 = vshrl.u32 %v1702, 7
      %v1704 = vsub.s32 0, %v1703
      %v1705 = vrot.slane %v536, %v1704
      %v1706 = vlaneseq
      %v1707 = vshrl.u32 %v1706, 7
      %v1708 = vsub.s32 0, %v1707
      %v1709 = vrot.slane %v537, %v1708
      %v1726 = vmul.f32 %v1649, %v1422
      %v1727 = vmul.f32 %v1649, %v1423
      %v1728 = vmul.f32 %v1653, %v1424
      %v1729 = vmul.f32 %v1653, %v1425
      %v1730 = vmul.f32 %v1657, %v1426
      %v1731 = vmul.f32 %v1657, %v1427
      %v1732 = vmul.f32 %v1661, %v1428
      %v1733 = vmul.f32 %v1661, %v1429
      %v1734 = vmul.f32 %v1665, %v1430
      %v1735 = vmul.f32 %v1665, %v1431
      %v1736 = vmul.f32 %v1669, %v1432
      %v1737 = vmul.f32 %v1669, %v1433
      %v1738 = vmul.f32 %v1673, %v1434
      %v1739 = vmul.f32 %v1673, %v1435
      %v1740 = vmul.f32 %v1677, %v1436
      %v1741 = vmul.f32 %v1677, %v1437
      %v1742 = vmul.f32 %v1681, %v1438
      %v1743 = vmul.f32 %v1681, %v1439
      %v1744 = vmul.f32 %v1685, %v1440
      %v1745 = vmul.f32 %v1685, %v1441
      %v1746 = vmul.f32 %v1689, %v1442
      %v1747 = vmul.f32 %v1689, %v1443
      %v1748 = vmul.f32 %v1693, %v1444
      %v1749 = vmul.f32 %v1693, %v1445
      %v1750 = vmul.f32 %v1697, %v1446
      %v1751 = vmul.f32 %v1697, %v1447
      %v1752 = vmul.f32 %v1701, %v1448
      %v1753 = vmul.f32 %v1701, %v1449
      %v1754 = vmul.f32 %v1705, %v1450
      %v1755 = vmul.f32 %v1705, %v1451
      %v1756 = vmul.f32 %v1709, %v1452
      %v1757 = vmul.f32 %v1709, %v1453
      %1759 = vset.pattern.permute.xlu0 0
      %1760 = vperm.xlu0 %1759, %v1726
      %v1761 = vpop.permute.xlu0 %1760
      %1764 = vset.pattern.permute.xlu0 0
      %1765 = vperm.xlu0 %1764, %v1727
      %v1766 = vpop.permute.xlu0 %1765
      %1769 = vset.pattern.permute.xlu0 0
      %1770 = vperm.xlu0 %1769, %v1728
      %v1771 = vpop.permute.xlu0 %1770
      %1774 = vset.pattern.permute.xlu0 0
      %1775 = vperm.xlu0 %1774, %v1729
      %v1776 = vpop.permute.xlu0 %1775
      %1779 = vset.pattern.permute.xlu0 0
      %1780 = vperm.xlu0 %1779, %v1730
      %v1781 = vpop.permute.xlu0 %1780
      %1784 = vset.pattern.permute.xlu0 0
      %1785 = vperm.xlu0 %1784, %v1731
      %v1786 = vpop.permute.xlu0 %1785
      %1789 = vset.pattern.permute.xlu0 0
      %1790 = vperm.xlu0 %1789, %v1732
      %v1791 = vpop.permute.xlu0 %1790
      %1794 = vset.pattern.permute.xlu0 0
      %1795 = vperm.xlu0 %1794, %v1733
      %v1796 = vpop.permute.xlu0 %1795
      %1799 = vset.pattern.permute.xlu0 0
      %1800 = vperm.xlu0 %1799, %v1734
      %v1801 = vpop.permute.xlu0 %1800
      %1804 = vset.pattern.permute.xlu0 0
      %1805 = vperm.xlu0 %1804, %v1735
      %v1806 = vpop.permute.xlu0 %1805
      %1809 = vset.pattern.permute.xlu0 0
      %1810 = vperm.xlu0 %1809, %v1736
      %v1811 = vpop.permute.xlu0 %1810
      %1814 = vset.pattern.permute.xlu0 0
      %1815 = vperm.xlu0 %1814, %v1737
      %v1816 = vpop.permute.xlu0 %1815
      %1819 = vset.pattern.permute.xlu0 0
      %1820 = vperm.xlu0 %1819, %v1738
      %v1821 = vpop.permute.xlu0 %1820
      %1824 = vset.pattern.permute.xlu0 0
      %1825 = vperm.xlu0 %1824, %v1739
      %v1826 = vpop.permute.xlu0 %1825
      %1829 = vset.pattern.permute.xlu0 0
      %1830 = vperm.xlu0 %1829, %v1740
      %v1831 = vpop.permute.xlu0 %1830
      %1834 = vset.pattern.permute.xlu0 0
      %1835 = vperm.xlu0 %1834, %v1741
      %v1836 = vpop.permute.xlu0 %1835
      %1839 = vset.pattern.permute.xlu0 0
      %1840 = vperm.xlu0 %1839, %v1742
      %v1841 = vpop.permute.xlu0 %1840
      %1844 = vset.pattern.permute.xlu0 0
      %1845 = vperm.xlu0 %1844, %v1743
      %v1846 = vpop.permute.xlu0 %1845
      %1849 = vset.pattern.permute.xlu0 0
      %1850 = vperm.xlu0 %1849, %v1744
      %v1851 = vpop.permute.xlu0 %1850
      %1854 = vset.pattern.permute.xlu0 0
      %1855 = vperm.xlu0 %1854, %v1745
      %v1856 = vpop.permute.xlu0 %1855
      %1859 = vset.pattern.permute.xlu0 0
      %1860 = vperm.xlu0 %1859, %v1746
      %v1861 = vpop.permute.xlu0 %1860
      %1864 = vset.pattern.permute.xlu0 0
      %1865 = vperm.xlu0 %1864, %v1747
      %v1866 = vpop.permute.xlu0 %1865
      %1869 = vset.pattern.permute.xlu0 0
      %1870 = vperm.xlu0 %1869, %v1748
      %v1871 = vpop.permute.xlu0 %1870
      %1874 = vset.pattern.permute.xlu0 0
      %1875 = vperm.xlu0 %1874, %v1749
      %v1876 = vpop.permute.xlu0 %1875
      %1879 = vset.pattern.permute.xlu0 0
      %1880 = vperm.xlu0 %1879, %v1750
      %v1881 = vpop.permute.xlu0 %1880
      %1884 = vset.pattern.permute.xlu0 0
      %1885 = vperm.xlu0 %1884, %v1751
      %v1886 = vpop.permute.xlu0 %1885
      %1889 = vset.pattern.permute.xlu0 0
      %1890 = vperm.xlu0 %1889, %v1752
      %v1891 = vpop.permute.xlu0 %1890
      %1894 = vset.pattern.permute.xlu0 0
      %1895 = vperm.xlu0 %1894, %v1753
      %v1896 = vpop.permute.xlu0 %1895
      %1899 = vset.pattern.permute.xlu0 0
      %1900 = vperm.xlu0 %1899, %v1754
      %v1901 = vpop.permute.xlu0 %1900
      %1904 = vset.pattern.permute.xlu0 0
      %1905 = vperm.xlu0 %1904, %v1755
      %v1906 = vpop.permute.xlu0 %1905
      %1909 = vset.pattern.permute.xlu0 0
      %1910 = vperm.xlu0 %1909, %v1756
      %v1911 = vpop.permute.xlu0 %1910
      %1914 = vset.pattern.permute.xlu0 0
      %1915 = vperm.xlu0 %1914, %v1757
      %v1916 = vpop.permute.xlu0 %1915
      %v1918 = vsub.f32 %v1598, %v1761
      %v1919 = vsub.f32 %v1599, %v1766
      %v1920 = vsub.f32 %v1600, %v1771
      %v1921 = vsub.f32 %v1601, %v1776
      %v1922 = vsub.f32 %v1602, %v1781
      %v1923 = vsub.f32 %v1603, %v1786
      %v1924 = vsub.f32 %v1604, %v1791
      %v1925 = vsub.f32 %v1605, %v1796
      %v1926 = vsub.f32 %v1606, %v1801
      %v1927 = vsub.f32 %v1607, %v1806
      %v1928 = vsub.f32 %v1608, %v1811
      %v1929 = vsub.f32 %v1609, %v1816
      %v1930 = vsub.f32 %v1610, %v1821
      %v1931 = vsub.f32 %v1611, %v1826
      %v1932 = vsub.f32 %v1612, %v1831
      %v1933 = vsub.f32 %v1613, %v1836
      %v1934 = vsub.f32 %v1614, %v1841
      %v1935 = vsub.f32 %v1615, %v1846
      %v1936 = vsub.f32 %v1616, %v1851
      %v1937 = vsub.f32 %v1617, %v1856
      %v1938 = vsub.f32 %v1618, %v1861
      %v1939 = vsub.f32 %v1619, %v1866
      %v1940 = vsub.f32 %v1620, %v1871
      %v1941 = vsub.f32 %v1621, %v1876
      %v1942 = vsub.f32 %v1622, %v1881
      %v1943 = vsub.f32 %v1623, %v1886
      %v1944 = vsub.f32 %v1624, %v1891
      %v1945 = vsub.f32 %v1625, %v1896
      %v1946 = vsub.f32 %v1626, %v1901
      %v1947 = vsub.f32 %v1627, %v1906
      %v1948 = vsub.f32 %v1628, %v1911
      %v1949 = vsub.f32 %v1629, %v1916
      %1950 = vset.pattern.permute.xlu0 1
      %1951 = vperm.xlu0 %1950, %v1649
      %v1952 = vpop.permute.xlu0 %1951
      %1954 = vset.pattern.permute.xlu0 1
      %1955 = vperm.xlu0 %1954, %v1653
      %v1956 = vpop.permute.xlu0 %1955
      %1958 = vset.pattern.permute.xlu0 1
      %1959 = vperm.xlu0 %1958, %v1657
      %v1960 = vpop.permute.xlu0 %1959
      %1962 = vset.pattern.permute.xlu0 1
      %1963 = vperm.xlu0 %1962, %v1661
      %v1964 = vpop.permute.xlu0 %1963
      %1966 = vset.pattern.permute.xlu0 1
      %1967 = vperm.xlu0 %1966, %v1665
      %v1968 = vpop.permute.xlu0 %1967
      %1970 = vset.pattern.permute.xlu0 1
      %1971 = vperm.xlu0 %1970, %v1669
      %v1972 = vpop.permute.xlu0 %1971
      %1974 = vset.pattern.permute.xlu0 1
      %1975 = vperm.xlu0 %1974, %v1673
      %v1976 = vpop.permute.xlu0 %1975
      %1978 = vset.pattern.permute.xlu0 1
      %1979 = vperm.xlu0 %1978, %v1677
      %v1980 = vpop.permute.xlu0 %1979
      %1982 = vset.pattern.permute.xlu0 1
      %1983 = vperm.xlu0 %1982, %v1681
      %v1984 = vpop.permute.xlu0 %1983
      %1986 = vset.pattern.permute.xlu0 1
      %1987 = vperm.xlu0 %1986, %v1685
      %v1988 = vpop.permute.xlu0 %1987
      %1990 = vset.pattern.permute.xlu0 1
      %1991 = vperm.xlu0 %1990, %v1689
      %v1992 = vpop.permute.xlu0 %1991
      %1994 = vset.pattern.permute.xlu0 1
      %1995 = vperm.xlu0 %1994, %v1693
      %v1996 = vpop.permute.xlu0 %1995
      %1998 = vset.pattern.permute.xlu0 1
      %1999 = vperm.xlu0 %1998, %v1697
      %v2000 = vpop.permute.xlu0 %1999
      %2002 = vset.pattern.permute.xlu0 1
      %2003 = vperm.xlu0 %2002, %v1701
      %v2004 = vpop.permute.xlu0 %2003
      %2006 = vset.pattern.permute.xlu0 1
      %2007 = vperm.xlu0 %2006, %v1705
      %v2008 = vpop.permute.xlu0 %2007
      %2010 = vset.pattern.permute.xlu0 1
      %2011 = vperm.xlu0 %2010, %v1709
      %v2012 = vpop.permute.xlu0 %2011
      %v2014 = vmul.f32 %v1918, %v1952
      %v2015 = vmul.f32 %v1919, %v1952
      %v2016 = vmul.f32 %v1920, %v1956
      %v2017 = vmul.f32 %v1921, %v1956
      %v2018 = vmul.f32 %v1922, %v1960
      %v2019 = vmul.f32 %v1923, %v1960
      %v2020 = vmul.f32 %v1924, %v1964
      %v2021 = vmul.f32 %v1925, %v1964
      %v2022 = vmul.f32 %v1926, %v1968
      %v2023 = vmul.f32 %v1927, %v1968
      %v2024 = vmul.f32 %v1928, %v1972
      %v2025 = vmul.f32 %v1929, %v1972
      %v2026 = vmul.f32 %v1930, %v1976
      %v2027 = vmul.f32 %v1931, %v1976
      %v2028 = vmul.f32 %v1932, %v1980
      %v2029 = vmul.f32 %v1933, %v1980
      %v2030 = vmul.f32 %v1934, %v1984
      %v2031 = vmul.f32 %v1935, %v1984
      %v2032 = vmul.f32 %v1936, %v1988
      %v2033 = vmul.f32 %v1937, %v1988
      %v2034 = vmul.f32 %v1938, %v1992
      %v2035 = vmul.f32 %v1939, %v1992
      %v2036 = vmul.f32 %v1940, %v1996
      %v2037 = vmul.f32 %v1941, %v1996
      %v2038 = vmul.f32 %v1942, %v2000
      %v2039 = vmul.f32 %v1943, %v2000
      %v2040 = vmul.f32 %v1944, %v2004
      %v2041 = vmul.f32 %v1945, %v2004
      %v2042 = vmul.f32 %v1946, %v2008
      %v2043 = vmul.f32 %v1947, %v2008
      %v2044 = vmul.f32 %v1948, %v2012
      %v2045 = vmul.f32 %v1949, %v2012
      %2046 = vset.pattern.permute.xlu0 2
      %2047 = vperm.xlu0 %2046, %v1473
      %v2048 = vpop.permute.xlu0 %2047
      %2050 = vset.pattern.permute.xlu0 2
      %2051 = vperm.xlu0 %2050, %v1477
      %v2052 = vpop.permute.xlu0 %2051
      %2054 = vset.pattern.permute.xlu0 2
      %2055 = vperm.xlu0 %2054, %v1481
      %v2056 = vpop.permute.xlu0 %2055
      %2058 = vset.pattern.permute.xlu0 2
      %2059 = vperm.xlu0 %2058, %v1485
      %v2060 = vpop.permute.xlu0 %2059
      %2062 = vset.pattern.permute.xlu0 2
      %2063 = vperm.xlu0 %2062, %v1489
      %v2064 = vpop.permute.xlu0 %2063
      %2066 = vset.pattern.permute.xlu0 2
      %2067 = vperm.xlu0 %2066, %v1493
      %v2068 = vpop.permute.xlu0 %2067
      %2070 = vset.pattern.permute.xlu0 2
      %2071 = vperm.xlu0 %2070, %v1497
      %v2072 = vpop.permute.xlu0 %2071
      %2074 = vset.pattern.permute.xlu0 2
      %2075 = vperm.xlu0 %2074, %v1501
      %v2076 = vpop.permute.xlu0 %2075
      %2078 = vset.pattern.permute.xlu0 2
      %2079 = vperm.xlu0 %2078, %v1505
      %v2080 = vpop.permute.xlu0 %2079
      %2082 = vset.pattern.permute.xlu0 2
      %2083 = vperm.xlu0 %2082, %v1509
      %v2084 = vpop.permute.xlu0 %2083
      %2086 = vset.pattern.permute.xlu0 2
      %2087 = vperm.xlu0 %2086, %v1513
      %v2088 = vpop.permute.xlu0 %2087
      %2090 = vset.pattern.permute.xlu0 2
      %2091 = vperm.xlu0 %2090, %v1517
      %v2092 = vpop.permute.xlu0 %2091
      %2094 = vset.pattern.permute.xlu0 2
      %2095 = vperm.xlu0 %2094, %v1521
      %v2096 = vpop.permute.xlu0 %2095
      %2098 = vset.pattern.permute.xlu0 2
      %2099 = vperm.xlu0 %2098, %v1525
      %v2100 = vpop.permute.xlu0 %2099
      %2102 = vset.pattern.permute.xlu0 2
      %2103 = vperm.xlu0 %2102, %v1529
      %v2104 = vpop.permute.xlu0 %2103
      %2106 = vset.pattern.permute.xlu0 2
      %2107 = vperm.xlu0 %2106, %v1533
      %v2108 = vpop.permute.xlu0 %2107
      %v2110 = vmul.f32 %v474, %v2048
      %v2111 = vmul.f32 %v475, %v2048
      %v2112 = vmul.f32 %v476, %v2052
      %v2113 = vmul.f32 %v477, %v2052
      %v2114 = vmul.f32 %v478, %v2056
      %v2115 = vmul.f32 %v479, %v2056
      %v2116 = vmul.f32 %v480, %v2060
      %v2117 = vmul.f32 %v481, %v2060
      %v2118 = vmul.f32 %v482, %v2064
      %v2119 = vmul.f32 %v483, %v2064
      %v2120 = vmul.f32 %v484, %v2068
      %v2121 = vmul.f32 %v485, %v2068
      %v2122 = vmul.f32 %v486, %v2072
      %v2123 = vmul.f32 %v487, %v2072
      %v2124 = vmul.f32 %v488, %v2076
      %v2125 = vmul.f32 %v489, %v2076
      %v2126 = vmul.f32 %v490, %v2080
      %v2127 = vmul.f32 %v491, %v2080
      %v2128 = vmul.f32 %v492, %v2084
      %v2129 = vmul.f32 %v493, %v2084
      %v2130 = vmul.f32 %v494, %v2088
      %v2131 = vmul.f32 %v495, %v2088
      %v2132 = vmul.f32 %v496, %v2092
      %v2133 = vmul.f32 %v497, %v2092
      %v2134 = vmul.f32 %v498, %v2096
      %v2135 = vmul.f32 %v499, %v2096
      %v2136 = vmul.f32 %v500, %v2100
      %v2137 = vmul.f32 %v501, %v2100
      %v2138 = vmul.f32 %v502, %v2104
      %v2139 = vmul.f32 %v503, %v2104
      %v2140 = vmul.f32 %v504, %v2108
      %v2141 = vmul.f32 %v505, %v2108
      %v2142 = vadd.f32 %v2014, %v2110
      %v2143 = vadd.f32 %v2015, %v2111
      %v2144 = vadd.f32 %v2016, %v2112
      %v2145 = vadd.f32 %v2017, %v2113
      %v2146 = vadd.f32 %v2018, %v2114
      %v2147 = vadd.f32 %v2019, %v2115
      %v2148 = vadd.f32 %v2020, %v2116
      %v2149 = vadd.f32 %v2021, %v2117
      %v2150 = vadd.f32 %v2022, %v2118
      %v2151 = vadd.f32 %v2023, %v2119
      %v2152 = vadd.f32 %v2024, %v2120
      %v2153 = vadd.f32 %v2025, %v2121
      %v2154 = vadd.f32 %v2026, %v2122
      %v2155 = vadd.f32 %v2027, %v2123
      %v2156 = vadd.f32 %v2028, %v2124
      %v2157 = vadd.f32 %v2029, %v2125
      %v2158 = vadd.f32 %v2030, %v2126
      %v2159 = vadd.f32 %v2031, %v2127
      %v2160 = vadd.f32 %v2032, %v2128
      %v2161 = vadd.f32 %v2033, %v2129
      %v2162 = vadd.f32 %v2034, %v2130
      %v2163 = vadd.f32 %v2035, %v2131
      %v2164 = vadd.f32 %v2036, %v2132
      %v2165 = vadd.f32 %v2037, %v2133
      %v2166 = vadd.f32 %v2038, %v2134
      %v2167 = vadd.f32 %v2039, %v2135
      %v2168 = vadd.f32 %v2040, %v2136
      %v2169 = vadd.f32 %v2041, %v2137
      %v2170 = vadd.f32 %v2042, %v2138
      %v2171 = vadd.f32 %v2043, %v2139
      %v2172 = vadd.f32 %v2044, %v2140
      %v2173 = vadd.f32 %v2045, %v2141
      %2174 = vst.msk [vmem:[%s463] sm:$0xff] %vm1324, %v2142
      %2175 = vst.msk [vmem:[%s463 + $0x8] sm:$0xff] %vm1324, %v2143
      %2176 = vst.msk [vmem:[%s463 + $0x10] sm:$0xff] %vm1324, %v2144
      %2177 = vst.msk [vmem:[%s463 + $0x18] sm:$0xff] %vm1324, %v2145
      %2178 = vst.msk [vmem:[%s463 + $0x20] sm:$0xff] %vm1324, %v2146
      %2179 = vst.msk [vmem:[%s463 + $0x28] sm:$0xff] %vm1324, %v2147
      %2180 = vst.msk [vmem:[%s463 + $0x30] sm:$0xff] %vm1324, %v2148
      %2181 = vst.msk [vmem:[%s463 + $0x38] sm:$0xff] %vm1324, %v2149
      %2182 = vst.msk [vmem:[%s463 + $0x40] sm:$0xff] %vm1324, %v2150
      %2183 = vst.msk [vmem:[%s463 + $0x48] sm:$0xff] %vm1324, %v2151
      %2184 = vst.msk [vmem:[%s463 + $0x50] sm:$0xff] %vm1324, %v2152
      %2185 = vst.msk [vmem:[%s463 + $0x58] sm:$0xff] %vm1324, %v2153
      %2186 = vst.msk [vmem:[%s463 + $0x60] sm:$0xff] %vm1324, %v2154
      %2187 = vst.msk [vmem:[%s463 + $0x68] sm:$0xff] %vm1324, %v2155
      %2188 = vst.msk [vmem:[%s463 + $0x70] sm:$0xff] %vm1324, %v2156
      %2189 = vst.msk [vmem:[%s463 + $0x78] sm:$0xff] %vm1324, %v2157
      %2190 = vst.msk [vmem:[%s463 + $0x80] sm:$0xff] %vm1324, %v2158
      %2191 = vst.msk [vmem:[%s463 + $0x88] sm:$0xff] %vm1324, %v2159
      %2192 = vst.msk [vmem:[%s463 + $0x90] sm:$0xff] %vm1324, %v2160
      %2193 = vst.msk [vmem:[%s463 + $0x98] sm:$0xff] %vm1324, %v2161
      %2194 = vst.msk [vmem:[%s463 + $0xa0] sm:$0xff] %vm1324, %v2162
      %2195 = vst.msk [vmem:[%s463 + $0xa8] sm:$0xff] %vm1324, %v2163
      %2196 = vst.msk [vmem:[%s463 + $0xb0] sm:$0xff] %vm1324, %v2164
      %2197 = vst.msk [vmem:[%s463 + $0xb8] sm:$0xff] %vm1324, %v2165
      %2198 = vst.msk [vmem:[%s463 + $0xc0] sm:$0xff] %vm1324, %v2166
      %2199 = vst.msk [vmem:[%s463 + $0xc8] sm:$0xff] %vm1324, %v2167
      %2200 = vst.msk [vmem:[%s463 + $0xd0] sm:$0xff] %vm1324, %v2168
      %2201 = vst.msk [vmem:[%s463 + $0xd8] sm:$0xff] %vm1324, %v2169
      %2202 = vst.msk [vmem:[%s463 + $0xe0] sm:$0xff] %vm1324, %v2170
      %2203 = vst.msk [vmem:[%s463 + $0xe8] sm:$0xff] %vm1324, %v2171
      %2204 = vst.msk [vmem:[%s463 + $0xf0] sm:$0xff] %vm1324, %v2172
      %2205 = vst.msk [vmem:[%s463 + $0xf8] sm:$0xff] %vm1324, %v2173
      %v2206 = vsel %vm1324, %v2142, 0.0
      %2207 = vadd.xlane.f32.xlu0 %v2206
      %v2208 = vpop.xlane.xlu0 %2207
      %v2209 = vsel %vm1324, %v2143, 0.0
      %2210 = vadd.xlane.f32.xlu0 %v2209
      %v2211 = vpop.xlane.xlu0 %2210
      %v2212 = vsel %vm1324, %v2144, 0.0
      %2213 = vadd.xlane.f32.xlu0 %v2212
      %v2214 = vpop.xlane.xlu0 %2213
      %v2215 = vsel %vm1324, %v2145, 0.0
      %2216 = vadd.xlane.f32.xlu0 %v2215
      %v2217 = vpop.xlane.xlu0 %2216
      %v2218 = vsel %vm1324, %v2146, 0.0
      %2219 = vadd.xlane.f32.xlu0 %v2218
      %v2220 = vpop.xlane.xlu0 %2219
      %v2221 = vsel %vm1324, %v2147, 0.0
      %2222 = vadd.xlane.f32.xlu0 %v2221
      %v2223 = vpop.xlane.xlu0 %2222
      %v2224 = vsel %vm1324, %v2148, 0.0
      %2225 = vadd.xlane.f32.xlu0 %v2224
      %v2226 = vpop.xlane.xlu0 %2225
      %v2227 = vsel %vm1324, %v2149, 0.0
      %2228 = vadd.xlane.f32.xlu0 %v2227
      %v2229 = vpop.xlane.xlu0 %2228
      %v2230 = vsel %vm1324, %v2150, 0.0
      %2231 = vadd.xlane.f32.xlu0 %v2230
      %v2232 = vpop.xlane.xlu0 %2231
      %v2233 = vsel %vm1324, %v2151, 0.0
      %2234 = vadd.xlane.f32.xlu0 %v2233
      %v2235 = vpop.xlane.xlu0 %2234
      %v2236 = vsel %vm1324, %v2152, 0.0
      %2237 = vadd.xlane.f32.xlu0 %v2236
      %v2238 = vpop.xlane.xlu0 %2237
      %v2239 = vsel %vm1324, %v2153, 0.0
      %2240 = vadd.xlane.f32.xlu0 %v2239
      %v2241 = vpop.xlane.xlu0 %2240
      %v2242 = vsel %vm1324, %v2154, 0.0
      %2243 = vadd.xlane.f32.xlu0 %v2242
      %v2244 = vpop.xlane.xlu0 %2243
      %v2245 = vsel %vm1324, %v2155, 0.0
      %2246 = vadd.xlane.f32.xlu0 %v2245
      %v2247 = vpop.xlane.xlu0 %2246
      %v2248 = vsel %vm1324, %v2156, 0.0
      %2249 = vadd.xlane.f32.xlu0 %v2248
      %v2250 = vpop.xlane.xlu0 %2249
      %v2251 = vsel %vm1324, %v2157, 0.0
      %2252 = vadd.xlane.f32.xlu0 %v2251
      %v2253 = vpop.xlane.xlu0 %2252
      %v2254 = vsel %vm1324, %v2158, 0.0
      %2255 = vadd.xlane.f32.xlu0 %v2254
      %v2256 = vpop.xlane.xlu0 %2255
      %v2257 = vsel %vm1324, %v2159, 0.0
      %2258 = vadd.xlane.f32.xlu0 %v2257
      %v2259 = vpop.xlane.xlu0 %2258
      %v2260 = vsel %vm1324, %v2160, 0.0
      %2261 = vadd.xlane.f32.xlu0 %v2260
      %v2262 = vpop.xlane.xlu0 %2261
      %v2263 = vsel %vm1324, %v2161, 0.0
      %2264 = vadd.xlane.f32.xlu0 %v2263
      %v2265 = vpop.xlane.xlu0 %2264
      %v2266 = vsel %vm1324, %v2162, 0.0
      %2267 = vadd.xlane.f32.xlu0 %v2266
      %v2268 = vpop.xlane.xlu0 %2267
      %v2269 = vsel %vm1324, %v2163, 0.0
      %2270 = vadd.xlane.f32.xlu0 %v2269
      %v2271 = vpop.xlane.xlu0 %2270
      %v2272 = vsel %vm1324, %v2164, 0.0
      %2273 = vadd.xlane.f32.xlu0 %v2272
      %v2274 = vpop.xlane.xlu0 %2273
      %v2275 = vsel %vm1324, %v2165, 0.0
      %2276 = vadd.xlane.f32.xlu0 %v2275
      %v2277 = vpop.xlane.xlu0 %2276
      %v2278 = vsel %vm1324, %v2166, 0.0
      %2279 = vadd.xlane.f32.xlu0 %v2278
      %v2280 = vpop.xlane.xlu0 %2279
      %v2281 = vsel %vm1324, %v2167, 0.0
      %2282 = vadd.xlane.f32.xlu0 %v2281
      %v2283 = vpop.xlane.xlu0 %2282
      %v2284 = vsel %vm1324, %v2168, 0.0
      %2285 = vadd.xlane.f32.xlu0 %v2284
      %v2286 = vpop.xlane.xlu0 %2285
      %v2287 = vsel %vm1324, %v2169, 0.0
      %2288 = vadd.xlane.f32.xlu0 %v2287
      %v2289 = vpop.xlane.xlu0 %2288
      %v2290 = vsel %vm1324, %v2170, 0.0
      %2291 = vadd.xlane.f32.xlu0 %v2290
      %v2292 = vpop.xlane.xlu0 %2291
      %v2293 = vsel %vm1324, %v2171, 0.0
      %2294 = vadd.xlane.f32.xlu0 %v2293
      %v2295 = vpop.xlane.xlu0 %2294
      %v2296 = vsel %vm1324, %v2172, 0.0
      %2297 = vadd.xlane.f32.xlu0 %v2296
      %v2298 = vpop.xlane.xlu0 %2297
      %v2299 = vsel %vm1324, %v2173, 0.0
      %2300 = vadd.xlane.f32.xlu0 %v2299
      %v2301 = vpop.xlane.xlu0 %2300
      %v2302 = vmul.f32 %v2208, %v1421
      %v2303 = vmul.f32 %v2211, %v1421
      %v2304 = vmul.f32 %v2214, %v1421
      %v2305 = vmul.f32 %v2217, %v1421
      %v2306 = vmul.f32 %v2220, %v1421
      %v2307 = vmul.f32 %v2223, %v1421
      %v2308 = vmul.f32 %v2226, %v1421
      %v2309 = vmul.f32 %v2229, %v1421
      %v2310 = vmul.f32 %v2232, %v1421
      %v2311 = vmul.f32 %v2235, %v1421
      %v2312 = vmul.f32 %v2238, %v1421
      %v2313 = vmul.f32 %v2241, %v1421
      %v2314 = vmul.f32 %v2244, %v1421
      %v2315 = vmul.f32 %v2247, %v1421
      %v2316 = vmul.f32 %v2250, %v1421
      %v2317 = vmul.f32 %v2253, %v1421
      %v2318 = vmul.f32 %v2256, %v1421
      %v2319 = vmul.f32 %v2259, %v1421
      %v2320 = vmul.f32 %v2262, %v1421
      %v2321 = vmul.f32 %v2265, %v1421
      %v2322 = vmul.f32 %v2268, %v1421
      %v2323 = vmul.f32 %v2271, %v1421
      %v2324 = vmul.f32 %v2274, %v1421
      %v2325 = vmul.f32 %v2277, %v1421
      %v2326 = vmul.f32 %v2280, %v1421
      %v2327 = vmul.f32 %v2283, %v1421
      %v2328 = vmul.f32 %v2286, %v1421
      %v2329 = vmul.f32 %v2289, %v1421
      %v2330 = vmul.f32 %v2292, %v1421
      %v2331 = vmul.f32 %v2295, %v1421
      %v2332 = vmul.f32 %v2298, %v1421
      %v2333 = vmul.f32 %v2301, %v1421
      %v2334 = vadd.f32 %v2302, %v2303
      %v2335 = vrot.slane %v2334, 4
      %v2336 = vadd.f32 %v2334, %v2335
      %v2337 = vrot.slane %v2336, 2
      %v2338 = vadd.f32 %v2336, %v2337
      %v2339 = vrot.slane %v2338, 1
      %v2340 = vadd.f32 %v2338, %v2339
      %v2341 = vadd.f32 %v2304, %v2305
      %v2342 = vrot.slane %v2341, 4
      %v2343 = vadd.f32 %v2341, %v2342
      %v2344 = vrot.slane %v2343, 2
      %v2345 = vadd.f32 %v2343, %v2344
      %v2346 = vrot.slane %v2345, 1
      %v2347 = vadd.f32 %v2345, %v2346
      %v2348 = vadd.f32 %v2306, %v2307
      %v2349 = vrot.slane %v2348, 4
      %v2350 = vadd.f32 %v2348, %v2349
      %v2351 = vrot.slane %v2350, 2
      %v2352 = vadd.f32 %v2350, %v2351
      %v2353 = vrot.slane %v2352, 1
      %v2354 = vadd.f32 %v2352, %v2353
      %v2355 = vadd.f32 %v2308, %v2309
      %v2356 = vrot.slane %v2355, 4
      %v2357 = vadd.f32 %v2355, %v2356
      %v2358 = vrot.slane %v2357, 2
      %v2359 = vadd.f32 %v2357, %v2358
      %v2360 = vrot.slane %v2359, 1
      %v2361 = vadd.f32 %v2359, %v2360
      %v2362 = vadd.f32 %v2310, %v2311
      %v2363 = vrot.slane %v2362, 4
      %v2364 = vadd.f32 %v2362, %v2363
      %v2365 = vrot.slane %v2364, 2
      %v2366 = vadd.f32 %v2364, %v2365
      %v2367 = vrot.slane %v2366, 1
      %v2368 = vadd.f32 %v2366, %v2367
      %v2369 = vadd.f32 %v2312, %v2313
      %v2370 = vrot.slane %v2369, 4
      %v2371 = vadd.f32 %v2369, %v2370
      %v2372 = vrot.slane %v2371, 2
      %v2373 = vadd.f32 %v2371, %v2372
      %v2374 = vrot.slane %v2373, 1
      %v2375 = vadd.f32 %v2373, %v2374
      %v2376 = vadd.f32 %v2314, %v2315
      %v2377 = vrot.slane %v2376, 4
      %v2378 = vadd.f32 %v2376, %v2377
      %v2379 = vrot.slane %v2378, 2
      %v2380 = vadd.f32 %v2378, %v2379
      %v2381 = vrot.slane %v2380, 1
      %v2382 = vadd.f32 %v2380, %v2381
      %v2383 = vadd.f32 %v2316, %v2317
      %v2384 = vrot.slane %v2383, 4
      %v2385 = vadd.f32 %v2383, %v2384
      %v2386 = vrot.slane %v2385, 2
      %v2387 = vadd.f32 %v2385, %v2386
      %v2388 = vrot.slane %v2387, 1
      %v2389 = vadd.f32 %v2387, %v2388
      %v2390 = vadd.f32 %v2318, %v2319
      %v2391 = vrot.slane %v2390, 4
      %v2392 = vadd.f32 %v2390, %v2391
      %v2393 = vrot.slane %v2392, 2
      %v2394 = vadd.f32 %v2392, %v2393
      %v2395 = vrot.slane %v2394, 1
      %v2396 = vadd.f32 %v2394, %v2395
      %v2397 = vadd.f32 %v2320, %v2321
      %v2398 = vrot.slane %v2397, 4
      %v2399 = vadd.f32 %v2397, %v2398
      %v2400 = vrot.slane %v2399, 2
      %v2401 = vadd.f32 %v2399, %v2400
      %v2402 = vrot.slane %v2401, 1
      %v2403 = vadd.f32 %v2401, %v2402
      %v2404 = vadd.f32 %v2322, %v2323
      %v2405 = vrot.slane %v2404, 4
      %v2406 = vadd.f32 %v2404, %v2405
      %v2407 = vrot.slane %v2406, 2
      %v2408 = vadd.f32 %v2406, %v2407
      %v2409 = vrot.slane %v2408, 1
      %v2410 = vadd.f32 %v2408, %v2409
      %v2411 = vadd.f32 %v2324, %v2325
      %v2412 = vrot.slane %v2411, 4
      %v2413 = vadd.f32 %v2411, %v2412
      %v2414 = vrot.slane %v2413, 2
      %v2415 = vadd.f32 %v2413, %v2414
      %v2416 = vrot.slane %v2415, 1
      %v2417 = vadd.f32 %v2415, %v2416
      %v2418 = vadd.f32 %v2326, %v2327
      %v2419 = vrot.slane %v2418, 4
      %v2420 = vadd.f32 %v2418, %v2419
      %v2421 = vrot.slane %v2420, 2
      %v2422 = vadd.f32 %v2420, %v2421
      %v2423 = vrot.slane %v2422, 1
      %v2424 = vadd.f32 %v2422, %v2423
      %v2425 = vadd.f32 %v2328, %v2329
      %v2426 = vrot.slane %v2425, 4
      %v2427 = vadd.f32 %v2425, %v2426
      %v2428 = vrot.slane %v2427, 2
      %v2429 = vadd.f32 %v2427, %v2428
      %v2430 = vrot.slane %v2429, 1
      %v2431 = vadd.f32 %v2429, %v2430
      %v2432 = vadd.f32 %v2330, %v2331
      %v2433 = vrot.slane %v2432, 4
      %v2434 = vadd.f32 %v2432, %v2433
      %v2435 = vrot.slane %v2434, 2
      %v2436 = vadd.f32 %v2434, %v2435
      %v2437 = vrot.slane %v2436, 1
      %v2438 = vadd.f32 %v2436, %v2437
      %v2439 = vadd.f32 %v2332, %v2333
      %v2440 = vrot.slane %v2439, 4
      %v2441 = vadd.f32 %v2439, %v2440
      %v2442 = vrot.slane %v2441, 2
      %v2443 = vadd.f32 %v2441, %v2442
      %v2444 = vrot.slane %v2443, 1
      %v2445 = vadd.f32 %v2443, %v2444
      %v2446 = vmul.f32 %v2340, %v1421
      %v2447 = vmul.f32 %v2347, %v1421
      %v2448 = vmul.f32 %v2354, %v1421
      %v2449 = vmul.f32 %v2361, %v1421
      %v2450 = vmul.f32 %v2368, %v1421
      %v2451 = vmul.f32 %v2375, %v1421
      %v2452 = vmul.f32 %v2382, %v1421
      %v2453 = vmul.f32 %v2389, %v1421
      %v2454 = vmul.f32 %v2396, %v1421
      %v2455 = vmul.f32 %v2403, %v1421
      %v2456 = vmul.f32 %v2410, %v1421
      %v2457 = vmul.f32 %v2417, %v1421
      %v2458 = vmul.f32 %v2424, %v1421
      %v2459 = vmul.f32 %v2431, %v1421
      %v2460 = vmul.f32 %v2438, %v1421
      %v2461 = vmul.f32 %v2445, %v1421
      %vm2462 = vcmask 0
      %2463 = vst.msk [vmem:[%s472] sm:$0x1] %vm2462, %v2446
      %2464 = vst.msk [vmem:[%s472 + $0x1] sm:$0x1] %vm2462, %v2447
      %2465 = vst.msk [vmem:[%s472 + $0x2] sm:$0x1] %vm2462, %v2448
      %2466 = vst.msk [vmem:[%s472 + $0x3] sm:$0x1] %vm2462, %v2449
      %2467 = vst.msk [vmem:[%s472 + $0x4] sm:$0x1] %vm2462, %v2450
      %2468 = vst.msk [vmem:[%s472 + $0x5] sm:$0x1] %vm2462, %v2451
      %2469 = vst.msk [vmem:[%s472 + $0x6] sm:$0x1] %vm2462, %v2452
      %2470 = vst.msk [vmem:[%s472 + $0x7] sm:$0x1] %vm2462, %v2453
      %2471 = vst.msk [vmem:[%s472 + $0x8] sm:$0x1] %vm2462, %v2454
      %2472 = vst.msk [vmem:[%s472 + $0x9] sm:$0x1] %vm2462, %v2455
      %2473 = vst.msk [vmem:[%s472 + $0xa] sm:$0x1] %vm2462, %v2456
      %2474 = vst.msk [vmem:[%s472 + $0xb] sm:$0x1] %vm2462, %v2457
      %2475 = vst.msk [vmem:[%s472 + $0xc] sm:$0x1] %vm2462, %v2458
      %2476 = vst.msk [vmem:[%s472 + $0xd] sm:$0x1] %vm2462, %v2459
      %2477 = vst.msk [vmem:[%s472 + $0xe] sm:$0x1] %vm2462, %v2460
      %2478 = vst.msk [vmem:[%s472 + $0xf] sm:$0x1] %vm2462, %v2461
      %v2495 = vrot.slane %v827, 1
      %v2496 = vrot.slane %v829, 1
      %v2497 = vrot.slane %v831, 1
      %v2498 = vrot.slane %v833, 1
      %v2499 = vrot.slane %v835, 1
      %v2500 = vrot.slane %v837, 1
      %v2501 = vrot.slane %v839, 1
      %v2502 = vrot.slane %v841, 1
      %v2503 = vrot.slane %v843, 1
      %v2504 = vrot.slane %v845, 1
      %v2505 = vrot.slane %v847, 1
      %v2506 = vrot.slane %v849, 1
      %v2507 = vrot.slane %v851, 1
      %v2508 = vrot.slane %v853, 1
      %v2509 = vrot.slane %v855, 1
      %v2510 = vrot.slane %v857, 1
      %vm2543 = vcmask 1040384
      %v2544 = vrot.slane %v827, 7
      %v2545 = vrot.slane %v828, 7
      %v2546 = vsel %vm2543, %v2544, %v2545
      %v2547 = vrot.slane %v829, 7
      %v2548 = vrot.slane %v830, 7
      %v2549 = vsel %vm2543, %v2547, %v2548
      %v2550 = vrot.slane %v831, 7
      %v2551 = vrot.slane %v832, 7
      %v2552 = vsel %vm2543, %v2550, %v2551
      %v2553 = vrot.slane %v833, 7
      %v2554 = vrot.slane %v834, 7
      %v2555 = vsel %vm2543, %v2553, %v2554
      %v2556 = vrot.slane %v835, 7
      %v2557 = vrot.slane %v836, 7
      %v2558 = vsel %vm2543, %v2556, %v2557
      %v2559 = vrot.slane %v837, 7
      %v2560 = vrot.slane %v838, 7
      %v2561 = vsel %vm2543, %v2559, %v2560
      %v2562 = vrot.slane %v839, 7
      %v2563 = vrot.slane %v840, 7
      %v2564 = vsel %vm2543, %v2562, %v2563
      %v2565 = vrot.slane %v841, 7
      %v2566 = vrot.slane %v842, 7
      %v2567 = vsel %vm2543, %v2565, %v2566
      %v2568 = vrot.slane %v843, 7
      %v2569 = vrot.slane %v844, 7
      %v2570 = vsel %vm2543, %v2568, %v2569
      %v2571 = vrot.slane %v845, 7
      %v2572 = vrot.slane %v846, 7
      %v2573 = vsel %vm2543, %v2571, %v2572
      %v2574 = vrot.slane %v847, 7
      %v2575 = vrot.slane %v848, 7
      %v2576 = vsel %vm2543, %v2574, %v2575
      %v2577 = vrot.slane %v849, 7
      %v2578 = vrot.slane %v850, 7
      %v2579 = vsel %vm2543, %v2577, %v2578
      %v2580 = vrot.slane %v851, 7
      %v2581 = vrot.slane %v852, 7
      %v2582 = vsel %vm2543, %v2580, %v2581
      %v2583 = vrot.slane %v853, 7
      %v2584 = vrot.slane %v854, 7
      %v2585 = vsel %vm2543, %v2583, %v2584
      %v2586 = vrot.slane %v855, 7
      %v2587 = vrot.slane %v856, 7
      %v2588 = vsel %vm2543, %v2586, %v2587
      %v2589 = vrot.slane %v857, 7
      %v2590 = vrot.slane %v858, 7
      %v2591 = vsel %vm2543, %v2589, %v2590
      %v2624 = vsel %vm2543, %v2495, %v2544
      %v2625 = vsel %vm2543, %v2496, %v2547
      %v2626 = vsel %vm2543, %v2497, %v2550
      %v2627 = vsel %vm2543, %v2498, %v2553
      %v2628 = vsel %vm2543, %v2499, %v2556
      %v2629 = vsel %vm2543, %v2500, %v2559
      %v2630 = vsel %vm2543, %v2501, %v2562
      %v2631 = vsel %vm2543, %v2502, %v2565
      %v2632 = vsel %vm2543, %v2503, %v2568
      %v2633 = vsel %vm2543, %v2504, %v2571
      %v2634 = vsel %vm2543, %v2505, %v2574
      %v2635 = vsel %vm2543, %v2506, %v2577
      %v2636 = vsel %vm2543, %v2507, %v2580
      %v2637 = vsel %vm2543, %v2508, %v2583
      %v2638 = vsel %vm2543, %v2509, %v2586
      %v2639 = vsel %vm2543, %v2510, %v2589
      %vm2640 = vcmask 1046528
      %v2641 = vrot.slane %v828, 1
      %v2642 = vsel %vm2640, %v2495, %v2641
      %v2643 = vrot.slane %v830, 1
      %v2644 = vsel %vm2640, %v2496, %v2643
      %v2645 = vrot.slane %v832, 1
      %v2646 = vsel %vm2640, %v2497, %v2645
      %v2647 = vrot.slane %v834, 1
      %v2648 = vsel %vm2640, %v2498, %v2647
      %v2649 = vrot.slane %v836, 1
      %v2650 = vsel %vm2640, %v2499, %v2649
      %v2651 = vrot.slane %v838, 1
      %v2652 = vsel %vm2640, %v2500, %v2651
      %v2653 = vrot.slane %v840, 1
      %v2654 = vsel %vm2640, %v2501, %v2653
      %v2655 = vrot.slane %v842, 1
      %v2656 = vsel %vm2640, %v2502, %v2655
      %v2657 = vrot.slane %v844, 1
      %v2658 = vsel %vm2640, %v2503, %v2657
      %v2659 = vrot.slane %v846, 1
      %v2660 = vsel %vm2640, %v2504, %v2659
      %v2661 = vrot.slane %v848, 1
      %v2662 = vsel %vm2640, %v2505, %v2661
      %v2663 = vrot.slane %v850, 1
      %v2664 = vsel %vm2640, %v2506, %v2663
      %v2665 = vrot.slane %v852, 1
      %v2666 = vsel %vm2640, %v2507, %v2665
      %v2667 = vrot.slane %v854, 1
      %v2668 = vsel %vm2640, %v2508, %v2667
      %v2669 = vrot.slane %v856, 1
      %v2670 = vsel %vm2640, %v2509, %v2669
      %v2671 = vrot.slane %v858, 1
      %v2672 = vsel %vm2640, %v2510, %v2671
      %v2721 = vsel %vm2640, %v2641, %v2545
      %v2722 = vsel %vm2640, %v2643, %v2548
      %v2723 = vsel %vm2640, %v2645, %v2551
      %v2724 = vsel %vm2640, %v2647, %v2554
      %v2725 = vsel %vm2640, %v2649, %v2557
      %v2726 = vsel %vm2640, %v2651, %v2560
      %v2727 = vsel %vm2640, %v2653, %v2563
      %v2728 = vsel %vm2640, %v2655, %v2566
      %v2729 = vsel %vm2640, %v2657, %v2569
      %v2730 = vsel %vm2640, %v2659, %v2572
      %v2731 = vsel %vm2640, %v2661, %v2575
      %v2732 = vsel %vm2640, %v2663, %v2578
      %v2733 = vsel %vm2640, %v2665, %v2581
      %v2734 = vsel %vm2640, %v2667, %v2584
      %v2735 = vsel %vm2640, %v2669, %v2587
      %v2736 = vsel %vm2640, %v2671, %v2590
      %v2753 = vlaneseq
      %v2754 = vshrl.u32 %v2753, 7
      %v2755 = vsub.s32 0, %v2754
      %v2756 = vrot.slane %v570, %v2755
      %v2757 = vlaneseq
      %v2758 = vshrl.u32 %v2757, 7
      %v2759 = vsub.s32 0, %v2758
      %v2760 = vrot.slane %v571, %v2759
      %v2761 = vlaneseq
      %v2762 = vshrl.u32 %v2761, 7
      %v2763 = vsub.s32 0, %v2762
      %v2764 = vrot.slane %v572, %v2763
      %v2765 = vlaneseq
      %v2766 = vshrl.u32 %v2765, 7
      %v2767 = vsub.s32 0, %v2766
      %v2768 = vrot.slane %v573, %v2767
      %v2769 = vlaneseq
      %v2770 = vshrl.u32 %v2769, 7
      %v2771 = vsub.s32 0, %v2770
      %v2772 = vrot.slane %v574, %v2771
      %v2773 = vlaneseq
      %v2774 = vshrl.u32 %v2773, 7
      %v2775 = vsub.s32 0, %v2774
      %v2776 = vrot.slane %v575, %v2775
      %v2777 = vlaneseq
      %v2778 = vshrl.u32 %v2777, 7
      %v2779 = vsub.s32 0, %v2778
      %v2780 = vrot.slane %v576, %v2779
      %v2781 = vlaneseq
      %v2782 = vshrl.u32 %v2781, 7
      %v2783 = vsub.s32 0, %v2782
      %v2784 = vrot.slane %v577, %v2783
      %v2785 = vlaneseq
      %v2786 = vshrl.u32 %v2785, 7
      %v2787 = vsub.s32 0, %v2786
      %v2788 = vrot.slane %v578, %v2787
      %v2789 = vlaneseq
      %v2790 = vshrl.u32 %v2789, 7
      %v2791 = vsub.s32 0, %v2790
      %v2792 = vrot.slane %v579, %v2791
      %v2793 = vlaneseq
      %v2794 = vshrl.u32 %v2793, 7
      %v2795 = vsub.s32 0, %v2794
      %v2796 = vrot.slane %v580, %v2795
      %v2797 = vlaneseq
      %v2798 = vshrl.u32 %v2797, 7
      %v2799 = vsub.s32 0, %v2798
      %v2800 = vrot.slane %v581, %v2799
      %v2801 = vlaneseq
      %v2802 = vshrl.u32 %v2801, 7
      %v2803 = vsub.s32 0, %v2802
      %v2804 = vrot.slane %v582, %v2803
      %v2805 = vlaneseq
      %v2806 = vshrl.u32 %v2805, 7
      %v2807 = vsub.s32 0, %v2806
      %v2808 = vrot.slane %v583, %v2807
      %v2809 = vlaneseq
      %v2810 = vshrl.u32 %v2809, 7
      %v2811 = vsub.s32 0, %v2810
      %v2812 = vrot.slane %v584, %v2811
      %v2813 = vlaneseq
      %v2814 = vshrl.u32 %v2813, 7
      %v2815 = vsub.s32 0, %v2814
      %v2816 = vrot.slane %v585, %v2815
      %2817 = vset.pattern.permute.xlu0 0
      %2818 = vperm.xlu0 %2817, %v2756
      %v2819 = vpop.permute.xlu0 %2818
      %2821 = vset.pattern.permute.xlu0 0
      %2822 = vperm.xlu0 %2821, %v2760
      %v2823 = vpop.permute.xlu0 %2822
      %2825 = vset.pattern.permute.xlu0 0
      %2826 = vperm.xlu0 %2825, %v2764
      %v2827 = vpop.permute.xlu0 %2826
      %2829 = vset.pattern.permute.xlu0 0
      %2830 = vperm.xlu0 %2829, %v2768
      %v2831 = vpop.permute.xlu0 %2830
      %2833 = vset.pattern.permute.xlu0 0
      %2834 = vperm.xlu0 %2833, %v2772
      %v2835 = vpop.permute.xlu0 %2834
      %2837 = vset.pattern.permute.xlu0 0
      %2838 = vperm.xlu0 %2837, %v2776
      %v2839 = vpop.permute.xlu0 %2838
      %2841 = vset.pattern.permute.xlu0 0
      %2842 = vperm.xlu0 %2841, %v2780
      %v2843 = vpop.permute.xlu0 %2842
      %2845 = vset.pattern.permute.xlu0 0
      %2846 = vperm.xlu0 %2845, %v2784
      %v2847 = vpop.permute.xlu0 %2846
      %2849 = vset.pattern.permute.xlu0 0
      %2850 = vperm.xlu0 %2849, %v2788
      %v2851 = vpop.permute.xlu0 %2850
      %2853 = vset.pattern.permute.xlu0 0
      %2854 = vperm.xlu0 %2853, %v2792
      %v2855 = vpop.permute.xlu0 %2854
      %2857 = vset.pattern.permute.xlu0 0
      %2858 = vperm.xlu0 %2857, %v2796
      %v2859 = vpop.permute.xlu0 %2858
      %2861 = vset.pattern.permute.xlu0 0
      %2862 = vperm.xlu0 %2861, %v2800
      %v2863 = vpop.permute.xlu0 %2862
      %2865 = vset.pattern.permute.xlu0 0
      %2866 = vperm.xlu0 %2865, %v2804
      %v2867 = vpop.permute.xlu0 %2866
      %2869 = vset.pattern.permute.xlu0 0
      %2870 = vperm.xlu0 %2869, %v2808
      %v2871 = vpop.permute.xlu0 %2870
      %2873 = vset.pattern.permute.xlu0 0
      %2874 = vperm.xlu0 %2873, %v2812
      %v2875 = vpop.permute.xlu0 %2874
      %2877 = vset.pattern.permute.xlu0 0
      %2878 = vperm.xlu0 %2877, %v2816
      %v2879 = vpop.permute.xlu0 %2878
      %v2881 = vmul.f32 %v2624, %v2819
      %v2882 = vmul.f32 %v2546, %v2819
      %v2883 = vmul.f32 %v2625, %v2823
      %v2884 = vmul.f32 %v2549, %v2823
      %v2885 = vmul.f32 %v2626, %v2827
      %v2886 = vmul.f32 %v2552, %v2827
      %v2887 = vmul.f32 %v2627, %v2831
      %v2888 = vmul.f32 %v2555, %v2831
      %v2889 = vmul.f32 %v2628, %v2835
      %v2890 = vmul.f32 %v2558, %v2835
      %v2891 = vmul.f32 %v2629, %v2839
      %v2892 = vmul.f32 %v2561, %v2839
      %v2893 = vmul.f32 %v2630, %v2843
      %v2894 = vmul.f32 %v2564, %v2843
      %v2895 = vmul.f32 %v2631, %v2847
      %v2896 = vmul.f32 %v2567, %v2847
      %v2897 = vmul.f32 %v2632, %v2851
      %v2898 = vmul.f32 %v2570, %v2851
      %v2899 = vmul.f32 %v2633, %v2855
      %v2900 = vmul.f32 %v2573, %v2855
      %v2901 = vmul.f32 %v2634, %v2859
      %v2902 = vmul.f32 %v2576, %v2859
      %v2903 = vmul.f32 %v2635, %v2863
      %v2904 = vmul.f32 %v2579, %v2863
      %v2905 = vmul.f32 %v2636, %v2867
      %v2906 = vmul.f32 %v2582, %v2867
      %v2907 = vmul.f32 %v2637, %v2871
      %v2908 = vmul.f32 %v2585, %v2871
      %v2909 = vmul.f32 %v2638, %v2875
      %v2910 = vmul.f32 %v2588, %v2875
      %v2911 = vmul.f32 %v2639, %v2879
      %v2912 = vmul.f32 %v2591, %v2879
      %2913 = vset.pattern.permute.xlu0 3
      %2914 = vperm.xlu0 %2913, %v2756
      %v2915 = vpop.permute.xlu0 %2914
      %2917 = vset.pattern.permute.xlu0 3
      %2918 = vperm.xlu0 %2917, %v2760
      %v2919 = vpop.permute.xlu0 %2918
      %2921 = vset.pattern.permute.xlu0 3
      %2922 = vperm.xlu0 %2921, %v2764
      %v2923 = vpop.permute.xlu0 %2922
      %2925 = vset.pattern.permute.xlu0 3
      %2926 = vperm.xlu0 %2925, %v2768
      %v2927 = vpop.permute.xlu0 %2926
      %2929 = vset.pattern.permute.xlu0 3
      %2930 = vperm.xlu0 %2929, %v2772
      %v2931 = vpop.permute.xlu0 %2930
      %2933 = vset.pattern.permute.xlu0 3
      %2934 = vperm.xlu0 %2933, %v2776
      %v2935 = vpop.permute.xlu0 %2934
      %2937 = vset.pattern.permute.xlu0 3
      %2938 = vperm.xlu0 %2937, %v2780
      %v2939 = vpop.permute.xlu0 %2938
      %2941 = vset.pattern.permute.xlu0 3
      %2942 = vperm.xlu0 %2941, %v2784
      %v2943 = vpop.permute.xlu0 %2942
      %2945 = vset.pattern.permute.xlu0 3
      %2946 = vperm.xlu0 %2945, %v2788
      %v2947 = vpop.permute.xlu0 %2946
      %2949 = vset.pattern.permute.xlu0 3
      %2950 = vperm.xlu0 %2949, %v2792
      %v2951 = vpop.permute.xlu0 %2950
      %2953 = vset.pattern.permute.xlu0 3
      %2954 = vperm.xlu0 %2953, %v2796
      %v2955 = vpop.permute.xlu0 %2954
      %2957 = vset.pattern.permute.xlu0 3
      %2958 = vperm.xlu0 %2957, %v2800
      %v2959 = vpop.permute.xlu0 %2958
      %2961 = vset.pattern.permute.xlu0 3
      %2962 = vperm.xlu0 %2961, %v2804
      %v2963 = vpop.permute.xlu0 %2962
      %2965 = vset.pattern.permute.xlu0 3
      %2966 = vperm.xlu0 %2965, %v2808
      %v2967 = vpop.permute.xlu0 %2966
      %2969 = vset.pattern.permute.xlu0 3
      %2970 = vperm.xlu0 %2969, %v2812
      %v2971 = vpop.permute.xlu0 %2970
      %2973 = vset.pattern.permute.xlu0 3
      %2974 = vperm.xlu0 %2973, %v2816
      %v2975 = vpop.permute.xlu0 %2974
      %v2977 = vmul.f32 %v827, %v2915
      %v2978 = vmul.f32 %v828, %v2915
      %v2979 = vmul.f32 %v829, %v2919
      %v2980 = vmul.f32 %v830, %v2919
      %v2981 = vmul.f32 %v831, %v2923
      %v2982 = vmul.f32 %v832, %v2923
      %v2983 = vmul.f32 %v833, %v2927
      %v2984 = vmul.f32 %v834, %v2927
      %v2985 = vmul.f32 %v835, %v2931
      %v2986 = vmul.f32 %v836, %v2931
      %v2987 = vmul.f32 %v837, %v2935
      %v2988 = vmul.f32 %v838, %v2935
      %v2989 = vmul.f32 %v839, %v2939
      %v2990 = vmul.f32 %v840, %v2939
      %v2991 = vmul.f32 %v841, %v2943
      %v2992 = vmul.f32 %v842, %v2943
      %v2993 = vmul.f32 %v843, %v2947
      %v2994 = vmul.f32 %v844, %v2947
      %v2995 = vmul.f32 %v845, %v2951
      %v2996 = vmul.f32 %v846, %v2951
      %v2997 = vmul.f32 %v847, %v2955
      %v2998 = vmul.f32 %v848, %v2955
      %v2999 = vmul.f32 %v849, %v2959
      %v3000 = vmul.f32 %v850, %v2959
      %v3001 = vmul.f32 %v851, %v2963
      %v3002 = vmul.f32 %v852, %v2963
      %v3003 = vmul.f32 %v853, %v2967
      %v3004 = vmul.f32 %v854, %v2967
      %v3005 = vmul.f32 %v855, %v2971
      %v3006 = vmul.f32 %v856, %v2971
      %v3007 = vmul.f32 %v857, %v2975
      %v3008 = vmul.f32 %v858, %v2975
      %v3009 = vadd.f32 %v2881, %v2977
      %v3010 = vadd.f32 %v2882, %v2978
      %v3011 = vadd.f32 %v2883, %v2979
      %v3012 = vadd.f32 %v2884, %v2980
      %v3013 = vadd.f32 %v2885, %v2981
      %v3014 = vadd.f32 %v2886, %v2982
      %v3015 = vadd.f32 %v2887, %v2983
      %v3016 = vadd.f32 %v2888, %v2984
      %v3017 = vadd.f32 %v2889, %v2985
      %v3018 = vadd.f32 %v2890, %v2986
      %v3019 = vadd.f32 %v2891, %v2987
      %v3020 = vadd.f32 %v2892, %v2988
      %v3021 = vadd.f32 %v2893, %v2989
      %v3022 = vadd.f32 %v2894, %v2990
      %v3023 = vadd.f32 %v2895, %v2991
      %v3024 = vadd.f32 %v2896, %v2992
      %v3025 = vadd.f32 %v2897, %v2993
      %v3026 = vadd.f32 %v2898, %v2994
      %v3027 = vadd.f32 %v2899, %v2995
      %v3028 = vadd.f32 %v2900, %v2996
      %v3029 = vadd.f32 %v2901, %v2997
      %v3030 = vadd.f32 %v2902, %v2998
      %v3031 = vadd.f32 %v2903, %v2999
      %v3032 = vadd.f32 %v2904, %v3000
      %v3033 = vadd.f32 %v2905, %v3001
      %v3034 = vadd.f32 %v2906, %v3002
      %v3035 = vadd.f32 %v2907, %v3003
      %v3036 = vadd.f32 %v2908, %v3004
      %v3037 = vadd.f32 %v2909, %v3005
      %v3038 = vadd.f32 %v2910, %v3006
      %v3039 = vadd.f32 %v2911, %v3007
      %v3040 = vadd.f32 %v2912, %v3008
      %3041 = vset.pattern.permute.xlu0 6
      %3042 = vperm.xlu0 %3041, %v2756
      %v3043 = vpop.permute.xlu0 %3042
      %3045 = vset.pattern.permute.xlu0 6
      %3046 = vperm.xlu0 %3045, %v2760
      %v3047 = vpop.permute.xlu0 %3046
      %3049 = vset.pattern.permute.xlu0 6
      %3050 = vperm.xlu0 %3049, %v2764
      %v3051 = vpop.permute.xlu0 %3050
      %3053 = vset.pattern.permute.xlu0 6
      %3054 = vperm.xlu0 %3053, %v2768
      %v3055 = vpop.permute.xlu0 %3054
      %3057 = vset.pattern.permute.xlu0 6
      %3058 = vperm.xlu0 %3057, %v2772
      %v3059 = vpop.permute.xlu0 %3058
      %3061 = vset.pattern.permute.xlu0 6
      %3062 = vperm.xlu0 %3061, %v2776
      %v3063 = vpop.permute.xlu0 %3062
      %3065 = vset.pattern.permute.xlu0 6
      %3066 = vperm.xlu0 %3065, %v2780
      %v3067 = vpop.permute.xlu0 %3066
      %3069 = vset.pattern.permute.xlu0 6
      %3070 = vperm.xlu0 %3069, %v2784
      %v3071 = vpop.permute.xlu0 %3070
      %3073 = vset.pattern.permute.xlu0 6
      %3074 = vperm.xlu0 %3073, %v2788
      %v3075 = vpop.permute.xlu0 %3074
      %3077 = vset.pattern.permute.xlu0 6
      %3078 = vperm.xlu0 %3077, %v2792
      %v3079 = vpop.permute.xlu0 %3078
      %3081 = vset.pattern.permute.xlu0 6
      %3082 = vperm.xlu0 %3081, %v2796
      %v3083 = vpop.permute.xlu0 %3082
      %3085 = vset.pattern.permute.xlu0 6
      %3086 = vperm.xlu0 %3085, %v2800
      %v3087 = vpop.permute.xlu0 %3086
      %3089 = vset.pattern.permute.xlu0 6
      %3090 = vperm.xlu0 %3089, %v2804
      %v3091 = vpop.permute.xlu0 %3090
      %3093 = vset.pattern.permute.xlu0 6
      %3094 = vperm.xlu0 %3093, %v2808
      %v3095 = vpop.permute.xlu0 %3094
      %3097 = vset.pattern.permute.xlu0 6
      %3098 = vperm.xlu0 %3097, %v2812
      %v3099 = vpop.permute.xlu0 %3098
      %3101 = vset.pattern.permute.xlu0 6
      %3102 = vperm.xlu0 %3101, %v2816
      %v3103 = vpop.permute.xlu0 %3102
      %v3105 = vmul.f32 %v2642, %v3043
      %v3106 = vmul.f32 %v2721, %v3043
      %v3107 = vmul.f32 %v2644, %v3047
      %v3108 = vmul.f32 %v2722, %v3047
      %v3109 = vmul.f32 %v2646, %v3051
      %v3110 = vmul.f32 %v2723, %v3051
      %v3111 = vmul.f32 %v2648, %v3055
      %v3112 = vmul.f32 %v2724, %v3055
      %v3113 = vmul.f32 %v2650, %v3059
      %v3114 = vmul.f32 %v2725, %v3059
      %v3115 = vmul.f32 %v2652, %v3063
      %v3116 = vmul.f32 %v2726, %v3063
      %v3117 = vmul.f32 %v2654, %v3067
      %v3118 = vmul.f32 %v2727, %v3067
      %v3119 = vmul.f32 %v2656, %v3071
      %v3120 = vmul.f32 %v2728, %v3071
      %v3121 = vmul.f32 %v2658, %v3075
      %v3122 = vmul.f32 %v2729, %v3075
      %v3123 = vmul.f32 %v2660, %v3079
      %v3124 = vmul.f32 %v2730, %v3079
      %v3125 = vmul.f32 %v2662, %v3083
      %v3126 = vmul.f32 %v2731, %v3083
      %v3127 = vmul.f32 %v2664, %v3087
      %v3128 = vmul.f32 %v2732, %v3087
      %v3129 = vmul.f32 %v2666, %v3091
      %v3130 = vmul.f32 %v2733, %v3091
      %v3131 = vmul.f32 %v2668, %v3095
      %v3132 = vmul.f32 %v2734, %v3095
      %v3133 = vmul.f32 %v2670, %v3099
      %v3134 = vmul.f32 %v2735, %v3099
      %v3135 = vmul.f32 %v2672, %v3103
      %v3136 = vmul.f32 %v2736, %v3103
      %v3137 = vadd.f32 %v3009, %v3105
      %v3138 = vadd.f32 %v3010, %v3106
      %v3139 = vadd.f32 %v3011, %v3107
      %v3140 = vadd.f32 %v3012, %v3108
      %v3141 = vadd.f32 %v3013, %v3109
      %v3142 = vadd.f32 %v3014, %v3110
      %v3143 = vadd.f32 %v3015, %v3111
      %v3144 = vadd.f32 %v3016, %v3112
      %v3145 = vadd.f32 %v3017, %v3113
      %v3146 = vadd.f32 %v3018, %v3114
      %v3147 = vadd.f32 %v3019, %v3115
      %v3148 = vadd.f32 %v3020, %v3116
      %v3149 = vadd.f32 %v3021, %v3117
      %v3150 = vadd.f32 %v3022, %v3118
      %v3151 = vadd.f32 %v3023, %v3119
      %v3152 = vadd.f32 %v3024, %v3120
      %v3153 = vadd.f32 %v3025, %v3121
      %v3154 = vadd.f32 %v3026, %v3122
      %v3155 = vadd.f32 %v3027, %v3123
      %v3156 = vadd.f32 %v3028, %v3124
      %v3157 = vadd.f32 %v3029, %v3125
      %v3158 = vadd.f32 %v3030, %v3126
      %v3159 = vadd.f32 %v3031, %v3127
      %v3160 = vadd.f32 %v3032, %v3128
      %v3161 = vadd.f32 %v3033, %v3129
      %v3162 = vadd.f32 %v3034, %v3130
      %v3163 = vadd.f32 %v3035, %v3131
      %v3164 = vadd.f32 %v3036, %v3132
      %v3165 = vadd.f32 %v3037, %v3133
      %v3166 = vadd.f32 %v3038, %v3134
      %v3167 = vadd.f32 %v3039, %v3135
      %v3168 = vadd.f32 %v3040, %v3136
      %v3169 = vrot.slane %v474, 1
      %v3170 = vrot.slane %v476, 1
      %v3171 = vrot.slane %v478, 1
      %v3172 = vrot.slane %v480, 1
      %v3173 = vrot.slane %v482, 1
      %v3174 = vrot.slane %v484, 1
      %v3175 = vrot.slane %v486, 1
      %v3176 = vrot.slane %v488, 1
      %v3177 = vrot.slane %v490, 1
      %v3178 = vrot.slane %v492, 1
      %v3179 = vrot.slane %v494, 1
      %v3180 = vrot.slane %v496, 1
      %v3181 = vrot.slane %v498, 1
      %v3182 = vrot.slane %v500, 1
      %v3183 = vrot.slane %v502, 1
      %v3184 = vrot.slane %v504, 1
      %v3201 = vrot.slane %v474, 7
      %v3202 = vrot.slane %v475, 7
      %v3203 = vsel %vm2543, %v3201, %v3202
      %v3204 = vrot.slane %v476, 7
      %v3205 = vrot.slane %v477, 7
      %v3206 = vsel %vm2543, %v3204, %v3205
      %v3207 = vrot.slane %v478, 7
      %v3208 = vrot.slane %v479, 7
      %v3209 = vsel %vm2543, %v3207, %v3208
      %v3210 = vrot.slane %v480, 7
      %v3211 = vrot.slane %v481, 7
      %v3212 = vsel %vm2543, %v3210, %v3211
      %v3213 = vrot.slane %v482, 7
      %v3214 = vrot.slane %v483, 7
      %v3215 = vsel %vm2543, %v3213, %v3214
      %v3216 = vrot.slane %v484, 7
      %v3217 = vrot.slane %v485, 7
      %v3218 = vsel %vm2543, %v3216, %v3217
      %v3219 = vrot.slane %v486, 7
      %v3220 = vrot.slane %v487, 7
      %v3221 = vsel %vm2543, %v3219, %v3220
      %v3222 = vrot.slane %v488, 7
      %v3223 = vrot.slane %v489, 7
      %v3224 = vsel %vm2543, %v3222, %v3223
      %v3225 = vrot.slane %v490, 7
      %v3226 = vrot.slane %v491, 7
      %v3227 = vsel %vm2543, %v3225, %v3226
      %v3228 = vrot.slane %v492, 7
      %v3229 = vrot.slane %v493, 7
      %v3230 = vsel %vm2543, %v3228, %v3229
      %v3231 = vrot.slane %v494, 7
      %v3232 = vrot.slane %v495, 7
      %v3233 = vsel %vm2543, %v3231, %v3232
      %v3234 = vrot.slane %v496, 7
      %v3235 = vrot.slane %v497, 7
      %v3236 = vsel %vm2543, %v3234, %v3235
      %v3237 = vrot.slane %v498, 7
      %v3238 = vrot.slane %v499, 7
      %v3239 = vsel %vm2543, %v3237, %v3238
      %v3240 = vrot.slane %v500, 7
      %v3241 = vrot.slane %v501, 7
      %v3242 = vsel %vm2543, %v3240, %v3241
      %v3243 = vrot.slane %v502, 7
      %v3244 = vrot.slane %v503, 7
      %v3245 = vsel %vm2543, %v3243, %v3244
      %v3246 = vrot.slane %v504, 7
      %v3247 = vrot.slane %v505, 7
      %v3248 = vsel %vm2543, %v3246, %v3247
      %v3281 = vsel %vm2543, %v3169, %v3201
      %v3282 = vsel %vm2543, %v3170, %v3204
      %v3283 = vsel %vm2543, %v3171, %v3207
      %v3284 = vsel %vm2543, %v3172, %v3210
      %v3285 = vsel %vm2543, %v3173, %v3213
      %v3286 = vsel %vm2543, %v3174, %v3216
      %v3287 = vsel %vm2543, %v3175, %v3219
      %v3288 = vsel %vm2543, %v3176, %v3222
      %v3289 = vsel %vm2543, %v3177, %v3225
      %v3290 = vsel %vm2543, %v3178, %v3228
      %v3291 = vsel %vm2543, %v3179, %v3231
      %v3292 = vsel %vm2543, %v3180, %v3234
      %v3293 = vsel %vm2543, %v3181, %v3237
      %v3294 = vsel %vm2543, %v3182, %v3240
      %v3295 = vsel %vm2543, %v3183, %v3243
      %v3296 = vsel %vm2543, %v3184, %v3246
      %v3297 = vrot.slane %v475, 1
      %v3298 = vsel %vm2640, %v3169, %v3297
      %v3299 = vrot.slane %v477, 1
      %v3300 = vsel %vm2640, %v3170, %v3299
      %v3301 = vrot.slane %v479, 1
      %v3302 = vsel %vm2640, %v3171, %v3301
      %v3303 = vrot.slane %v481, 1
      %v3304 = vsel %vm2640, %v3172, %v3303
      %v3305 = vrot.slane %v483, 1
      %v3306 = vsel %vm2640, %v3173, %v3305
      %v3307 = vrot.slane %v485, 1
      %v3308 = vsel %vm2640, %v3174, %v3307
      %v3309 = vrot.slane %v487, 1
      %v3310 = vsel %vm2640, %v3175, %v3309
      %v3311 = vrot.slane %v489, 1
      %v3312 = vsel %vm2640, %v3176, %v3311
      %v3313 = vrot.slane %v491, 1
      %v3314 = vsel %vm2640, %v3177, %v3313
      %v3315 = vrot.slane %v493, 1
      %v3316 = vsel %vm2640, %v3178, %v3315
      %v3317 = vrot.slane %v495, 1
      %v3318 = vsel %vm2640, %v3179, %v3317
      %v3319 = vrot.slane %v497, 1
      %v3320 = vsel %vm2640, %v3180, %v3319
      %v3321 = vrot.slane %v499, 1
      %v3322 = vsel %vm2640, %v3181, %v3321
      %v3323 = vrot.slane %v501, 1
      %v3324 = vsel %vm2640, %v3182, %v3323
      %v3325 = vrot.slane %v503, 1
      %v3326 = vsel %vm2640, %v3183, %v3325
      %v3327 = vrot.slane %v505, 1
      %v3328 = vsel %vm2640, %v3184, %v3327
      %v3377 = vsel %vm2640, %v3297, %v3202
      %v3378 = vsel %vm2640, %v3299, %v3205
      %v3379 = vsel %vm2640, %v3301, %v3208
      %v3380 = vsel %vm2640, %v3303, %v3211
      %v3381 = vsel %vm2640, %v3305, %v3214
      %v3382 = vsel %vm2640, %v3307, %v3217
      %v3383 = vsel %vm2640, %v3309, %v3220
      %v3384 = vsel %vm2640, %v3311, %v3223
      %v3385 = vsel %vm2640, %v3313, %v3226
      %v3386 = vsel %vm2640, %v3315, %v3229
      %v3387 = vsel %vm2640, %v3317, %v3232
      %v3388 = vsel %vm2640, %v3319, %v3235
      %v3389 = vsel %vm2640, %v3321, %v3238
      %v3390 = vsel %vm2640, %v3323, %v3241
      %v3391 = vsel %vm2640, %v3325, %v3244
      %v3392 = vsel %vm2640, %v3327, %v3247
      %3393 = vset.pattern.permute.xlu0 1
      %3394 = vperm.xlu0 %3393, %v2756
      %v3395 = vpop.permute.xlu0 %3394
      %3397 = vset.pattern.permute.xlu0 1
      %3398 = vperm.xlu0 %3397, %v2760
      %v3399 = vpop.permute.xlu0 %3398
      %3401 = vset.pattern.permute.xlu0 1
      %3402 = vperm.xlu0 %3401, %v2764
      %v3403 = vpop.permute.xlu0 %3402
      %3405 = vset.pattern.permute.xlu0 1
      %3406 = vperm.xlu0 %3405, %v2768
      %v3407 = vpop.permute.xlu0 %3406
      %3409 = vset.pattern.permute.xlu0 1
      %3410 = vperm.xlu0 %3409, %v2772
      %v3411 = vpop.permute.xlu0 %3410
      %3413 = vset.pattern.permute.xlu0 1
      %3414 = vperm.xlu0 %3413, %v2776
      %v3415 = vpop.permute.xlu0 %3414
      %3417 = vset.pattern.permute.xlu0 1
      %3418 = vperm.xlu0 %3417, %v2780
      %v3419 = vpop.permute.xlu0 %3418
      %3421 = vset.pattern.permute.xlu0 1
      %3422 = vperm.xlu0 %3421, %v2784
      %v3423 = vpop.permute.xlu0 %3422
      %3425 = vset.pattern.permute.xlu0 1
      %3426 = vperm.xlu0 %3425, %v2788
      %v3427 = vpop.permute.xlu0 %3426
      %3429 = vset.pattern.permute.xlu0 1
      %3430 = vperm.xlu0 %3429, %v2792
      %v3431 = vpop.permute.xlu0 %3430
      %3433 = vset.pattern.permute.xlu0 1
      %3434 = vperm.xlu0 %3433, %v2796
      %v3435 = vpop.permute.xlu0 %3434
      %3437 = vset.pattern.permute.xlu0 1
      %3438 = vperm.xlu0 %3437, %v2800
      %v3439 = vpop.permute.xlu0 %3438
      %3441 = vset.pattern.permute.xlu0 1
      %3442 = vperm.xlu0 %3441, %v2804
      %v3443 = vpop.permute.xlu0 %3442
      %3445 = vset.pattern.permute.xlu0 1
      %3446 = vperm.xlu0 %3445, %v2808
      %v3447 = vpop.permute.xlu0 %3446
      %3449 = vset.pattern.permute.xlu0 1
      %3450 = vperm.xlu0 %3449, %v2812
      %v3451 = vpop.permute.xlu0 %3450
      %3453 = vset.pattern.permute.xlu0 1
      %3454 = vperm.xlu0 %3453, %v2816
      %v3455 = vpop.permute.xlu0 %3454
      %v3457 = vmul.f32 %v3281, %v3395
      %v3458 = vmul.f32 %v3203, %v3395
      %v3459 = vmul.f32 %v3282, %v3399
      %v3460 = vmul.f32 %v3206, %v3399
      %v3461 = vmul.f32 %v3283, %v3403
      %v3462 = vmul.f32 %v3209, %v3403
      %v3463 = vmul.f32 %v3284, %v3407
      %v3464 = vmul.f32 %v3212, %v3407
      %v3465 = vmul.f32 %v3285, %v3411
      %v3466 = vmul.f32 %v3215, %v3411
      %v3467 = vmul.f32 %v3286, %v3415
      %v3468 = vmul.f32 %v3218, %v3415
      %v3469 = vmul.f32 %v3287, %v3419
      %v3470 = vmul.f32 %v3221, %v3419
      %v3471 = vmul.f32 %v3288, %v3423
      %v3472 = vmul.f32 %v3224, %v3423
      %v3473 = vmul.f32 %v3289, %v3427
      %v3474 = vmul.f32 %v3227, %v3427
      %v3475 = vmul.f32 %v3290, %v3431
      %v3476 = vmul.f32 %v3230, %v3431
      %v3477 = vmul.f32 %v3291, %v3435
      %v3478 = vmul.f32 %v3233, %v3435
      %v3479 = vmul.f32 %v3292, %v3439
      %v3480 = vmul.f32 %v3236, %v3439
      %v3481 = vmul.f32 %v3293, %v3443
      %v3482 = vmul.f32 %v3239, %v3443
      %v3483 = vmul.f32 %v3294, %v3447
      %v3484 = vmul.f32 %v3242, %v3447
      %v3485 = vmul.f32 %v3295, %v3451
      %v3486 = vmul.f32 %v3245, %v3451
      %v3487 = vmul.f32 %v3296, %v3455
      %v3488 = vmul.f32 %v3248, %v3455
      %3489 = vset.pattern.permute.xlu0 4
      %3490 = vperm.xlu0 %3489, %v2756
      %v3491 = vpop.permute.xlu0 %3490
      %3493 = vset.pattern.permute.xlu0 4
      %3494 = vperm.xlu0 %3493, %v2760
      %v3495 = vpop.permute.xlu0 %3494
      %3497 = vset.pattern.permute.xlu0 4
      %3498 = vperm.xlu0 %3497, %v2764
      %v3499 = vpop.permute.xlu0 %3498
      %3501 = vset.pattern.permute.xlu0 4
      %3502 = vperm.xlu0 %3501, %v2768
      %v3503 = vpop.permute.xlu0 %3502
      %3505 = vset.pattern.permute.xlu0 4
      %3506 = vperm.xlu0 %3505, %v2772
      %v3507 = vpop.permute.xlu0 %3506
      %3509 = vset.pattern.permute.xlu0 4
      %3510 = vperm.xlu0 %3509, %v2776
      %v3511 = vpop.permute.xlu0 %3510
      %3513 = vset.pattern.permute.xlu0 4
      %3514 = vperm.xlu0 %3513, %v2780
      %v3515 = vpop.permute.xlu0 %3514
      %3517 = vset.pattern.permute.xlu0 4
      %3518 = vperm.xlu0 %3517, %v2784
      %v3519 = vpop.permute.xlu0 %3518
      %3521 = vset.pattern.permute.xlu0 4
      %3522 = vperm.xlu0 %3521, %v2788
      %v3523 = vpop.permute.xlu0 %3522
      %3525 = vset.pattern.permute.xlu0 4
      %3526 = vperm.xlu0 %3525, %v2792
      %v3527 = vpop.permute.xlu0 %3526
      %3529 = vset.pattern.permute.xlu0 4
      %3530 = vperm.xlu0 %3529, %v2796
      %v3531 = vpop.permute.xlu0 %3530
      %3533 = vset.pattern.permute.xlu0 4
      %3534 = vperm.xlu0 %3533, %v2800
      %v3535 = vpop.permute.xlu0 %3534
      %3537 = vset.pattern.permute.xlu0 4
      %3538 = vperm.xlu0 %3537, %v2804
      %v3539 = vpop.permute.xlu0 %3538
      %3541 = vset.pattern.permute.xlu0 4
      %3542 = vperm.xlu0 %3541, %v2808
      %v3543 = vpop.permute.xlu0 %3542
      %3545 = vset.pattern.permute.xlu0 4
      %3546 = vperm.xlu0 %3545, %v2812
      %v3547 = vpop.permute.xlu0 %3546
      %3549 = vset.pattern.permute.xlu0 4
      %3550 = vperm.xlu0 %3549, %v2816
      %v3551 = vpop.permute.xlu0 %3550
      %v3553 = vmul.f32 %v474, %v3491
      %v3554 = vmul.f32 %v475, %v3491
      %v3555 = vmul.f32 %v476, %v3495
      %v3556 = vmul.f32 %v477, %v3495
      %v3557 = vmul.f32 %v478, %v3499
      %v3558 = vmul.f32 %v479, %v3499
      %v3559 = vmul.f32 %v480, %v3503
      %v3560 = vmul.f32 %v481, %v3503
      %v3561 = vmul.f32 %v482, %v3507
      %v3562 = vmul.f32 %v483, %v3507
      %v3563 = vmul.f32 %v484, %v3511
      %v3564 = vmul.f32 %v485, %v3511
      %v3565 = vmul.f32 %v486, %v3515
      %v3566 = vmul.f32 %v487, %v3515
      %v3567 = vmul.f32 %v488, %v3519
      %v3568 = vmul.f32 %v489, %v3519
      %v3569 = vmul.f32 %v490, %v3523
      %v3570 = vmul.f32 %v491, %v3523
      %v3571 = vmul.f32 %v492, %v3527
      %v3572 = vmul.f32 %v493, %v3527
      %v3573 = vmul.f32 %v494, %v3531
      %v3574 = vmul.f32 %v495, %v3531
      %v3575 = vmul.f32 %v496, %v3535
      %v3576 = vmul.f32 %v497, %v3535
      %v3577 = vmul.f32 %v498, %v3539
      %v3578 = vmul.f32 %v499, %v3539
      %v3579 = vmul.f32 %v500, %v3543
      %v3580 = vmul.f32 %v501, %v3543
      %v3581 = vmul.f32 %v502, %v3547
      %v3582 = vmul.f32 %v503, %v3547
      %v3583 = vmul.f32 %v504, %v3551
      %v3584 = vmul.f32 %v505, %v3551
      %v3585 = vadd.f32 %v3457, %v3553
      %v3586 = vadd.f32 %v3458, %v3554
      %v3587 = vadd.f32 %v3459, %v3555
      %v3588 = vadd.f32 %v3460, %v3556
      %v3589 = vadd.f32 %v3461, %v3557
      %v3590 = vadd.f32 %v3462, %v3558
      %v3591 = vadd.f32 %v3463, %v3559
      %v3592 = vadd.f32 %v3464, %v3560
      %v3593 = vadd.f32 %v3465, %v3561
      %v3594 = vadd.f32 %v3466, %v3562
      %v3595 = vadd.f32 %v3467, %v3563
      %v3596 = vadd.f32 %v3468, %v3564
      %v3597 = vadd.f32 %v3469, %v3565
      %v3598 = vadd.f32 %v3470, %v3566
      %v3599 = vadd.f32 %v3471, %v3567
      %v3600 = vadd.f32 %v3472, %v3568
      %v3601 = vadd.f32 %v3473, %v3569
      %v3602 = vadd.f32 %v3474, %v3570
      %v3603 = vadd.f32 %v3475, %v3571
      %v3604 = vadd.f32 %v3476, %v3572
      %v3605 = vadd.f32 %v3477, %v3573
      %v3606 = vadd.f32 %v3478, %v3574
      %v3607 = vadd.f32 %v3479, %v3575
      %v3608 = vadd.f32 %v3480, %v3576
      %v3609 = vadd.f32 %v3481, %v3577
      %v3610 = vadd.f32 %v3482, %v3578
      %v3611 = vadd.f32 %v3483, %v3579
      %v3612 = vadd.f32 %v3484, %v3580
      %v3613 = vadd.f32 %v3485, %v3581
      %v3614 = vadd.f32 %v3486, %v3582
      %v3615 = vadd.f32 %v3487, %v3583
      %v3616 = vadd.f32 %v3488, %v3584
      %3617 = vset.pattern.permute.xlu0 7
      %3618 = vperm.xlu0 %3617, %v2756
      %v3619 = vpop.permute.xlu0 %3618
      %3621 = vset.pattern.permute.xlu0 7
      %3622 = vperm.xlu0 %3621, %v2760
      %v3623 = vpop.permute.xlu0 %3622
      %3625 = vset.pattern.permute.xlu0 7
      %3626 = vperm.xlu0 %3625, %v2764
      %v3627 = vpop.permute.xlu0 %3626
      %3629 = vset.pattern.permute.xlu0 7
      %3630 = vperm.xlu0 %3629, %v2768
      %v3631 = vpop.permute.xlu0 %3630
      %3633 = vset.pattern.permute.xlu0 7
      %3634 = vperm.xlu0 %3633, %v2772
      %v3635 = vpop.permute.xlu0 %3634
      %3637 = vset.pattern.permute.xlu0 7
      %3638 = vperm.xlu0 %3637, %v2776
      %v3639 = vpop.permute.xlu0 %3638
      %3641 = vset.pattern.permute.xlu0 7
      %3642 = vperm.xlu0 %3641, %v2780
      %v3643 = vpop.permute.xlu0 %3642
      %3645 = vset.pattern.permute.xlu0 7
      %3646 = vperm.xlu0 %3645, %v2784
      %v3647 = vpop.permute.xlu0 %3646
      %3649 = vset.pattern.permute.xlu0 7
      %3650 = vperm.xlu0 %3649, %v2788
      %v3651 = vpop.permute.xlu0 %3650
      %3653 = vset.pattern.permute.xlu0 7
      %3654 = vperm.xlu0 %3653, %v2792
      %v3655 = vpop.permute.xlu0 %3654
      %3657 = vset.pattern.permute.xlu0 7
      %3658 = vperm.xlu0 %3657, %v2796
      %v3659 = vpop.permute.xlu0 %3658
      %3661 = vset.pattern.permute.xlu0 7
      %3662 = vperm.xlu0 %3661, %v2800
      %v3663 = vpop.permute.xlu0 %3662
      %3665 = vset.pattern.permute.xlu0 7
      %3666 = vperm.xlu0 %3665, %v2804
      %v3667 = vpop.permute.xlu0 %3666
      %3669 = vset.pattern.permute.xlu0 7
      %3670 = vperm.xlu0 %3669, %v2808
      %v3671 = vpop.permute.xlu0 %3670
      %3673 = vset.pattern.permute.xlu0 7
      %3674 = vperm.xlu0 %3673, %v2812
      %v3675 = vpop.permute.xlu0 %3674
      %3677 = vset.pattern.permute.xlu0 7
      %3678 = vperm.xlu0 %3677, %v2816
      %v3679 = vpop.permute.xlu0 %3678
      %v3681 = vmul.f32 %v3298, %v3619
      %v3682 = vmul.f32 %v3377, %v3619
      %v3683 = vmul.f32 %v3300, %v3623
      %v3684 = vmul.f32 %v3378, %v3623
      %v3685 = vmul.f32 %v3302, %v3627
      %v3686 = vmul.f32 %v3379, %v3627
      %v3687 = vmul.f32 %v3304, %v3631
      %v3688 = vmul.f32 %v3380, %v3631
      %v3689 = vmul.f32 %v3306, %v3635
      %v3690 = vmul.f32 %v3381, %v3635
      %v3691 = vmul.f32 %v3308, %v3639
      %v3692 = vmul.f32 %v3382, %v3639
      %v3693 = vmul.f32 %v3310, %v3643
      %v3694 = vmul.f32 %v3383, %v3643
      %v3695 = vmul.f32 %v3312, %v3647
      %v3696 = vmul.f32 %v3384, %v3647
      %v3697 = vmul.f32 %v3314, %v3651
      %v3698 = vmul.f32 %v3385, %v3651
      %v3699 = vmul.f32 %v3316, %v3655
      %v3700 = vmul.f32 %v3386, %v3655
      %v3701 = vmul.f32 %v3318, %v3659
      %v3702 = vmul.f32 %v3387, %v3659
      %v3703 = vmul.f32 %v3320, %v3663
      %v3704 = vmul.f32 %v3388, %v3663
      %v3705 = vmul.f32 %v3322, %v3667
      %v3706 = vmul.f32 %v3389, %v3667
      %v3707 = vmul.f32 %v3324, %v3671
      %v3708 = vmul.f32 %v3390, %v3671
      %v3709 = vmul.f32 %v3326, %v3675
      %v3710 = vmul.f32 %v3391, %v3675
      %v3711 = vmul.f32 %v3328, %v3679
      %v3712 = vmul.f32 %v3392, %v3679
      %v3713 = vadd.f32 %v3585, %v3681
      %v3714 = vadd.f32 %v3586, %v3682
      %v3715 = vadd.f32 %v3587, %v3683
      %v3716 = vadd.f32 %v3588, %v3684
      %v3717 = vadd.f32 %v3589, %v3685
      %v3718 = vadd.f32 %v3590, %v3686
      %v3719 = vadd.f32 %v3591, %v3687
      %v3720 = vadd.f32 %v3592, %v3688
      %v3721 = vadd.f32 %v3593, %v3689
      %v3722 = vadd.f32 %v3594, %v3690
      %v3723 = vadd.f32 %v3595, %v3691
      %v3724 = vadd.f32 %v3596, %v3692
      %v3725 = vadd.f32 %v3597, %v3693
      %v3726 = vadd.f32 %v3598, %v3694
      %v3727 = vadd.f32 %v3599, %v3695
      %v3728 = vadd.f32 %v3600, %v3696
      %v3729 = vadd.f32 %v3601, %v3697
      %v3730 = vadd.f32 %v3602, %v3698
      %v3731 = vadd.f32 %v3603, %v3699
      %v3732 = vadd.f32 %v3604, %v3700
      %v3733 = vadd.f32 %v3605, %v3701
      %v3734 = vadd.f32 %v3606, %v3702
      %v3735 = vadd.f32 %v3607, %v3703
      %v3736 = vadd.f32 %v3608, %v3704
      %v3737 = vadd.f32 %v3609, %v3705
      %v3738 = vadd.f32 %v3610, %v3706
      %v3739 = vadd.f32 %v3611, %v3707
      %v3740 = vadd.f32 %v3612, %v3708
      %v3741 = vadd.f32 %v3613, %v3709
      %v3742 = vadd.f32 %v3614, %v3710
      %v3743 = vadd.f32 %v3615, %v3711
      %v3744 = vadd.f32 %v3616, %v3712
      %v3745 = vadd.f32 %v3137, %v3713
      %v3746 = vadd.f32 %v3138, %v3714
      %v3747 = vadd.f32 %v3139, %v3715
      %v3748 = vadd.f32 %v3140, %v3716
      %v3749 = vadd.f32 %v3141, %v3717
      %v3750 = vadd.f32 %v3142, %v3718
      %v3751 = vadd.f32 %v3143, %v3719
      %v3752 = vadd.f32 %v3144, %v3720
      %v3753 = vadd.f32 %v3145, %v3721
      %v3754 = vadd.f32 %v3146, %v3722
      %v3755 = vadd.f32 %v3147, %v3723
      %v3756 = vadd.f32 %v3148, %v3724
      %v3757 = vadd.f32 %v3149, %v3725
      %v3758 = vadd.f32 %v3150, %v3726
      %v3759 = vadd.f32 %v3151, %v3727
      %v3760 = vadd.f32 %v3152, %v3728
      %v3761 = vadd.f32 %v3153, %v3729
      %v3762 = vadd.f32 %v3154, %v3730
      %v3763 = vadd.f32 %v3155, %v3731
      %v3764 = vadd.f32 %v3156, %v3732
      %v3765 = vadd.f32 %v3157, %v3733
      %v3766 = vadd.f32 %v3158, %v3734
      %v3767 = vadd.f32 %v3159, %v3735
      %v3768 = vadd.f32 %v3160, %v3736
      %v3769 = vadd.f32 %v3161, %v3737
      %v3770 = vadd.f32 %v3162, %v3738
      %v3771 = vadd.f32 %v3163, %v3739
      %v3772 = vadd.f32 %v3164, %v3740
      %v3773 = vadd.f32 %v3165, %v3741
      %v3774 = vadd.f32 %v3166, %v3742
      %v3775 = vadd.f32 %v3167, %v3743
      %v3776 = vadd.f32 %v3168, %v3744
      %v3793 = vrot.slane %v860, 1
      %v3794 = vrot.slane %v862, 1
      %v3795 = vrot.slane %v864, 1
      %v3796 = vrot.slane %v866, 1
      %v3797 = vrot.slane %v868, 1
      %v3798 = vrot.slane %v870, 1
      %v3799 = vrot.slane %v872, 1
      %v3800 = vrot.slane %v874, 1
      %v3801 = vrot.slane %v876, 1
      %v3802 = vrot.slane %v878, 1
      %v3803 = vrot.slane %v880, 1
      %v3804 = vrot.slane %v882, 1
      %v3805 = vrot.slane %v884, 1
      %v3806 = vrot.slane %v886, 1
      %v3807 = vrot.slane %v888, 1
      %v3808 = vrot.slane %v890, 1
      %v3841 = vrot.slane %v860, 7
      %v3842 = vrot.slane %v861, 7
      %v3843 = vsel %vm2543, %v3841, %v3842
      %v3844 = vrot.slane %v862, 7
      %v3845 = vrot.slane %v863, 7
      %v3846 = vsel %vm2543, %v3844, %v3845
      %v3847 = vrot.slane %v864, 7
      %v3848 = vrot.slane %v865, 7
      %v3849 = vsel %vm2543, %v3847, %v3848
      %v3850 = vrot.slane %v866, 7
      %v3851 = vrot.slane %v867, 7
      %v3852 = vsel %vm2543, %v3850, %v3851
      %v3853 = vrot.slane %v868, 7
      %v3854 = vrot.slane %v869, 7
      %v3855 = vsel %vm2543, %v3853, %v3854
      %v3856 = vrot.slane %v870, 7
      %v3857 = vrot.slane %v871, 7
      %v3858 = vsel %vm2543, %v3856, %v3857
      %v3859 = vrot.slane %v872, 7
      %v3860 = vrot.slane %v873, 7
      %v3861 = vsel %vm2543, %v3859, %v3860
      %v3862 = vrot.slane %v874, 7
      %v3863 = vrot.slane %v875, 7
      %v3864 = vsel %vm2543, %v3862, %v3863
      %v3865 = vrot.slane %v876, 7
      %v3866 = vrot.slane %v877, 7
      %v3867 = vsel %vm2543, %v3865, %v3866
      %v3868 = vrot.slane %v878, 7
      %v3869 = vrot.slane %v879, 7
      %v3870 = vsel %vm2543, %v3868, %v3869
      %v3871 = vrot.slane %v880, 7
      %v3872 = vrot.slane %v881, 7
      %v3873 = vsel %vm2543, %v3871, %v3872
      %v3874 = vrot.slane %v882, 7
      %v3875 = vrot.slane %v883, 7
      %v3876 = vsel %vm2543, %v3874, %v3875
      %v3877 = vrot.slane %v884, 7
      %v3878 = vrot.slane %v885, 7
      %v3879 = vsel %vm2543, %v3877, %v3878
      %v3880 = vrot.slane %v886, 7
      %v3881 = vrot.slane %v887, 7
      %v3882 = vsel %vm2543, %v3880, %v3881
      %v3883 = vrot.slane %v888, 7
      %v3884 = vrot.slane %v889, 7
      %v3885 = vsel %vm2543, %v3883, %v3884
      %v3886 = vrot.slane %v890, 7
      %v3887 = vrot.slane %v891, 7
      %v3888 = vsel %vm2543, %v3886, %v3887
      %v3921 = vsel %vm2543, %v3793, %v3841
      %v3922 = vsel %vm2543, %v3794, %v3844
      %v3923 = vsel %vm2543, %v3795, %v3847
      %v3924 = vsel %vm2543, %v3796, %v3850
      %v3925 = vsel %vm2543, %v3797, %v3853
      %v3926 = vsel %vm2543, %v3798, %v3856
      %v3927 = vsel %vm2543, %v3799, %v3859
      %v3928 = vsel %vm2543, %v3800, %v3862
      %v3929 = vsel %vm2543, %v3801, %v3865
      %v3930 = vsel %vm2543, %v3802, %v3868
      %v3931 = vsel %vm2543, %v3803, %v3871
      %v3932 = vsel %vm2543, %v3804, %v3874
      %v3933 = vsel %vm2543, %v3805, %v3877
      %v3934 = vsel %vm2543, %v3806, %v3880
      %v3935 = vsel %vm2543, %v3807, %v3883
      %v3936 = vsel %vm2543, %v3808, %v3886
      %v3937 = vrot.slane %v861, 1
      %v3938 = vsel %vm2640, %v3793, %v3937
      %v3939 = vrot.slane %v863, 1
      %v3940 = vsel %vm2640, %v3794, %v3939
      %v3941 = vrot.slane %v865, 1
      %v3942 = vsel %vm2640, %v3795, %v3941
      %v3943 = vrot.slane %v867, 1
      %v3944 = vsel %vm2640, %v3796, %v3943
      %v3945 = vrot.slane %v869, 1
      %v3946 = vsel %vm2640, %v3797, %v3945
      %v3947 = vrot.slane %v871, 1
      %v3948 = vsel %vm2640, %v3798, %v3947
      %v3949 = vrot.slane %v873, 1
      %v3950 = vsel %vm2640, %v3799, %v3949
      %v3951 = vrot.slane %v875, 1
      %v3952 = vsel %vm2640, %v3800, %v3951
      %v3953 = vrot.slane %v877, 1
      %v3954 = vsel %vm2640, %v3801, %v3953
      %v3955 = vrot.slane %v879, 1
      %v3956 = vsel %vm2640, %v3802, %v3955
      %v3957 = vrot.slane %v881, 1
      %v3958 = vsel %vm2640, %v3803, %v3957
      %v3959 = vrot.slane %v883, 1
      %v3960 = vsel %vm2640, %v3804, %v3959
      %v3961 = vrot.slane %v885, 1
      %v3962 = vsel %vm2640, %v3805, %v3961
      %v3963 = vrot.slane %v887, 1
      %v3964 = vsel %vm2640, %v3806, %v3963
      %v3965 = vrot.slane %v889, 1
      %v3966 = vsel %vm2640, %v3807, %v3965
      %v3967 = vrot.slane %v891, 1
      %v3968 = vsel %vm2640, %v3808, %v3967
      %v4017 = vsel %vm2640, %v3937, %v3842
      %v4018 = vsel %vm2640, %v3939, %v3845
      %v4019 = vsel %vm2640, %v3941, %v3848
      %v4020 = vsel %vm2640, %v3943, %v3851
      %v4021 = vsel %vm2640, %v3945, %v3854
      %v4022 = vsel %vm2640, %v3947, %v3857
      %v4023 = vsel %vm2640, %v3949, %v3860
      %v4024 = vsel %vm2640, %v3951, %v3863
      %v4025 = vsel %vm2640, %v3953, %v3866
      %v4026 = vsel %vm2640, %v3955, %v3869
      %v4027 = vsel %vm2640, %v3957, %v3872
      %v4028 = vsel %vm2640, %v3959, %v3875
      %v4029 = vsel %vm2640, %v3961, %v3878
      %v4030 = vsel %vm2640, %v3963, %v3881
      %v4031 = vsel %vm2640, %v3965, %v3884
      %v4032 = vsel %vm2640, %v3967, %v3887
      %4033 = vset.pattern.permute.xlu0 2
      %4034 = vperm.xlu0 %4033, %v2756
      %v4035 = vpop.permute.xlu0 %4034
      %4037 = vset.pattern.permute.xlu0 2
      %4038 = vperm.xlu0 %4037, %v2760
      %v4039 = vpop.permute.xlu0 %4038
      %4041 = vset.pattern.permute.xlu0 2
      %4042 = vperm.xlu0 %4041, %v2764
      %v4043 = vpop.permute.xlu0 %4042
      %4045 = vset.pattern.permute.xlu0 2
      %4046 = vperm.xlu0 %4045, %v2768
      %v4047 = vpop.permute.xlu0 %4046
      %4049 = vset.pattern.permute.xlu0 2
      %4050 = vperm.xlu0 %4049, %v2772
      %v4051 = vpop.permute.xlu0 %4050
      %4053 = vset.pattern.permute.xlu0 2
      %4054 = vperm.xlu0 %4053, %v2776
      %v4055 = vpop.permute.xlu0 %4054
      %4057 = vset.pattern.permute.xlu0 2
      %4058 = vperm.xlu0 %4057, %v2780
      %v4059 = vpop.permute.xlu0 %4058
      %4061 = vset.pattern.permute.xlu0 2
      %4062 = vperm.xlu0 %4061, %v2784
      %v4063 = vpop.permute.xlu0 %4062
      %4065 = vset.pattern.permute.xlu0 2
      %4066 = vperm.xlu0 %4065, %v2788
      %v4067 = vpop.permute.xlu0 %4066
      %4069 = vset.pattern.permute.xlu0 2
      %4070 = vperm.xlu0 %4069, %v2792
      %v4071 = vpop.permute.xlu0 %4070
      %4073 = vset.pattern.permute.xlu0 2
      %4074 = vperm.xlu0 %4073, %v2796
      %v4075 = vpop.permute.xlu0 %4074
      %4077 = vset.pattern.permute.xlu0 2
      %4078 = vperm.xlu0 %4077, %v2800
      %v4079 = vpop.permute.xlu0 %4078
      %4081 = vset.pattern.permute.xlu0 2
      %4082 = vperm.xlu0 %4081, %v2804
      %v4083 = vpop.permute.xlu0 %4082
      %4085 = vset.pattern.permute.xlu0 2
      %4086 = vperm.xlu0 %4085, %v2808
      %v4087 = vpop.permute.xlu0 %4086
      %4089 = vset.pattern.permute.xlu0 2
      %4090 = vperm.xlu0 %4089, %v2812
      %v4091 = vpop.permute.xlu0 %4090
      %4093 = vset.pattern.permute.xlu0 2
      %4094 = vperm.xlu0 %4093, %v2816
      %v4095 = vpop.permute.xlu0 %4094
      %v4097 = vmul.f32 %v3921, %v4035
      %v4098 = vmul.f32 %v3843, %v4035
      %v4099 = vmul.f32 %v3922, %v4039
      %v4100 = vmul.f32 %v3846, %v4039
      %v4101 = vmul.f32 %v3923, %v4043
      %v4102 = vmul.f32 %v3849, %v4043
      %v4103 = vmul.f32 %v3924, %v4047
      %v4104 = vmul.f32 %v3852, %v4047
      %v4105 = vmul.f32 %v3925, %v4051
      %v4106 = vmul.f32 %v3855, %v4051
      %v4107 = vmul.f32 %v3926, %v4055
      %v4108 = vmul.f32 %v3858, %v4055
      %v4109 = vmul.f32 %v3927, %v4059
      %v4110 = vmul.f32 %v3861, %v4059
      %v4111 = vmul.f32 %v3928, %v4063
      %v4112 = vmul.f32 %v3864, %v4063
      %v4113 = vmul.f32 %v3929, %v4067
      %v4114 = vmul.f32 %v3867, %v4067
      %v4115 = vmul.f32 %v3930, %v4071
      %v4116 = vmul.f32 %v3870, %v4071
      %v4117 = vmul.f32 %v3931, %v4075
      %v4118 = vmul.f32 %v3873, %v4075
      %v4119 = vmul.f32 %v3932, %v4079
      %v4120 = vmul.f32 %v3876, %v4079
      %v4121 = vmul.f32 %v3933, %v4083
      %v4122 = vmul.f32 %v3879, %v4083
      %v4123 = vmul.f32 %v3934, %v4087
      %v4124 = vmul.f32 %v3882, %v4087
      %v4125 = vmul.f32 %v3935, %v4091
      %v4126 = vmul.f32 %v3885, %v4091
      %v4127 = vmul.f32 %v3936, %v4095
      %v4128 = vmul.f32 %v3888, %v4095
      %4129 = vset.pattern.permute.xlu0 5
      %4130 = vperm.xlu0 %4129, %v2756
      %v4131 = vpop.permute.xlu0 %4130
      %4133 = vset.pattern.permute.xlu0 5
      %4134 = vperm.xlu0 %4133, %v2760
      %v4135 = vpop.permute.xlu0 %4134
      %4137 = vset.pattern.permute.xlu0 5
      %4138 = vperm.xlu0 %4137, %v2764
      %v4139 = vpop.permute.xlu0 %4138
      %4141 = vset.pattern.permute.xlu0 5
      %4142 = vperm.xlu0 %4141, %v2768
      %v4143 = vpop.permute.xlu0 %4142
      %4145 = vset.pattern.permute.xlu0 5
      %4146 = vperm.xlu0 %4145, %v2772
      %v4147 = vpop.permute.xlu0 %4146
      %4149 = vset.pattern.permute.xlu0 5
      %4150 = vperm.xlu0 %4149, %v2776
      %v4151 = vpop.permute.xlu0 %4150
      %4153 = vset.pattern.permute.xlu0 5
      %4154 = vperm.xlu0 %4153, %v2780
      %v4155 = vpop.permute.xlu0 %4154
      %4157 = vset.pattern.permute.xlu0 5
      %4158 = vperm.xlu0 %4157, %v2784
      %v4159 = vpop.permute.xlu0 %4158
      %4161 = vset.pattern.permute.xlu0 5
      %4162 = vperm.xlu0 %4161, %v2788
      %v4163 = vpop.permute.xlu0 %4162
      %4165 = vset.pattern.permute.xlu0 5
      %4166 = vperm.xlu0 %4165, %v2792
      %v4167 = vpop.permute.xlu0 %4166
      %4169 = vset.pattern.permute.xlu0 5
      %4170 = vperm.xlu0 %4169, %v2796
      %v4171 = vpop.permute.xlu0 %4170
      %4173 = vset.pattern.permute.xlu0 5
      %4174 = vperm.xlu0 %4173, %v2800
      %v4175 = vpop.permute.xlu0 %4174
      %4177 = vset.pattern.permute.xlu0 5
      %4178 = vperm.xlu0 %4177, %v2804
      %v4179 = vpop.permute.xlu0 %4178
      %4181 = vset.pattern.permute.xlu0 5
      %4182 = vperm.xlu0 %4181, %v2808
      %v4183 = vpop.permute.xlu0 %4182
      %4185 = vset.pattern.permute.xlu0 5
      %4186 = vperm.xlu0 %4185, %v2812
      %v4187 = vpop.permute.xlu0 %4186
      %4189 = vset.pattern.permute.xlu0 5
      %4190 = vperm.xlu0 %4189, %v2816
      %v4191 = vpop.permute.xlu0 %4190
      %v4193 = vmul.f32 %v860, %v4131
      %v4194 = vmul.f32 %v861, %v4131
      %v4195 = vmul.f32 %v862, %v4135
      %v4196 = vmul.f32 %v863, %v4135
      %v4197 = vmul.f32 %v864, %v4139
      %v4198 = vmul.f32 %v865, %v4139
      %v4199 = vmul.f32 %v866, %v4143
      %v4200 = vmul.f32 %v867, %v4143
      %v4201 = vmul.f32 %v868, %v4147
      %v4202 = vmul.f32 %v869, %v4147
      %v4203 = vmul.f32 %v870, %v4151
      %v4204 = vmul.f32 %v871, %v4151
      %v4205 = vmul.f32 %v872, %v4155
      %v4206 = vmul.f32 %v873, %v4155
      %v4207 = vmul.f32 %v874, %v4159
      %v4208 = vmul.f32 %v875, %v4159
      %v4209 = vmul.f32 %v876, %v4163
      %v4210 = vmul.f32 %v877, %v4163
      %v4211 = vmul.f32 %v878, %v4167
      %v4212 = vmul.f32 %v879, %v4167
      %v4213 = vmul.f32 %v880, %v4171
      %v4214 = vmul.f32 %v881, %v4171
      %v4215 = vmul.f32 %v882, %v4175
      %v4216 = vmul.f32 %v883, %v4175
      %v4217 = vmul.f32 %v884, %v4179
      %v4218 = vmul.f32 %v885, %v4179
      %v4219 = vmul.f32 %v886, %v4183
      %v4220 = vmul.f32 %v887, %v4183
      %v4221 = vmul.f32 %v888, %v4187
      %v4222 = vmul.f32 %v889, %v4187
      %v4223 = vmul.f32 %v890, %v4191
      %v4224 = vmul.f32 %v891, %v4191
      %v4225 = vadd.f32 %v4097, %v4193
      %v4226 = vadd.f32 %v4098, %v4194
      %v4227 = vadd.f32 %v4099, %v4195
      %v4228 = vadd.f32 %v4100, %v4196
      %v4229 = vadd.f32 %v4101, %v4197
      %v4230 = vadd.f32 %v4102, %v4198
      %v4231 = vadd.f32 %v4103, %v4199
      %v4232 = vadd.f32 %v4104, %v4200
      %v4233 = vadd.f32 %v4105, %v4201
      %v4234 = vadd.f32 %v4106, %v4202
      %v4235 = vadd.f32 %v4107, %v4203
      %v4236 = vadd.f32 %v4108, %v4204
      %v4237 = vadd.f32 %v4109, %v4205
      %v4238 = vadd.f32 %v4110, %v4206
      %v4239 = vadd.f32 %v4111, %v4207
      %v4240 = vadd.f32 %v4112, %v4208
      %v4241 = vadd.f32 %v4113, %v4209
      %v4242 = vadd.f32 %v4114, %v4210
      %v4243 = vadd.f32 %v4115, %v4211
      %v4244 = vadd.f32 %v4116, %v4212
      %v4245 = vadd.f32 %v4117, %v4213
      %v4246 = vadd.f32 %v4118, %v4214
      %v4247 = vadd.f32 %v4119, %v4215
      %v4248 = vadd.f32 %v4120, %v4216
      %v4249 = vadd.f32 %v4121, %v4217
      %v4250 = vadd.f32 %v4122, %v4218
      %v4251 = vadd.f32 %v4123, %v4219
      %v4252 = vadd.f32 %v4124, %v4220
      %v4253 = vadd.f32 %v4125, %v4221
      %v4254 = vadd.f32 %v4126, %v4222
      %v4255 = vadd.f32 %v4127, %v4223
      %v4256 = vadd.f32 %v4128, %v4224
      %4257 = vset.pattern.permute.xlu0 8
      %4258 = vperm.xlu0 %4257, %v2756
      %v4259 = vpop.permute.xlu0 %4258
      %4261 = vset.pattern.permute.xlu0 8
      %4262 = vperm.xlu0 %4261, %v2760
      %v4263 = vpop.permute.xlu0 %4262
      %4265 = vset.pattern.permute.xlu0 8
      %4266 = vperm.xlu0 %4265, %v2764
      %v4267 = vpop.permute.xlu0 %4266
      %4269 = vset.pattern.permute.xlu0 8
      %4270 = vperm.xlu0 %4269, %v2768
      %v4271 = vpop.permute.xlu0 %4270
      %4273 = vset.pattern.permute.xlu0 8
      %4274 = vperm.xlu0 %4273, %v2772
      %v4275 = vpop.permute.xlu0 %4274
      %4277 = vset.pattern.permute.xlu0 8
      %4278 = vperm.xlu0 %4277, %v2776
      %v4279 = vpop.permute.xlu0 %4278
      %4281 = vset.pattern.permute.xlu0 8
      %4282 = vperm.xlu0 %4281, %v2780
      %v4283 = vpop.permute.xlu0 %4282
      %4285 = vset.pattern.permute.xlu0 8
      %4286 = vperm.xlu0 %4285, %v2784
      %v4287 = vpop.permute.xlu0 %4286
      %4289 = vset.pattern.permute.xlu0 8
      %4290 = vperm.xlu0 %4289, %v2788
      %v4291 = vpop.permute.xlu0 %4290
      %4293 = vset.pattern.permute.xlu0 8
      %4294 = vperm.xlu0 %4293, %v2792
      %v4295 = vpop.permute.xlu0 %4294
      %4297 = vset.pattern.permute.xlu0 8
      %4298 = vperm.xlu0 %4297, %v2796
      %v4299 = vpop.permute.xlu0 %4298
      %4301 = vset.pattern.permute.xlu0 8
      %4302 = vperm.xlu0 %4301, %v2800
      %v4303 = vpop.permute.xlu0 %4302
      %4305 = vset.pattern.permute.xlu0 8
      %4306 = vperm.xlu0 %4305, %v2804
      %v4307 = vpop.permute.xlu0 %4306
      %4309 = vset.pattern.permute.xlu0 8
      %4310 = vperm.xlu0 %4309, %v2808
      %v4311 = vpop.permute.xlu0 %4310
      %4313 = vset.pattern.permute.xlu0 8
      %4314 = vperm.xlu0 %4313, %v2812
      %v4315 = vpop.permute.xlu0 %4314
      %4317 = vset.pattern.permute.xlu0 8
      %4318 = vperm.xlu0 %4317, %v2816
      %v4319 = vpop.permute.xlu0 %4318
      %v4321 = vmul.f32 %v3938, %v4259
      %v4322 = vmul.f32 %v4017, %v4259
      %v4323 = vmul.f32 %v3940, %v4263
      %v4324 = vmul.f32 %v4018, %v4263
      %v4325 = vmul.f32 %v3942, %v4267
      %v4326 = vmul.f32 %v4019, %v4267
      %v4327 = vmul.f32 %v3944, %v4271
      %v4328 = vmul.f32 %v4020, %v4271
      %v4329 = vmul.f32 %v3946, %v4275
      %v4330 = vmul.f32 %v4021, %v4275
      %v4331 = vmul.f32 %v3948, %v4279
      %v4332 = vmul.f32 %v4022, %v4279
      %v4333 = vmul.f32 %v3950, %v4283
      %v4334 = vmul.f32 %v4023, %v4283
      %v4335 = vmul.f32 %v3952, %v4287
      %v4336 = vmul.f32 %v4024, %v4287
      %v4337 = vmul.f32 %v3954, %v4291
      %v4338 = vmul.f32 %v4025, %v4291
      %v4339 = vmul.f32 %v3956, %v4295
      %v4340 = vmul.f32 %v4026, %v4295
      %v4341 = vmul.f32 %v3958, %v4299
      %v4342 = vmul.f32 %v4027, %v4299
      %v4343 = vmul.f32 %v3960, %v4303
      %v4344 = vmul.f32 %v4028, %v4303
      %v4345 = vmul.f32 %v3962, %v4307
      %v4346 = vmul.f32 %v4029, %v4307
      %v4347 = vmul.f32 %v3964, %v4311
      %v4348 = vmul.f32 %v4030, %v4311
      %v4349 = vmul.f32 %v3966, %v4315
      %v4350 = vmul.f32 %v4031, %v4315
      %v4351 = vmul.f32 %v3968, %v4319
      %v4352 = vmul.f32 %v4032, %v4319
      %v4353 = vadd.f32 %v4225, %v4321
      %v4354 = vadd.f32 %v4226, %v4322
      %v4355 = vadd.f32 %v4227, %v4323
      %v4356 = vadd.f32 %v4228, %v4324
      %v4357 = vadd.f32 %v4229, %v4325
      %v4358 = vadd.f32 %v4230, %v4326
      %v4359 = vadd.f32 %v4231, %v4327
      %v4360 = vadd.f32 %v4232, %v4328
      %v4361 = vadd.f32 %v4233, %v4329
      %v4362 = vadd.f32 %v4234, %v4330
      %v4363 = vadd.f32 %v4235, %v4331
      %v4364 = vadd.f32 %v4236, %v4332
      %v4365 = vadd.f32 %v4237, %v4333
      %v4366 = vadd.f32 %v4238, %v4334
      %v4367 = vadd.f32 %v4239, %v4335
      %v4368 = vadd.f32 %v4240, %v4336
      %v4369 = vadd.f32 %v4241, %v4337
      %v4370 = vadd.f32 %v4242, %v4338
      %v4371 = vadd.f32 %v4243, %v4339
      %v4372 = vadd.f32 %v4244, %v4340
      %v4373 = vadd.f32 %v4245, %v4341
      %v4374 = vadd.f32 %v4246, %v4342
      %v4375 = vadd.f32 %v4247, %v4343
      %v4376 = vadd.f32 %v4248, %v4344
      %v4377 = vadd.f32 %v4249, %v4345
      %v4378 = vadd.f32 %v4250, %v4346
      %v4379 = vadd.f32 %v4251, %v4347
      %v4380 = vadd.f32 %v4252, %v4348
      %v4381 = vadd.f32 %v4253, %v4349
      %v4382 = vadd.f32 %v4254, %v4350
      %v4383 = vadd.f32 %v4255, %v4351
      %v4384 = vadd.f32 %v4256, %v4352
      %v4385 = vadd.f32 %v3745, %v4353
      %v4386 = vadd.f32 %v3746, %v4354
      %v4387 = vadd.f32 %v3747, %v4355
      %v4388 = vadd.f32 %v3748, %v4356
      %v4389 = vadd.f32 %v3749, %v4357
      %v4390 = vadd.f32 %v3750, %v4358
      %v4391 = vadd.f32 %v3751, %v4359
      %v4392 = vadd.f32 %v3752, %v4360
      %v4393 = vadd.f32 %v3753, %v4361
      %v4394 = vadd.f32 %v3754, %v4362
      %v4395 = vadd.f32 %v3755, %v4363
      %v4396 = vadd.f32 %v3756, %v4364
      %v4397 = vadd.f32 %v3757, %v4365
      %v4398 = vadd.f32 %v3758, %v4366
      %v4399 = vadd.f32 %v3759, %v4367
      %v4400 = vadd.f32 %v3760, %v4368
      %v4401 = vadd.f32 %v3761, %v4369
      %v4402 = vadd.f32 %v3762, %v4370
      %v4403 = vadd.f32 %v3763, %v4371
      %v4404 = vadd.f32 %v3764, %v4372
      %v4405 = vadd.f32 %v3765, %v4373
      %v4406 = vadd.f32 %v3766, %v4374
      %v4407 = vadd.f32 %v3767, %v4375
      %v4408 = vadd.f32 %v3768, %v4376
      %v4409 = vadd.f32 %v3769, %v4377
      %v4410 = vadd.f32 %v3770, %v4378
      %v4411 = vadd.f32 %v3771, %v4379
      %v4412 = vadd.f32 %v3772, %v4380
      %v4413 = vadd.f32 %v3773, %v4381
      %v4414 = vadd.f32 %v3774, %v4382
      %v4415 = vadd.f32 %v3775, %v4383
      %v4416 = vadd.f32 %v3776, %v4384
      %v4433 = vlaneseq
      %v4434 = vshrl.u32 %v4433, 7
      %v4435 = vsub.s32 0, %v4434
      %v4436 = vrot.slane %v538, %v4435
      %v4437 = vlaneseq
      %v4438 = vshrl.u32 %v4437, 7
      %v4439 = vsub.s32 0, %v4438
      %v4440 = vrot.slane %v539, %v4439
      %v4441 = vlaneseq
      %v4442 = vshrl.u32 %v4441, 7
      %v4443 = vsub.s32 0, %v4442
      %v4444 = vrot.slane %v540, %v4443
      %v4445 = vlaneseq
      %v4446 = vshrl.u32 %v4445, 7
      %v4447 = vsub.s32 0, %v4446
      %v4448 = vrot.slane %v541, %v4447
      %v4449 = vlaneseq
      %v4450 = vshrl.u32 %v4449, 7
      %v4451 = vsub.s32 0, %v4450
      %v4452 = vrot.slane %v542, %v4451
      %v4453 = vlaneseq
      %v4454 = vshrl.u32 %v4453, 7
      %v4455 = vsub.s32 0, %v4454
      %v4456 = vrot.slane %v543, %v4455
      %v4457 = vlaneseq
      %v4458 = vshrl.u32 %v4457, 7
      %v4459 = vsub.s32 0, %v4458
      %v4460 = vrot.slane %v544, %v4459
      %v4461 = vlaneseq
      %v4462 = vshrl.u32 %v4461, 7
      %v4463 = vsub.s32 0, %v4462
      %v4464 = vrot.slane %v545, %v4463
      %v4465 = vlaneseq
      %v4466 = vshrl.u32 %v4465, 7
      %v4467 = vsub.s32 0, %v4466
      %v4468 = vrot.slane %v546, %v4467
      %v4469 = vlaneseq
      %v4470 = vshrl.u32 %v4469, 7
      %v4471 = vsub.s32 0, %v4470
      %v4472 = vrot.slane %v547, %v4471
      %v4473 = vlaneseq
      %v4474 = vshrl.u32 %v4473, 7
      %v4475 = vsub.s32 0, %v4474
      %v4476 = vrot.slane %v548, %v4475
      %v4477 = vlaneseq
      %v4478 = vshrl.u32 %v4477, 7
      %v4479 = vsub.s32 0, %v4478
      %v4480 = vrot.slane %v549, %v4479
      %v4481 = vlaneseq
      %v4482 = vshrl.u32 %v4481, 7
      %v4483 = vsub.s32 0, %v4482
      %v4484 = vrot.slane %v550, %v4483
      %v4485 = vlaneseq
      %v4486 = vshrl.u32 %v4485, 7
      %v4487 = vsub.s32 0, %v4486
      %v4488 = vrot.slane %v551, %v4487
      %v4489 = vlaneseq
      %v4490 = vshrl.u32 %v4489, 7
      %v4491 = vsub.s32 0, %v4490
      %v4492 = vrot.slane %v552, %v4491
      %v4493 = vlaneseq
      %v4494 = vshrl.u32 %v4493, 7
      %v4495 = vsub.s32 0, %v4494
      %v4496 = vrot.slane %v553, %v4495
      %4497 = vset.pattern.permute.xlu0 0
      %4498 = vperm.xlu0 %4497, %v4436
      %v4499 = vpop.permute.xlu0 %4498
      %4501 = vset.pattern.permute.xlu0 0
      %4502 = vperm.xlu0 %4501, %v4440
      %v4503 = vpop.permute.xlu0 %4502
      %4505 = vset.pattern.permute.xlu0 0
      %4506 = vperm.xlu0 %4505, %v4444
      %v4507 = vpop.permute.xlu0 %4506
      %4509 = vset.pattern.permute.xlu0 0
      %4510 = vperm.xlu0 %4509, %v4448
      %v4511 = vpop.permute.xlu0 %4510
      %4513 = vset.pattern.permute.xlu0 0
      %4514 = vperm.xlu0 %4513, %v4452
      %v4515 = vpop.permute.xlu0 %4514
      %4517 = vset.pattern.permute.xlu0 0
      %4518 = vperm.xlu0 %4517, %v4456
      %v4519 = vpop.permute.xlu0 %4518
      %4521 = vset.pattern.permute.xlu0 0
      %4522 = vperm.xlu0 %4521, %v4460
      %v4523 = vpop.permute.xlu0 %4522
      %4525 = vset.pattern.permute.xlu0 0
      %4526 = vperm.xlu0 %4525, %v4464
      %v4527 = vpop.permute.xlu0 %4526
      %4529 = vset.pattern.permute.xlu0 0
      %4530 = vperm.xlu0 %4529, %v4468
      %v4531 = vpop.permute.xlu0 %4530
      %4533 = vset.pattern.permute.xlu0 0
      %4534 = vperm.xlu0 %4533, %v4472
      %v4535 = vpop.permute.xlu0 %4534
      %4537 = vset.pattern.permute.xlu0 0
      %4538 = vperm.xlu0 %4537, %v4476
      %v4539 = vpop.permute.xlu0 %4538
      %4541 = vset.pattern.permute.xlu0 0
      %4542 = vperm.xlu0 %4541, %v4480
      %v4543 = vpop.permute.xlu0 %4542
      %4545 = vset.pattern.permute.xlu0 0
      %4546 = vperm.xlu0 %4545, %v4484
      %v4547 = vpop.permute.xlu0 %4546
      %4549 = vset.pattern.permute.xlu0 0
      %4550 = vperm.xlu0 %4549, %v4488
      %v4551 = vpop.permute.xlu0 %4550
      %4553 = vset.pattern.permute.xlu0 0
      %4554 = vperm.xlu0 %4553, %v4492
      %v4555 = vpop.permute.xlu0 %4554
      %4557 = vset.pattern.permute.xlu0 0
      %4558 = vperm.xlu0 %4557, %v4496
      %v4559 = vpop.permute.xlu0 %4558
      %v4561 = vmul.f32 %v4385, %v4499
      %v4562 = vmul.f32 %v4386, %v4499
      %v4563 = vmul.f32 %v4387, %v4503
      %v4564 = vmul.f32 %v4388, %v4503
      %v4565 = vmul.f32 %v4389, %v4507
      %v4566 = vmul.f32 %v4390, %v4507
      %v4567 = vmul.f32 %v4391, %v4511
      %v4568 = vmul.f32 %v4392, %v4511
      %v4569 = vmul.f32 %v4393, %v4515
      %v4570 = vmul.f32 %v4394, %v4515
      %v4571 = vmul.f32 %v4395, %v4519
      %v4572 = vmul.f32 %v4396, %v4519
      %v4573 = vmul.f32 %v4397, %v4523
      %v4574 = vmul.f32 %v4398, %v4523
      %v4575 = vmul.f32 %v4399, %v4527
      %v4576 = vmul.f32 %v4400, %v4527
      %v4577 = vmul.f32 %v4401, %v4531
      %v4578 = vmul.f32 %v4402, %v4531
      %v4579 = vmul.f32 %v4403, %v4535
      %v4580 = vmul.f32 %v4404, %v4535
      %v4581 = vmul.f32 %v4405, %v4539
      %v4582 = vmul.f32 %v4406, %v4539
      %v4583 = vmul.f32 %v4407, %v4543
      %v4584 = vmul.f32 %v4408, %v4543
      %v4585 = vmul.f32 %v4409, %v4547
      %v4586 = vmul.f32 %v4410, %v4547
      %v4587 = vmul.f32 %v4411, %v4551
      %v4588 = vmul.f32 %v4412, %v4551
      %v4589 = vmul.f32 %v4413, %v4555
      %v4590 = vmul.f32 %v4414, %v4555
      %v4591 = vmul.f32 %v4415, %v4559
      %v4592 = vmul.f32 %v4416, %v4559
      %4593 = vrot.lane.b32.xlu0 %v570, 119
      %v4594 = vpop.permute.xlu0 %4593
      %4595 = vrot.lane.b32.xlu0 %v571, 119
      %v4596 = vpop.permute.xlu0 %4595
      %4597 = vrot.lane.b32.xlu0 %v572, 119
      %v4598 = vpop.permute.xlu0 %4597
      %4599 = vrot.lane.b32.xlu0 %v573, 119
      %v4600 = vpop.permute.xlu0 %4599
      %4601 = vrot.lane.b32.xlu0 %v574, 119
      %v4602 = vpop.permute.xlu0 %4601
      %4603 = vrot.lane.b32.xlu0 %v575, 119
      %v4604 = vpop.permute.xlu0 %4603
      %4605 = vrot.lane.b32.xlu0 %v576, 119
      %v4606 = vpop.permute.xlu0 %4605
      %4607 = vrot.lane.b32.xlu0 %v577, 119
      %v4608 = vpop.permute.xlu0 %4607
      %4609 = vrot.lane.b32.xlu0 %v578, 119
      %v4610 = vpop.permute.xlu0 %4609
      %4611 = vrot.lane.b32.xlu0 %v579, 119
      %v4612 = vpop.permute.xlu0 %4611
      %4613 = vrot.lane.b32.xlu0 %v580, 119
      %v4614 = vpop.permute.xlu0 %4613
      %4615 = vrot.lane.b32.xlu0 %v581, 119
      %v4616 = vpop.permute.xlu0 %4615
      %4617 = vrot.lane.b32.xlu0 %v582, 119
      %v4618 = vpop.permute.xlu0 %4617
      %4619 = vrot.lane.b32.xlu0 %v583, 119
      %v4620 = vpop.permute.xlu0 %4619
      %4621 = vrot.lane.b32.xlu0 %v584, 119
      %v4622 = vpop.permute.xlu0 %4621
      %4623 = vrot.lane.b32.xlu0 %v585, 119
      %v4624 = vpop.permute.xlu0 %4623
      %v4641 = vmul.f32 %v506, %v4594
      %v4642 = vmul.f32 %v507, %v4596
      %v4643 = vmul.f32 %v508, %v4598
      %v4644 = vmul.f32 %v509, %v4600
      %v4645 = vmul.f32 %v510, %v4602
      %v4646 = vmul.f32 %v511, %v4604
      %v4647 = vmul.f32 %v512, %v4606
      %v4648 = vmul.f32 %v513, %v4608
      %v4649 = vmul.f32 %v514, %v4610
      %v4650 = vmul.f32 %v515, %v4612
      %v4651 = vmul.f32 %v516, %v4614
      %v4652 = vmul.f32 %v517, %v4616
      %v4653 = vmul.f32 %v518, %v4618
      %v4654 = vmul.f32 %v519, %v4620
      %v4655 = vmul.f32 %v520, %v4622
      %v4656 = vmul.f32 %v521, %v4624
      %v4673 = vlaneseq
      %v4674 = vshrl.u32 %v4673, 7
      %v4675 = vsub.s32 0, %v4674
      %v4676 = vrot.slane %v4641, %v4675
      %v4677 = vlaneseq
      %v4678 = vshrl.u32 %v4677, 7
      %v4679 = vsub.s32 0, %v4678
      %v4680 = vrot.slane %v4642, %v4679
      %v4681 = vlaneseq
      %v4682 = vshrl.u32 %v4681, 7
      %v4683 = vsub.s32 0, %v4682
      %v4684 = vrot.slane %v4643, %v4683
      %v4685 = vlaneseq
      %v4686 = vshrl.u32 %v4685, 7
      %v4687 = vsub.s32 0, %v4686
      %v4688 = vrot.slane %v4644, %v4687
      %v4689 = vlaneseq
      %v4690 = vshrl.u32 %v4689, 7
      %v4691 = vsub.s32 0, %v4690
      %v4692 = vrot.slane %v4645, %v4691
      %v4693 = vlaneseq
      %v4694 = vshrl.u32 %v4693, 7
      %v4695 = vsub.s32 0, %v4694
      %v4696 = vrot.slane %v4646, %v4695
      %v4697 = vlaneseq
      %v4698 = vshrl.u32 %v4697, 7
      %v4699 = vsub.s32 0, %v4698
      %v4700 = vrot.slane %v4647, %v4699
      %v4701 = vlaneseq
      %v4702 = vshrl.u32 %v4701, 7
      %v4703 = vsub.s32 0, %v4702
      %v4704 = vrot.slane %v4648, %v4703
      %v4705 = vlaneseq
      %v4706 = vshrl.u32 %v4705, 7
      %v4707 = vsub.s32 0, %v4706
      %v4708 = vrot.slane %v4649, %v4707
      %v4709 = vlaneseq
      %v4710 = vshrl.u32 %v4709, 7
      %v4711 = vsub.s32 0, %v4710
      %v4712 = vrot.slane %v4650, %v4711
      %v4713 = vlaneseq
      %v4714 = vshrl.u32 %v4713, 7
      %v4715 = vsub.s32 0, %v4714
      %v4716 = vrot.slane %v4651, %v4715
      %v4717 = vlaneseq
      %v4718 = vshrl.u32 %v4717, 7
      %v4719 = vsub.s32 0, %v4718
      %v4720 = vrot.slane %v4652, %v4719
      %v4721 = vlaneseq
      %v4722 = vshrl.u32 %v4721, 7
      %v4723 = vsub.s32 0, %v4722
      %v4724 = vrot.slane %v4653, %v4723
      %v4725 = vlaneseq
      %v4726 = vshrl.u32 %v4725, 7
      %v4727 = vsub.s32 0, %v4726
      %v4728 = vrot.slane %v4654, %v4727
      %v4729 = vlaneseq
      %v4730 = vshrl.u32 %v4729, 7
      %v4731 = vsub.s32 0, %v4730
      %v4732 = vrot.slane %v4655, %v4731
      %v4733 = vlaneseq
      %v4734 = vshrl.u32 %v4733, 7
      %v4735 = vsub.s32 0, %v4734
      %v4736 = vrot.slane %v4656, %v4735
      %4737 = vset.pattern.permute.xlu0 0
      %4738 = vperm.xlu0 %4737, %v4676
      %v4739 = vpop.permute.xlu0 %4738
      %4741 = vset.pattern.permute.xlu0 0
      %4742 = vperm.xlu0 %4741, %v4680
      %v4743 = vpop.permute.xlu0 %4742
      %4745 = vset.pattern.permute.xlu0 0
      %4746 = vperm.xlu0 %4745, %v4684
      %v4747 = vpop.permute.xlu0 %4746
      %4749 = vset.pattern.permute.xlu0 0
      %4750 = vperm.xlu0 %4749, %v4688
      %v4751 = vpop.permute.xlu0 %4750
      %4753 = vset.pattern.permute.xlu0 0
      %4754 = vperm.xlu0 %4753, %v4692
      %v4755 = vpop.permute.xlu0 %4754
      %4757 = vset.pattern.permute.xlu0 0
      %4758 = vperm.xlu0 %4757, %v4696
      %v4759 = vpop.permute.xlu0 %4758
      %4761 = vset.pattern.permute.xlu0 0
      %4762 = vperm.xlu0 %4761, %v4700
      %v4763 = vpop.permute.xlu0 %4762
      %4765 = vset.pattern.permute.xlu0 0
      %4766 = vperm.xlu0 %4765, %v4704
      %v4767 = vpop.permute.xlu0 %4766
      %4769 = vset.pattern.permute.xlu0 0
      %4770 = vperm.xlu0 %4769, %v4708
      %v4771 = vpop.permute.xlu0 %4770
      %4773 = vset.pattern.permute.xlu0 0
      %4774 = vperm.xlu0 %4773, %v4712
      %v4775 = vpop.permute.xlu0 %4774
      %4777 = vset.pattern.permute.xlu0 0
      %4778 = vperm.xlu0 %4777, %v4716
      %v4779 = vpop.permute.xlu0 %4778
      %4781 = vset.pattern.permute.xlu0 0
      %4782 = vperm.xlu0 %4781, %v4720
      %v4783 = vpop.permute.xlu0 %4782
      %4785 = vset.pattern.permute.xlu0 0
      %4786 = vperm.xlu0 %4785, %v4724
      %v4787 = vpop.permute.xlu0 %4786
      %4789 = vset.pattern.permute.xlu0 0
      %4790 = vperm.xlu0 %4789, %v4728
      %v4791 = vpop.permute.xlu0 %4790
      %4793 = vset.pattern.permute.xlu0 0
      %4794 = vperm.xlu0 %4793, %v4732
      %v4795 = vpop.permute.xlu0 %4794
      %4797 = vset.pattern.permute.xlu0 0
      %4798 = vperm.xlu0 %4797, %v4736
      %v4799 = vpop.permute.xlu0 %4798
      %v4801 = vsub.f32 %v4561, %v4739
      %v4802 = vsub.f32 %v4562, %v4739
      %v4803 = vsub.f32 %v4563, %v4743
      %v4804 = vsub.f32 %v4564, %v4743
      %v4805 = vsub.f32 %v4565, %v4747
      %v4806 = vsub.f32 %v4566, %v4747
      %v4807 = vsub.f32 %v4567, %v4751
      %v4808 = vsub.f32 %v4568, %v4751
      %v4809 = vsub.f32 %v4569, %v4755
      %v4810 = vsub.f32 %v4570, %v4755
      %v4811 = vsub.f32 %v4571, %v4759
      %v4812 = vsub.f32 %v4572, %v4759
      %v4813 = vsub.f32 %v4573, %v4763
      %v4814 = vsub.f32 %v4574, %v4763
      %v4815 = vsub.f32 %v4575, %v4767
      %v4816 = vsub.f32 %v4576, %v4767
      %v4817 = vsub.f32 %v4577, %v4771
      %v4818 = vsub.f32 %v4578, %v4771
      %v4819 = vsub.f32 %v4579, %v4775
      %v4820 = vsub.f32 %v4580, %v4775
      %v4821 = vsub.f32 %v4581, %v4779
      %v4822 = vsub.f32 %v4582, %v4779
      %v4823 = vsub.f32 %v4583, %v4783
      %v4824 = vsub.f32 %v4584, %v4783
      %v4825 = vsub.f32 %v4585, %v4787
      %v4826 = vsub.f32 %v4586, %v4787
      %v4827 = vsub.f32 %v4587, %v4791
      %v4828 = vsub.f32 %v4588, %v4791
      %v4829 = vsub.f32 %v4589, %v4795
      %v4830 = vsub.f32 %v4590, %v4795
      %v4831 = vsub.f32 %v4591, %v4799
      %v4832 = vsub.f32 %v4592, %v4799
      %v4849 = vlaneseq
      %v4850 = vshrl.u32 %v4849, 7
      %v4851 = vsub.s32 0, %v4850
      %v4852 = vrot.slane %v506, %v4851
      %v4853 = vlaneseq
      %v4854 = vshrl.u32 %v4853, 7
      %v4855 = vsub.s32 0, %v4854
      %v4856 = vrot.slane %v507, %v4855
      %v4857 = vlaneseq
      %v4858 = vshrl.u32 %v4857, 7
      %v4859 = vsub.s32 0, %v4858
      %v4860 = vrot.slane %v508, %v4859
      %v4861 = vlaneseq
      %v4862 = vshrl.u32 %v4861, 7
      %v4863 = vsub.s32 0, %v4862
      %v4864 = vrot.slane %v509, %v4863
      %v4865 = vlaneseq
      %v4866 = vshrl.u32 %v4865, 7
      %v4867 = vsub.s32 0, %v4866
      %v4868 = vrot.slane %v510, %v4867
      %v4869 = vlaneseq
      %v4870 = vshrl.u32 %v4869, 7
      %v4871 = vsub.s32 0, %v4870
      %v4872 = vrot.slane %v511, %v4871
      %v4873 = vlaneseq
      %v4874 = vshrl.u32 %v4873, 7
      %v4875 = vsub.s32 0, %v4874
      %v4876 = vrot.slane %v512, %v4875
      %v4877 = vlaneseq
      %v4878 = vshrl.u32 %v4877, 7
      %v4879 = vsub.s32 0, %v4878
      %v4880 = vrot.slane %v513, %v4879
      %v4881 = vlaneseq
      %v4882 = vshrl.u32 %v4881, 7
      %v4883 = vsub.s32 0, %v4882
      %v4884 = vrot.slane %v514, %v4883
      %v4885 = vlaneseq
      %v4886 = vshrl.u32 %v4885, 7
      %v4887 = vsub.s32 0, %v4886
      %v4888 = vrot.slane %v515, %v4887
      %v4889 = vlaneseq
      %v4890 = vshrl.u32 %v4889, 7
      %v4891 = vsub.s32 0, %v4890
      %v4892 = vrot.slane %v516, %v4891
      %v4893 = vlaneseq
      %v4894 = vshrl.u32 %v4893, 7
      %v4895 = vsub.s32 0, %v4894
      %v4896 = vrot.slane %v517, %v4895
      %v4897 = vlaneseq
      %v4898 = vshrl.u32 %v4897, 7
      %v4899 = vsub.s32 0, %v4898
      %v4900 = vrot.slane %v518, %v4899
      %v4901 = vlaneseq
      %v4902 = vshrl.u32 %v4901, 7
      %v4903 = vsub.s32 0, %v4902
      %v4904 = vrot.slane %v519, %v4903
      %v4905 = vlaneseq
      %v4906 = vshrl.u32 %v4905, 7
      %v4907 = vsub.s32 0, %v4906
      %v4908 = vrot.slane %v520, %v4907
      %v4909 = vlaneseq
      %v4910 = vshrl.u32 %v4909, 7
      %v4911 = vsub.s32 0, %v4910
      %v4912 = vrot.slane %v521, %v4911
      %4913 = vset.pattern.permute.xlu0 1
      %4914 = vperm.xlu0 %4913, %v4852
      %v4915 = vpop.permute.xlu0 %4914
      %4917 = vset.pattern.permute.xlu0 1
      %4918 = vperm.xlu0 %4917, %v4856
      %v4919 = vpop.permute.xlu0 %4918
      %4921 = vset.pattern.permute.xlu0 1
      %4922 = vperm.xlu0 %4921, %v4860
      %v4923 = vpop.permute.xlu0 %4922
      %4925 = vset.pattern.permute.xlu0 1
      %4926 = vperm.xlu0 %4925, %v4864
      %v4927 = vpop.permute.xlu0 %4926
      %4929 = vset.pattern.permute.xlu0 1
      %4930 = vperm.xlu0 %4929, %v4868
      %v4931 = vpop.permute.xlu0 %4930
      %4933 = vset.pattern.permute.xlu0 1
      %4934 = vperm.xlu0 %4933, %v4872
      %v4935 = vpop.permute.xlu0 %4934
      %4937 = vset.pattern.permute.xlu0 1
      %4938 = vperm.xlu0 %4937, %v4876
      %v4939 = vpop.permute.xlu0 %4938
      %4941 = vset.pattern.permute.xlu0 1
      %4942 = vperm.xlu0 %4941, %v4880
      %v4943 = vpop.permute.xlu0 %4942
      %4945 = vset.pattern.permute.xlu0 1
      %4946 = vperm.xlu0 %4945, %v4884
      %v4947 = vpop.permute.xlu0 %4946
      %4949 = vset.pattern.permute.xlu0 1
      %4950 = vperm.xlu0 %4949, %v4888
      %v4951 = vpop.permute.xlu0 %4950
      %4953 = vset.pattern.permute.xlu0 1
      %4954 = vperm.xlu0 %4953, %v4892
      %v4955 = vpop.permute.xlu0 %4954
      %4957 = vset.pattern.permute.xlu0 1
      %4958 = vperm.xlu0 %4957, %v4896
      %v4959 = vpop.permute.xlu0 %4958
      %4961 = vset.pattern.permute.xlu0 1
      %4962 = vperm.xlu0 %4961, %v4900
      %v4963 = vpop.permute.xlu0 %4962
      %4965 = vset.pattern.permute.xlu0 1
      %4966 = vperm.xlu0 %4965, %v4904
      %v4967 = vpop.permute.xlu0 %4966
      %4969 = vset.pattern.permute.xlu0 1
      %4970 = vperm.xlu0 %4969, %v4908
      %v4971 = vpop.permute.xlu0 %4970
      %4973 = vset.pattern.permute.xlu0 1
      %4974 = vperm.xlu0 %4973, %v4912
      %v4975 = vpop.permute.xlu0 %4974
      %v4977 = vmul.f32 %v4801, %v4915
      %v4978 = vmul.f32 %v4802, %v4915
      %v4979 = vmul.f32 %v4803, %v4919
      %v4980 = vmul.f32 %v4804, %v4919
      %v4981 = vmul.f32 %v4805, %v4923
      %v4982 = vmul.f32 %v4806, %v4923
      %v4983 = vmul.f32 %v4807, %v4927
      %v4984 = vmul.f32 %v4808, %v4927
      %v4985 = vmul.f32 %v4809, %v4931
      %v4986 = vmul.f32 %v4810, %v4931
      %v4987 = vmul.f32 %v4811, %v4935
      %v4988 = vmul.f32 %v4812, %v4935
      %v4989 = vmul.f32 %v4813, %v4939
      %v4990 = vmul.f32 %v4814, %v4939
      %v4991 = vmul.f32 %v4815, %v4943
      %v4992 = vmul.f32 %v4816, %v4943
      %v4993 = vmul.f32 %v4817, %v4947
      %v4994 = vmul.f32 %v4818, %v4947
      %v4995 = vmul.f32 %v4819, %v4951
      %v4996 = vmul.f32 %v4820, %v4951
      %v4997 = vmul.f32 %v4821, %v4955
      %v4998 = vmul.f32 %v4822, %v4955
      %v4999 = vmul.f32 %v4823, %v4959
      %v5000 = vmul.f32 %v4824, %v4959
      %v5001 = vmul.f32 %v4825, %v4963
      %v5002 = vmul.f32 %v4826, %v4963
      %v5003 = vmul.f32 %v4827, %v4967
      %v5004 = vmul.f32 %v4828, %v4967
      %v5005 = vmul.f32 %v4829, %v4971
      %v5006 = vmul.f32 %v4830, %v4971
      %v5007 = vmul.f32 %v4831, %v4975
      %v5008 = vmul.f32 %v4832, %v4975
      %5009 = vset.pattern.permute.xlu0 2
      %5010 = vperm.xlu0 %5009, %v4436
      %v5011 = vpop.permute.xlu0 %5010
      %5013 = vset.pattern.permute.xlu0 2
      %5014 = vperm.xlu0 %5013, %v4440
      %v5015 = vpop.permute.xlu0 %5014
      %5017 = vset.pattern.permute.xlu0 2
      %5018 = vperm.xlu0 %5017, %v4444
      %v5019 = vpop.permute.xlu0 %5018
      %5021 = vset.pattern.permute.xlu0 2
      %5022 = vperm.xlu0 %5021, %v4448
      %v5023 = vpop.permute.xlu0 %5022
      %5025 = vset.pattern.permute.xlu0 2
      %5026 = vperm.xlu0 %5025, %v4452
      %v5027 = vpop.permute.xlu0 %5026
      %5029 = vset.pattern.permute.xlu0 2
      %5030 = vperm.xlu0 %5029, %v4456
      %v5031 = vpop.permute.xlu0 %5030
      %5033 = vset.pattern.permute.xlu0 2
      %5034 = vperm.xlu0 %5033, %v4460
      %v5035 = vpop.permute.xlu0 %5034
      %5037 = vset.pattern.permute.xlu0 2
      %5038 = vperm.xlu0 %5037, %v4464
      %v5039 = vpop.permute.xlu0 %5038
      %5041 = vset.pattern.permute.xlu0 2
      %5042 = vperm.xlu0 %5041, %v4468
      %v5043 = vpop.permute.xlu0 %5042
      %5045 = vset.pattern.permute.xlu0 2
      %5046 = vperm.xlu0 %5045, %v4472
      %v5047 = vpop.permute.xlu0 %5046
      %5049 = vset.pattern.permute.xlu0 2
      %5050 = vperm.xlu0 %5049, %v4476
      %v5051 = vpop.permute.xlu0 %5050
      %5053 = vset.pattern.permute.xlu0 2
      %5054 = vperm.xlu0 %5053, %v4480
      %v5055 = vpop.permute.xlu0 %5054
      %5057 = vset.pattern.permute.xlu0 2
      %5058 = vperm.xlu0 %5057, %v4484
      %v5059 = vpop.permute.xlu0 %5058
      %5061 = vset.pattern.permute.xlu0 2
      %5062 = vperm.xlu0 %5061, %v4488
      %v5063 = vpop.permute.xlu0 %5062
      %5065 = vset.pattern.permute.xlu0 2
      %5066 = vperm.xlu0 %5065, %v4492
      %v5067 = vpop.permute.xlu0 %5066
      %5069 = vset.pattern.permute.xlu0 2
      %5070 = vperm.xlu0 %5069, %v4496
      %v5071 = vpop.permute.xlu0 %5070
      %v5073 = vmul.f32 %v474, %v5011
      %v5074 = vmul.f32 %v475, %v5011
      %v5075 = vmul.f32 %v476, %v5015
      %v5076 = vmul.f32 %v477, %v5015
      %v5077 = vmul.f32 %v478, %v5019
      %v5078 = vmul.f32 %v479, %v5019
      %v5079 = vmul.f32 %v480, %v5023
      %v5080 = vmul.f32 %v481, %v5023
      %v5081 = vmul.f32 %v482, %v5027
      %v5082 = vmul.f32 %v483, %v5027
      %v5083 = vmul.f32 %v484, %v5031
      %v5084 = vmul.f32 %v485, %v5031
      %v5085 = vmul.f32 %v486, %v5035
      %v5086 = vmul.f32 %v487, %v5035
      %v5087 = vmul.f32 %v488, %v5039
      %v5088 = vmul.f32 %v489, %v5039
      %v5089 = vmul.f32 %v490, %v5043
      %v5090 = vmul.f32 %v491, %v5043
      %v5091 = vmul.f32 %v492, %v5047
      %v5092 = vmul.f32 %v493, %v5047
      %v5093 = vmul.f32 %v494, %v5051
      %v5094 = vmul.f32 %v495, %v5051
      %v5095 = vmul.f32 %v496, %v5055
      %v5096 = vmul.f32 %v497, %v5055
      %v5097 = vmul.f32 %v498, %v5059
      %v5098 = vmul.f32 %v499, %v5059
      %v5099 = vmul.f32 %v500, %v5063
      %v5100 = vmul.f32 %v501, %v5063
      %v5101 = vmul.f32 %v502, %v5067
      %v5102 = vmul.f32 %v503, %v5067
      %v5103 = vmul.f32 %v504, %v5071
      %v5104 = vmul.f32 %v505, %v5071
      %v5105 = vadd.f32 %v4977, %v5073
      %v5106 = vadd.f32 %v4978, %v5074
      %v5107 = vadd.f32 %v4979, %v5075
      %v5108 = vadd.f32 %v4980, %v5076
      %v5109 = vadd.f32 %v4981, %v5077
      %v5110 = vadd.f32 %v4982, %v5078
      %v5111 = vadd.f32 %v4983, %v5079
      %v5112 = vadd.f32 %v4984, %v5080
      %v5113 = vadd.f32 %v4985, %v5081
      %v5114 = vadd.f32 %v4986, %v5082
      %v5115 = vadd.f32 %v4987, %v5083
      %v5116 = vadd.f32 %v4988, %v5084
      %v5117 = vadd.f32 %v4989, %v5085
      %v5118 = vadd.f32 %v4990, %v5086
      %v5119 = vadd.f32 %v4991, %v5087
      %v5120 = vadd.f32 %v4992, %v5088
      %v5121 = vadd.f32 %v4993, %v5089
      %v5122 = vadd.f32 %v4994, %v5090
      %v5123 = vadd.f32 %v4995, %v5091
      %v5124 = vadd.f32 %v4996, %v5092
      %v5125 = vadd.f32 %v4997, %v5093
      %v5126 = vadd.f32 %v4998, %v5094
      %v5127 = vadd.f32 %v4999, %v5095
      %v5128 = vadd.f32 %v5000, %v5096
      %v5129 = vadd.f32 %v5001, %v5097
      %v5130 = vadd.f32 %v5002, %v5098
      %v5131 = vadd.f32 %v5003, %v5099
      %v5132 = vadd.f32 %v5004, %v5100
      %v5133 = vadd.f32 %v5005, %v5101
      %v5134 = vadd.f32 %v5006, %v5102
      %v5135 = vadd.f32 %v5007, %v5103
      %v5136 = vadd.f32 %v5008, %v5104
      %5137 = vst.msk [vmem:[%s452] sm:$0xff] %vm1324, %v5105
      %5138 = vst.msk [vmem:[%s452 + $0x8] sm:$0xff] %vm1324, %v5106
      %5139 = vst.msk [vmem:[%s452 + $0x10] sm:$0xff] %vm1324, %v5107
      %5140 = vst.msk [vmem:[%s452 + $0x18] sm:$0xff] %vm1324, %v5108
      %5141 = vst.msk [vmem:[%s452 + $0x20] sm:$0xff] %vm1324, %v5109
      %5142 = vst.msk [vmem:[%s452 + $0x28] sm:$0xff] %vm1324, %v5110
      %5143 = vst.msk [vmem:[%s452 + $0x30] sm:$0xff] %vm1324, %v5111
      %5144 = vst.msk [vmem:[%s452 + $0x38] sm:$0xff] %vm1324, %v5112
      %5145 = vst.msk [vmem:[%s452 + $0x40] sm:$0xff] %vm1324, %v5113
      %5146 = vst.msk [vmem:[%s452 + $0x48] sm:$0xff] %vm1324, %v5114
      %5147 = vst.msk [vmem:[%s452 + $0x50] sm:$0xff] %vm1324, %v5115
      %5148 = vst.msk [vmem:[%s452 + $0x58] sm:$0xff] %vm1324, %v5116
      %5149 = vst.msk [vmem:[%s452 + $0x60] sm:$0xff] %vm1324, %v5117
      %5150 = vst.msk [vmem:[%s452 + $0x68] sm:$0xff] %vm1324, %v5118
      %5151 = vst.msk [vmem:[%s452 + $0x70] sm:$0xff] %vm1324, %v5119
      %5152 = vst.msk [vmem:[%s452 + $0x78] sm:$0xff] %vm1324, %v5120
      %5153 = vst.msk [vmem:[%s452 + $0x80] sm:$0xff] %vm1324, %v5121
      %5154 = vst.msk [vmem:[%s452 + $0x88] sm:$0xff] %vm1324, %v5122
      %5155 = vst.msk [vmem:[%s452 + $0x90] sm:$0xff] %vm1324, %v5123
      %5156 = vst.msk [vmem:[%s452 + $0x98] sm:$0xff] %vm1324, %v5124
      %5157 = vst.msk [vmem:[%s452 + $0xa0] sm:$0xff] %vm1324, %v5125
      %5158 = vst.msk [vmem:[%s452 + $0xa8] sm:$0xff] %vm1324, %v5126
      %5159 = vst.msk [vmem:[%s452 + $0xb0] sm:$0xff] %vm1324, %v5127
      %5160 = vst.msk [vmem:[%s452 + $0xb8] sm:$0xff] %vm1324, %v5128
      %5161 = vst.msk [vmem:[%s452 + $0xc0] sm:$0xff] %vm1324, %v5129
      %5162 = vst.msk [vmem:[%s452 + $0xc8] sm:$0xff] %vm1324, %v5130
      %5163 = vst.msk [vmem:[%s452 + $0xd0] sm:$0xff] %vm1324, %v5131
      %5164 = vst.msk [vmem:[%s452 + $0xd8] sm:$0xff] %vm1324, %v5132
      %5165 = vst.msk [vmem:[%s452 + $0xe0] sm:$0xff] %vm1324, %v5133
      %5166 = vst.msk [vmem:[%s452 + $0xe8] sm:$0xff] %vm1324, %v5134
      %5167 = vst.msk [vmem:[%s452 + $0xf0] sm:$0xff] %vm1324, %v5135
      %5168 = vst.msk [vmem:[%s452 + $0xf8] sm:$0xff] %vm1324, %v5136
      %s5169 = smul.u32 16, %s24
      %p5170 = scmp.lt.s32.totalorder %s23, 1
      %s5171 = scalar_select %p5170, %s23, 1
      %p5172 = scmp.lt.s32.totalorder %s5169, 15
      %s5173 = scalar_select %p5172, %s5169, 15
      %s5174 = smul.addr %s5173, 2
      %s5175 = smul.addr %s5171, 32
      %s5176 = sadd.s32 %s5174, %s5175
      %s5177 = smul.addr %s5176, 8
      %s5178 = scalar_lea.vmem %s5, %s5177
      %s5179 = smul.u32 16, %s24
      %p5180 = scmp.lt.s32.totalorder %s23, 1
      %s5181 = scalar_select %p5180, %s23, 1
      %p5182 = scmp.lt.s32.totalorder %s5179, 15
      %s5183 = scalar_select %p5182, %s5179, 15
      %s5184 = smul.addr %s5183, 2
      %s5185 = smul.addr %s5181, 32
      %s5186 = sadd.s32 %s5184, %s5185
      %s5187 = smul.addr %s5186, 8
      %s5188 = scalar_lea.vmem %s6, %s5187
      %s5189 = smul.u32 16, %s24
      %p5190 = scmp.lt.s32.totalorder %s23, 1
      %s5191 = scalar_select %p5190, %s23, 1
      %p5192 = scmp.lt.s32.totalorder %s5189, 15
      %s5193 = scalar_select %p5192, %s5189, 15
      %s5194 = smul.addr %s5191, 16
      %s5195 = sadd.s32 %s5193, %s5194
      %s5196 = scalar_lea.vmem %s7, %s5195
      // Predicated region
      $region41: #{multishape_forward.2} parent=39 // pred_check
        %p5197 = pneg %p187
      $region42: #{multishape_forward.2} parent=39 // pred_check_branch
        %5199 = sbr.rel (%p5197) target = $region44
      $region43: #{multishape_forward.2} parent=39 // pred_region
        %s5200 = smul.u32 16, %s24
      $region44: #{multishape_forward.2} parent=39 // pred_fallthru
        _
      // Predicated region
      $region45: #{multishape_forward.2} parent=39 // pred_check
        %p5201 = pneg %p215
      $region46: #{multishape_forward.2} parent=39 // pred_check_branch
        %5203 = sbr.rel (%p5201) target = $region48
      $region47: #{multishape_forward.2} parent=39 // pred_region
        %s5204 = smul.u32 16, %s24
      $region48: #{multishape_forward.2} parent=39 // pred_fallthru
        _
      // Predicated region
      $region49: #{multishape_forward.2} parent=39 // pred_check
        %p5205 = pneg %p243
      $region50: #{multishape_forward.2} parent=39 // pred_check_branch
        %5207 = sbr.rel (%p5205) target = $region52
      $region51: #{multishape_forward.2} parent=39 // pred_region
        %s5208 = smul.u32 16, %s24
      $region52: #{multishape_forward.2} parent=39 // pred_fallthru
        _
    $region40: #{multishape_forward.2} parent=5 // pred_fallthru
      _
    %p5209 = scmp.le.s32.totalorder 2, %s14
    // Predicated region
    $region53: #{multishape_forward.2} parent=5 // pred_check
      %p5210 = pneg %p5209
    $region54: #{multishape_forward.2} parent=5 // pred_check_branch
      %5212 = sbr.rel (%p5210) target = $region56
    $region55: #{multishape_forward.2} parent=5 // pred_region
      %s5213 = ssub.s32 %s14, 2
      // Predicated region
      $region57: #{multishape_forward.2} parent=55 // pred_check
        %p5214 = pneg %p193
      $region58: #{multishape_forward.2} parent=55 // pred_check_branch
        %5216 = sbr.rel (%p5214) target = $region60
      $region59: #{multishape_forward.2} parent=55 // pred_region
        %s5217 = smul.u32 16, %s26
        %p5218 = scmp.lt.s32.totalorder %s25, 1
        %s5219 = scalar_select %p5218, %s25, 1
        %p5220 = scmp.lt.s32.totalorder %s5217, 15
        %s5221 = scalar_select %p5220, %s5217, 15
        %s5222 = smul.addr %s5221, 2
        %s5223 = smul.addr %s5219, 32
        %s5224 = sadd.s32 %s5222, %s5223
        %s5225 = smul.addr %s5224, 8
        %s5226 = scalar_lea.vmem %s5, %s5225
      $region60: #{multishape_forward.2} parent=55 // pred_fallthru
        _
      // Predicated region
      $region61: #{multishape_forward.2} parent=55 // pred_check
        %p5227 = pneg %p221
      $region62: #{multishape_forward.2} parent=55 // pred_check_branch
        %5229 = sbr.rel (%p5227) target = $region64
      $region63: #{multishape_forward.2} parent=55 // pred_region
        %s5230 = smul.u32 16, %s26
        %p5231 = scmp.lt.s32.totalorder %s25, 1
        %s5232 = scalar_select %p5231, %s25, 1
        %p5233 = scmp.lt.s32.totalorder %s5230, 15
        %s5234 = scalar_select %p5233, %s5230, 15
        %s5235 = smul.addr %s5234, 2
        %s5236 = smul.addr %s5232, 32
        %s5237 = sadd.s32 %s5235, %s5236
        %s5238 = smul.addr %s5237, 8
        %s5239 = scalar_lea.vmem %s6, %s5238
      $region64: #{multishape_forward.2} parent=55 // pred_fallthru
        _
      // Predicated region
      $region65: #{multishape_forward.2} parent=55 // pred_check
        %p5240 = pneg %p249
      $region66: #{multishape_forward.2} parent=55 // pred_check_branch
        %5242 = sbr.rel (%p5240) target = $region68
      $region67: #{multishape_forward.2} parent=55 // pred_region
        %s5243 = smul.u32 16, %s26
        %p5244 = scmp.lt.s32.totalorder %s25, 1
        %s5245 = scalar_select %p5244, %s25, 1
        %p5246 = scmp.lt.s32.totalorder %s5243, 15
        %s5247 = scalar_select %p5246, %s5243, 15
        %s5248 = smul.addr %s5245, 16
        %s5249 = sadd.s32 %s5247, %s5248
        %s5250 = scalar_lea.vmem %s7, %s5249
      $region68: #{multishape_forward.2} parent=55 // pred_fallthru
        _
    $region56: #{multishape_forward.2} parent=5 // pred_fallthru
      _
  $region6: #{multishape_forward.2} parent=0 // loop_footer
    %s18 = sadd.s32 1, %s14
  $region7: #{multishape_forward.2} parent=0 // loop_footer_branch
    %13 = sbr.rel target = $region3
  $region8: #{multishape_forward.2} parent=0 // loop_exit
    _

</llo_original>
